<compile_context>
chip_gen: v7x
topology: tpu7x:2x2x1
jax: 0.10.0
libtpu: 0.0.40
codegen_flags: <defaults>
</compile_context>

<pallas_src>
import numpy as np

import jax
import jax.numpy as jnp
from jax.experimental import pallas as pl
from jax.experimental.pallas import tpu as pltpu

# (input_spatial, cin, cout, has_bn) for the 4 discriminator blocks.
LAYERS = [(32, 1, 16, False), (16, 16, 32, True), (8, 32, 64, True), (4, 64, 128, True)]
NEG_SLOPE = 0.2
BN_EPS = 0.8  # nn.BatchNorm2d(out_filters, 0.8): 2nd positional arg is eps.

# Order of the constant (weights / gather tables) kernel arguments.
ARG_ORDER = (
    "s01", "s10", "s11", "w1", "b1",
    "g2", "w2", "b2", "sc2", "sh2",
    "g3", "w3", "b3", "sc3", "sh3",
    "g4", "w4", "b4", "sc4", "sh4",
    "wh", "bh",
)


# ----------------------------------------------------------------------------
# Host-side one-hot gather tables (built once; exact 0/1 matrices).
# ----------------------------------------------------------------------------
def _shift_matrix(t, dp, dq):
    """(t*t, t*t): out row (p, q) <- in row (p-dp, q-dq); zero row if OOB."""
    m = np.zeros((t * t, t * t), np.float32)
    for p in range(t):
        for q in range(t):
            sp, sq = p - dp, q - dq
            if sp >= 0 and sq >= 0:
                m[p * t + q, sp * t + sq] = 1.0
    return m


def _tap_gather(s):
    """(9, (s//2)**2, s*s): one-hot gathers for a 3x3 / stride-2 / pad-1 conv.

    Tap k = di*3 + dj maps output pixel (oh, ow) to input row
    (2*oh + di - 1) * s + (2*ow + dj - 1); zero row when out of bounds (= pad).
    """
    t = s // 2
    g = np.zeros((9, t * t, s * s), np.float32)
    for di in range(3):
        for dj in range(3):
            k = di * 3 + dj
            for oh in range(t):
                for ow in range(t):
                    ih, iw = 2 * oh + di - 1, 2 * ow + dj - 1
                    if 0 <= ih < s and 0 <= iw < s:
                        g[k, oh * t + ow, ih * s + iw] = 1.0
    return g


# ----------------------------------------------------------------------------
# The fused kernel: one image per grid step, everything stays in VMEM.
# ----------------------------------------------------------------------------
def dnet_kernel(x_ref,                                   # (256, 4) f32 s2d image
                s01_ref, s10_ref, s11_ref,               # (256, 256) f32 shifts
                w1_ref, b1_ref,                          # (9,1,16) f32, (1,16) f32
                g2_ref, w2_ref, b2_ref, sc2_ref, sh2_ref,
                g3_ref, w3_ref, b3_ref, sc3_ref, sh3_ref,
                g4_ref, w4_ref, b4_ref, sc4_ref, sh4_ref,
                wh_ref, bh_ref,                          # (4,128) f32, (1,1) f32
                o_ref):                                  # (1,1) f32
    f32, bf16 = jnp.float32, jnp.bfloat16

    # ---- block 1: Conv(1->16, 3x3, s2, p1) + bias + LeakyReLU (no BN) -------
    # Input is space-to-depth: row p*16+q, lane a*2+b == img[2p+a, 2q+b].
    # The three one-hot shift matmuls (exact gathers) give the spatially
    # shifted copies needed for the 9 taps; Cin == 1 so the weight application
    # is a cheap VPU broadcast-multiply-accumulate (no K=1 MXU matmuls).
    x0 = x_ref[...]                                                   # (256, 4)
    shifted = {
        (0, 0): x0,
        (0, 1): jnp.dot(s01_ref[...], x0, preferred_element_type=f32),
        (1, 0): jnp.dot(s10_ref[...], x0, preferred_element_type=f32),
        (1, 1): jnp.dot(s11_ref[...], x0, preferred_element_type=f32),
    }
    acc = jnp.zeros((256, 16), f32)
    for di in range(3):
        for dj in range(3):
            t = di * 3 + dj
            lane = (0 if di == 1 else 2) + (0 if dj == 1 else 1)
            tap = shifted[(int(di == 0), int(dj == 0))][:, lane:lane + 1]  # (256,1)
            acc = acc + tap * w1_ref[t]                                    # (256,16)
    y = acc + b1_ref[...]
    y = jnp.where(y > 0, y, NEG_SLOPE * y)
    # Dropout2d(0.25) is identity in eval mode.

    # ---- blocks 2..4: gather-matmul conv + bias + LeakyReLU + BN affine -----
    for g_ref, w_ref, b_ref, sc_ref, sh_ref in (
            (g2_ref, w2_ref, b2_ref, sc2_ref, sh2_ref),
            (g3_ref, w3_ref, b3_ref, sc3_ref, sh3_ref),
            (g4_ref, w4_ref, b4_ref, sc4_ref, sh4_ref)):
        xb = y.astype(bf16)                       # bf16 operands, f32 accumulate
        m_out = g_ref.shape[1]
        cout = w_ref.shape[2]
        acc = jnp.zeros((m_out, cout), f32)
        for t in range(9):
            # One-hot gather of this tap's rows (exact selection of bf16 vals).
            tap = jnp.dot(g_ref[t], xb, preferred_element_type=f32).astype(bf16)
            acc = acc + jnp.dot(tap, w_ref[t], preferred_element_type=f32)
        y = acc + b_ref[...]                      # conv bias (before LeakyReLU)
        y = jnp.where(y > 0, y, NEG_SLOPE * y)    # LeakyReLU(0.2)
        # Dropout2d(0.25): identity in eval mode.
        y = y * sc_ref[...] + sh_ref[...]         # folded BatchNorm2d (running stats)

    # ---- head: NCHW flatten folded into wh; Linear(512 -> 1) + Sigmoid ------
    z = y * wh_ref[...]                           # (4, 128) elementwise
    s = jnp.sum(z, axis=1, keepdims=True)         # lane reduce   -> (4, 1)
    s = jnp.sum(s, axis=0, keepdims=True)         # sublane reduce-> (1, 1)
    logit = s + bh_ref[...]
    # sigmoid = 1 / (1 + exp(-x)): exp on EUP, approx reciprocal on EUP.
    o_ref[...] = pl.reciprocal(1.0 + jnp.exp(-logit), approx=True)


def _full_spec(arr):
    """Whole-array block whose index never changes -> DMA'd once, stays in VMEM."""
    zeros = (0,) * arr.ndim
    return pl.BlockSpec(arr.shape, lambda i, _z=zeros: _z)


@jax.jit
def dnet_forward(img_nchw, packed):
    """img_nchw: (N, 1, 32, 32) float32 -> validity (N, 1)."""
    n = img_nchw.shape[0]
    assert img_nchw.shape[1:] == (1, 32, 32)

    # 2x2 space-to-depth (pure layout, no amplification): (N, 256, 4) where
    # row p*16+q, lane a*2+b == img[n, 0, 2p+a, 2q+b].
    x = img_nchw[:, 0, :, :]
    x = x.reshape(n, 16, 2, 16, 2).transpose(0, 1, 3, 2, 4).reshape(n, 256, 4)

    const_args = [packed[k] for k in ARG_ORDER]
    in_specs = [pl.BlockSpec((None, 256, 4), lambda i: (i, 0, 0))]
    in_specs += [_full_spec(a) for a in const_args]

    out = pl.pallas_call(
        dnet_kernel,
        grid=(n,),
        in_specs=in_specs,
        out_specs=pl.BlockSpec((None, 1, 1), lambda i: (i, 0, 0)),
        out_shape=jax.ShapeDtypeStruct((n, 1, 1), jnp.float32),
        compiler_params=pltpu.CompilerParams(
            dimension_semantics=("parallel",)),   # v7x: batch split over 2 TCs
    )(x, *const_args)
    return out.reshape(n, 1)


# ----------------------------------------------------------------------------
# Parameters: PyTorch-layout init (synthetic, deterministic) + kernel packing.
# ----------------------------------------------------------------------------
def init_params(key):
    """Torch-layout parameters (used by the pure-JAX reference)."""
    params = {"blocks": []}
    for (_, cin, cout, bn) in LAYERS:
        key, kw, kb, kg, kbe = jax.random.split(key, 5)
        blk = {
            "w": 0.1 * jax.random.normal(kw, (cout, cin, 3, 3), jnp.float32),
            "b": 0.1 * jax.random.normal(kb, (cout,), jnp.float32),
            "bn": bn,
        }
        if bn:
            blk["gamma"] = 1.0 + 0.1 * jax.random.normal(kg, (cout,), jnp.float32)
            blk["beta"] = 0.1 * jax.random.normal(kbe, (cout,), jnp.float32)
            blk["running_mean"] = jnp.zeros((cout,), jnp.float32)
            blk["running_var"] = jnp.ones((cout,), jnp.float32)
        params["blocks"].append(blk)
    key, kw, kb = jax.random.split(key, 3)
    params["head_w"] = 0.1 * jax.random.normal(kw, (1, 512), jnp.float32)  # (out, in)
    params["head_b"] = 0.1 * jax.random.normal(kb, (1,), jnp.float32)
    return params


def pack_params(p):
    """Kernel-layout constants: per-tap weights (bf16 for the MXU-heavy blocks),
    folded BN affine, one-hot gather tables, flatten-folded head weights."""
    packed = {}

    def taps(w, cin, cout, dtype):
        # (cout, cin, 3, 3) -> (kh, kw, cin, cout) -> (9, cin, cout), k = kh*3+kw
        return jnp.transpose(w, (2, 3, 1, 0)).reshape(9, cin, cout).astype(dtype)

    # Block 1 (Cin=1): exact f32 gathers of the raw input + VPU weight apply.
    blk = p["blocks"][0]
    packed["w1"] = taps(blk["w"], 1, 16, jnp.float32)
    packed["b1"] = blk["b"].reshape(1, 16).astype(jnp.float32)
    packed["s01"] = jnp.asarray(_shift_matrix(16, 0, 1), jnp.float32)
    packed["s10"] = jnp.asarray(_shift_matrix(16, 1, 0), jnp.float32)
    packed["s11"] = jnp.asarray(_shift_matrix(16, 1, 1), jnp.float32)

    # Blocks 2..4: bf16 gather tables + bf16 conv weights, f32 epilogue params.
    for i, (s, cin, cout, _) in enumerate(LAYERS[1:], start=2):
        blk = p["blocks"][i - 1]
        packed[f"g{i}"] = jnp.asarray(_tap_gather(s), jnp.bfloat16)   # 0/1 exact
        packed[f"w{i}"] = taps(blk["w"], cin, cout, jnp.bfloat16)
        packed[f"b{i}"] = blk["b"].reshape(1, cout).astype(jnp.float32)
        scale = blk["gamma"] / jnp.sqrt(blk["running_var"] + BN_EPS)
        shift = blk["beta"] - blk["running_mean"] * scale
        packed[f"sc{i}"] = scale.reshape(1, cout).astype(jnp.float32)
        packed[f"sh{i}"] = shift.reshape(1, cout).astype(jnp.float32)

    # Head: flat index = c*4 + (oh*2 + ow)  ->  Wh[s, c] = head_w[0, c*4 + s].
    packed["wh"] = p["head_w"][0].reshape(128, 4).T.astype(jnp.float32)  # (4,128)
    packed["bh"] = p["head_b"].reshape(1, 1).astype(jnp.float32)
    return packed


# ----------------------------------------------------------------------------
# Pure-JAX reference (inference-mode semantics of the PyTorch module).
# ----------------------------------------------------------------------------
def dnet_reference(img, p):
    x = img
    for blk in p["blocks"]:
        x = jax.lax.conv_general_dilated(
            x, blk["w"], window_strides=(2, 2), padding=((1, 1), (1, 1)),
            dimension_numbers=("NCHW", "OIHW", "NCHW"),
            precision=jax.lax.Precision.HIGHEST)
        x = x + blk["b"].reshape(1, -1, 1, 1)
        x = jnp.where(x > 0, x, NEG_SLOPE * x)
        if blk["bn"]:
            scale = blk["gamma"] / jnp.sqrt(blk["running_var"] + BN_EPS)
            shift = blk["beta"] - blk["running_mean"] * scale
            x = x * scale.reshape(1, -1, 1, 1) + shift.reshape(1, -1, 1, 1)
    flat = x.reshape(x.shape[0], -1)
    logit = flat @ p["head_w"].T + p["head_b"]
    return jax.nn.sigmoid(logit)


if __name__ == "__main__":
    key = jax.random.PRNGKey(0)
    key, kimg = jax.random.split(key)
    # DNet's forward implies 32x32 single-channel images (ds_size = 32 // 2**4 = 2).
    img = jax.random.normal(kimg, (4, 1, 32, 32), jnp.float32)

    tparams = init_params(key)        # torch-layout params (reference)
    packed = pack_params(tparams)     # kernel-layout constants

    validity = dnet_forward(img, packed)
    jax.block_until_ready(validity)

    ref = dnet_reference(img, tparams)
    assert validity.shape == (4, 1)
    err = float(jnp.max(jnp.abs(validity - ref)))
    assert err < 1e-2, f"kernel/reference mismatch: {err}"
    assert bool(jnp.all((validity > -1e-3) & (validity < 1.0 + 1e-3)))
    print("KERNEL_OK")
</pallas_src>

<mosaic_0001>
module attributes {stable_mosaic.version = 11 : i64} {
  func.func @dnet_kernel(%arg0: i32, %arg1: memref<1x256x4xf32, #tpu.memory_space<vmem>>, %arg2: memref<256x256xf32, #tpu.memory_space<vmem>>, %arg3: memref<256x256xf32, #tpu.memory_space<vmem>>, %arg4: memref<256x256xf32, #tpu.memory_space<vmem>>, %arg5: memref<9x1x16xf32, #tpu.memory_space<vmem>>, %arg6: memref<1x16xf32, #tpu.memory_space<vmem>>, %arg7: memref<9x64x256xbf16, #tpu.memory_space<vmem>>, %arg8: memref<9x16x32xbf16, #tpu.memory_space<vmem>>, %arg9: memref<1x32xf32, #tpu.memory_space<vmem>>, %arg10: memref<1x32xf32, #tpu.memory_space<vmem>>, %arg11: memref<1x32xf32, #tpu.memory_space<vmem>>, %arg12: memref<9x16x64xbf16, #tpu.memory_space<vmem>>, %arg13: memref<9x32x64xbf16, #tpu.memory_space<vmem>>, %arg14: memref<1x64xf32, #tpu.memory_space<vmem>>, %arg15: memref<1x64xf32, #tpu.memory_space<vmem>>, %arg16: memref<1x64xf32, #tpu.memory_space<vmem>>, %arg17: memref<9x4x16xbf16, #tpu.memory_space<vmem>>, %arg18: memref<9x64x128xbf16, #tpu.memory_space<vmem>>, %arg19: memref<1x128xf32, #tpu.memory_space<vmem>>, %arg20: memref<1x128xf32, #tpu.memory_space<vmem>>, %arg21: memref<1x128xf32, #tpu.memory_space<vmem>>, %arg22: memref<4x128xf32, #tpu.memory_space<vmem>>, %arg23: memref<1x1xf32, #tpu.memory_space<vmem>>, %arg24: memref<1x1x1xf32, #tpu.memory_space<vmem>>) attributes {dimension_semantics = [#tpu.dimension_semantics<parallel>], iteration_bounds = array<i64: 4>, scalar_prefetch = 0 : i64, scratch_operands = 0 : i64, tpu.core_type = #tpu.core_type<tc>, window_params = [{transform_indices = @transform_0, window_bounds = array<i64: 1, 256, 4>}, {pipeline_mode = #tpu.pipeline_mode<synchronous>, transform_indices = @transform_1, window_bounds = array<i64: 256, 256>}, {pipeline_mode = #tpu.pipeline_mode<synchronous>, transform_indices = @transform_2, window_bounds = array<i64: 256, 256>}, {pipeline_mode = #tpu.pipeline_mode<synchronous>, transform_indices = @transform_3, window_bounds = array<i64: 256, 256>}, {pipeline_mode = #tpu.pipeline_mode<synchronous>, transform_indices = @transform_4, window_bounds = array<i64: 9, 1, 16>}, {pipeline_mode = #tpu.pipeline_mode<synchronous>, transform_indices = @transform_5, window_bounds = array<i64: 1, 16>}, {pipeline_mode = #tpu.pipeline_mode<synchronous>, transform_indices = @transform_6, window_bounds = array<i64: 9, 64, 256>}, {pipeline_mode = #tpu.pipeline_mode<synchronous>, transform_indices = @transform_7, window_bounds = array<i64: 9, 16, 32>}, {pipeline_mode = #tpu.pipeline_mode<synchronous>, transform_indices = @transform_8, window_bounds = array<i64: 1, 32>}, {pipeline_mode = #tpu.pipeline_mode<synchronous>, transform_indices = @transform_9, window_bounds = array<i64: 1, 32>}, {pipeline_mode = #tpu.pipeline_mode<synchronous>, transform_indices = @transform_10, window_bounds = array<i64: 1, 32>}, {pipeline_mode = #tpu.pipeline_mode<synchronous>, transform_indices = @transform_11, window_bounds = array<i64: 9, 16, 64>}, {pipeline_mode = #tpu.pipeline_mode<synchronous>, transform_indices = @transform_12, window_bounds = array<i64: 9, 32, 64>}, {pipeline_mode = #tpu.pipeline_mode<synchronous>, transform_indices = @transform_13, window_bounds = array<i64: 1, 64>}, {pipeline_mode = #tpu.pipeline_mode<synchronous>, transform_indices = @transform_14, window_bounds = array<i64: 1, 64>}, {pipeline_mode = #tpu.pipeline_mode<synchronous>, transform_indices = @transform_15, window_bounds = array<i64: 1, 64>}, {pipeline_mode = #tpu.pipeline_mode<synchronous>, transform_indices = @transform_16, window_bounds = array<i64: 9, 4, 16>}, {pipeline_mode = #tpu.pipeline_mode<synchronous>, transform_indices = @transform_17, window_bounds = array<i64: 9, 64, 128>}, {pipeline_mode = #tpu.pipeline_mode<synchronous>, transform_indices = @transform_18, window_bounds = array<i64: 1, 128>}, {pipeline_mode = #tpu.pipeline_mode<synchronous>, transform_indices = @transform_19, window_bounds = array<i64: 1, 128>}, {pipeline_mode = #tpu.pipeline_mode<synchronous>, transform_indices = @transform_20, window_bounds = array<i64: 1, 128>}, {pipeline_mode = #tpu.pipeline_mode<synchronous>, transform_indices = @transform_21, window_bounds = array<i64: 4, 128>}, {pipeline_mode = #tpu.pipeline_mode<synchronous>, transform_indices = @transform_22, window_bounds = array<i64: 1, 1>}, {transform_indices = @transform_23, window_bounds = array<i64: 1, 1, 1>}]} {
    %c0 = arith.constant 0 : index
    %c0_0 = arith.constant 0 : index
    %c0_1 = arith.constant 0 : index
    %0 = vector.load %arg1[%c0, %c0_0, %c0_1] : memref<1x256x4xf32, #tpu.memory_space<vmem>>, vector<1x256x4xf32>
    %1 = vector.shape_cast %0 : vector<1x256x4xf32> to vector<256x4xf32>
    %c0_2 = arith.constant 0 : index
    %c0_3 = arith.constant 0 : index
    %2 = vector.load %arg2[%c0_2, %c0_3] : memref<256x256xf32, #tpu.memory_space<vmem>>, vector<256x256xf32>
    %cst = arith.constant dense<0.000000e+00> : vector<256x4xf32>
    %3 = tpu.matmul %2, %1, %cst {dimension_numbers = #tpu.dot_dimension_numbers<[1], [0], [0], [1], [0, 0, 1, 1], [], []>} : vector<256x256xf32>, vector<256x4xf32>, vector<256x4xf32> -> vector<256x4xf32>
    %c0_4 = arith.constant 0 : index
    %c0_5 = arith.constant 0 : index
    %4 = vector.load %arg3[%c0_4, %c0_5] : memref<256x256xf32, #tpu.memory_space<vmem>>, vector<256x256xf32>
    %cst_6 = arith.constant dense<0.000000e+00> : vector<256x4xf32>
    %5 = tpu.matmul %4, %1, %cst_6 {dimension_numbers = #tpu.dot_dimension_numbers<[1], [0], [0], [1], [0, 0, 1, 1], [], []>} : vector<256x256xf32>, vector<256x4xf32>, vector<256x4xf32> -> vector<256x4xf32>
    %c0_7 = arith.constant 0 : index
    %c0_8 = arith.constant 0 : index
    %6 = vector.load %arg4[%c0_7, %c0_8] : memref<256x256xf32, #tpu.memory_space<vmem>>, vector<256x256xf32>
    %cst_9 = arith.constant dense<0.000000e+00> : vector<256x4xf32>
    %7 = tpu.matmul %6, %1, %cst_9 {dimension_numbers = #tpu.dot_dimension_numbers<[1], [0], [0], [1], [0, 0, 1, 1], [], []>} : vector<256x256xf32>, vector<256x4xf32>, vector<256x4xf32> -> vector<256x4xf32>
    %cst_10 = arith.constant 0.000000e+00 : f32
    %8 = vector.broadcast %cst_10 : f32 to vector<256x16xf32>
    %9 = vector.extract_strided_slice %7 {offsets = [0, 3], sizes = [256, 1], strides = [1, 1]} : vector<256x4xf32> to vector<256x1xf32>
    %c0_11 = arith.constant 0 : index
    %c0_12 = arith.constant 0 : index
    %c0_13 = arith.constant 0 : index
    %10 = vector.load %arg5[%c0_11, %c0_12, %c0_13] : memref<9x1x16xf32, #tpu.memory_space<vmem>>, vector<1x1x16xf32>
    %11 = vector.shape_cast %10 : vector<1x1x16xf32> to vector<1x16xf32>
    %12 = vector.broadcast %9 : vector<256x1xf32> to vector<256x16xf32>
    %13 = vector.broadcast %11 : vector<1x16xf32> to vector<256x16xf32>
    %14 = arith.mulf %12, %13 : vector<256x16xf32>
    %15 = arith.addf %8, %14 : vector<256x16xf32>
    %16 = vector.extract_strided_slice %5 {offsets = [0, 2], sizes = [256, 1], strides = [1, 1]} : vector<256x4xf32> to vector<256x1xf32>
    %c1 = arith.constant 1 : index
    %c0_14 = arith.constant 0 : index
    %c0_15 = arith.constant 0 : index
    %17 = vector.load %arg5[%c1, %c0_14, %c0_15] : memref<9x1x16xf32, #tpu.memory_space<vmem>>, vector<1x1x16xf32>
    %18 = vector.shape_cast %17 : vector<1x1x16xf32> to vector<1x16xf32>
    %19 = vector.broadcast %16 : vector<256x1xf32> to vector<256x16xf32>
    %20 = vector.broadcast %18 : vector<1x16xf32> to vector<256x16xf32>
    %21 = arith.mulf %19, %20 : vector<256x16xf32>
    %22 = arith.addf %15, %21 : vector<256x16xf32>
    %23 = vector.extract_strided_slice %5 {offsets = [0, 3], sizes = [256, 1], strides = [1, 1]} : vector<256x4xf32> to vector<256x1xf32>
    %c2 = arith.constant 2 : index
    %c0_16 = arith.constant 0 : index
    %c0_17 = arith.constant 0 : index
    %24 = vector.load %arg5[%c2, %c0_16, %c0_17] : memref<9x1x16xf32, #tpu.memory_space<vmem>>, vector<1x1x16xf32>
    %25 = vector.shape_cast %24 : vector<1x1x16xf32> to vector<1x16xf32>
    %26 = vector.broadcast %23 : vector<256x1xf32> to vector<256x16xf32>
    %27 = vector.broadcast %25 : vector<1x16xf32> to vector<256x16xf32>
    %28 = arith.mulf %26, %27 : vector<256x16xf32>
    %29 = arith.addf %22, %28 : vector<256x16xf32>
    %30 = vector.extract_strided_slice %3 {offsets = [0, 1], sizes = [256, 1], strides = [1, 1]} : vector<256x4xf32> to vector<256x1xf32>
    %c3 = arith.constant 3 : index
    %c0_18 = arith.constant 0 : index
    %c0_19 = arith.constant 0 : index
    %31 = vector.load %arg5[%c3, %c0_18, %c0_19] : memref<9x1x16xf32, #tpu.memory_space<vmem>>, vector<1x1x16xf32>
    %32 = vector.shape_cast %31 : vector<1x1x16xf32> to vector<1x16xf32>
    %33 = vector.broadcast %30 : vector<256x1xf32> to vector<256x16xf32>
    %34 = vector.broadcast %32 : vector<1x16xf32> to vector<256x16xf32>
    %35 = arith.mulf %33, %34 : vector<256x16xf32>
    %36 = arith.addf %29, %35 : vector<256x16xf32>
    %37 = vector.extract_strided_slice %1 {offsets = [0, 0], sizes = [256, 1], strides = [1, 1]} : vector<256x4xf32> to vector<256x1xf32>
    %c4 = arith.constant 4 : index
    %c0_20 = arith.constant 0 : index
    %c0_21 = arith.constant 0 : index
    %38 = vector.load %arg5[%c4, %c0_20, %c0_21] : memref<9x1x16xf32, #tpu.memory_space<vmem>>, vector<1x1x16xf32>
    %39 = vector.shape_cast %38 : vector<1x1x16xf32> to vector<1x16xf32>
    %40 = vector.broadcast %37 : vector<256x1xf32> to vector<256x16xf32>
    %41 = vector.broadcast %39 : vector<1x16xf32> to vector<256x16xf32>
    %42 = arith.mulf %40, %41 : vector<256x16xf32>
    %43 = arith.addf %36, %42 : vector<256x16xf32>
    %44 = vector.extract_strided_slice %1 {offsets = [0, 1], sizes = [256, 1], strides = [1, 1]} : vector<256x4xf32> to vector<256x1xf32>
    %c5 = arith.constant 5 : index
    %c0_22 = arith.constant 0 : index
    %c0_23 = arith.constant 0 : index
    %45 = vector.load %arg5[%c5, %c0_22, %c0_23] : memref<9x1x16xf32, #tpu.memory_space<vmem>>, vector<1x1x16xf32>
    %46 = vector.shape_cast %45 : vector<1x1x16xf32> to vector<1x16xf32>
    %47 = vector.broadcast %44 : vector<256x1xf32> to vector<256x16xf32>
    %48 = vector.broadcast %46 : vector<1x16xf32> to vector<256x16xf32>
    %49 = arith.mulf %47, %48 : vector<256x16xf32>
    %50 = arith.addf %43, %49 : vector<256x16xf32>
    %51 = vector.extract_strided_slice %3 {offsets = [0, 3], sizes = [256, 1], strides = [1, 1]} : vector<256x4xf32> to vector<256x1xf32>
    %c6 = arith.constant 6 : index
    %c0_24 = arith.constant 0 : index
    %c0_25 = arith.constant 0 : index
    %52 = vector.load %arg5[%c6, %c0_24, %c0_25] : memref<9x1x16xf32, #tpu.memory_space<vmem>>, vector<1x1x16xf32>
    %53 = vector.shape_cast %52 : vector<1x1x16xf32> to vector<1x16xf32>
    %54 = vector.broadcast %51 : vector<256x1xf32> to vector<256x16xf32>
    %55 = vector.broadcast %53 : vector<1x16xf32> to vector<256x16xf32>
    %56 = arith.mulf %54, %55 : vector<256x16xf32>
    %57 = arith.addf %50, %56 : vector<256x16xf32>
    %58 = vector.extract_strided_slice %1 {offsets = [0, 2], sizes = [256, 1], strides = [1, 1]} : vector<256x4xf32> to vector<256x1xf32>
    %c7 = arith.constant 7 : index
    %c0_26 = arith.constant 0 : index
    %c0_27 = arith.constant 0 : index
    %59 = vector.load %arg5[%c7, %c0_26, %c0_27] : memref<9x1x16xf32, #tpu.memory_space<vmem>>, vector<1x1x16xf32>
    %60 = vector.shape_cast %59 : vector<1x1x16xf32> to vector<1x16xf32>
    %61 = vector.broadcast %58 : vector<256x1xf32> to vector<256x16xf32>
    %62 = vector.broadcast %60 : vector<1x16xf32> to vector<256x16xf32>
    %63 = arith.mulf %61, %62 : vector<256x16xf32>
    %64 = arith.addf %57, %63 : vector<256x16xf32>
    %65 = vector.extract_strided_slice %1 {offsets = [0, 3], sizes = [256, 1], strides = [1, 1]} : vector<256x4xf32> to vector<256x1xf32>
    %c8 = arith.constant 8 : index
    %c0_28 = arith.constant 0 : index
    %c0_29 = arith.constant 0 : index
    %66 = vector.load %arg5[%c8, %c0_28, %c0_29] : memref<9x1x16xf32, #tpu.memory_space<vmem>>, vector<1x1x16xf32>
    %67 = vector.shape_cast %66 : vector<1x1x16xf32> to vector<1x16xf32>
    %68 = vector.broadcast %65 : vector<256x1xf32> to vector<256x16xf32>
    %69 = vector.broadcast %67 : vector<1x16xf32> to vector<256x16xf32>
    %70 = arith.mulf %68, %69 : vector<256x16xf32>
    %71 = arith.addf %64, %70 : vector<256x16xf32>
    %c0_30 = arith.constant 0 : index
    %c0_31 = arith.constant 0 : index
    %72 = vector.load %arg6[%c0_30, %c0_31] : memref<1x16xf32, #tpu.memory_space<vmem>>, vector<1x16xf32>
    %73 = vector.broadcast %72 : vector<1x16xf32> to vector<256x16xf32>
    %74 = arith.addf %71, %73 : vector<256x16xf32>
    %cst_32 = arith.constant 0.000000e+00 : f32
    %75 = vector.broadcast %cst_32 : f32 to vector<256x16xf32>
    %76 = arith.cmpf ogt, %74, %75 : vector<256x16xf32>
    %cst_33 = arith.constant 2.000000e-01 : f32
    %77 = vector.broadcast %cst_33 : f32 to vector<256x16xf32>
    %78 = arith.mulf %77, %74 : vector<256x16xf32>
    %79 = arith.select %76, %74, %78 : vector<256x16xi1>, vector<256x16xf32>
    %80 = arith.truncf %79 : vector<256x16xf32> to vector<256x16xbf16>
    %cst_34 = arith.constant 0.000000e+00 : f32
    %81 = vector.broadcast %cst_34 : f32 to vector<64x32xf32>
    %c0_35 = arith.constant 0 : index
    %c0_36 = arith.constant 0 : index
    %c0_37 = arith.constant 0 : index
    %82 = vector.load %arg7[%c0_35, %c0_36, %c0_37] : memref<9x64x256xbf16, #tpu.memory_space<vmem>>, vector<1x64x256xbf16>
    %83 = vector.shape_cast %82 : vector<1x64x256xbf16> to vector<64x256xbf16>
    %cst_38 = arith.constant dense<0.000000e+00> : vector<64x16xf32>
    %84 = tpu.matmul %83, %80, %cst_38 {dimension_numbers = #tpu.dot_dimension_numbers<[1], [0], [0], [1], [0, 0, 1, 1], [], []>} : vector<64x256xbf16>, vector<256x16xbf16>, vector<64x16xf32> -> vector<64x16xf32>
    %85 = arith.truncf %84 : vector<64x16xf32> to vector<64x16xbf16>
    %c0_39 = arith.constant 0 : index
    %c0_40 = arith.constant 0 : index
    %c0_41 = arith.constant 0 : index
    %86 = vector.load %arg8[%c0_39, %c0_40, %c0_41] : memref<9x16x32xbf16, #tpu.memory_space<vmem>>, vector<1x16x32xbf16>
    %87 = vector.shape_cast %86 : vector<1x16x32xbf16> to vector<16x32xbf16>
    %cst_42 = arith.constant dense<0.000000e+00> : vector<64x32xf32>
    %88 = tpu.matmul %85, %87, %cst_42 {dimension_numbers = #tpu.dot_dimension_numbers<[1], [0], [0], [1], [0, 0, 1, 1], [], []>} : vector<64x16xbf16>, vector<16x32xbf16>, vector<64x32xf32> -> vector<64x32xf32>
    %89 = arith.addf %81, %88 : vector<64x32xf32>
    %c1_43 = arith.constant 1 : index
    %c0_44 = arith.constant 0 : index
    %c0_45 = arith.constant 0 : index
    %90 = vector.load %arg7[%c1_43, %c0_44, %c0_45] : memref<9x64x256xbf16, #tpu.memory_space<vmem>>, vector<1x64x256xbf16>
    %91 = vector.shape_cast %90 : vector<1x64x256xbf16> to vector<64x256xbf16>
    %cst_46 = arith.constant dense<0.000000e+00> : vector<64x16xf32>
    %92 = tpu.matmul %91, %80, %cst_46 {dimension_numbers = #tpu.dot_dimension_numbers<[1], [0], [0], [1], [0, 0, 1, 1], [], []>} : vector<64x256xbf16>, vector<256x16xbf16>, vector<64x16xf32> -> vector<64x16xf32>
    %93 = arith.truncf %92 : vector<64x16xf32> to vector<64x16xbf16>
    %c1_47 = arith.constant 1 : index
    %c0_48 = arith.constant 0 : index
    %c0_49 = arith.constant 0 : index
    %94 = vector.load %arg8[%c1_47, %c0_48, %c0_49] : memref<9x16x32xbf16, #tpu.memory_space<vmem>>, vector<1x16x32xbf16>
    %95 = vector.shape_cast %94 : vector<1x16x32xbf16> to vector<16x32xbf16>
    %cst_50 = arith.constant dense<0.000000e+00> : vector<64x32xf32>
    %96 = tpu.matmul %93, %95, %cst_50 {dimension_numbers = #tpu.dot_dimension_numbers<[1], [0], [0], [1], [0, 0, 1, 1], [], []>} : vector<64x16xbf16>, vector<16x32xbf16>, vector<64x32xf32> -> vector<64x32xf32>
    %97 = arith.addf %89, %96 : vector<64x32xf32>
    %c2_51 = arith.constant 2 : index
    %c0_52 = arith.constant 0 : index
    %c0_53 = arith.constant 0 : index
    %98 = vector.load %arg7[%c2_51, %c0_52, %c0_53] : memref<9x64x256xbf16, #tpu.memory_space<vmem>>, vector<1x64x256xbf16>
    %99 = vector.shape_cast %98 : vector<1x64x256xbf16> to vector<64x256xbf16>
    %cst_54 = arith.constant dense<0.000000e+00> : vector<64x16xf32>
    %100 = tpu.matmul %99, %80, %cst_54 {dimension_numbers = #tpu.dot_dimension_numbers<[1], [0], [0], [1], [0, 0, 1, 1], [], []>} : vector<64x256xbf16>, vector<256x16xbf16>, vector<64x16xf32> -> vector<64x16xf32>
    %101 = arith.truncf %100 : vector<64x16xf32> to vector<64x16xbf16>
    %c2_55 = arith.constant 2 : index
    %c0_56 = arith.constant 0 : index
    %c0_57 = arith.constant 0 : index
    %102 = vector.load %arg8[%c2_55, %c0_56, %c0_57] : memref<9x16x32xbf16, #tpu.memory_space<vmem>>, vector<1x16x32xbf16>
    %103 = vector.shape_cast %102 : vector<1x16x32xbf16> to vector<16x32xbf16>
    %cst_58 = arith.constant dense<0.000000e+00> : vector<64x32xf32>
    %104 = tpu.matmul %101, %103, %cst_58 {dimension_numbers = #tpu.dot_dimension_numbers<[1], [0], [0], [1], [0, 0, 1, 1], [], []>} : vector<64x16xbf16>, vector<16x32xbf16>, vector<64x32xf32> -> vector<64x32xf32>
    %105 = arith.addf %97, %104 : vector<64x32xf32>
    %c3_59 = arith.constant 3 : index
    %c0_60 = arith.constant 0 : index
    %c0_61 = arith.constant 0 : index
    %106 = vector.load %arg7[%c3_59, %c0_60, %c0_61] : memref<9x64x256xbf16, #tpu.memory_space<vmem>>, vector<1x64x256xbf16>
    %107 = vector.shape_cast %106 : vector<1x64x256xbf16> to vector<64x256xbf16>
    %cst_62 = arith.constant dense<0.000000e+00> : vector<64x16xf32>
    %108 = tpu.matmul %107, %80, %cst_62 {dimension_numbers = #tpu.dot_dimension_numbers<[1], [0], [0], [1], [0, 0, 1, 1], [], []>} : vector<64x256xbf16>, vector<256x16xbf16>, vector<64x16xf32> -> vector<64x16xf32>
    %109 = arith.truncf %108 : vector<64x16xf32> to vector<64x16xbf16>
    %c3_63 = arith.constant 3 : index
    %c0_64 = arith.constant 0 : index
    %c0_65 = arith.constant 0 : index
    %110 = vector.load %arg8[%c3_63, %c0_64, %c0_65] : memref<9x16x32xbf16, #tpu.memory_space<vmem>>, vector<1x16x32xbf16>
    %111 = vector.shape_cast %110 : vector<1x16x32xbf16> to vector<16x32xbf16>
    %cst_66 = arith.constant dense<0.000000e+00> : vector<64x32xf32>
    %112 = tpu.matmul %109, %111, %cst_66 {dimension_numbers = #tpu.dot_dimension_numbers<[1], [0], [0], [1], [0, 0, 1, 1], [], []>} : vector<64x16xbf16>, vector<16x32xbf16>, vector<64x32xf32> -> vector<64x32xf32>
    %113 = arith.addf %105, %112 : vector<64x32xf32>
    %c4_67 = arith.constant 4 : index
    %c0_68 = arith.constant 0 : index
    %c0_69 = arith.constant 0 : index
    %114 = vector.load %arg7[%c4_67, %c0_68, %c0_69] : memref<9x64x256xbf16, #tpu.memory_space<vmem>>, vector<1x64x256xbf16>
    %115 = vector.shape_cast %114 : vector<1x64x256xbf16> to vector<64x256xbf16>
    %cst_70 = arith.constant dense<0.000000e+00> : vector<64x16xf32>
    %116 = tpu.matmul %115, %80, %cst_70 {dimension_numbers = #tpu.dot_dimension_numbers<[1], [0], [0], [1], [0, 0, 1, 1], [], []>} : vector<64x256xbf16>, vector<256x16xbf16>, vector<64x16xf32> -> vector<64x16xf32>
    %117 = arith.truncf %116 : vector<64x16xf32> to vector<64x16xbf16>
    %c4_71 = arith.constant 4 : index
    %c0_72 = arith.constant 0 : index
    %c0_73 = arith.constant 0 : index
    %118 = vector.load %arg8[%c4_71, %c0_72, %c0_73] : memref<9x16x32xbf16, #tpu.memory_space<vmem>>, vector<1x16x32xbf16>
    %119 = vector.shape_cast %118 : vector<1x16x32xbf16> to vector<16x32xbf16>
    %cst_74 = arith.constant dense<0.000000e+00> : vector<64x32xf32>
    %120 = tpu.matmul %117, %119, %cst_74 {dimension_numbers = #tpu.dot_dimension_numbers<[1], [0], [0], [1], [0, 0, 1, 1], [], []>} : vector<64x16xbf16>, vector<16x32xbf16>, vector<64x32xf32> -> vector<64x32xf32>
    %121 = arith.addf %113, %120 : vector<64x32xf32>
    %c5_75 = arith.constant 5 : index
    %c0_76 = arith.constant 0 : index
    %c0_77 = arith.constant 0 : index
    %122 = vector.load %arg7[%c5_75, %c0_76, %c0_77] : memref<9x64x256xbf16, #tpu.memory_space<vmem>>, vector<1x64x256xbf16>
    %123 = vector.shape_cast %122 : vector<1x64x256xbf16> to vector<64x256xbf16>
    %cst_78 = arith.constant dense<0.000000e+00> : vector<64x16xf32>
    %124 = tpu.matmul %123, %80, %cst_78 {dimension_numbers = #tpu.dot_dimension_numbers<[1], [0], [0], [1], [0, 0, 1, 1], [], []>} : vector<64x256xbf16>, vector<256x16xbf16>, vector<64x16xf32> -> vector<64x16xf32>
    %125 = arith.truncf %124 : vector<64x16xf32> to vector<64x16xbf16>
    %c5_79 = arith.constant 5 : index
    %c0_80 = arith.constant 0 : index
    %c0_81 = arith.constant 0 : index
    %126 = vector.load %arg8[%c5_79, %c0_80, %c0_81] : memref<9x16x32xbf16, #tpu.memory_space<vmem>>, vector<1x16x32xbf16>
    %127 = vector.shape_cast %126 : vector<1x16x32xbf16> to vector<16x32xbf16>
    %cst_82 = arith.constant dense<0.000000e+00> : vector<64x32xf32>
    %128 = tpu.matmul %125, %127, %cst_82 {dimension_numbers = #tpu.dot_dimension_numbers<[1], [0], [0], [1], [0, 0, 1, 1], [], []>} : vector<64x16xbf16>, vector<16x32xbf16>, vector<64x32xf32> -> vector<64x32xf32>
    %129 = arith.addf %121, %128 : vector<64x32xf32>
    %c6_83 = arith.constant 6 : index
    %c0_84 = arith.constant 0 : index
    %c0_85 = arith.constant 0 : index
    %130 = vector.load %arg7[%c6_83, %c0_84, %c0_85] : memref<9x64x256xbf16, #tpu.memory_space<vmem>>, vector<1x64x256xbf16>
    %131 = vector.shape_cast %130 : vector<1x64x256xbf16> to vector<64x256xbf16>
    %cst_86 = arith.constant dense<0.000000e+00> : vector<64x16xf32>
    %132 = tpu.matmul %131, %80, %cst_86 {dimension_numbers = #tpu.dot_dimension_numbers<[1], [0], [0], [1], [0, 0, 1, 1], [], []>} : vector<64x256xbf16>, vector<256x16xbf16>, vector<64x16xf32> -> vector<64x16xf32>
    %133 = arith.truncf %132 : vector<64x16xf32> to vector<64x16xbf16>
    %c6_87 = arith.constant 6 : index
    %c0_88 = arith.constant 0 : index
    %c0_89 = arith.constant 0 : index
    %134 = vector.load %arg8[%c6_87, %c0_88, %c0_89] : memref<9x16x32xbf16, #tpu.memory_space<vmem>>, vector<1x16x32xbf16>
    %135 = vector.shape_cast %134 : vector<1x16x32xbf16> to vector<16x32xbf16>
    %cst_90 = arith.constant dense<0.000000e+00> : vector<64x32xf32>
    %136 = tpu.matmul %133, %135, %cst_90 {dimension_numbers = #tpu.dot_dimension_numbers<[1], [0], [0], [1], [0, 0, 1, 1], [], []>} : vector<64x16xbf16>, vector<16x32xbf16>, vector<64x32xf32> -> vector<64x32xf32>
    %137 = arith.addf %129, %136 : vector<64x32xf32>
    %c7_91 = arith.constant 7 : index
    %c0_92 = arith.constant 0 : index
    %c0_93 = arith.constant 0 : index
    %138 = vector.load %arg7[%c7_91, %c0_92, %c0_93] : memref<9x64x256xbf16, #tpu.memory_space<vmem>>, vector<1x64x256xbf16>
    %139 = vector.shape_cast %138 : vector<1x64x256xbf16> to vector<64x256xbf16>
    %cst_94 = arith.constant dense<0.000000e+00> : vector<64x16xf32>
    %140 = tpu.matmul %139, %80, %cst_94 {dimension_numbers = #tpu.dot_dimension_numbers<[1], [0], [0], [1], [0, 0, 1, 1], [], []>} : vector<64x256xbf16>, vector<256x16xbf16>, vector<64x16xf32> -> vector<64x16xf32>
    %141 = arith.truncf %140 : vector<64x16xf32> to vector<64x16xbf16>
    %c7_95 = arith.constant 7 : index
    %c0_96 = arith.constant 0 : index
    %c0_97 = arith.constant 0 : index
    %142 = vector.load %arg8[%c7_95, %c0_96, %c0_97] : memref<9x16x32xbf16, #tpu.memory_space<vmem>>, vector<1x16x32xbf16>
    %143 = vector.shape_cast %142 : vector<1x16x32xbf16> to vector<16x32xbf16>
    %cst_98 = arith.constant dense<0.000000e+00> : vector<64x32xf32>
    %144 = tpu.matmul %141, %143, %cst_98 {dimension_numbers = #tpu.dot_dimension_numbers<[1], [0], [0], [1], [0, 0, 1, 1], [], []>} : vector<64x16xbf16>, vector<16x32xbf16>, vector<64x32xf32> -> vector<64x32xf32>
    %145 = arith.addf %137, %144 : vector<64x32xf32>
    %c8_99 = arith.constant 8 : index
    %c0_100 = arith.constant 0 : index
    %c0_101 = arith.constant 0 : index
    %146 = vector.load %arg7[%c8_99, %c0_100, %c0_101] : memref<9x64x256xbf16, #tpu.memory_space<vmem>>, vector<1x64x256xbf16>
    %147 = vector.shape_cast %146 : vector<1x64x256xbf16> to vector<64x256xbf16>
    %cst_102 = arith.constant dense<0.000000e+00> : vector<64x16xf32>
    %148 = tpu.matmul %147, %80, %cst_102 {dimension_numbers = #tpu.dot_dimension_numbers<[1], [0], [0], [1], [0, 0, 1, 1], [], []>} : vector<64x256xbf16>, vector<256x16xbf16>, vector<64x16xf32> -> vector<64x16xf32>
    %149 = arith.truncf %148 : vector<64x16xf32> to vector<64x16xbf16>
    %c8_103 = arith.constant 8 : index
    %c0_104 = arith.constant 0 : index
    %c0_105 = arith.constant 0 : index
    %150 = vector.load %arg8[%c8_103, %c0_104, %c0_105] : memref<9x16x32xbf16, #tpu.memory_space<vmem>>, vector<1x16x32xbf16>
    %151 = vector.shape_cast %150 : vector<1x16x32xbf16> to vector<16x32xbf16>
    %cst_106 = arith.constant dense<0.000000e+00> : vector<64x32xf32>
    %152 = tpu.matmul %149, %151, %cst_106 {dimension_numbers = #tpu.dot_dimension_numbers<[1], [0], [0], [1], [0, 0, 1, 1], [], []>} : vector<64x16xbf16>, vector<16x32xbf16>, vector<64x32xf32> -> vector<64x32xf32>
    %153 = arith.addf %145, %152 : vector<64x32xf32>
    %c0_107 = arith.constant 0 : index
    %c0_108 = arith.constant 0 : index
    %154 = vector.load %arg9[%c0_107, %c0_108] : memref<1x32xf32, #tpu.memory_space<vmem>>, vector<1x32xf32>
    %155 = vector.broadcast %154 : vector<1x32xf32> to vector<64x32xf32>
    %156 = arith.addf %153, %155 : vector<64x32xf32>
    %cst_109 = arith.constant 0.000000e+00 : f32
    %157 = vector.broadcast %cst_109 : f32 to vector<64x32xf32>
    %158 = arith.cmpf ogt, %156, %157 : vector<64x32xf32>
    %cst_110 = arith.constant 2.000000e-01 : f32
    %159 = vector.broadcast %cst_110 : f32 to vector<64x32xf32>
    %160 = arith.mulf %159, %156 : vector<64x32xf32>
    %161 = arith.select %158, %156, %160 : vector<64x32xi1>, vector<64x32xf32>
    %c0_111 = arith.constant 0 : index
    %c0_112 = arith.constant 0 : index
    %162 = vector.load %arg10[%c0_111, %c0_112] : memref<1x32xf32, #tpu.memory_space<vmem>>, vector<1x32xf32>
    %163 = vector.broadcast %162 : vector<1x32xf32> to vector<64x32xf32>
    %164 = arith.mulf %161, %163 : vector<64x32xf32>
    %c0_113 = arith.constant 0 : index
    %c0_114 = arith.constant 0 : index
    %165 = vector.load %arg11[%c0_113, %c0_114] : memref<1x32xf32, #tpu.memory_space<vmem>>, vector<1x32xf32>
    %166 = vector.broadcast %165 : vector<1x32xf32> to vector<64x32xf32>
    %167 = arith.addf %164, %166 : vector<64x32xf32>
    %168 = arith.truncf %167 : vector<64x32xf32> to vector<64x32xbf16>
    %cst_115 = arith.constant 0.000000e+00 : f32
    %169 = vector.broadcast %cst_115 : f32 to vector<16x64xf32>
    %c0_116 = arith.constant 0 : index
    %c0_117 = arith.constant 0 : index
    %c0_118 = arith.constant 0 : index
    %170 = vector.load %arg12[%c0_116, %c0_117, %c0_118] : memref<9x16x64xbf16, #tpu.memory_space<vmem>>, vector<1x16x64xbf16>
    %171 = vector.shape_cast %170 : vector<1x16x64xbf16> to vector<16x64xbf16>
    %cst_119 = arith.constant dense<0.000000e+00> : vector<16x32xf32>
    %172 = tpu.matmul %171, %168, %cst_119 {dimension_numbers = #tpu.dot_dimension_numbers<[1], [0], [0], [1], [0, 0, 1, 1], [], []>} : vector<16x64xbf16>, vector<64x32xbf16>, vector<16x32xf32> -> vector<16x32xf32>
    %173 = arith.truncf %172 : vector<16x32xf32> to vector<16x32xbf16>
    %c0_120 = arith.constant 0 : index
    %c0_121 = arith.constant 0 : index
    %c0_122 = arith.constant 0 : index
    %174 = vector.load %arg13[%c0_120, %c0_121, %c0_122] : memref<9x32x64xbf16, #tpu.memory_space<vmem>>, vector<1x32x64xbf16>
    %175 = vector.shape_cast %174 : vector<1x32x64xbf16> to vector<32x64xbf16>
    %cst_123 = arith.constant dense<0.000000e+00> : vector<16x64xf32>
    %176 = tpu.matmul %173, %175, %cst_123 {dimension_numbers = #tpu.dot_dimension_numbers<[1], [0], [0], [1], [0, 0, 1, 1], [], []>} : vector<16x32xbf16>, vector<32x64xbf16>, vector<16x64xf32> -> vector<16x64xf32>
    %177 = arith.addf %169, %176 : vector<16x64xf32>
    %c1_124 = arith.constant 1 : index
    %c0_125 = arith.constant 0 : index
    %c0_126 = arith.constant 0 : index
    %178 = vector.load %arg12[%c1_124, %c0_125, %c0_126] : memref<9x16x64xbf16, #tpu.memory_space<vmem>>, vector<1x16x64xbf16>
    %179 = vector.shape_cast %178 : vector<1x16x64xbf16> to vector<16x64xbf16>
    %cst_127 = arith.constant dense<0.000000e+00> : vector<16x32xf32>
    %180 = tpu.matmul %179, %168, %cst_127 {dimension_numbers = #tpu.dot_dimension_numbers<[1], [0], [0], [1], [0, 0, 1, 1], [], []>} : vector<16x64xbf16>, vector<64x32xbf16>, vector<16x32xf32> -> vector<16x32xf32>
    %181 = arith.truncf %180 : vector<16x32xf32> to vector<16x32xbf16>
    %c1_128 = arith.constant 1 : index
    %c0_129 = arith.constant 0 : index
    %c0_130 = arith.constant 0 : index
    %182 = vector.load %arg13[%c1_128, %c0_129, %c0_130] : memref<9x32x64xbf16, #tpu.memory_space<vmem>>, vector<1x32x64xbf16>
    %183 = vector.shape_cast %182 : vector<1x32x64xbf16> to vector<32x64xbf16>
    %cst_131 = arith.constant dense<0.000000e+00> : vector<16x64xf32>
    %184 = tpu.matmul %181, %183, %cst_131 {dimension_numbers = #tpu.dot_dimension_numbers<[1], [0], [0], [1], [0, 0, 1, 1], [], []>} : vector<16x32xbf16>, vector<32x64xbf16>, vector<16x64xf32> -> vector<16x64xf32>
    %185 = arith.addf %177, %184 : vector<16x64xf32>
    %c2_132 = arith.constant 2 : index
    %c0_133 = arith.constant 0 : index
    %c0_134 = arith.constant 0 : index
    %186 = vector.load %arg12[%c2_132, %c0_133, %c0_134] : memref<9x16x64xbf16, #tpu.memory_space<vmem>>, vector<1x16x64xbf16>
    %187 = vector.shape_cast %186 : vector<1x16x64xbf16> to vector<16x64xbf16>
    %cst_135 = arith.constant dense<0.000000e+00> : vector<16x32xf32>
    %188 = tpu.matmul %187, %168, %cst_135 {dimension_numbers = #tpu.dot_dimension_numbers<[1], [0], [0], [1], [0, 0, 1, 1], [], []>} : vector<16x64xbf16>, vector<64x32xbf16>, vector<16x32xf32> -> vector<16x32xf32>
    %189 = arith.truncf %188 : vector<16x32xf32> to vector<16x32xbf16>
    %c2_136 = arith.constant 2 : index
    %c0_137 = arith.constant 0 : index
    %c0_138 = arith.constant 0 : index
    %190 = vector.load %arg13[%c2_136, %c0_137, %c0_138] : memref<9x32x64xbf16, #tpu.memory_space<vmem>>, vector<1x32x64xbf16>
    %191 = vector.shape_cast %190 : vector<1x32x64xbf16> to vector<32x64xbf16>
    %cst_139 = arith.constant dense<0.000000e+00> : vector<16x64xf32>
    %192 = tpu.matmul %189, %191, %cst_139 {dimension_numbers = #tpu.dot_dimension_numbers<[1], [0], [0], [1], [0, 0, 1, 1], [], []>} : vector<16x32xbf16>, vector<32x64xbf16>, vector<16x64xf32> -> vector<16x64xf32>
    %193 = arith.addf %185, %192 : vector<16x64xf32>
    %c3_140 = arith.constant 3 : index
    %c0_141 = arith.constant 0 : index
    %c0_142 = arith.constant 0 : index
    %194 = vector.load %arg12[%c3_140, %c0_141, %c0_142] : memref<9x16x64xbf16, #tpu.memory_space<vmem>>, vector<1x16x64xbf16>
    %195 = vector.shape_cast %194 : vector<1x16x64xbf16> to vector<16x64xbf16>
    %cst_143 = arith.constant dense<0.000000e+00> : vector<16x32xf32>
    %196 = tpu.matmul %195, %168, %cst_143 {dimension_numbers = #tpu.dot_dimension_numbers<[1], [0], [0], [1], [0, 0, 1, 1], [], []>} : vector<16x64xbf16>, vector<64x32xbf16>, vector<16x32xf32> -> vector<16x32xf32>
    %197 = arith.truncf %196 : vector<16x32xf32> to vector<16x32xbf16>
    %c3_144 = arith.constant 3 : index
    %c0_145 = arith.constant 0 : index
    %c0_146 = arith.constant 0 : index
    %198 = vector.load %arg13[%c3_144, %c0_145, %c0_146] : memref<9x32x64xbf16, #tpu.memory_space<vmem>>, vector<1x32x64xbf16>
    %199 = vector.shape_cast %198 : vector<1x32x64xbf16> to vector<32x64xbf16>
    %cst_147 = arith.constant dense<0.000000e+00> : vector<16x64xf32>
    %200 = tpu.matmul %197, %199, %cst_147 {dimension_numbers = #tpu.dot_dimension_numbers<[1], [0], [0], [1], [0, 0, 1, 1], [], []>} : vector<16x32xbf16>, vector<32x64xbf16>, vector<16x64xf32> -> vector<16x64xf32>
    %201 = arith.addf %193, %200 : vector<16x64xf32>
    %c4_148 = arith.constant 4 : index
    %c0_149 = arith.constant 0 : index
    %c0_150 = arith.constant 0 : index
    %202 = vector.load %arg12[%c4_148, %c0_149, %c0_150] : memref<9x16x64xbf16, #tpu.memory_space<vmem>>, vector<1x16x64xbf16>
    %203 = vector.shape_cast %202 : vector<1x16x64xbf16> to vector<16x64xbf16>
    %cst_151 = arith.constant dense<0.000000e+00> : vector<16x32xf32>
    %204 = tpu.matmul %203, %168, %cst_151 {dimension_numbers = #tpu.dot_dimension_numbers<[1], [0], [0], [1], [0, 0, 1, 1], [], []>} : vector<16x64xbf16>, vector<64x32xbf16>, vector<16x32xf32> -> vector<16x32xf32>
    %205 = arith.truncf %204 : vector<16x32xf32> to vector<16x32xbf16>
    %c4_152 = arith.constant 4 : index
    %c0_153 = arith.constant 0 : index
    %c0_154 = arith.constant 0 : index
    %206 = vector.load %arg13[%c4_152, %c0_153, %c0_154] : memref<9x32x64xbf16, #tpu.memory_space<vmem>>, vector<1x32x64xbf16>
    %207 = vector.shape_cast %206 : vector<1x32x64xbf16> to vector<32x64xbf16>
    %cst_155 = arith.constant dense<0.000000e+00> : vector<16x64xf32>
    %208 = tpu.matmul %205, %207, %cst_155 {dimension_numbers = #tpu.dot_dimension_numbers<[1], [0], [0], [1], [0, 0, 1, 1], [], []>} : vector<16x32xbf16>, vector<32x64xbf16>, vector<16x64xf32> -> vector<16x64xf32>
    %209 = arith.addf %201, %208 : vector<16x64xf32>
    %c5_156 = arith.constant 5 : index
    %c0_157 = arith.constant 0 : index
    %c0_158 = arith.constant 0 : index
    %210 = vector.load %arg12[%c5_156, %c0_157, %c0_158] : memref<9x16x64xbf16, #tpu.memory_space<vmem>>, vector<1x16x64xbf16>
    %211 = vector.shape_cast %210 : vector<1x16x64xbf16> to vector<16x64xbf16>
    %cst_159 = arith.constant dense<0.000000e+00> : vector<16x32xf32>
    %212 = tpu.matmul %211, %168, %cst_159 {dimension_numbers = #tpu.dot_dimension_numbers<[1], [0], [0], [1], [0, 0, 1, 1], [], []>} : vector<16x64xbf16>, vector<64x32xbf16>, vector<16x32xf32> -> vector<16x32xf32>
    %213 = arith.truncf %212 : vector<16x32xf32> to vector<16x32xbf16>
    %c5_160 = arith.constant 5 : index
    %c0_161 = arith.constant 0 : index
    %c0_162 = arith.constant 0 : index
    %214 = vector.load %arg13[%c5_160, %c0_161, %c0_162] : memref<9x32x64xbf16, #tpu.memory_space<vmem>>, vector<1x32x64xbf16>
    %215 = vector.shape_cast %214 : vector<1x32x64xbf16> to vector<32x64xbf16>
    %cst_163 = arith.constant dense<0.000000e+00> : vector<16x64xf32>
    %216 = tpu.matmul %213, %215, %cst_163 {dimension_numbers = #tpu.dot_dimension_numbers<[1], [0], [0], [1], [0, 0, 1, 1], [], []>} : vector<16x32xbf16>, vector<32x64xbf16>, vector<16x64xf32> -> vector<16x64xf32>
    %217 = arith.addf %209, %216 : vector<16x64xf32>
    %c6_164 = arith.constant 6 : index
    %c0_165 = arith.constant 0 : index
    %c0_166 = arith.constant 0 : index
    %218 = vector.load %arg12[%c6_164, %c0_165, %c0_166] : memref<9x16x64xbf16, #tpu.memory_space<vmem>>, vector<1x16x64xbf16>
    %219 = vector.shape_cast %218 : vector<1x16x64xbf16> to vector<16x64xbf16>
    %cst_167 = arith.constant dense<0.000000e+00> : vector<16x32xf32>
    %220 = tpu.matmul %219, %168, %cst_167 {dimension_numbers = #tpu.dot_dimension_numbers<[1], [0], [0], [1], [0, 0, 1, 1], [], []>} : vector<16x64xbf16>, vector<64x32xbf16>, vector<16x32xf32> -> vector<16x32xf32>
    %221 = arith.truncf %220 : vector<16x32xf32> to vector<16x32xbf16>
    %c6_168 = arith.constant 6 : index
    %c0_169 = arith.constant 0 : index
    %c0_170 = arith.constant 0 : index
    %222 = vector.load %arg13[%c6_168, %c0_169, %c0_170] : memref<9x32x64xbf16, #tpu.memory_space<vmem>>, vector<1x32x64xbf16>
    %223 = vector.shape_cast %222 : vector<1x32x64xbf16> to vector<32x64xbf16>
    %cst_171 = arith.constant dense<0.000000e+00> : vector<16x64xf32>
    %224 = tpu.matmul %221, %223, %cst_171 {dimension_numbers = #tpu.dot_dimension_numbers<[1], [0], [0], [1], [0, 0, 1, 1], [], []>} : vector<16x32xbf16>, vector<32x64xbf16>, vector<16x64xf32> -> vector<16x64xf32>
    %225 = arith.addf %217, %224 : vector<16x64xf32>
    %c7_172 = arith.constant 7 : index
    %c0_173 = arith.constant 0 : index
    %c0_174 = arith.constant 0 : index
    %226 = vector.load %arg12[%c7_172, %c0_173, %c0_174] : memref<9x16x64xbf16, #tpu.memory_space<vmem>>, vector<1x16x64xbf16>
    %227 = vector.shape_cast %226 : vector<1x16x64xbf16> to vector<16x64xbf16>
    %cst_175 = arith.constant dense<0.000000e+00> : vector<16x32xf32>
    %228 = tpu.matmul %227, %168, %cst_175 {dimension_numbers = #tpu.dot_dimension_numbers<[1], [0], [0], [1], [0, 0, 1, 1], [], []>} : vector<16x64xbf16>, vector<64x32xbf16>, vector<16x32xf32> -> vector<16x32xf32>
    %229 = arith.truncf %228 : vector<16x32xf32> to vector<16x32xbf16>
    %c7_176 = arith.constant 7 : index
    %c0_177 = arith.constant 0 : index
    %c0_178 = arith.constant 0 : index
    %230 = vector.load %arg13[%c7_176, %c0_177, %c0_178] : memref<9x32x64xbf16, #tpu.memory_space<vmem>>, vector<1x32x64xbf16>
    %231 = vector.shape_cast %230 : vector<1x32x64xbf16> to vector<32x64xbf16>
    %cst_179 = arith.constant dense<0.000000e+00> : vector<16x64xf32>
    %232 = tpu.matmul %229, %231, %cst_179 {dimension_numbers = #tpu.dot_dimension_numbers<[1], [0], [0], [1], [0, 0, 1, 1], [], []>} : vector<16x32xbf16>, vector<32x64xbf16>, vector<16x64xf32> -> vector<16x64xf32>
    %233 = arith.addf %225, %232 : vector<16x64xf32>
    %c8_180 = arith.constant 8 : index
    %c0_181 = arith.constant 0 : index
    %c0_182 = arith.constant 0 : index
    %234 = vector.load %arg12[%c8_180, %c0_181, %c0_182] : memref<9x16x64xbf16, #tpu.memory_space<vmem>>, vector<1x16x64xbf16>
    %235 = vector.shape_cast %234 : vector<1x16x64xbf16> to vector<16x64xbf16>
    %cst_183 = arith.constant dense<0.000000e+00> : vector<16x32xf32>
    %236 = tpu.matmul %235, %168, %cst_183 {dimension_numbers = #tpu.dot_dimension_numbers<[1], [0], [0], [1], [0, 0, 1, 1], [], []>} : vector<16x64xbf16>, vector<64x32xbf16>, vector<16x32xf32> -> vector<16x32xf32>
    %237 = arith.truncf %236 : vector<16x32xf32> to vector<16x32xbf16>
    %c8_184 = arith.constant 8 : index
    %c0_185 = arith.constant 0 : index
    %c0_186 = arith.constant 0 : index
    %238 = vector.load %arg13[%c8_184, %c0_185, %c0_186] : memref<9x32x64xbf16, #tpu.memory_space<vmem>>, vector<1x32x64xbf16>
    %239 = vector.shape_cast %238 : vector<1x32x64xbf16> to vector<32x64xbf16>
    %cst_187 = arith.constant dense<0.000000e+00> : vector<16x64xf32>
    %240 = tpu.matmul %237, %239, %cst_187 {dimension_numbers = #tpu.dot_dimension_numbers<[1], [0], [0], [1], [0, 0, 1, 1], [], []>} : vector<16x32xbf16>, vector<32x64xbf16>, vector<16x64xf32> -> vector<16x64xf32>
    %241 = arith.addf %233, %240 : vector<16x64xf32>
    %c0_188 = arith.constant 0 : index
    %c0_189 = arith.constant 0 : index
    %242 = vector.load %arg14[%c0_188, %c0_189] : memref<1x64xf32, #tpu.memory_space<vmem>>, vector<1x64xf32>
    %243 = vector.broadcast %242 : vector<1x64xf32> to vector<16x64xf32>
    %244 = arith.addf %241, %243 : vector<16x64xf32>
    %cst_190 = arith.constant 0.000000e+00 : f32
    %245 = vector.broadcast %cst_190 : f32 to vector<16x64xf32>
    %246 = arith.cmpf ogt, %244, %245 : vector<16x64xf32>
    %cst_191 = arith.constant 2.000000e-01 : f32
    %247 = vector.broadcast %cst_191 : f32 to vector<16x64xf32>
    %248 = arith.mulf %247, %244 : vector<16x64xf32>
    %249 = arith.select %246, %244, %248 : vector<16x64xi1>, vector<16x64xf32>
    %c0_192 = arith.constant 0 : index
    %c0_193 = arith.constant 0 : index
    %250 = vector.load %arg15[%c0_192, %c0_193] : memref<1x64xf32, #tpu.memory_space<vmem>>, vector<1x64xf32>
    %251 = vector.broadcast %250 : vector<1x64xf32> to vector<16x64xf32>
    %252 = arith.mulf %249, %251 : vector<16x64xf32>
    %c0_194 = arith.constant 0 : index
    %c0_195 = arith.constant 0 : index
    %253 = vector.load %arg16[%c0_194, %c0_195] : memref<1x64xf32, #tpu.memory_space<vmem>>, vector<1x64xf32>
    %254 = vector.broadcast %253 : vector<1x64xf32> to vector<16x64xf32>
    %255 = arith.addf %252, %254 : vector<16x64xf32>
    %256 = arith.truncf %255 : vector<16x64xf32> to vector<16x64xbf16>
    %cst_196 = arith.constant 0.000000e+00 : f32
    %257 = vector.broadcast %cst_196 : f32 to vector<4x128xf32>
    %c0_197 = arith.constant 0 : index
    %c0_198 = arith.constant 0 : index
    %c0_199 = arith.constant 0 : index
    %258 = vector.load %arg17[%c0_197, %c0_198, %c0_199] : memref<9x4x16xbf16, #tpu.memory_space<vmem>>, vector<1x4x16xbf16>
    %259 = vector.shape_cast %258 : vector<1x4x16xbf16> to vector<4x16xbf16>
    %cst_200 = arith.constant dense<0.000000e+00> : vector<4x64xf32>
    %260 = tpu.matmul %259, %256, %cst_200 {dimension_numbers = #tpu.dot_dimension_numbers<[1], [0], [0], [1], [0, 0, 1, 1], [], []>} : vector<4x16xbf16>, vector<16x64xbf16>, vector<4x64xf32> -> vector<4x64xf32>
    %261 = arith.truncf %260 : vector<4x64xf32> to vector<4x64xbf16>
    %c0_201 = arith.constant 0 : index
    %c0_202 = arith.constant 0 : index
    %c0_203 = arith.constant 0 : index
    %262 = vector.load %arg18[%c0_201, %c0_202, %c0_203] : memref<9x64x128xbf16, #tpu.memory_space<vmem>>, vector<1x64x128xbf16>
    %263 = vector.shape_cast %262 : vector<1x64x128xbf16> to vector<64x128xbf16>
    %cst_204 = arith.constant dense<0.000000e+00> : vector<4x128xf32>
    %264 = tpu.matmul %261, %263, %cst_204 {dimension_numbers = #tpu.dot_dimension_numbers<[1], [0], [0], [1], [0, 0, 1, 1], [], []>} : vector<4x64xbf16>, vector<64x128xbf16>, vector<4x128xf32> -> vector<4x128xf32>
    %265 = arith.addf %257, %264 : vector<4x128xf32>
    %c1_205 = arith.constant 1 : index
    %c0_206 = arith.constant 0 : index
    %c0_207 = arith.constant 0 : index
    %266 = vector.load %arg17[%c1_205, %c0_206, %c0_207] : memref<9x4x16xbf16, #tpu.memory_space<vmem>>, vector<1x4x16xbf16>
    %267 = vector.shape_cast %266 : vector<1x4x16xbf16> to vector<4x16xbf16>
    %cst_208 = arith.constant dense<0.000000e+00> : vector<4x64xf32>
    %268 = tpu.matmul %267, %256, %cst_208 {dimension_numbers = #tpu.dot_dimension_numbers<[1], [0], [0], [1], [0, 0, 1, 1], [], []>} : vector<4x16xbf16>, vector<16x64xbf16>, vector<4x64xf32> -> vector<4x64xf32>
    %269 = arith.truncf %268 : vector<4x64xf32> to vector<4x64xbf16>
    %c1_209 = arith.constant 1 : index
    %c0_210 = arith.constant 0 : index
    %c0_211 = arith.constant 0 : index
    %270 = vector.load %arg18[%c1_209, %c0_210, %c0_211] : memref<9x64x128xbf16, #tpu.memory_space<vmem>>, vector<1x64x128xbf16>
    %271 = vector.shape_cast %270 : vector<1x64x128xbf16> to vector<64x128xbf16>
    %cst_212 = arith.constant dense<0.000000e+00> : vector<4x128xf32>
    %272 = tpu.matmul %269, %271, %cst_212 {dimension_numbers = #tpu.dot_dimension_numbers<[1], [0], [0], [1], [0, 0, 1, 1], [], []>} : vector<4x64xbf16>, vector<64x128xbf16>, vector<4x128xf32> -> vector<4x128xf32>
    %273 = arith.addf %265, %272 : vector<4x128xf32>
    %c2_213 = arith.constant 2 : index
    %c0_214 = arith.constant 0 : index
    %c0_215 = arith.constant 0 : index
    %274 = vector.load %arg17[%c2_213, %c0_214, %c0_215] : memref<9x4x16xbf16, #tpu.memory_space<vmem>>, vector<1x4x16xbf16>
    %275 = vector.shape_cast %274 : vector<1x4x16xbf16> to vector<4x16xbf16>
    %cst_216 = arith.constant dense<0.000000e+00> : vector<4x64xf32>
    %276 = tpu.matmul %275, %256, %cst_216 {dimension_numbers = #tpu.dot_dimension_numbers<[1], [0], [0], [1], [0, 0, 1, 1], [], []>} : vector<4x16xbf16>, vector<16x64xbf16>, vector<4x64xf32> -> vector<4x64xf32>
    %277 = arith.truncf %276 : vector<4x64xf32> to vector<4x64xbf16>
    %c2_217 = arith.constant 2 : index
    %c0_218 = arith.constant 0 : index
    %c0_219 = arith.constant 0 : index
    %278 = vector.load %arg18[%c2_217, %c0_218, %c0_219] : memref<9x64x128xbf16, #tpu.memory_space<vmem>>, vector<1x64x128xbf16>
    %279 = vector.shape_cast %278 : vector<1x64x128xbf16> to vector<64x128xbf16>
    %cst_220 = arith.constant dense<0.000000e+00> : vector<4x128xf32>
    %280 = tpu.matmul %277, %279, %cst_220 {dimension_numbers = #tpu.dot_dimension_numbers<[1], [0], [0], [1], [0, 0, 1, 1], [], []>} : vector<4x64xbf16>, vector<64x128xbf16>, vector<4x128xf32> -> vector<4x128xf32>
    %281 = arith.addf %273, %280 : vector<4x128xf32>
    %c3_221 = arith.constant 3 : index
    %c0_222 = arith.constant 0 : index
    %c0_223 = arith.constant 0 : index
    %282 = vector.load %arg17[%c3_221, %c0_222, %c0_223] : memref<9x4x16xbf16, #tpu.memory_space<vmem>>, vector<1x4x16xbf16>
    %283 = vector.shape_cast %282 : vector<1x4x16xbf16> to vector<4x16xbf16>
    %cst_224 = arith.constant dense<0.000000e+00> : vector<4x64xf32>
    %284 = tpu.matmul %283, %256, %cst_224 {dimension_numbers = #tpu.dot_dimension_numbers<[1], [0], [0], [1], [0, 0, 1, 1], [], []>} : vector<4x16xbf16>, vector<16x64xbf16>, vector<4x64xf32> -> vector<4x64xf32>
    %285 = arith.truncf %284 : vector<4x64xf32> to vector<4x64xbf16>
    %c3_225 = arith.constant 3 : index
    %c0_226 = arith.constant 0 : index
    %c0_227 = arith.constant 0 : index
    %286 = vector.load %arg18[%c3_225, %c0_226, %c0_227] : memref<9x64x128xbf16, #tpu.memory_space<vmem>>, vector<1x64x128xbf16>
    %287 = vector.shape_cast %286 : vector<1x64x128xbf16> to vector<64x128xbf16>
    %cst_228 = arith.constant dense<0.000000e+00> : vector<4x128xf32>
    %288 = tpu.matmul %285, %287, %cst_228 {dimension_numbers = #tpu.dot_dimension_numbers<[1], [0], [0], [1], [0, 0, 1, 1], [], []>} : vector<4x64xbf16>, vector<64x128xbf16>, vector<4x128xf32> -> vector<4x128xf32>
    %289 = arith.addf %281, %288 : vector<4x128xf32>
    %c4_229 = arith.constant 4 : index
    %c0_230 = arith.constant 0 : index
    %c0_231 = arith.constant 0 : index
    %290 = vector.load %arg17[%c4_229, %c0_230, %c0_231] : memref<9x4x16xbf16, #tpu.memory_space<vmem>>, vector<1x4x16xbf16>
    %291 = vector.shape_cast %290 : vector<1x4x16xbf16> to vector<4x16xbf16>
    %cst_232 = arith.constant dense<0.000000e+00> : vector<4x64xf32>
    %292 = tpu.matmul %291, %256, %cst_232 {dimension_numbers = #tpu.dot_dimension_numbers<[1], [0], [0], [1], [0, 0, 1, 1], [], []>} : vector<4x16xbf16>, vector<16x64xbf16>, vector<4x64xf32> -> vector<4x64xf32>
    %293 = arith.truncf %292 : vector<4x64xf32> to vector<4x64xbf16>
    %c4_233 = arith.constant 4 : index
    %c0_234 = arith.constant 0 : index
    %c0_235 = arith.constant 0 : index
    %294 = vector.load %arg18[%c4_233, %c0_234, %c0_235] : memref<9x64x128xbf16, #tpu.memory_space<vmem>>, vector<1x64x128xbf16>
    %295 = vector.shape_cast %294 : vector<1x64x128xbf16> to vector<64x128xbf16>
    %cst_236 = arith.constant dense<0.000000e+00> : vector<4x128xf32>
    %296 = tpu.matmul %293, %295, %cst_236 {dimension_numbers = #tpu.dot_dimension_numbers<[1], [0], [0], [1], [0, 0, 1, 1], [], []>} : vector<4x64xbf16>, vector<64x128xbf16>, vector<4x128xf32> -> vector<4x128xf32>
    %297 = arith.addf %289, %296 : vector<4x128xf32>
    %c5_237 = arith.constant 5 : index
    %c0_238 = arith.constant 0 : index
    %c0_239 = arith.constant 0 : index
    %298 = vector.load %arg17[%c5_237, %c0_238, %c0_239] : memref<9x4x16xbf16, #tpu.memory_space<vmem>>, vector<1x4x16xbf16>
    %299 = vector.shape_cast %298 : vector<1x4x16xbf16> to vector<4x16xbf16>
    %cst_240 = arith.constant dense<0.000000e+00> : vector<4x64xf32>
    %300 = tpu.matmul %299, %256, %cst_240 {dimension_numbers = #tpu.dot_dimension_numbers<[1], [0], [0], [1], [0, 0, 1, 1], [], []>} : vector<4x16xbf16>, vector<16x64xbf16>, vector<4x64xf32> -> vector<4x64xf32>
    %301 = arith.truncf %300 : vector<4x64xf32> to vector<4x64xbf16>
    %c5_241 = arith.constant 5 : index
    %c0_242 = arith.constant 0 : index
    %c0_243 = arith.constant 0 : index
    %302 = vector.load %arg18[%c5_241, %c0_242, %c0_243] : memref<9x64x128xbf16, #tpu.memory_space<vmem>>, vector<1x64x128xbf16>
    %303 = vector.shape_cast %302 : vector<1x64x128xbf16> to vector<64x128xbf16>
    %cst_244 = arith.constant dense<0.000000e+00> : vector<4x128xf32>
    %304 = tpu.matmul %301, %303, %cst_244 {dimension_numbers = #tpu.dot_dimension_numbers<[1], [0], [0], [1], [0, 0, 1, 1], [], []>} : vector<4x64xbf16>, vector<64x128xbf16>, vector<4x128xf32> -> vector<4x128xf32>
    %305 = arith.addf %297, %304 : vector<4x128xf32>
    %c6_245 = arith.constant 6 : index
    %c0_246 = arith.constant 0 : index
    %c0_247 = arith.constant 0 : index
    %306 = vector.load %arg17[%c6_245, %c0_246, %c0_247] : memref<9x4x16xbf16, #tpu.memory_space<vmem>>, vector<1x4x16xbf16>
    %307 = vector.shape_cast %306 : vector<1x4x16xbf16> to vector<4x16xbf16>
    %cst_248 = arith.constant dense<0.000000e+00> : vector<4x64xf32>
    %308 = tpu.matmul %307, %256, %cst_248 {dimension_numbers = #tpu.dot_dimension_numbers<[1], [0], [0], [1], [0, 0, 1, 1], [], []>} : vector<4x16xbf16>, vector<16x64xbf16>, vector<4x64xf32> -> vector<4x64xf32>
    %309 = arith.truncf %308 : vector<4x64xf32> to vector<4x64xbf16>
    %c6_249 = arith.constant 6 : index
    %c0_250 = arith.constant 0 : index
    %c0_251 = arith.constant 0 : index
    %310 = vector.load %arg18[%c6_249, %c0_250, %c0_251] : memref<9x64x128xbf16, #tpu.memory_space<vmem>>, vector<1x64x128xbf16>
    %311 = vector.shape_cast %310 : vector<1x64x128xbf16> to vector<64x128xbf16>
    %cst_252 = arith.constant dense<0.000000e+00> : vector<4x128xf32>
    %312 = tpu.matmul %309, %311, %cst_252 {dimension_numbers = #tpu.dot_dimension_numbers<[1], [0], [0], [1], [0, 0, 1, 1], [], []>} : vector<4x64xbf16>, vector<64x128xbf16>, vector<4x128xf32> -> vector<4x128xf32>
    %313 = arith.addf %305, %312 : vector<4x128xf32>
    %c7_253 = arith.constant 7 : index
    %c0_254 = arith.constant 0 : index
    %c0_255 = arith.constant 0 : index
    %314 = vector.load %arg17[%c7_253, %c0_254, %c0_255] : memref<9x4x16xbf16, #tpu.memory_space<vmem>>, vector<1x4x16xbf16>
    %315 = vector.shape_cast %314 : vector<1x4x16xbf16> to vector<4x16xbf16>
    %cst_256 = arith.constant dense<0.000000e+00> : vector<4x64xf32>
    %316 = tpu.matmul %315, %256, %cst_256 {dimension_numbers = #tpu.dot_dimension_numbers<[1], [0], [0], [1], [0, 0, 1, 1], [], []>} : vector<4x16xbf16>, vector<16x64xbf16>, vector<4x64xf32> -> vector<4x64xf32>
    %317 = arith.truncf %316 : vector<4x64xf32> to vector<4x64xbf16>
    %c7_257 = arith.constant 7 : index
    %c0_258 = arith.constant 0 : index
    %c0_259 = arith.constant 0 : index
    %318 = vector.load %arg18[%c7_257, %c0_258, %c0_259] : memref<9x64x128xbf16, #tpu.memory_space<vmem>>, vector<1x64x128xbf16>
    %319 = vector.shape_cast %318 : vector<1x64x128xbf16> to vector<64x128xbf16>
    %cst_260 = arith.constant dense<0.000000e+00> : vector<4x128xf32>
    %320 = tpu.matmul %317, %319, %cst_260 {dimension_numbers = #tpu.dot_dimension_numbers<[1], [0], [0], [1], [0, 0, 1, 1], [], []>} : vector<4x64xbf16>, vector<64x128xbf16>, vector<4x128xf32> -> vector<4x128xf32>
    %321 = arith.addf %313, %320 : vector<4x128xf32>
    %c8_261 = arith.constant 8 : index
    %c0_262 = arith.constant 0 : index
    %c0_263 = arith.constant 0 : index
    %322 = vector.load %arg17[%c8_261, %c0_262, %c0_263] : memref<9x4x16xbf16, #tpu.memory_space<vmem>>, vector<1x4x16xbf16>
    %323 = vector.shape_cast %322 : vector<1x4x16xbf16> to vector<4x16xbf16>
    %cst_264 = arith.constant dense<0.000000e+00> : vector<4x64xf32>
    %324 = tpu.matmul %323, %256, %cst_264 {dimension_numbers = #tpu.dot_dimension_numbers<[1], [0], [0], [1], [0, 0, 1, 1], [], []>} : vector<4x16xbf16>, vector<16x64xbf16>, vector<4x64xf32> -> vector<4x64xf32>
    %325 = arith.truncf %324 : vector<4x64xf32> to vector<4x64xbf16>
    %c8_265 = arith.constant 8 : index
    %c0_266 = arith.constant 0 : index
    %c0_267 = arith.constant 0 : index
    %326 = vector.load %arg18[%c8_265, %c0_266, %c0_267] : memref<9x64x128xbf16, #tpu.memory_space<vmem>>, vector<1x64x128xbf16>
    %327 = vector.shape_cast %326 : vector<1x64x128xbf16> to vector<64x128xbf16>
    %cst_268 = arith.constant dense<0.000000e+00> : vector<4x128xf32>
    %328 = tpu.matmul %325, %327, %cst_268 {dimension_numbers = #tpu.dot_dimension_numbers<[1], [0], [0], [1], [0, 0, 1, 1], [], []>} : vector<4x64xbf16>, vector<64x128xbf16>, vector<4x128xf32> -> vector<4x128xf32>
    %329 = arith.addf %321, %328 : vector<4x128xf32>
    %c0_269 = arith.constant 0 : index
    %c0_270 = arith.constant 0 : index
    %330 = vector.load %arg19[%c0_269, %c0_270] : memref<1x128xf32, #tpu.memory_space<vmem>>, vector<1x128xf32>
    %331 = vector.broadcast %330 : vector<1x128xf32> to vector<4x128xf32>
    %332 = arith.addf %329, %331 : vector<4x128xf32>
    %cst_271 = arith.constant 0.000000e+00 : f32
    %333 = vector.broadcast %cst_271 : f32 to vector<4x128xf32>
    %334 = arith.cmpf ogt, %332, %333 : vector<4x128xf32>
    %cst_272 = arith.constant 2.000000e-01 : f32
    %335 = vector.broadcast %cst_272 : f32 to vector<4x128xf32>
    %336 = arith.mulf %335, %332 : vector<4x128xf32>
    %337 = arith.select %334, %332, %336 : vector<4x128xi1>, vector<4x128xf32>
    %c0_273 = arith.constant 0 : index
    %c0_274 = arith.constant 0 : index
    %338 = vector.load %arg20[%c0_273, %c0_274] : memref<1x128xf32, #tpu.memory_space<vmem>>, vector<1x128xf32>
    %339 = vector.broadcast %338 : vector<1x128xf32> to vector<4x128xf32>
    %340 = arith.mulf %337, %339 : vector<4x128xf32>
    %c0_275 = arith.constant 0 : index
    %c0_276 = arith.constant 0 : index
    %341 = vector.load %arg21[%c0_275, %c0_276] : memref<1x128xf32, #tpu.memory_space<vmem>>, vector<1x128xf32>
    %342 = vector.broadcast %341 : vector<1x128xf32> to vector<4x128xf32>
    %343 = arith.addf %340, %342 : vector<4x128xf32>
    %c0_277 = arith.constant 0 : index
    %c0_278 = arith.constant 0 : index
    %344 = vector.load %arg22[%c0_277, %c0_278] : memref<4x128xf32, #tpu.memory_space<vmem>>, vector<4x128xf32>
    %345 = arith.mulf %343, %344 : vector<4x128xf32>
    %cst_279 = arith.constant dense<0.000000e+00> : vector<4xf32>
    %346 = vector.multi_reduction <add>, %345, %cst_279 [1] : vector<4x128xf32> to vector<4xf32>
    %347 = vector.shape_cast %346 : vector<4xf32> to vector<4x1xf32>
    %cst_280 = arith.constant dense<0.000000e+00> : vector<1xf32>
    %348 = vector.multi_reduction <add>, %347, %cst_280 [0] : vector<4x1xf32> to vector<1xf32>
    %349 = vector.shape_cast %348 : vector<1xf32> to vector<1x1xf32>
    %c0_281 = arith.constant 0 : index
    %c0_282 = arith.constant 0 : index
    %350 = vector.load %arg23[%c0_281, %c0_282] : memref<1x1xf32, #tpu.memory_space<vmem>>, vector<1x1xf32>
    %351 = arith.addf %349, %350 : vector<1x1xf32>
    %cst_283 = arith.constant 0.000000e+00 : f32
    %352 = vector.broadcast %cst_283 : f32 to vector<1x1xf32>
    %353 = arith.subf %352, %351 : vector<1x1xf32>
    %354 = math.exp %353 : vector<1x1xf32>
    %cst_284 = arith.constant 1.000000e+00 : f32
    %355 = vector.broadcast %cst_284 : f32 to vector<1x1xf32>
    %356 = arith.addf %355, %354 : vector<1x1xf32>
    %357 = tpu.reciprocal %356 {approx = true} : vector<1x1xf32> -> vector<1x1xf32>
    %c0_285 = arith.constant 0 : index
    %c0_286 = arith.constant 0 : index
    %c0_287 = arith.constant 0 : index
    %358 = vector.load %arg24[%c0_285, %c0_286, %c0_287] : memref<1x1x1xf32, #tpu.memory_space<vmem>>, vector<1x1x1xf32>
    %359 = vector.shape_cast %358 : vector<1x1x1xf32> to vector<1x1xf32>
    %360 = vector.shape_cast %357 : vector<1x1xf32> to vector<1x1x1xf32>
    tpu.vector_store %arg24[%c0_285, %c0_286, %c0_287], %360 {strides = array<i32>} : memref<1x1x1xf32, #tpu.memory_space<vmem>>, vector<1x1x1xf32>,
    return
  }
  func.func @transform_0(%arg0: i32) -> (i32, i32, i32) {
    %c0_i32 = arith.constant 0 : i32
    %c0_i32_0 = arith.constant 0 : i32
    %c0_i32_1 = arith.constant 0 : i32
    return %arg0, %c0_i32, %c0_i32_0 : i32, i32, i32
  }
  func.func @transform_1(%arg0: i32) -> (i32, i32) {
    %c0_i32 = arith.constant 0 : i32
    %c0_i32_0 = arith.constant 0 : i32
    %c0_i32_1 = arith.constant 0 : i32
    return %c0_i32, %c0_i32_0 : i32, i32
  }
  func.func @transform_2(%arg0: i32) -> (i32, i32) {
    %c0_i32 = arith.constant 0 : i32
    %c0_i32_0 = arith.constant 0 : i32
    %c0_i32_1 = arith.constant 0 : i32
    return %c0_i32, %c0_i32_0 : i32, i32
  }
  func.func @transform_3(%arg0: i32) -> (i32, i32) {
    %c0_i32 = arith.constant 0 : i32
    %c0_i32_0 = arith.constant 0 : i32
    %c0_i32_1 = arith.constant 0 : i32
    return %c0_i32, %c0_i32_0 : i32, i32
  }
  func.func @transform_4(%arg0: i32) -> (i32, i32, i32) {
    %c0_i32 = arith.constant 0 : i32
    %c0_i32_0 = arith.constant 0 : i32
    %c0_i32_1 = arith.constant 0 : i32
    %c0_i32_2 = arith.constant 0 : i32
    return %c0_i32, %c0_i32_0, %c0_i32_1 : i32, i32, i32
  }
  func.func @transform_5(%arg0: i32) -> (i32, i32) {
    %c0_i32 = arith.constant 0 : i32
    %c0_i32_0 = arith.constant 0 : i32
    %c0_i32_1 = arith.constant 0 : i32
    return %c0_i32, %c0_i32_0 : i32, i32
  }
  func.func @transform_6(%arg0: i32) -> (i32, i32, i32) {
    %c0_i32 = arith.constant 0 : i32
    %c0_i32_0 = arith.constant 0 : i32
    %c0_i32_1 = arith.constant 0 : i32
    %c0_i32_2 = arith.constant 0 : i32
    return %c0_i32, %c0_i32_0, %c0_i32_1 : i32, i32, i32
  }
  func.func @transform_7(%arg0: i32) -> (i32, i32, i32) {
    %c0_i32 = arith.constant 0 : i32
    %c0_i32_0 = arith.constant 0 : i32
    %c0_i32_1 = arith.constant 0 : i32
    %c0_i32_2 = arith.constant 0 : i32
    return %c0_i32, %c0_i32_0, %c0_i32_1 : i32, i32, i32
  }
  func.func @transform_8(%arg0: i32) -> (i32, i32) {
    %c0_i32 = arith.constant 0 : i32
    %c0_i32_0 = arith.constant 0 : i32
    %c0_i32_1 = arith.constant 0 : i32
    return %c0_i32, %c0_i32_0 : i32, i32
  }
  func.func @transform_9(%arg0: i32) -> (i32, i32) {
    %c0_i32 = arith.constant 0 : i32
    %c0_i32_0 = arith.constant 0 : i32
    %c0_i32_1 = arith.constant 0 : i32
    return %c0_i32, %c0_i32_0 : i32, i32
  }
  func.func @transform_10(%arg0: i32) -> (i32, i32) {
    %c0_i32 = arith.constant 0 : i32
    %c0_i32_0 = arith.constant 0 : i32
    %c0_i32_1 = arith.constant 0 : i32
    return %c0_i32, %c0_i32_0 : i32, i32
  }
  func.func @transform_11(%arg0: i32) -> (i32, i32, i32) {
    %c0_i32 = arith.constant 0 : i32
    %c0_i32_0 = arith.constant 0 : i32
    %c0_i32_1 = arith.constant 0 : i32
    %c0_i32_2 = arith.constant 0 : i32
    return %c0_i32, %c0_i32_0, %c0_i32_1 : i32, i32, i32
  }
  func.func @transform_12(%arg0: i32) -> (i32, i32, i32) {
    %c0_i32 = arith.constant 0 : i32
    %c0_i32_0 = arith.constant 0 : i32
    %c0_i32_1 = arith.constant 0 : i32
    %c0_i32_2 = arith.constant 0 : i32
    return %c0_i32, %c0_i32_0, %c0_i32_1 : i32, i32, i32
  }
  func.func @transform_13(%arg0: i32) -> (i32, i32) {
    %c0_i32 = arith.constant 0 : i32
    %c0_i32_0 = arith.constant 0 : i32
    %c0_i32_1 = arith.constant 0 : i32
    return %c0_i32, %c0_i32_0 : i32, i32
  }
  func.func @transform_14(%arg0: i32) -> (i32, i32) {
    %c0_i32 = arith.constant 0 : i32
    %c0_i32_0 = arith.constant 0 : i32
    %c0_i32_1 = arith.constant 0 : i32
    return %c0_i32, %c0_i32_0 : i32, i32
  }
  func.func @transform_15(%arg0: i32) -> (i32, i32) {
    %c0_i32 = arith.constant 0 : i32
    %c0_i32_0 = arith.constant 0 : i32
    %c0_i32_1 = arith.constant 0 : i32
    return %c0_i32, %c0_i32_0 : i32, i32
  }
  func.func @transform_16(%arg0: i32) -> (i32, i32, i32) {
    %c0_i32 = arith.constant 0 : i32
    %c0_i32_0 = arith.constant 0 : i32
    %c0_i32_1 = arith.constant 0 : i32
    %c0_i32_2 = arith.constant 0 : i32
    return %c0_i32, %c0_i32_0, %c0_i32_1 : i32, i32, i32
  }
  func.func @transform_17(%arg0: i32) -> (i32, i32, i32) {
    %c0_i32 = arith.constant 0 : i32
    %c0_i32_0 = arith.constant 0 : i32
    %c0_i32_1 = arith.constant 0 : i32
    %c0_i32_2 = arith.constant 0 : i32
    return %c0_i32, %c0_i32_0, %c0_i32_1 : i32, i32, i32
  }
  func.func @transform_18(%arg0: i32) -> (i32, i32) {
    %c0_i32 = arith.constant 0 : i32
    %c0_i32_0 = arith.constant 0 : i32
    %c0_i32_1 = arith.constant 0 : i32
    return %c0_i32, %c0_i32_0 : i32, i32
  }
  func.func @transform_19(%arg0: i32) -> (i32, i32) {
    %c0_i32 = arith.constant 0 : i32
    %c0_i32_0 = arith.constant 0 : i32
    %c0_i32_1 = arith.constant 0 : i32
    return %c0_i32, %c0_i32_0 : i32, i32
  }
  func.func @transform_20(%arg0: i32) -> (i32, i32) {
    %c0_i32 = arith.constant 0 : i32
    %c0_i32_0 = arith.constant 0 : i32
    %c0_i32_1 = arith.constant 0 : i32
    return %c0_i32, %c0_i32_0 : i32, i32
  }
  func.func @transform_21(%arg0: i32) -> (i32, i32) {
    %c0_i32 = arith.constant 0 : i32
    %c0_i32_0 = arith.constant 0 : i32
    %c0_i32_1 = arith.constant 0 : i32
    return %c0_i32, %c0_i32_0 : i32, i32
  }
  func.func @transform_22(%arg0: i32) -> (i32, i32) {
    %c0_i32 = arith.constant 0 : i32
    %c0_i32_0 = arith.constant 0 : i32
    %c0_i32_1 = arith.constant 0 : i32
    return %c0_i32, %c0_i32_0 : i32, i32
  }
  func.func @transform_23(%arg0: i32) -> (i32, i32, i32) {
    %c0_i32 = arith.constant 0 : i32
    %c0_i32_0 = arith.constant 0 : i32
    %c0_i32_1 = arith.constant 0 : i32
    return %arg0, %c0_i32, %c0_i32_0 : i32, i32, i32
  }
}

</mosaic_0001>

<llo_original>
// kernel: dnet_forward.1
$region0: #{dnet_forward.1}
  #allocation0 [shape = 'u32[]', space=smem, size = 0x4, offset = 0x4, fixed_abs, tag = 'smem constant byte address 0x4 - core index']
  #allocation1 [shape = 'u32[144,128]{1,0:T(1,128)}', space=vmem, size = 0x12000, scoped, tag = 'internal scratch']
  #allocation2 [shape = 'f32[1,1]{1,0:T(1,128)S(1)}', space=vmem, size = 0x200, scoped, tag = 'scoped memory for dnet_forward.1']
  %s0 = inlined_call_operand.vmem [shape: f32[4,256,4], index: 0, kind: input, shape index: {}]
  %s1 = inlined_call_operand.vmem [shape: f32[256,256], index: 1, kind: input, shape index: {}]
  %s2 = inlined_call_operand.vmem [shape: f32[256,256], index: 2, kind: input, shape index: {}]
  %s3 = inlined_call_operand.vmem [shape: f32[256,256], index: 3, kind: input, shape index: {}]
  %s4 = inlined_call_operand.vmem [shape: f32[9,1,16], index: 4, kind: input, shape index: {}]
  %s5 = inlined_call_operand.vmem [shape: f32[1,16], index: 5, kind: input, shape index: {}]
  %s6 = inlined_call_operand.vmem [shape: bf16[9,64,256], index: 6, kind: input, shape index: {}]
  %s7 = inlined_call_operand.vmem [shape: bf16[9,16,32], index: 7, kind: input, shape index: {}]
  %s8 = inlined_call_operand.vmem [shape: f32[1,32], index: 8, kind: input, shape index: {}]
  %s9 = inlined_call_operand.vmem [shape: f32[1,32], index: 9, kind: input, shape index: {}]
  %s10 = inlined_call_operand.vmem [shape: f32[1,32], index: 10, kind: input, shape index: {}]
  %s11 = inlined_call_operand.vmem [shape: bf16[9,16,64], index: 11, kind: input, shape index: {}]
  %s12 = inlined_call_operand.vmem [shape: bf16[9,32,64], index: 12, kind: input, shape index: {}]
  %s13 = inlined_call_operand.vmem [shape: f32[1,64], index: 13, kind: input, shape index: {}]
  %s14 = inlined_call_operand.vmem [shape: f32[1,64], index: 14, kind: input, shape index: {}]
  %s15 = inlined_call_operand.vmem [shape: f32[1,64], index: 15, kind: input, shape index: {}]
  %s16 = inlined_call_operand.vmem [shape: bf16[9,4,16], index: 16, kind: input, shape index: {}]
  %s17 = inlined_call_operand.vmem [shape: bf16[9,64,128], index: 17, kind: input, shape index: {}]
  %s18 = inlined_call_operand.vmem [shape: f32[1,128], index: 18, kind: input, shape index: {}]
  %s19 = inlined_call_operand.vmem [shape: f32[1,128], index: 19, kind: input, shape index: {}]
  %s20 = inlined_call_operand.vmem [shape: f32[1,128], index: 20, kind: input, shape index: {}]
  %s21 = inlined_call_operand.vmem [shape: f32[4,128], index: 21, kind: input, shape index: {}]
  %s22 = inlined_call_operand.<no memory space> [shape: f32[1,1], index: 22, kind: input, shape index: {}]
  %s23 = inlined_call_operand.vmem [shape: f32[4,1,1], index: 23, kind: output, shape index: {}]
  %s24 = sld [smem:[#allocation0]]
  $region125: #{dnet_forward.1} parent=0
    _
  %s26 = ssub.s32 1, %s24
  %s27 = scalar_select 0, %s26, %s24
  %v28 = vstv %s22
  %29 = vst [vmem:[#allocation2] sm:$0x1] %v28
  loop: start=0, step=1, limit=6
  $region2: #{dnet_forward.1} parent=0 // loop_pre_header
    _
  $region3: #{dnet_forward.1} parent=0 // loop_header
    %s31 = sphi 0, %s35
    %p32 = scmp.ge.s32.totalorder %s31, 6
    %s41 = sphi 0, %s43
    %s44 = sphi 0, %s41
    %s45 = sphi 0, %s44
    %s61 = sphi 0, %s45
    %s65 = sphi 0, %s65
    %s67 = sphi 0, %s65
    %s68 = sphi 0, %s67
    %s82 = sphi 0, %s68
    %s86 = sphi 0, %s86
    %s88 = sphi 0, %s86
    %s89 = sphi 0, %s88
    %s103 = sphi 0, %s89
    %s107 = sphi 0, %s107
    %s109 = sphi 0, %s107
    %s110 = sphi 0, %s109
    %s124 = sphi 0, %s110
    %s128 = sphi 0, %s128
    %s130 = sphi 0, %s128
    %s131 = sphi 0, %s130
    %s145 = sphi 0, %s131
    %s149 = sphi 0, %s149
    %s151 = sphi 0, %s149
    %s152 = sphi 0, %s151
    %s166 = sphi 0, %s152
    %s170 = sphi 0, %s170
    %s172 = sphi 0, %s170
    %s173 = sphi 0, %s172
    %s187 = sphi 0, %s173
    %s191 = sphi 0, %s191
    %s193 = sphi 0, %s191
    %s194 = sphi 0, %s193
    %s208 = sphi 0, %s194
    %s212 = sphi 0, %s212
    %s214 = sphi 0, %s212
    %s215 = sphi 0, %s214
    %s229 = sphi 0, %s215
    %s233 = sphi 0, %s233
    %s235 = sphi 0, %s233
    %s236 = sphi 0, %s235
    %s250 = sphi 0, %s236
    %s254 = sphi 0, %s254
    %s256 = sphi 0, %s254
    %s257 = sphi 0, %s256
    %s271 = sphi 0, %s257
    %s275 = sphi 0, %s275
    %s277 = sphi 0, %s275
    %s278 = sphi 0, %s277
    %s292 = sphi 0, %s278
    %s296 = sphi 0, %s296
    %s298 = sphi 0, %s296
    %s299 = sphi 0, %s298
    %s313 = sphi 0, %s299
    %s317 = sphi 0, %s317
    %s319 = sphi 0, %s317
    %s320 = sphi 0, %s319
    %s334 = sphi 0, %s320
    %s338 = sphi 0, %s338
    %s340 = sphi 0, %s338
    %s341 = sphi 0, %s340
    %s355 = sphi 0, %s341
    %s359 = sphi 0, %s359
    %s361 = sphi 0, %s359
    %s362 = sphi 0, %s361
    %s376 = sphi 0, %s362
    %s380 = sphi 0, %s380
    %s382 = sphi 0, %s380
    %s383 = sphi 0, %s382
    %s397 = sphi 0, %s383
    %s401 = sphi 0, %s401
    %s403 = sphi 0, %s401
    %s404 = sphi 0, %s403
    %s418 = sphi 0, %s404
    %s422 = sphi 0, %s422
    %s424 = sphi 0, %s422
    %s425 = sphi 0, %s424
    %s439 = sphi 0, %s425
    %s443 = sphi 0, %s443
    %s445 = sphi 0, %s443
    %s446 = sphi 0, %s445
    %s460 = sphi 0, %s446
    %s464 = sphi 0, %s464
    %s466 = sphi 0, %s464
    %s467 = sphi 0, %s466
    %s481 = sphi 0, %s467
    %s485 = sphi 0, %s485
    %s487 = sphi 0, %s485
    %s488 = sphi 0, %s487
    %s502 = sphi 0, %s488
    %s506 = sphi 0, %s506
    %s508 = sphi 0, %s506
    %s509 = sphi 0, %s508
    %s523 = sphi 0, %s509
    %s529 = sphi 0, %s531
    %s532 = sphi 0, %s529
    %s533 = sphi 0, %s532
    %s549 = sphi 0, %s533
  $region4: #{dnet_forward.1} parent=0 // loop_header_branch
    %34 = sbr.rel (%p32) target = $region8
  $region5: #{dnet_forward.1} parent=0 // loop_body
    %s36 = ssub.s32 %s31, 1
    %s37 = ssub.s32 %s31, 2
    %s38 = sadd.s32 %s31, 1
    %s39 = ssub.s32 %s31, %s38
    %p40 = scmp.eq.s32.totalorder %s39, 0
    %s42 = sadd.s32 %s41, 1
    %s43 = scalar_select %p40, %s41, %s42
    %p46 = pneg %p40
    %p47 = scmp.eq.s32.totalorder %s31, 3
    %p48 = por %p46, %p47
    %p49 = scmp.ne.s32.totalorder %s41, %s44
    %p50 = scmp.eq.s32.totalorder %s31, 0
    %p51 = por %p49, %p50
    %p52 = scmp.ne.s32.totalorder %s41, %s44
    %p53 = scmp.eq.s32.totalorder %s36, 3
    %p54 = por %p52, %p53
    %p55 = scmp.ne.s32.totalorder %s44, %s45
    %p56 = scmp.eq.s32.totalorder %s36, 0
    %p57 = por %p55, %p56
    %p58 = scmp.ne.s32.totalorder %s44, %s45
    %p59 = scmp.eq.s32.totalorder %s37, 3
    %p60 = por %p58, %p59
    %p62 = scmp.ne.s32.totalorder %s45, %s61
    %p63 = scmp.eq.s32.totalorder %s37, 0
    %p64 = por %p62, %p63
    %s66 = sadd.s32 %s65, 1
    %p69 = scmp.eq.s32.totalorder %s31, 3
    %p70 = scmp.ne.s32.totalorder %s65, %s67
    %p71 = scmp.eq.s32.totalorder %s31, 0
    %p72 = por %p70, %p71
    %p73 = scmp.ne.s32.totalorder %s65, %s67
    %p74 = scmp.eq.s32.totalorder %s36, 3
    %p75 = por %p73, %p74
    %p76 = scmp.ne.s32.totalorder %s67, %s68
    %p77 = scmp.eq.s32.totalorder %s36, 0
    %p78 = por %p76, %p77
    %p79 = scmp.ne.s32.totalorder %s67, %s68
    %p80 = scmp.eq.s32.totalorder %s37, 3
    %p81 = por %p79, %p80
    %p83 = scmp.ne.s32.totalorder %s68, %s82
    %p84 = scmp.eq.s32.totalorder %s37, 0
    %p85 = por %p83, %p84
    %s87 = sadd.s32 %s86, 1
    %p90 = scmp.eq.s32.totalorder %s31, 3
    %p91 = scmp.ne.s32.totalorder %s86, %s88
    %p92 = scmp.eq.s32.totalorder %s31, 0
    %p93 = por %p91, %p92
    %p94 = scmp.ne.s32.totalorder %s86, %s88
    %p95 = scmp.eq.s32.totalorder %s36, 3
    %p96 = por %p94, %p95
    %p97 = scmp.ne.s32.totalorder %s88, %s89
    %p98 = scmp.eq.s32.totalorder %s36, 0
    %p99 = por %p97, %p98
    %p100 = scmp.ne.s32.totalorder %s88, %s89
    %p101 = scmp.eq.s32.totalorder %s37, 3
    %p102 = por %p100, %p101
    %p104 = scmp.ne.s32.totalorder %s89, %s103
    %p105 = scmp.eq.s32.totalorder %s37, 0
    %p106 = por %p104, %p105
    %s108 = sadd.s32 %s107, 1
    %p111 = scmp.eq.s32.totalorder %s31, 3
    %p112 = scmp.ne.s32.totalorder %s107, %s109
    %p113 = scmp.eq.s32.totalorder %s31, 0
    %p114 = por %p112, %p113
    %p115 = scmp.ne.s32.totalorder %s107, %s109
    %p116 = scmp.eq.s32.totalorder %s36, 3
    %p117 = por %p115, %p116
    %p118 = scmp.ne.s32.totalorder %s109, %s110
    %p119 = scmp.eq.s32.totalorder %s36, 0
    %p120 = por %p118, %p119
    %p121 = scmp.ne.s32.totalorder %s109, %s110
    %p122 = scmp.eq.s32.totalorder %s37, 3
    %p123 = por %p121, %p122
    %p125 = scmp.ne.s32.totalorder %s110, %s124
    %p126 = scmp.eq.s32.totalorder %s37, 0
    %p127 = por %p125, %p126
    %s129 = sadd.s32 %s128, 1
    %p132 = scmp.eq.s32.totalorder %s31, 3
    %p133 = scmp.ne.s32.totalorder %s128, %s130
    %p134 = scmp.eq.s32.totalorder %s31, 0
    %p135 = por %p133, %p134
    %p136 = scmp.ne.s32.totalorder %s128, %s130
    %p137 = scmp.eq.s32.totalorder %s36, 3
    %p138 = por %p136, %p137
    %p139 = scmp.ne.s32.totalorder %s130, %s131
    %p140 = scmp.eq.s32.totalorder %s36, 0
    %p141 = por %p139, %p140
    %p142 = scmp.ne.s32.totalorder %s130, %s131
    %p143 = scmp.eq.s32.totalorder %s37, 3
    %p144 = por %p142, %p143
    %p146 = scmp.ne.s32.totalorder %s131, %s145
    %p147 = scmp.eq.s32.totalorder %s37, 0
    %p148 = por %p146, %p147
    %s150 = sadd.s32 %s149, 1
    %p153 = scmp.eq.s32.totalorder %s31, 3
    %p154 = scmp.ne.s32.totalorder %s149, %s151
    %p155 = scmp.eq.s32.totalorder %s31, 0
    %p156 = por %p154, %p155
    %p157 = scmp.ne.s32.totalorder %s149, %s151
    %p158 = scmp.eq.s32.totalorder %s36, 3
    %p159 = por %p157, %p158
    %p160 = scmp.ne.s32.totalorder %s151, %s152
    %p161 = scmp.eq.s32.totalorder %s36, 0
    %p162 = por %p160, %p161
    %p163 = scmp.ne.s32.totalorder %s151, %s152
    %p164 = scmp.eq.s32.totalorder %s37, 3
    %p165 = por %p163, %p164
    %p167 = scmp.ne.s32.totalorder %s152, %s166
    %p168 = scmp.eq.s32.totalorder %s37, 0
    %p169 = por %p167, %p168
    %s171 = sadd.s32 %s170, 1
    %p174 = scmp.eq.s32.totalorder %s31, 3
    %p175 = scmp.ne.s32.totalorder %s170, %s172
    %p176 = scmp.eq.s32.totalorder %s31, 0
    %p177 = por %p175, %p176
    %p178 = scmp.ne.s32.totalorder %s170, %s172
    %p179 = scmp.eq.s32.totalorder %s36, 3
    %p180 = por %p178, %p179
    %p181 = scmp.ne.s32.totalorder %s172, %s173
    %p182 = scmp.eq.s32.totalorder %s36, 0
    %p183 = por %p181, %p182
    %p184 = scmp.ne.s32.totalorder %s172, %s173
    %p185 = scmp.eq.s32.totalorder %s37, 3
    %p186 = por %p184, %p185
    %p188 = scmp.ne.s32.totalorder %s173, %s187
    %p189 = scmp.eq.s32.totalorder %s37, 0
    %p190 = por %p188, %p189
    %s192 = sadd.s32 %s191, 1
    %p195 = scmp.eq.s32.totalorder %s31, 3
    %p196 = scmp.ne.s32.totalorder %s191, %s193
    %p197 = scmp.eq.s32.totalorder %s31, 0
    %p198 = por %p196, %p197
    %p199 = scmp.ne.s32.totalorder %s191, %s193
    %p200 = scmp.eq.s32.totalorder %s36, 3
    %p201 = por %p199, %p200
    %p202 = scmp.ne.s32.totalorder %s193, %s194
    %p203 = scmp.eq.s32.totalorder %s36, 0
    %p204 = por %p202, %p203
    %p205 = scmp.ne.s32.totalorder %s193, %s194
    %p206 = scmp.eq.s32.totalorder %s37, 3
    %p207 = por %p205, %p206
    %p209 = scmp.ne.s32.totalorder %s194, %s208
    %p210 = scmp.eq.s32.totalorder %s37, 0
    %p211 = por %p209, %p210
    %s213 = sadd.s32 %s212, 1
    %p216 = scmp.eq.s32.totalorder %s31, 3
    %p217 = scmp.ne.s32.totalorder %s212, %s214
    %p218 = scmp.eq.s32.totalorder %s31, 0
    %p219 = por %p217, %p218
    %p220 = scmp.ne.s32.totalorder %s212, %s214
    %p221 = scmp.eq.s32.totalorder %s36, 3
    %p222 = por %p220, %p221
    %p223 = scmp.ne.s32.totalorder %s214, %s215
    %p224 = scmp.eq.s32.totalorder %s36, 0
    %p225 = por %p223, %p224
    %p226 = scmp.ne.s32.totalorder %s214, %s215
    %p227 = scmp.eq.s32.totalorder %s37, 3
    %p228 = por %p226, %p227
    %p230 = scmp.ne.s32.totalorder %s215, %s229
    %p231 = scmp.eq.s32.totalorder %s37, 0
    %p232 = por %p230, %p231
    %s234 = sadd.s32 %s233, 1
    %p237 = scmp.eq.s32.totalorder %s31, 3
    %p238 = scmp.ne.s32.totalorder %s233, %s235
    %p239 = scmp.eq.s32.totalorder %s31, 0
    %p240 = por %p238, %p239
    %p241 = scmp.ne.s32.totalorder %s233, %s235
    %p242 = scmp.eq.s32.totalorder %s36, 3
    %p243 = por %p241, %p242
    %p244 = scmp.ne.s32.totalorder %s235, %s236
    %p245 = scmp.eq.s32.totalorder %s36, 0
    %p246 = por %p244, %p245
    %p247 = scmp.ne.s32.totalorder %s235, %s236
    %p248 = scmp.eq.s32.totalorder %s37, 3
    %p249 = por %p247, %p248
    %p251 = scmp.ne.s32.totalorder %s236, %s250
    %p252 = scmp.eq.s32.totalorder %s37, 0
    %p253 = por %p251, %p252
    %s255 = sadd.s32 %s254, 1
    %p258 = scmp.eq.s32.totalorder %s31, 3
    %p259 = scmp.ne.s32.totalorder %s254, %s256
    %p260 = scmp.eq.s32.totalorder %s31, 0
    %p261 = por %p259, %p260
    %p262 = scmp.ne.s32.totalorder %s254, %s256
    %p263 = scmp.eq.s32.totalorder %s36, 3
    %p264 = por %p262, %p263
    %p265 = scmp.ne.s32.totalorder %s256, %s257
    %p266 = scmp.eq.s32.totalorder %s36, 0
    %p267 = por %p265, %p266
    %p268 = scmp.ne.s32.totalorder %s256, %s257
    %p269 = scmp.eq.s32.totalorder %s37, 3
    %p270 = por %p268, %p269
    %p272 = scmp.ne.s32.totalorder %s257, %s271
    %p273 = scmp.eq.s32.totalorder %s37, 0
    %p274 = por %p272, %p273
    %s276 = sadd.s32 %s275, 1
    %p279 = scmp.eq.s32.totalorder %s31, 3
    %p280 = scmp.ne.s32.totalorder %s275, %s277
    %p281 = scmp.eq.s32.totalorder %s31, 0
    %p282 = por %p280, %p281
    %p283 = scmp.ne.s32.totalorder %s275, %s277
    %p284 = scmp.eq.s32.totalorder %s36, 3
    %p285 = por %p283, %p284
    %p286 = scmp.ne.s32.totalorder %s277, %s278
    %p287 = scmp.eq.s32.totalorder %s36, 0
    %p288 = por %p286, %p287
    %p289 = scmp.ne.s32.totalorder %s277, %s278
    %p290 = scmp.eq.s32.totalorder %s37, 3
    %p291 = por %p289, %p290
    %p293 = scmp.ne.s32.totalorder %s278, %s292
    %p294 = scmp.eq.s32.totalorder %s37, 0
    %p295 = por %p293, %p294
    %s297 = sadd.s32 %s296, 1
    %p300 = scmp.eq.s32.totalorder %s31, 3
    %p301 = scmp.ne.s32.totalorder %s296, %s298
    %p302 = scmp.eq.s32.totalorder %s31, 0
    %p303 = por %p301, %p302
    %p304 = scmp.ne.s32.totalorder %s296, %s298
    %p305 = scmp.eq.s32.totalorder %s36, 3
    %p306 = por %p304, %p305
    %p307 = scmp.ne.s32.totalorder %s298, %s299
    %p308 = scmp.eq.s32.totalorder %s36, 0
    %p309 = por %p307, %p308
    %p310 = scmp.ne.s32.totalorder %s298, %s299
    %p311 = scmp.eq.s32.totalorder %s37, 3
    %p312 = por %p310, %p311
    %p314 = scmp.ne.s32.totalorder %s299, %s313
    %p315 = scmp.eq.s32.totalorder %s37, 0
    %p316 = por %p314, %p315
    %s318 = sadd.s32 %s317, 1
    %p321 = scmp.eq.s32.totalorder %s31, 3
    %p322 = scmp.ne.s32.totalorder %s317, %s319
    %p323 = scmp.eq.s32.totalorder %s31, 0
    %p324 = por %p322, %p323
    %p325 = scmp.ne.s32.totalorder %s317, %s319
    %p326 = scmp.eq.s32.totalorder %s36, 3
    %p327 = por %p325, %p326
    %p328 = scmp.ne.s32.totalorder %s319, %s320
    %p329 = scmp.eq.s32.totalorder %s36, 0
    %p330 = por %p328, %p329
    %p331 = scmp.ne.s32.totalorder %s319, %s320
    %p332 = scmp.eq.s32.totalorder %s37, 3
    %p333 = por %p331, %p332
    %p335 = scmp.ne.s32.totalorder %s320, %s334
    %p336 = scmp.eq.s32.totalorder %s37, 0
    %p337 = por %p335, %p336
    %s339 = sadd.s32 %s338, 1
    %p342 = scmp.eq.s32.totalorder %s31, 3
    %p343 = scmp.ne.s32.totalorder %s338, %s340
    %p344 = scmp.eq.s32.totalorder %s31, 0
    %p345 = por %p343, %p344
    %p346 = scmp.ne.s32.totalorder %s338, %s340
    %p347 = scmp.eq.s32.totalorder %s36, 3
    %p348 = por %p346, %p347
    %p349 = scmp.ne.s32.totalorder %s340, %s341
    %p350 = scmp.eq.s32.totalorder %s36, 0
    %p351 = por %p349, %p350
    %p352 = scmp.ne.s32.totalorder %s340, %s341
    %p353 = scmp.eq.s32.totalorder %s37, 3
    %p354 = por %p352, %p353
    %p356 = scmp.ne.s32.totalorder %s341, %s355
    %p357 = scmp.eq.s32.totalorder %s37, 0
    %p358 = por %p356, %p357
    %s360 = sadd.s32 %s359, 1
    %p363 = scmp.eq.s32.totalorder %s31, 3
    %p364 = scmp.ne.s32.totalorder %s359, %s361
    %p365 = scmp.eq.s32.totalorder %s31, 0
    %p366 = por %p364, %p365
    %p367 = scmp.ne.s32.totalorder %s359, %s361
    %p368 = scmp.eq.s32.totalorder %s36, 3
    %p369 = por %p367, %p368
    %p370 = scmp.ne.s32.totalorder %s361, %s362
    %p371 = scmp.eq.s32.totalorder %s36, 0
    %p372 = por %p370, %p371
    %p373 = scmp.ne.s32.totalorder %s361, %s362
    %p374 = scmp.eq.s32.totalorder %s37, 3
    %p375 = por %p373, %p374
    %p377 = scmp.ne.s32.totalorder %s362, %s376
    %p378 = scmp.eq.s32.totalorder %s37, 0
    %p379 = por %p377, %p378
    %s381 = sadd.s32 %s380, 1
    %p384 = scmp.eq.s32.totalorder %s31, 3
    %p385 = scmp.ne.s32.totalorder %s380, %s382
    %p386 = scmp.eq.s32.totalorder %s31, 0
    %p387 = por %p385, %p386
    %p388 = scmp.ne.s32.totalorder %s380, %s382
    %p389 = scmp.eq.s32.totalorder %s36, 3
    %p390 = por %p388, %p389
    %p391 = scmp.ne.s32.totalorder %s382, %s383
    %p392 = scmp.eq.s32.totalorder %s36, 0
    %p393 = por %p391, %p392
    %p394 = scmp.ne.s32.totalorder %s382, %s383
    %p395 = scmp.eq.s32.totalorder %s37, 3
    %p396 = por %p394, %p395
    %p398 = scmp.ne.s32.totalorder %s383, %s397
    %p399 = scmp.eq.s32.totalorder %s37, 0
    %p400 = por %p398, %p399
    %s402 = sadd.s32 %s401, 1
    %p405 = scmp.eq.s32.totalorder %s31, 3
    %p406 = scmp.ne.s32.totalorder %s401, %s403
    %p407 = scmp.eq.s32.totalorder %s31, 0
    %p408 = por %p406, %p407
    %p409 = scmp.ne.s32.totalorder %s401, %s403
    %p410 = scmp.eq.s32.totalorder %s36, 3
    %p411 = por %p409, %p410
    %p412 = scmp.ne.s32.totalorder %s403, %s404
    %p413 = scmp.eq.s32.totalorder %s36, 0
    %p414 = por %p412, %p413
    %p415 = scmp.ne.s32.totalorder %s403, %s404
    %p416 = scmp.eq.s32.totalorder %s37, 3
    %p417 = por %p415, %p416
    %p419 = scmp.ne.s32.totalorder %s404, %s418
    %p420 = scmp.eq.s32.totalorder %s37, 0
    %p421 = por %p419, %p420
    %s423 = sadd.s32 %s422, 1
    %p426 = scmp.eq.s32.totalorder %s31, 3
    %p427 = scmp.ne.s32.totalorder %s422, %s424
    %p428 = scmp.eq.s32.totalorder %s31, 0
    %p429 = por %p427, %p428
    %p430 = scmp.ne.s32.totalorder %s422, %s424
    %p431 = scmp.eq.s32.totalorder %s36, 3
    %p432 = por %p430, %p431
    %p433 = scmp.ne.s32.totalorder %s424, %s425
    %p434 = scmp.eq.s32.totalorder %s36, 0
    %p435 = por %p433, %p434
    %p436 = scmp.ne.s32.totalorder %s424, %s425
    %p437 = scmp.eq.s32.totalorder %s37, 3
    %p438 = por %p436, %p437
    %p440 = scmp.ne.s32.totalorder %s425, %s439
    %p441 = scmp.eq.s32.totalorder %s37, 0
    %p442 = por %p440, %p441
    %s444 = sadd.s32 %s443, 1
    %p447 = scmp.eq.s32.totalorder %s31, 3
    %p448 = scmp.ne.s32.totalorder %s443, %s445
    %p449 = scmp.eq.s32.totalorder %s31, 0
    %p450 = por %p448, %p449
    %p451 = scmp.ne.s32.totalorder %s443, %s445
    %p452 = scmp.eq.s32.totalorder %s36, 3
    %p453 = por %p451, %p452
    %p454 = scmp.ne.s32.totalorder %s445, %s446
    %p455 = scmp.eq.s32.totalorder %s36, 0
    %p456 = por %p454, %p455
    %p457 = scmp.ne.s32.totalorder %s445, %s446
    %p458 = scmp.eq.s32.totalorder %s37, 3
    %p459 = por %p457, %p458
    %p461 = scmp.ne.s32.totalorder %s446, %s460
    %p462 = scmp.eq.s32.totalorder %s37, 0
    %p463 = por %p461, %p462
    %s465 = sadd.s32 %s464, 1
    %p468 = scmp.eq.s32.totalorder %s31, 3
    %p469 = scmp.ne.s32.totalorder %s464, %s466
    %p470 = scmp.eq.s32.totalorder %s31, 0
    %p471 = por %p469, %p470
    %p472 = scmp.ne.s32.totalorder %s464, %s466
    %p473 = scmp.eq.s32.totalorder %s36, 3
    %p474 = por %p472, %p473
    %p475 = scmp.ne.s32.totalorder %s466, %s467
    %p476 = scmp.eq.s32.totalorder %s36, 0
    %p477 = por %p475, %p476
    %p478 = scmp.ne.s32.totalorder %s466, %s467
    %p479 = scmp.eq.s32.totalorder %s37, 3
    %p480 = por %p478, %p479
    %p482 = scmp.ne.s32.totalorder %s467, %s481
    %p483 = scmp.eq.s32.totalorder %s37, 0
    %p484 = por %p482, %p483
    %s486 = sadd.s32 %s485, 1
    %p489 = scmp.eq.s32.totalorder %s31, 3
    %p490 = scmp.ne.s32.totalorder %s485, %s487
    %p491 = scmp.eq.s32.totalorder %s31, 0
    %p492 = por %p490, %p491
    %p493 = scmp.ne.s32.totalorder %s485, %s487
    %p494 = scmp.eq.s32.totalorder %s36, 3
    %p495 = por %p493, %p494
    %p496 = scmp.ne.s32.totalorder %s487, %s488
    %p497 = scmp.eq.s32.totalorder %s36, 0
    %p498 = por %p496, %p497
    %p499 = scmp.ne.s32.totalorder %s487, %s488
    %p500 = scmp.eq.s32.totalorder %s37, 3
    %p501 = por %p499, %p500
    %p503 = scmp.ne.s32.totalorder %s488, %s502
    %p504 = scmp.eq.s32.totalorder %s37, 0
    %p505 = por %p503, %p504
    %s507 = sadd.s32 %s506, 1
    %p510 = scmp.eq.s32.totalorder %s31, 3
    %p511 = scmp.ne.s32.totalorder %s506, %s508
    %p512 = scmp.eq.s32.totalorder %s31, 0
    %p513 = por %p511, %p512
    %p514 = scmp.ne.s32.totalorder %s506, %s508
    %p515 = scmp.eq.s32.totalorder %s36, 3
    %p516 = por %p514, %p515
    %p517 = scmp.ne.s32.totalorder %s508, %s509
    %p518 = scmp.eq.s32.totalorder %s36, 0
    %p519 = por %p517, %p518
    %p520 = scmp.ne.s32.totalorder %s508, %s509
    %p521 = scmp.eq.s32.totalorder %s37, 3
    %p522 = por %p520, %p521
    %p524 = scmp.ne.s32.totalorder %s509, %s523
    %p525 = scmp.eq.s32.totalorder %s37, 0
    %p526 = por %p524, %p525
    %s527 = ssub.s32 %s31, %s38
    %p528 = scmp.eq.s32.totalorder %s527, 0
    %s530 = sadd.s32 %s529, 1
    %s531 = scalar_select %p528, %s529, %s530
    %p534 = pneg %p528
    %p535 = scmp.eq.s32.totalorder %s31, 3
    %p536 = por %p534, %p535
    %p537 = scmp.ne.s32.totalorder %s529, %s532
    %p538 = scmp.eq.s32.totalorder %s31, 0
    %p539 = por %p537, %p538
    %p540 = scmp.ne.s32.totalorder %s529, %s532
    %p541 = scmp.eq.s32.totalorder %s36, 3
    %p542 = por %p540, %p541
    %p543 = scmp.ne.s32.totalorder %s532, %s533
    %p544 = scmp.eq.s32.totalorder %s36, 0
    %p545 = por %p543, %p544
    %p546 = scmp.ne.s32.totalorder %s532, %s533
    %p547 = scmp.eq.s32.totalorder %s37, 3
    %p548 = por %p546, %p547
    %p550 = scmp.ne.s32.totalorder %s533, %s549
    %p551 = scmp.eq.s32.totalorder %s37, 0
    %p552 = por %p550, %p551
    %p553 = scmp.le.s32.totalorder 1, %s31
    %p554 = scmp.lt.s32.totalorder %s31, 5
    %p555 = pnand %p553, %p554
    %p556 = pneg %p555
    // Predicated region
    $region9: #{dnet_forward.1} parent=5 // pred_check
      _
    $region10: #{dnet_forward.1} parent=5 // pred_check_branch
      %558 = sbr.rel (%p555) target = $region12
    $region11: #{dnet_forward.1} parent=5 // pred_region
      %s559 = ssub.s32 %s31, 1
      // Predicated region
      $region13: #{dnet_forward.1} parent=11 // pred_check
        %p560 = pneg %p78
      $region14: #{dnet_forward.1} parent=11 // pred_check_branch
        %562 = sbr.rel (%p560) target = $region16
      $region15: #{dnet_forward.1} parent=11 // pred_region
        _
      $region16: #{dnet_forward.1} parent=11 // pred_fallthru
        _
      // Predicated region
      $region17: #{dnet_forward.1} parent=11 // pred_check
        %p563 = pneg %p99
      $region18: #{dnet_forward.1} parent=11 // pred_check_branch
        %565 = sbr.rel (%p563) target = $region20
      $region19: #{dnet_forward.1} parent=11 // pred_region
        _
      $region20: #{dnet_forward.1} parent=11 // pred_fallthru
        _
      // Predicated region
      $region21: #{dnet_forward.1} parent=11 // pred_check
        %p566 = pneg %p120
      $region22: #{dnet_forward.1} parent=11 // pred_check_branch
        %568 = sbr.rel (%p566) target = $region24
      $region23: #{dnet_forward.1} parent=11 // pred_region
        _
      $region24: #{dnet_forward.1} parent=11 // pred_fallthru
        _
      // Predicated region
      $region25: #{dnet_forward.1} parent=11 // pred_check
        %p569 = pneg %p141
      $region26: #{dnet_forward.1} parent=11 // pred_check_branch
        %571 = sbr.rel (%p569) target = $region28
      $region27: #{dnet_forward.1} parent=11 // pred_region
        _
      $region28: #{dnet_forward.1} parent=11 // pred_fallthru
        _
      // Predicated region
      $region29: #{dnet_forward.1} parent=11 // pred_check
        %p572 = pneg %p162
      $region30: #{dnet_forward.1} parent=11 // pred_check_branch
        %574 = sbr.rel (%p572) target = $region32
      $region31: #{dnet_forward.1} parent=11 // pred_region
        _
      $region32: #{dnet_forward.1} parent=11 // pred_fallthru
        _
      // Predicated region
      $region33: #{dnet_forward.1} parent=11 // pred_check
        %p575 = pneg %p183
      $region34: #{dnet_forward.1} parent=11 // pred_check_branch
        %577 = sbr.rel (%p575) target = $region36
      $region35: #{dnet_forward.1} parent=11 // pred_region
        _
      $region36: #{dnet_forward.1} parent=11 // pred_fallthru
        _
      // Predicated region
      $region37: #{dnet_forward.1} parent=11 // pred_check
        %p578 = pneg %p204
      $region38: #{dnet_forward.1} parent=11 // pred_check_branch
        %580 = sbr.rel (%p578) target = $region40
      $region39: #{dnet_forward.1} parent=11 // pred_region
        _
      $region40: #{dnet_forward.1} parent=11 // pred_fallthru
        _
      // Predicated region
      $region41: #{dnet_forward.1} parent=11 // pred_check
        %p581 = pneg %p225
      $region42: #{dnet_forward.1} parent=11 // pred_check_branch
        %583 = sbr.rel (%p581) target = $region44
      $region43: #{dnet_forward.1} parent=11 // pred_region
        _
      $region44: #{dnet_forward.1} parent=11 // pred_fallthru
        _
      // Predicated region
      $region45: #{dnet_forward.1} parent=11 // pred_check
        %p584 = pneg %p246
      $region46: #{dnet_forward.1} parent=11 // pred_check_branch
        %586 = sbr.rel (%p584) target = $region48
      $region47: #{dnet_forward.1} parent=11 // pred_region
        _
      $region48: #{dnet_forward.1} parent=11 // pred_fallthru
        _
      // Predicated region
      $region49: #{dnet_forward.1} parent=11 // pred_check
        %p587 = pneg %p267
      $region50: #{dnet_forward.1} parent=11 // pred_check_branch
        %589 = sbr.rel (%p587) target = $region52
      $region51: #{dnet_forward.1} parent=11 // pred_region
        _
      $region52: #{dnet_forward.1} parent=11 // pred_fallthru
        _
      // Predicated region
      $region53: #{dnet_forward.1} parent=11 // pred_check
        %p590 = pneg %p288
      $region54: #{dnet_forward.1} parent=11 // pred_check_branch
        %592 = sbr.rel (%p590) target = $region56
      $region55: #{dnet_forward.1} parent=11 // pred_region
        _
      $region56: #{dnet_forward.1} parent=11 // pred_fallthru
        _
      // Predicated region
      $region57: #{dnet_forward.1} parent=11 // pred_check
        %p593 = pneg %p309
      $region58: #{dnet_forward.1} parent=11 // pred_check_branch
        %595 = sbr.rel (%p593) target = $region60
      $region59: #{dnet_forward.1} parent=11 // pred_region
        _
      $region60: #{dnet_forward.1} parent=11 // pred_fallthru
        _
      // Predicated region
      $region61: #{dnet_forward.1} parent=11 // pred_check
        %p596 = pneg %p330
      $region62: #{dnet_forward.1} parent=11 // pred_check_branch
        %598 = sbr.rel (%p596) target = $region64
      $region63: #{dnet_forward.1} parent=11 // pred_region
        _
      $region64: #{dnet_forward.1} parent=11 // pred_fallthru
        _
      // Predicated region
      $region65: #{dnet_forward.1} parent=11 // pred_check
        %p599 = pneg %p351
      $region66: #{dnet_forward.1} parent=11 // pred_check_branch
        %601 = sbr.rel (%p599) target = $region68
      $region67: #{dnet_forward.1} parent=11 // pred_region
        _
      $region68: #{dnet_forward.1} parent=11 // pred_fallthru
        _
      // Predicated region
      $region69: #{dnet_forward.1} parent=11 // pred_check
        %p602 = pneg %p372
      $region70: #{dnet_forward.1} parent=11 // pred_check_branch
        %604 = sbr.rel (%p602) target = $region72
      $region71: #{dnet_forward.1} parent=11 // pred_region
        _
      $region72: #{dnet_forward.1} parent=11 // pred_fallthru
        _
      // Predicated region
      $region73: #{dnet_forward.1} parent=11 // pred_check
        %p605 = pneg %p393
      $region74: #{dnet_forward.1} parent=11 // pred_check_branch
        %607 = sbr.rel (%p605) target = $region76
      $region75: #{dnet_forward.1} parent=11 // pred_region
        _
      $region76: #{dnet_forward.1} parent=11 // pred_fallthru
        _
      // Predicated region
      $region77: #{dnet_forward.1} parent=11 // pred_check
        %p608 = pneg %p414
      $region78: #{dnet_forward.1} parent=11 // pred_check_branch
        %610 = sbr.rel (%p608) target = $region80
      $region79: #{dnet_forward.1} parent=11 // pred_region
        _
      $region80: #{dnet_forward.1} parent=11 // pred_fallthru
        _
      // Predicated region
      $region81: #{dnet_forward.1} parent=11 // pred_check
        %p611 = pneg %p435
      $region82: #{dnet_forward.1} parent=11 // pred_check_branch
        %613 = sbr.rel (%p611) target = $region84
      $region83: #{dnet_forward.1} parent=11 // pred_region
        _
      $region84: #{dnet_forward.1} parent=11 // pred_fallthru
        _
      // Predicated region
      $region85: #{dnet_forward.1} parent=11 // pred_check
        %p614 = pneg %p456
      $region86: #{dnet_forward.1} parent=11 // pred_check_branch
        %616 = sbr.rel (%p614) target = $region88
      $region87: #{dnet_forward.1} parent=11 // pred_region
        _
      $region88: #{dnet_forward.1} parent=11 // pred_fallthru
        _
      // Predicated region
      $region89: #{dnet_forward.1} parent=11 // pred_check
        %p617 = pneg %p477
      $region90: #{dnet_forward.1} parent=11 // pred_check_branch
        %619 = sbr.rel (%p617) target = $region92
      $region91: #{dnet_forward.1} parent=11 // pred_region
        _
      $region92: #{dnet_forward.1} parent=11 // pred_fallthru
        _
      // Predicated region
      $region93: #{dnet_forward.1} parent=11 // pred_check
        %p620 = pneg %p498
      $region94: #{dnet_forward.1} parent=11 // pred_check_branch
        %622 = sbr.rel (%p620) target = $region96
      $region95: #{dnet_forward.1} parent=11 // pred_region
        _
      $region96: #{dnet_forward.1} parent=11 // pred_fallthru
        _
      // Predicated region
      $region97: #{dnet_forward.1} parent=11 // pred_check
        %p623 = pneg %p519
      $region98: #{dnet_forward.1} parent=11 // pred_check_branch
        %625 = sbr.rel (%p623) target = $region100
      $region99: #{dnet_forward.1} parent=11 // pred_region
        _
      $region100: #{dnet_forward.1} parent=11 // pred_fallthru
        _
    $region12: #{dnet_forward.1} parent=5 // pred_fallthru
      _
    %p626 = scmp.lt.s32.totalorder %s31, 4
    // Predicated region
    $region101: #{dnet_forward.1} parent=5 // pred_check
      %p627 = pneg %p626
    $region102: #{dnet_forward.1} parent=5 // pred_check_branch
      %629 = sbr.rel (%p627) target = $region104
    $region103: #{dnet_forward.1} parent=5 // pred_region
      // Predicated region
      $region105: #{dnet_forward.1} parent=103 // pred_check
        %p630 = pneg %p51
      $region106: #{dnet_forward.1} parent=103 // pred_check_branch
        %632 = sbr.rel (%p630) target = $region108
      $region107: #{dnet_forward.1} parent=103 // pred_region
        %p633 = scmp.lt.s32.totalorder %s31, 3
        %s634 = scalar_select %p633, %s31, 3
        %s635 = smul.addr %s634, 32
        %s636 = smul.addr %s635, 8
        %s637 = scalar_lea.vmem %s0, %s636
      $region108: #{dnet_forward.1} parent=103 // pred_fallthru
        _
    $region104: #{dnet_forward.1} parent=5 // pred_fallthru
      _
    %p638 = scmp.le.s32.totalorder 1, %s31
    %p639 = scmp.lt.s32.totalorder %s31, 5
    %p640 = pnand %p638, %p639
    %p641 = pneg %p640
    // Predicated region
    $region109: #{dnet_forward.1} parent=5 // pred_check
      _
    $region110: #{dnet_forward.1} parent=5 // pred_check_branch
      %643 = sbr.rel (%p640) target = $region112
    $region111: #{dnet_forward.1} parent=5 // pred_region
      %s644 = ssub.s32 %s31, 1
      %p645 = scmp.lt.s32.totalorder %s36, 3
      %s646 = scalar_select %p645, %s36, 3
      %s647 = smul.addr %s646, 32
      %s648 = smul.addr %s647, 8
      %s649 = scalar_lea.vmem %s0, %s648
      %p650 = pneg %p57
      %p651 = pneg %p54
      %p652 = pneg %p78
      %p653 = pneg %p75
      %p654 = pneg %p99
      %p655 = pneg %p96
      %p656 = pneg %p120
      %p657 = pneg %p117
      %p658 = pneg %p141
      %p659 = pneg %p138
      %p660 = pneg %p162
      %p661 = pneg %p159
      %p662 = pneg %p183
      %p663 = pneg %p180
      %p664 = pneg %p204
      %p665 = pneg %p201
      %p666 = pneg %p225
      %p667 = pneg %p222
      %p668 = pneg %p246
      %p669 = pneg %p243
      %p670 = pneg %p267
      %p671 = pneg %p264
      %p672 = pneg %p288
      %p673 = pneg %p285
      %p674 = pneg %p309
      %p675 = pneg %p306
      %p676 = pneg %p330
      %p677 = pneg %p327
      %p678 = pneg %p351
      %p679 = pneg %p348
      %p680 = pneg %p372
      %p681 = pneg %p369
      %p682 = pneg %p393
      %p683 = pneg %p390
      %p684 = pneg %p414
      %p685 = pneg %p411
      %p686 = pneg %p435
      %p687 = pneg %p432
      %p688 = pneg %p456
      %p689 = pneg %p453
      %p690 = pneg %p477
      %p691 = pneg %p474
      %p692 = pneg %p498
      %p693 = pneg %p495
      %p694 = pneg %p519
      %p695 = pneg %p516
      %p696 = pneg %p545
      %p697 = pneg %p542
      %p698 = scmp.lt.s32.totalorder %s36, 3
      %s699 = scalar_select %p698, %s36, 3
      %s700 = scalar_lea.vmem %s23, %s699
      %p701 = scmp.lt.s32.totalorder %s36, 3
      %s702 = scalar_select %p701, %s36, 3
      %s703 = smul.addr %s702, 32
      %s704 = smul.addr %s703, 8
      %s705 = scalar_lea.vmem %s0, %s704
      %p706 = scmp.lt.s32.totalorder %s36, 3
      %s707 = scalar_select %p706, %s36, 3
      %s708 = scalar_lea.vmem %s23, %s707
      %v710 = vld [vmem:[%s705] sm:$0xff]
      %v711 = vld [vmem:[%s705 + $0x8] sm:$0xff]
      %v712 = vld [vmem:[%s705 + $0x10] sm:$0xff]
      %v713 = vld [vmem:[%s705 + $0x18] sm:$0xff]
      %v714 = vld [vmem:[%s705 + $0x20] sm:$0xff]
      %v715 = vld [vmem:[%s705 + $0x28] sm:$0xff]
      %v716 = vld [vmem:[%s705 + $0x30] sm:$0xff]
      %v717 = vld [vmem:[%s705 + $0x38] sm:$0xff]
      %v718 = vld [vmem:[%s705 + $0x40] sm:$0xff]
      %v719 = vld [vmem:[%s705 + $0x48] sm:$0xff]
      %v720 = vld [vmem:[%s705 + $0x50] sm:$0xff]
      %v721 = vld [vmem:[%s705 + $0x58] sm:$0xff]
      %v722 = vld [vmem:[%s705 + $0x60] sm:$0xff]
      %v723 = vld [vmem:[%s705 + $0x68] sm:$0xff]
      %v724 = vld [vmem:[%s705 + $0x70] sm:$0xff]
      %v725 = vld [vmem:[%s705 + $0x78] sm:$0xff]
      %v726 = vld [vmem:[%s705 + $0x80] sm:$0xff]
      %v727 = vld [vmem:[%s705 + $0x88] sm:$0xff]
      %v728 = vld [vmem:[%s705 + $0x90] sm:$0xff]
      %v729 = vld [vmem:[%s705 + $0x98] sm:$0xff]
      %v730 = vld [vmem:[%s705 + $0xa0] sm:$0xff]
      %v731 = vld [vmem:[%s705 + $0xa8] sm:$0xff]
      %v732 = vld [vmem:[%s705 + $0xb0] sm:$0xff]
      %v733 = vld [vmem:[%s705 + $0xb8] sm:$0xff]
      %v734 = vld [vmem:[%s705 + $0xc0] sm:$0xff]
      %v735 = vld [vmem:[%s705 + $0xc8] sm:$0xff]
      %v736 = vld [vmem:[%s705 + $0xd0] sm:$0xff]
      %v737 = vld [vmem:[%s705 + $0xd8] sm:$0xff]
      %v738 = vld [vmem:[%s705 + $0xe0] sm:$0xff]
      %v739 = vld [vmem:[%s705 + $0xe8] sm:$0xff]
      %v740 = vld [vmem:[%s705 + $0xf0] sm:$0xff]
      %v741 = vld [vmem:[%s705 + $0xf8] sm:$0xff]
      %v742 = vld [vmem:[%s1] sm:$0xff]
      %v743 = vld [vmem:[%s1 + $0x8] sm:$0xff]
      %v744 = vld [vmem:[%s1 + $0x10] sm:$0xff]
      %v745 = vld [vmem:[%s1 + $0x18] sm:$0xff]
      %v746 = vld [vmem:[%s1 + $0x20] sm:$0xff]
      %v747 = vld [vmem:[%s1 + $0x28] sm:$0xff]
      %v748 = vld [vmem:[%s1 + $0x30] sm:$0xff]
      %v749 = vld [vmem:[%s1 + $0x38] sm:$0xff]
      %v750 = vld [vmem:[%s1 + $0x40] sm:$0xff]
      %v751 = vld [vmem:[%s1 + $0x48] sm:$0xff]
      %v752 = vld [vmem:[%s1 + $0x50] sm:$0xff]
      %v753 = vld [vmem:[%s1 + $0x58] sm:$0xff]
      %v754 = vld [vmem:[%s1 + $0x60] sm:$0xff]
      %v755 = vld [vmem:[%s1 + $0x68] sm:$0xff]
      %v756 = vld [vmem:[%s1 + $0x70] sm:$0xff]
      %v757 = vld [vmem:[%s1 + $0x78] sm:$0xff]
      %v758 = vld [vmem:[%s1 + $0x80] sm:$0xff]
      %v759 = vld [vmem:[%s1 + $0x88] sm:$0xff]
      %v760 = vld [vmem:[%s1 + $0x90] sm:$0xff]
      %v761 = vld [vmem:[%s1 + $0x98] sm:$0xff]
      %v762 = vld [vmem:[%s1 + $0xa0] sm:$0xff]
      %v763 = vld [vmem:[%s1 + $0xa8] sm:$0xff]
      %v764 = vld [vmem:[%s1 + $0xb0] sm:$0xff]
      %v765 = vld [vmem:[%s1 + $0xb8] sm:$0xff]
      %v766 = vld [vmem:[%s1 + $0xc0] sm:$0xff]
      %v767 = vld [vmem:[%s1 + $0xc8] sm:$0xff]
      %v768 = vld [vmem:[%s1 + $0xd0] sm:$0xff]
      %v769 = vld [vmem:[%s1 + $0xd8] sm:$0xff]
      %v770 = vld [vmem:[%s1 + $0xe0] sm:$0xff]
      %v771 = vld [vmem:[%s1 + $0xe8] sm:$0xff]
      %v772 = vld [vmem:[%s1 + $0xf0] sm:$0xff]
      %v773 = vld [vmem:[%s1 + $0xf8] sm:$0xff]
      %v774 = vld [vmem:[%s1 + $0x100] sm:$0xff]
      %v775 = vld [vmem:[%s1 + $0x108] sm:$0xff]
      %v776 = vld [vmem:[%s1 + $0x110] sm:$0xff]
      %v777 = vld [vmem:[%s1 + $0x118] sm:$0xff]
      %v778 = vld [vmem:[%s1 + $0x120] sm:$0xff]
      %v779 = vld [vmem:[%s1 + $0x128] sm:$0xff]
      %v780 = vld [vmem:[%s1 + $0x130] sm:$0xff]
      %v781 = vld [vmem:[%s1 + $0x138] sm:$0xff]
      %v782 = vld [vmem:[%s1 + $0x140] sm:$0xff]
      %v783 = vld [vmem:[%s1 + $0x148] sm:$0xff]
      %v784 = vld [vmem:[%s1 + $0x150] sm:$0xff]
      %v785 = vld [vmem:[%s1 + $0x158] sm:$0xff]
      %v786 = vld [vmem:[%s1 + $0x160] sm:$0xff]
      %v787 = vld [vmem:[%s1 + $0x168] sm:$0xff]
      %v788 = vld [vmem:[%s1 + $0x170] sm:$0xff]
      %v789 = vld [vmem:[%s1 + $0x178] sm:$0xff]
      %v790 = vld [vmem:[%s1 + $0x180] sm:$0xff]
      %v791 = vld [vmem:[%s1 + $0x188] sm:$0xff]
      %v792 = vld [vmem:[%s1 + $0x190] sm:$0xff]
      %v793 = vld [vmem:[%s1 + $0x198] sm:$0xff]
      %v794 = vld [vmem:[%s1 + $0x1a0] sm:$0xff]
      %v795 = vld [vmem:[%s1 + $0x1a8] sm:$0xff]
      %v796 = vld [vmem:[%s1 + $0x1b0] sm:$0xff]
      %v797 = vld [vmem:[%s1 + $0x1b8] sm:$0xff]
      %v798 = vld [vmem:[%s1 + $0x1c0] sm:$0xff]
      %v799 = vld [vmem:[%s1 + $0x1c8] sm:$0xff]
      %v800 = vld [vmem:[%s1 + $0x1d0] sm:$0xff]
      %v801 = vld [vmem:[%s1 + $0x1d8] sm:$0xff]
      %v802 = vld [vmem:[%s1 + $0x1e0] sm:$0xff]
      %v803 = vld [vmem:[%s1 + $0x1e8] sm:$0xff]
      %v804 = vld [vmem:[%s1 + $0x1f0] sm:$0xff]
      %v805 = vld [vmem:[%s1 + $0x1f8] sm:$0xff]
      %806 = vmatprep.subr.mxu0 0.0
      %807 = vmatpush1.msra.mxu0 %v710
      %808 = vmatprep.subr.mxu0 0.0
      %809 = vmatpush1.msra.mxu0 %v711
      %810 = vmatprep.subr.mxu0 0.0
      %811 = vmatpush1.msra.mxu0 %v712
      %812 = vmatprep.subr.mxu0 0.0
      %813 = vmatpush1.msra.mxu0 %v713
      %814 = vmatprep.subr.mxu0 0.0
      %815 = vmatpush1.msra.mxu0 %v714
      %816 = vmatprep.subr.mxu0 0.0
      %817 = vmatpush1.msra.mxu0 %v715
      %818 = vmatprep.subr.mxu0 0.0
      %819 = vmatpush1.msra.mxu0 %v716
      %820 = vmatprep.subr.mxu0 0.0
      %821 = vmatpush1.msra.mxu0 %v717
      %822 = vmatprep.subr.mxu0 0.0
      %823 = vmatpush1.msra.mxu0 %v718
      %824 = vmatprep.subr.mxu0 0.0
      %825 = vmatpush1.msra.mxu0 %v719
      %826 = vmatprep.subr.mxu0 0.0
      %827 = vmatpush1.msra.mxu0 %v720
      %828 = vmatprep.subr.mxu0 0.0
      %829 = vmatpush1.msra.mxu0 %v721
      %830 = vmatprep.subr.mxu0 0.0
      %831 = vmatpush1.msra.mxu0 %v722
      %832 = vmatprep.subr.mxu0 0.0
      %833 = vmatpush1.msra.mxu0 %v723
      %834 = vmatprep.subr.mxu0 0.0
      %835 = vmatpush1.msra.mxu0 %v724
      %836 = vmatprep.subr.mxu0 0.0
      %837 = vmatpush1.msra.mxu0 %v725
      %838 = vmatprep.subr.mxu0 0.0
      %839 = vmatpush1.msra.mxu0 %v726
      %840 = vmatprep.subr.mxu0 0.0
      %841 = vmatpush1.msra.mxu0 %v727
      %842 = vmatprep.subr.mxu0 0.0
      %843 = vmatpush1.msra.mxu0 %v728
      %844 = vmatprep.subr.mxu0 0.0
      %845 = vmatpush1.msra.mxu0 %v729
      %846 = vmatprep.subr.mxu0 0.0
      %847 = vmatpush1.msra.mxu0 %v730
      %848 = vmatprep.subr.mxu0 0.0
      %849 = vmatpush1.msra.mxu0 %v731
      %850 = vmatprep.subr.mxu0 0.0
      %851 = vmatpush1.msra.mxu0 %v732
      %852 = vmatprep.subr.mxu0 0.0
      %853 = vmatpush1.msra.mxu0 %v733
      %854 = vmatprep.subr.mxu0 0.0
      %855 = vmatpush1.msra.mxu0 %v734
      %856 = vmatprep.subr.mxu0 0.0
      %857 = vmatpush1.msra.mxu0 %v735
      %858 = vmatprep.subr.mxu0 0.0
      %859 = vmatpush1.msra.mxu0 %v736
      %860 = vmatprep.subr.mxu0 0.0
      %861 = vmatpush1.msra.mxu0 %v737
      %862 = vmatprep.subr.mxu0 0.0
      %863 = vmatpush1.msra.mxu0 %v738
      %864 = vmatprep.subr.mxu0 0.0
      %865 = vmatpush1.msra.mxu0 %v739
      %866 = vmatprep.subr.mxu0 0.0
      %867 = vmatpush1.msra.mxu0 %v740
      %868 = vmatprep.subr.mxu0 0.0
      %869 = vmatpush1.msra.mxu0 %v741
      %870 = vmatprep.mubr.f32.mxu0 %v743
      %871 = vmatmul.mubr.f32.gmra.mrb[0].mxu0 %v742
      %v872 = vpop.f32.mrb[0].mxu0
      %v873 = vadd.f32 0.0, %v872
      %v874 = vpop.f32.mrb[0].mxu0
      %875 = vmatprep.mubr.f32.mxu0 %v745
      %876 = vmatmul.mubr.f32.gmra.mrb[0].mxu0 %v744
      %v877 = vpop.f32.mrb[0].mxu0
      %v878 = vadd.f32 0.0, %v877
      %v879 = vpop.f32.mrb[0].mxu0
      %880 = vmatprep.mubr.f32.mxu0 %v747
      %881 = vmatmul.mubr.f32.gmra.mrb[0].mxu0 %v746
      %v882 = vpop.f32.mrb[0].mxu0
      %v883 = vadd.f32 0.0, %v882
      %v884 = vpop.f32.mrb[0].mxu0
      %885 = vmatprep.mubr.f32.mxu0 %v749
      %886 = vmatmul.mubr.f32.gmra.mrb[0].mxu0 %v748
      %v887 = vpop.f32.mrb[0].mxu0
      %v888 = vadd.f32 0.0, %v887
      %v889 = vpop.f32.mrb[0].mxu0
      %890 = vmatprep.mubr.f32.mxu0 %v751
      %891 = vmatmul.mubr.f32.gmra.mrb[0].mxu0 %v750
      %v892 = vpop.f32.mrb[0].mxu0
      %v893 = vadd.f32 0.0, %v892
      %v894 = vpop.f32.mrb[0].mxu0
      %895 = vmatprep.mubr.f32.mxu0 %v753
      %896 = vmatmul.mubr.f32.gmra.mrb[0].mxu0 %v752
      %v897 = vpop.f32.mrb[0].mxu0
      %v898 = vadd.f32 0.0, %v897
      %v899 = vpop.f32.mrb[0].mxu0
      %900 = vmatprep.mubr.f32.mxu0 %v755
      %901 = vmatmul.mubr.f32.gmra.mrb[0].mxu0 %v754
      %v902 = vpop.f32.mrb[0].mxu0
      %v903 = vadd.f32 0.0, %v902
      %v904 = vpop.f32.mrb[0].mxu0
      %905 = vmatprep.mubr.f32.mxu0 %v757
      %906 = vmatmul.mubr.f32.gmra.mrb[0].mxu0 %v756
      %v907 = vpop.f32.mrb[0].mxu0
      %v908 = vadd.f32 0.0, %v907
      %v909 = vpop.f32.mrb[0].mxu0
      %910 = vmatprep.mubr.f32.mxu0 %v759
      %911 = vmatmul.mubr.f32.gmra.mrb[0].mxu0 %v758
      %v912 = vpop.f32.mrb[0].mxu0
      %v913 = vadd.f32 0.0, %v912
      %v914 = vpop.f32.mrb[0].mxu0
      %915 = vmatprep.mubr.f32.mxu0 %v761
      %916 = vmatmul.mubr.f32.gmra.mrb[0].mxu0 %v760
      %v917 = vpop.f32.mrb[0].mxu0
      %v918 = vadd.f32 0.0, %v917
      %v919 = vpop.f32.mrb[0].mxu0
      %920 = vmatprep.mubr.f32.mxu0 %v763
      %921 = vmatmul.mubr.f32.gmra.mrb[0].mxu0 %v762
      %v922 = vpop.f32.mrb[0].mxu0
      %v923 = vadd.f32 0.0, %v922
      %v924 = vpop.f32.mrb[0].mxu0
      %925 = vmatprep.mubr.f32.mxu0 %v765
      %926 = vmatmul.mubr.f32.gmra.mrb[0].mxu0 %v764
      %v927 = vpop.f32.mrb[0].mxu0
      %v928 = vadd.f32 0.0, %v927
      %v929 = vpop.f32.mrb[0].mxu0
      %930 = vmatprep.mubr.f32.mxu0 %v767
      %931 = vmatmul.mubr.f32.gmra.mrb[0].mxu0 %v766
      %v932 = vpop.f32.mrb[0].mxu0
      %v933 = vadd.f32 0.0, %v932
      %v934 = vpop.f32.mrb[0].mxu0
      %935 = vmatprep.mubr.f32.mxu0 %v769
      %936 = vmatmul.mubr.f32.gmra.mrb[0].mxu0 %v768
      %v937 = vpop.f32.mrb[0].mxu0
      %v938 = vadd.f32 0.0, %v937
      %v939 = vpop.f32.mrb[0].mxu0
      %940 = vmatprep.mubr.f32.mxu0 %v771
      %941 = vmatmul.mubr.f32.gmra.mrb[0].mxu0 %v770
      %v942 = vpop.f32.mrb[0].mxu0
      %v943 = vadd.f32 0.0, %v942
      %v944 = vpop.f32.mrb[0].mxu0
      %945 = vmatprep.mubr.f32.mxu0 %v773
      %946 = vmatmul.mubr.f32.gmra.mrb[0].mxu0 %v772
      %v947 = vpop.f32.mrb[0].mxu0
      %v948 = vadd.f32 0.0, %v947
      %v949 = vpop.f32.mrb[0].mxu0
      %950 = vmatprep.mubr.f32.mxu0 %v775
      %951 = vmatmul.mubr.f32.gmra.mrb[0].mxu0 %v774
      %v952 = vpop.f32.mrb[0].mxu0
      %v953 = vadd.f32 0.0, %v952
      %v954 = vpop.f32.mrb[0].mxu0
      %955 = vmatprep.mubr.f32.mxu0 %v777
      %956 = vmatmul.mubr.f32.gmra.mrb[0].mxu0 %v776
      %v957 = vpop.f32.mrb[0].mxu0
      %v958 = vadd.f32 0.0, %v957
      %v959 = vpop.f32.mrb[0].mxu0
      %960 = vmatprep.mubr.f32.mxu0 %v779
      %961 = vmatmul.mubr.f32.gmra.mrb[0].mxu0 %v778
      %v962 = vpop.f32.mrb[0].mxu0
      %v963 = vadd.f32 0.0, %v962
      %v964 = vpop.f32.mrb[0].mxu0
      %965 = vmatprep.mubr.f32.mxu0 %v781
      %966 = vmatmul.mubr.f32.gmra.mrb[0].mxu0 %v780
      %v967 = vpop.f32.mrb[0].mxu0
      %v968 = vadd.f32 0.0, %v967
      %v969 = vpop.f32.mrb[0].mxu0
      %970 = vmatprep.mubr.f32.mxu0 %v783
      %971 = vmatmul.mubr.f32.gmra.mrb[0].mxu0 %v782
      %v972 = vpop.f32.mrb[0].mxu0
      %v973 = vadd.f32 0.0, %v972
      %v974 = vpop.f32.mrb[0].mxu0
      %975 = vmatprep.mubr.f32.mxu0 %v785
      %976 = vmatmul.mubr.f32.gmra.mrb[0].mxu0 %v784
      %v977 = vpop.f32.mrb[0].mxu0
      %v978 = vadd.f32 0.0, %v977
      %v979 = vpop.f32.mrb[0].mxu0
      %980 = vmatprep.mubr.f32.mxu0 %v787
      %981 = vmatmul.mubr.f32.gmra.mrb[0].mxu0 %v786
      %v982 = vpop.f32.mrb[0].mxu0
      %v983 = vadd.f32 0.0, %v982
      %v984 = vpop.f32.mrb[0].mxu0
      %985 = vmatprep.mubr.f32.mxu0 %v789
      %986 = vmatmul.mubr.f32.gmra.mrb[0].mxu0 %v788
      %v987 = vpop.f32.mrb[0].mxu0
      %v988 = vadd.f32 0.0, %v987
      %v989 = vpop.f32.mrb[0].mxu0
      %990 = vmatprep.mubr.f32.mxu0 %v791
      %991 = vmatmul.mubr.f32.gmra.mrb[0].mxu0 %v790
      %v992 = vpop.f32.mrb[0].mxu0
      %v993 = vadd.f32 0.0, %v992
      %v994 = vpop.f32.mrb[0].mxu0
      %995 = vmatprep.mubr.f32.mxu0 %v793
      %996 = vmatmul.mubr.f32.gmra.mrb[0].mxu0 %v792
      %v997 = vpop.f32.mrb[0].mxu0
      %v998 = vadd.f32 0.0, %v997
      %v999 = vpop.f32.mrb[0].mxu0
      %1000 = vmatprep.mubr.f32.mxu0 %v795
      %1001 = vmatmul.mubr.f32.gmra.mrb[0].mxu0 %v794
      %v1002 = vpop.f32.mrb[0].mxu0
      %v1003 = vadd.f32 0.0, %v1002
      %v1004 = vpop.f32.mrb[0].mxu0
      %1005 = vmatprep.mubr.f32.mxu0 %v797
      %1006 = vmatmul.mubr.f32.gmra.mrb[0].mxu0 %v796
      %v1007 = vpop.f32.mrb[0].mxu0
      %v1008 = vadd.f32 0.0, %v1007
      %v1009 = vpop.f32.mrb[0].mxu0
      %1010 = vmatprep.mubr.f32.mxu0 %v799
      %1011 = vmatmul.mubr.f32.gmra.mrb[0].mxu0 %v798
      %v1012 = vpop.f32.mrb[0].mxu0
      %v1013 = vadd.f32 0.0, %v1012
      %v1014 = vpop.f32.mrb[0].mxu0
      %1015 = vmatprep.mubr.f32.mxu0 %v801
      %1016 = vmatmul.mubr.f32.gmra.mrb[0].mxu0 %v800
      %v1017 = vpop.f32.mrb[0].mxu0
      %v1018 = vadd.f32 0.0, %v1017
      %v1019 = vpop.f32.mrb[0].mxu0
      %1020 = vmatprep.mubr.f32.mxu0 %v803
      %1021 = vmatmul.mubr.f32.gmra.mrb[0].mxu0 %v802
      %v1022 = vpop.f32.mrb[0].mxu0
      %v1023 = vadd.f32 0.0, %v1022
      %v1024 = vpop.f32.mrb[0].mxu0
      %1025 = vmatprep.mubr.f32.mxu0 %v805
      %1026 = vmatmul.mubr.f32.gmra.mrb[0].mxu0 %v804
      %v1027 = vpop.f32.mrb[0].mxu0
      %v1028 = vadd.f32 0.0, %v1027
      %v1029 = vpop.f32.mrb[0].mxu0
      %1030 = vdwg.mxu0
      %v1031 = vld [vmem:[%s2] sm:$0xff]
      %v1032 = vld [vmem:[%s2 + $0x8] sm:$0xff]
      %v1033 = vld [vmem:[%s2 + $0x10] sm:$0xff]
      %v1034 = vld [vmem:[%s2 + $0x18] sm:$0xff]
      %v1035 = vld [vmem:[%s2 + $0x20] sm:$0xff]
      %v1036 = vld [vmem:[%s2 + $0x28] sm:$0xff]
      %v1037 = vld [vmem:[%s2 + $0x30] sm:$0xff]
      %v1038 = vld [vmem:[%s2 + $0x38] sm:$0xff]
      %v1039 = vld [vmem:[%s2 + $0x40] sm:$0xff]
      %v1040 = vld [vmem:[%s2 + $0x48] sm:$0xff]
      %v1041 = vld [vmem:[%s2 + $0x50] sm:$0xff]
      %v1042 = vld [vmem:[%s2 + $0x58] sm:$0xff]
      %v1043 = vld [vmem:[%s2 + $0x60] sm:$0xff]
      %v1044 = vld [vmem:[%s2 + $0x68] sm:$0xff]
      %v1045 = vld [vmem:[%s2 + $0x70] sm:$0xff]
      %v1046 = vld [vmem:[%s2 + $0x78] sm:$0xff]
      %v1047 = vld [vmem:[%s2 + $0x80] sm:$0xff]
      %v1048 = vld [vmem:[%s2 + $0x88] sm:$0xff]
      %v1049 = vld [vmem:[%s2 + $0x90] sm:$0xff]
      %v1050 = vld [vmem:[%s2 + $0x98] sm:$0xff]
      %v1051 = vld [vmem:[%s2 + $0xa0] sm:$0xff]
      %v1052 = vld [vmem:[%s2 + $0xa8] sm:$0xff]
      %v1053 = vld [vmem:[%s2 + $0xb0] sm:$0xff]
      %v1054 = vld [vmem:[%s2 + $0xb8] sm:$0xff]
      %v1055 = vld [vmem:[%s2 + $0xc0] sm:$0xff]
      %v1056 = vld [vmem:[%s2 + $0xc8] sm:$0xff]
      %v1057 = vld [vmem:[%s2 + $0xd0] sm:$0xff]
      %v1058 = vld [vmem:[%s2 + $0xd8] sm:$0xff]
      %v1059 = vld [vmem:[%s2 + $0xe0] sm:$0xff]
      %v1060 = vld [vmem:[%s2 + $0xe8] sm:$0xff]
      %v1061 = vld [vmem:[%s2 + $0xf0] sm:$0xff]
      %v1062 = vld [vmem:[%s2 + $0xf8] sm:$0xff]
      %v1063 = vld [vmem:[%s2 + $0x100] sm:$0xff]
      %v1064 = vld [vmem:[%s2 + $0x108] sm:$0xff]
      %v1065 = vld [vmem:[%s2 + $0x110] sm:$0xff]
      %v1066 = vld [vmem:[%s2 + $0x118] sm:$0xff]
      %v1067 = vld [vmem:[%s2 + $0x120] sm:$0xff]
      %v1068 = vld [vmem:[%s2 + $0x128] sm:$0xff]
      %v1069 = vld [vmem:[%s2 + $0x130] sm:$0xff]
      %v1070 = vld [vmem:[%s2 + $0x138] sm:$0xff]
      %v1071 = vld [vmem:[%s2 + $0x140] sm:$0xff]
      %v1072 = vld [vmem:[%s2 + $0x148] sm:$0xff]
      %v1073 = vld [vmem:[%s2 + $0x150] sm:$0xff]
      %v1074 = vld [vmem:[%s2 + $0x158] sm:$0xff]
      %v1075 = vld [vmem:[%s2 + $0x160] sm:$0xff]
      %v1076 = vld [vmem:[%s2 + $0x168] sm:$0xff]
      %v1077 = vld [vmem:[%s2 + $0x170] sm:$0xff]
      %v1078 = vld [vmem:[%s2 + $0x178] sm:$0xff]
      %v1079 = vld [vmem:[%s2 + $0x180] sm:$0xff]
      %v1080 = vld [vmem:[%s2 + $0x188] sm:$0xff]
      %v1081 = vld [vmem:[%s2 + $0x190] sm:$0xff]
      %v1082 = vld [vmem:[%s2 + $0x198] sm:$0xff]
      %v1083 = vld [vmem:[%s2 + $0x1a0] sm:$0xff]
      %v1084 = vld [vmem:[%s2 + $0x1a8] sm:$0xff]
      %v1085 = vld [vmem:[%s2 + $0x1b0] sm:$0xff]
      %v1086 = vld [vmem:[%s2 + $0x1b8] sm:$0xff]
      %v1087 = vld [vmem:[%s2 + $0x1c0] sm:$0xff]
      %v1088 = vld [vmem:[%s2 + $0x1c8] sm:$0xff]
      %v1089 = vld [vmem:[%s2 + $0x1d0] sm:$0xff]
      %v1090 = vld [vmem:[%s2 + $0x1d8] sm:$0xff]
      %v1091 = vld [vmem:[%s2 + $0x1e0] sm:$0xff]
      %v1092 = vld [vmem:[%s2 + $0x1e8] sm:$0xff]
      %v1093 = vld [vmem:[%s2 + $0x1f0] sm:$0xff]
      %v1094 = vld [vmem:[%s2 + $0x1f8] sm:$0xff]
      %1095 = vmatprep.subr.mxu0 0.0
      %1096 = vmatpush1.msra.mxu0 %v710
      %1097 = vmatprep.subr.mxu0 0.0
      %1098 = vmatpush1.msra.mxu0 %v711
      %1099 = vmatprep.subr.mxu0 0.0
      %1100 = vmatpush1.msra.mxu0 %v712
      %1101 = vmatprep.subr.mxu0 0.0
      %1102 = vmatpush1.msra.mxu0 %v713
      %1103 = vmatprep.subr.mxu0 0.0
      %1104 = vmatpush1.msra.mxu0 %v714
      %1105 = vmatprep.subr.mxu0 0.0
      %1106 = vmatpush1.msra.mxu0 %v715
      %1107 = vmatprep.subr.mxu0 0.0
      %1108 = vmatpush1.msra.mxu0 %v716
      %1109 = vmatprep.subr.mxu0 0.0
      %1110 = vmatpush1.msra.mxu0 %v717
      %1111 = vmatprep.subr.mxu0 0.0
      %1112 = vmatpush1.msra.mxu0 %v718
      %1113 = vmatprep.subr.mxu0 0.0
      %1114 = vmatpush1.msra.mxu0 %v719
      %1115 = vmatprep.subr.mxu0 0.0
      %1116 = vmatpush1.msra.mxu0 %v720
      %1117 = vmatprep.subr.mxu0 0.0
      %1118 = vmatpush1.msra.mxu0 %v721
      %1119 = vmatprep.subr.mxu0 0.0
      %1120 = vmatpush1.msra.mxu0 %v722
      %1121 = vmatprep.subr.mxu0 0.0
      %1122 = vmatpush1.msra.mxu0 %v723
      %1123 = vmatprep.subr.mxu0 0.0
      %1124 = vmatpush1.msra.mxu0 %v724
      %1125 = vmatprep.subr.mxu0 0.0
      %1126 = vmatpush1.msra.mxu0 %v725
      %1127 = vmatprep.subr.mxu0 0.0
      %1128 = vmatpush1.msra.mxu0 %v726
      %1129 = vmatprep.subr.mxu0 0.0
      %1130 = vmatpush1.msra.mxu0 %v727
      %1131 = vmatprep.subr.mxu0 0.0
      %1132 = vmatpush1.msra.mxu0 %v728
      %1133 = vmatprep.subr.mxu0 0.0
      %1134 = vmatpush1.msra.mxu0 %v729
      %1135 = vmatprep.subr.mxu0 0.0
      %1136 = vmatpush1.msra.mxu0 %v730
      %1137 = vmatprep.subr.mxu0 0.0
      %1138 = vmatpush1.msra.mxu0 %v731
      %1139 = vmatprep.subr.mxu0 0.0
      %1140 = vmatpush1.msra.mxu0 %v732
      %1141 = vmatprep.subr.mxu0 0.0
      %1142 = vmatpush1.msra.mxu0 %v733
      %1143 = vmatprep.subr.mxu0 0.0
      %1144 = vmatpush1.msra.mxu0 %v734
      %1145 = vmatprep.subr.mxu0 0.0
      %1146 = vmatpush1.msra.mxu0 %v735
      %1147 = vmatprep.subr.mxu0 0.0
      %1148 = vmatpush1.msra.mxu0 %v736
      %1149 = vmatprep.subr.mxu0 0.0
      %1150 = vmatpush1.msra.mxu0 %v737
      %1151 = vmatprep.subr.mxu0 0.0
      %1152 = vmatpush1.msra.mxu0 %v738
      %1153 = vmatprep.subr.mxu0 0.0
      %1154 = vmatpush1.msra.mxu0 %v739
      %1155 = vmatprep.subr.mxu0 0.0
      %1156 = vmatpush1.msra.mxu0 %v740
      %1157 = vmatprep.subr.mxu0 0.0
      %1158 = vmatpush1.msra.mxu0 %v741
      %1159 = vmatprep.mubr.f32.mxu0 %v1032
      %1160 = vmatmul.mubr.f32.gmra.mrb[0].mxu0 %v1031
      %v1161 = vpop.f32.mrb[0].mxu0
      %v1162 = vadd.f32 0.0, %v1161
      %v1163 = vpop.f32.mrb[0].mxu0
      %1164 = vmatprep.mubr.f32.mxu0 %v1034
      %1165 = vmatmul.mubr.f32.gmra.mrb[0].mxu0 %v1033
      %v1166 = vpop.f32.mrb[0].mxu0
      %v1167 = vadd.f32 0.0, %v1166
      %v1168 = vpop.f32.mrb[0].mxu0
      %1169 = vmatprep.mubr.f32.mxu0 %v1036
      %1170 = vmatmul.mubr.f32.gmra.mrb[0].mxu0 %v1035
      %v1171 = vpop.f32.mrb[0].mxu0
      %v1172 = vadd.f32 0.0, %v1171
      %v1173 = vpop.f32.mrb[0].mxu0
      %1174 = vmatprep.mubr.f32.mxu0 %v1038
      %1175 = vmatmul.mubr.f32.gmra.mrb[0].mxu0 %v1037
      %v1176 = vpop.f32.mrb[0].mxu0
      %v1177 = vadd.f32 0.0, %v1176
      %v1178 = vpop.f32.mrb[0].mxu0
      %1179 = vmatprep.mubr.f32.mxu0 %v1040
      %1180 = vmatmul.mubr.f32.gmra.mrb[0].mxu0 %v1039
      %v1181 = vpop.f32.mrb[0].mxu0
      %v1182 = vadd.f32 0.0, %v1181
      %v1183 = vpop.f32.mrb[0].mxu0
      %1184 = vmatprep.mubr.f32.mxu0 %v1042
      %1185 = vmatmul.mubr.f32.gmra.mrb[0].mxu0 %v1041
      %v1186 = vpop.f32.mrb[0].mxu0
      %v1187 = vadd.f32 0.0, %v1186
      %v1188 = vpop.f32.mrb[0].mxu0
      %1189 = vmatprep.mubr.f32.mxu0 %v1044
      %1190 = vmatmul.mubr.f32.gmra.mrb[0].mxu0 %v1043
      %v1191 = vpop.f32.mrb[0].mxu0
      %v1192 = vadd.f32 0.0, %v1191
      %v1193 = vpop.f32.mrb[0].mxu0
      %1194 = vmatprep.mubr.f32.mxu0 %v1046
      %1195 = vmatmul.mubr.f32.gmra.mrb[0].mxu0 %v1045
      %v1196 = vpop.f32.mrb[0].mxu0
      %v1197 = vadd.f32 0.0, %v1196
      %v1198 = vpop.f32.mrb[0].mxu0
      %1199 = vmatprep.mubr.f32.mxu0 %v1048
      %1200 = vmatmul.mubr.f32.gmra.mrb[0].mxu0 %v1047
      %v1201 = vpop.f32.mrb[0].mxu0
      %v1202 = vadd.f32 0.0, %v1201
      %v1203 = vpop.f32.mrb[0].mxu0
      %1204 = vmatprep.mubr.f32.mxu0 %v1050
      %1205 = vmatmul.mubr.f32.gmra.mrb[0].mxu0 %v1049
      %v1206 = vpop.f32.mrb[0].mxu0
      %v1207 = vadd.f32 0.0, %v1206
      %v1208 = vpop.f32.mrb[0].mxu0
      %1209 = vmatprep.mubr.f32.mxu0 %v1052
      %1210 = vmatmul.mubr.f32.gmra.mrb[0].mxu0 %v1051
      %v1211 = vpop.f32.mrb[0].mxu0
      %v1212 = vadd.f32 0.0, %v1211
      %v1213 = vpop.f32.mrb[0].mxu0
      %1214 = vmatprep.mubr.f32.mxu0 %v1054
      %1215 = vmatmul.mubr.f32.gmra.mrb[0].mxu0 %v1053
      %v1216 = vpop.f32.mrb[0].mxu0
      %v1217 = vadd.f32 0.0, %v1216
      %v1218 = vpop.f32.mrb[0].mxu0
      %1219 = vmatprep.mubr.f32.mxu0 %v1056
      %1220 = vmatmul.mubr.f32.gmra.mrb[0].mxu0 %v1055
      %v1221 = vpop.f32.mrb[0].mxu0
      %v1222 = vadd.f32 0.0, %v1221
      %v1223 = vpop.f32.mrb[0].mxu0
      %1224 = vmatprep.mubr.f32.mxu0 %v1058
      %1225 = vmatmul.mubr.f32.gmra.mrb[0].mxu0 %v1057
      %v1226 = vpop.f32.mrb[0].mxu0
      %v1227 = vadd.f32 0.0, %v1226
      %v1228 = vpop.f32.mrb[0].mxu0
      %1229 = vmatprep.mubr.f32.mxu0 %v1060
      %1230 = vmatmul.mubr.f32.gmra.mrb[0].mxu0 %v1059
      %v1231 = vpop.f32.mrb[0].mxu0
      %v1232 = vadd.f32 0.0, %v1231
      %v1233 = vpop.f32.mrb[0].mxu0
      %1234 = vmatprep.mubr.f32.mxu0 %v1062
      %1235 = vmatmul.mubr.f32.gmra.mrb[0].mxu0 %v1061
      %v1236 = vpop.f32.mrb[0].mxu0
      %v1237 = vadd.f32 0.0, %v1236
      %v1238 = vpop.f32.mrb[0].mxu0
      %1239 = vmatprep.mubr.f32.mxu0 %v1064
      %1240 = vmatmul.mubr.f32.gmra.mrb[0].mxu0 %v1063
      %v1241 = vpop.f32.mrb[0].mxu0
      %v1242 = vadd.f32 0.0, %v1241
      %v1243 = vpop.f32.mrb[0].mxu0
      %1244 = vmatprep.mubr.f32.mxu0 %v1066
      %1245 = vmatmul.mubr.f32.gmra.mrb[0].mxu0 %v1065
      %v1246 = vpop.f32.mrb[0].mxu0
      %v1247 = vadd.f32 0.0, %v1246
      %v1248 = vpop.f32.mrb[0].mxu0
      %1249 = vmatprep.mubr.f32.mxu0 %v1068
      %1250 = vmatmul.mubr.f32.gmra.mrb[0].mxu0 %v1067
      %v1251 = vpop.f32.mrb[0].mxu0
      %v1252 = vadd.f32 0.0, %v1251
      %v1253 = vpop.f32.mrb[0].mxu0
      %1254 = vmatprep.mubr.f32.mxu0 %v1070
      %1255 = vmatmul.mubr.f32.gmra.mrb[0].mxu0 %v1069
      %v1256 = vpop.f32.mrb[0].mxu0
      %v1257 = vadd.f32 0.0, %v1256
      %v1258 = vpop.f32.mrb[0].mxu0
      %1259 = vmatprep.mubr.f32.mxu0 %v1072
      %1260 = vmatmul.mubr.f32.gmra.mrb[0].mxu0 %v1071
      %v1261 = vpop.f32.mrb[0].mxu0
      %v1262 = vadd.f32 0.0, %v1261
      %v1263 = vpop.f32.mrb[0].mxu0
      %1264 = vmatprep.mubr.f32.mxu0 %v1074
      %1265 = vmatmul.mubr.f32.gmra.mrb[0].mxu0 %v1073
      %v1266 = vpop.f32.mrb[0].mxu0
      %v1267 = vadd.f32 0.0, %v1266
      %v1268 = vpop.f32.mrb[0].mxu0
      %1269 = vmatprep.mubr.f32.mxu0 %v1076
      %1270 = vmatmul.mubr.f32.gmra.mrb[0].mxu0 %v1075
      %v1271 = vpop.f32.mrb[0].mxu0
      %v1272 = vadd.f32 0.0, %v1271
      %v1273 = vpop.f32.mrb[0].mxu0
      %1274 = vmatprep.mubr.f32.mxu0 %v1078
      %1275 = vmatmul.mubr.f32.gmra.mrb[0].mxu0 %v1077
      %v1276 = vpop.f32.mrb[0].mxu0
      %v1277 = vadd.f32 0.0, %v1276
      %v1278 = vpop.f32.mrb[0].mxu0
      %1279 = vmatprep.mubr.f32.mxu0 %v1080
      %1280 = vmatmul.mubr.f32.gmra.mrb[0].mxu0 %v1079
      %v1281 = vpop.f32.mrb[0].mxu0
      %v1282 = vadd.f32 0.0, %v1281
      %v1283 = vpop.f32.mrb[0].mxu0
      %1284 = vmatprep.mubr.f32.mxu0 %v1082
      %1285 = vmatmul.mubr.f32.gmra.mrb[0].mxu0 %v1081
      %v1286 = vpop.f32.mrb[0].mxu0
      %v1287 = vadd.f32 0.0, %v1286
      %v1288 = vpop.f32.mrb[0].mxu0
      %1289 = vmatprep.mubr.f32.mxu0 %v1084
      %1290 = vmatmul.mubr.f32.gmra.mrb[0].mxu0 %v1083
      %v1291 = vpop.f32.mrb[0].mxu0
      %v1292 = vadd.f32 0.0, %v1291
      %v1293 = vpop.f32.mrb[0].mxu0
      %1294 = vmatprep.mubr.f32.mxu0 %v1086
      %1295 = vmatmul.mubr.f32.gmra.mrb[0].mxu0 %v1085
      %v1296 = vpop.f32.mrb[0].mxu0
      %v1297 = vadd.f32 0.0, %v1296
      %v1298 = vpop.f32.mrb[0].mxu0
      %1299 = vmatprep.mubr.f32.mxu0 %v1088
      %1300 = vmatmul.mubr.f32.gmra.mrb[0].mxu0 %v1087
      %v1301 = vpop.f32.mrb[0].mxu0
      %v1302 = vadd.f32 0.0, %v1301
      %v1303 = vpop.f32.mrb[0].mxu0
      %1304 = vmatprep.mubr.f32.mxu0 %v1090
      %1305 = vmatmul.mubr.f32.gmra.mrb[0].mxu0 %v1089
      %v1306 = vpop.f32.mrb[0].mxu0
      %v1307 = vadd.f32 0.0, %v1306
      %v1308 = vpop.f32.mrb[0].mxu0
      %1309 = vmatprep.mubr.f32.mxu0 %v1092
      %1310 = vmatmul.mubr.f32.gmra.mrb[0].mxu0 %v1091
      %v1311 = vpop.f32.mrb[0].mxu0
      %v1312 = vadd.f32 0.0, %v1311
      %v1313 = vpop.f32.mrb[0].mxu0
      %1314 = vmatprep.mubr.f32.mxu0 %v1094
      %1315 = vmatmul.mubr.f32.gmra.mrb[0].mxu0 %v1093
      %v1316 = vpop.f32.mrb[0].mxu0
      %v1317 = vadd.f32 0.0, %v1316
      %v1318 = vpop.f32.mrb[0].mxu0
      %1319 = vdwg.mxu0
      %v1320 = vld [vmem:[%s3] sm:$0xff]
      %v1321 = vld [vmem:[%s3 + $0x8] sm:$0xff]
      %v1322 = vld [vmem:[%s3 + $0x10] sm:$0xff]
      %v1323 = vld [vmem:[%s3 + $0x18] sm:$0xff]
      %v1324 = vld [vmem:[%s3 + $0x20] sm:$0xff]
      %v1325 = vld [vmem:[%s3 + $0x28] sm:$0xff]
      %v1326 = vld [vmem:[%s3 + $0x30] sm:$0xff]
      %v1327 = vld [vmem:[%s3 + $0x38] sm:$0xff]
      %v1328 = vld [vmem:[%s3 + $0x40] sm:$0xff]
      %v1329 = vld [vmem:[%s3 + $0x48] sm:$0xff]
      %v1330 = vld [vmem:[%s3 + $0x50] sm:$0xff]
      %v1331 = vld [vmem:[%s3 + $0x58] sm:$0xff]
      %v1332 = vld [vmem:[%s3 + $0x60] sm:$0xff]
      %v1333 = vld [vmem:[%s3 + $0x68] sm:$0xff]
      %v1334 = vld [vmem:[%s3 + $0x70] sm:$0xff]
      %v1335 = vld [vmem:[%s3 + $0x78] sm:$0xff]
      %v1336 = vld [vmem:[%s3 + $0x80] sm:$0xff]
      %v1337 = vld [vmem:[%s3 + $0x88] sm:$0xff]
      %v1338 = vld [vmem:[%s3 + $0x90] sm:$0xff]
      %v1339 = vld [vmem:[%s3 + $0x98] sm:$0xff]
      %v1340 = vld [vmem:[%s3 + $0xa0] sm:$0xff]
      %v1341 = vld [vmem:[%s3 + $0xa8] sm:$0xff]
      %v1342 = vld [vmem:[%s3 + $0xb0] sm:$0xff]
      %v1343 = vld [vmem:[%s3 + $0xb8] sm:$0xff]
      %v1344 = vld [vmem:[%s3 + $0xc0] sm:$0xff]
      %v1345 = vld [vmem:[%s3 + $0xc8] sm:$0xff]
      %v1346 = vld [vmem:[%s3 + $0xd0] sm:$0xff]
      %v1347 = vld [vmem:[%s3 + $0xd8] sm:$0xff]
      %v1348 = vld [vmem:[%s3 + $0xe0] sm:$0xff]
      %v1349 = vld [vmem:[%s3 + $0xe8] sm:$0xff]
      %v1350 = vld [vmem:[%s3 + $0xf0] sm:$0xff]
      %v1351 = vld [vmem:[%s3 + $0xf8] sm:$0xff]
      %v1352 = vld [vmem:[%s3 + $0x100] sm:$0xff]
      %v1353 = vld [vmem:[%s3 + $0x108] sm:$0xff]
      %v1354 = vld [vmem:[%s3 + $0x110] sm:$0xff]
      %v1355 = vld [vmem:[%s3 + $0x118] sm:$0xff]
      %v1356 = vld [vmem:[%s3 + $0x120] sm:$0xff]
      %v1357 = vld [vmem:[%s3 + $0x128] sm:$0xff]
      %v1358 = vld [vmem:[%s3 + $0x130] sm:$0xff]
      %v1359 = vld [vmem:[%s3 + $0x138] sm:$0xff]
      %v1360 = vld [vmem:[%s3 + $0x140] sm:$0xff]
      %v1361 = vld [vmem:[%s3 + $0x148] sm:$0xff]
      %v1362 = vld [vmem:[%s3 + $0x150] sm:$0xff]
      %v1363 = vld [vmem:[%s3 + $0x158] sm:$0xff]
      %v1364 = vld [vmem:[%s3 + $0x160] sm:$0xff]
      %v1365 = vld [vmem:[%s3 + $0x168] sm:$0xff]
      %v1366 = vld [vmem:[%s3 + $0x170] sm:$0xff]
      %v1367 = vld [vmem:[%s3 + $0x178] sm:$0xff]
      %v1368 = vld [vmem:[%s3 + $0x180] sm:$0xff]
      %v1369 = vld [vmem:[%s3 + $0x188] sm:$0xff]
      %v1370 = vld [vmem:[%s3 + $0x190] sm:$0xff]
      %v1371 = vld [vmem:[%s3 + $0x198] sm:$0xff]
      %v1372 = vld [vmem:[%s3 + $0x1a0] sm:$0xff]
      %v1373 = vld [vmem:[%s3 + $0x1a8] sm:$0xff]
      %v1374 = vld [vmem:[%s3 + $0x1b0] sm:$0xff]
      %v1375 = vld [vmem:[%s3 + $0x1b8] sm:$0xff]
      %v1376 = vld [vmem:[%s3 + $0x1c0] sm:$0xff]
      %v1377 = vld [vmem:[%s3 + $0x1c8] sm:$0xff]
      %v1378 = vld [vmem:[%s3 + $0x1d0] sm:$0xff]
      %v1379 = vld [vmem:[%s3 + $0x1d8] sm:$0xff]
      %v1380 = vld [vmem:[%s3 + $0x1e0] sm:$0xff]
      %v1381 = vld [vmem:[%s3 + $0x1e8] sm:$0xff]
      %v1382 = vld [vmem:[%s3 + $0x1f0] sm:$0xff]
      %v1383 = vld [vmem:[%s3 + $0x1f8] sm:$0xff]
      %1384 = vmatprep.subr.mxu0 0.0
      %1385 = vmatpush1.msra.mxu0 %v710
      %1386 = vmatprep.subr.mxu0 0.0
      %1387 = vmatpush1.msra.mxu0 %v711
      %1388 = vmatprep.subr.mxu0 0.0
      %1389 = vmatpush1.msra.mxu0 %v712
      %1390 = vmatprep.subr.mxu0 0.0
      %1391 = vmatpush1.msra.mxu0 %v713
      %1392 = vmatprep.subr.mxu0 0.0
      %1393 = vmatpush1.msra.mxu0 %v714
      %1394 = vmatprep.subr.mxu0 0.0
      %1395 = vmatpush1.msra.mxu0 %v715
      %1396 = vmatprep.subr.mxu0 0.0
      %1397 = vmatpush1.msra.mxu0 %v716
      %1398 = vmatprep.subr.mxu0 0.0
      %1399 = vmatpush1.msra.mxu0 %v717
      %1400 = vmatprep.subr.mxu0 0.0
      %1401 = vmatpush1.msra.mxu0 %v718
      %1402 = vmatprep.subr.mxu0 0.0
      %1403 = vmatpush1.msra.mxu0 %v719
      %1404 = vmatprep.subr.mxu0 0.0
      %1405 = vmatpush1.msra.mxu0 %v720
      %1406 = vmatprep.subr.mxu0 0.0
      %1407 = vmatpush1.msra.mxu0 %v721
      %1408 = vmatprep.subr.mxu0 0.0
      %1409 = vmatpush1.msra.mxu0 %v722
      %1410 = vmatprep.subr.mxu0 0.0
      %1411 = vmatpush1.msra.mxu0 %v723
      %1412 = vmatprep.subr.mxu0 0.0
      %1413 = vmatpush1.msra.mxu0 %v724
      %1414 = vmatprep.subr.mxu0 0.0
      %1415 = vmatpush1.msra.mxu0 %v725
      %1416 = vmatprep.subr.mxu0 0.0
      %1417 = vmatpush1.msra.mxu0 %v726
      %1418 = vmatprep.subr.mxu0 0.0
      %1419 = vmatpush1.msra.mxu0 %v727
      %1420 = vmatprep.subr.mxu0 0.0
      %1421 = vmatpush1.msra.mxu0 %v728
      %1422 = vmatprep.subr.mxu0 0.0
      %1423 = vmatpush1.msra.mxu0 %v729
      %1424 = vmatprep.subr.mxu0 0.0
      %1425 = vmatpush1.msra.mxu0 %v730
      %1426 = vmatprep.subr.mxu0 0.0
      %1427 = vmatpush1.msra.mxu0 %v731
      %1428 = vmatprep.subr.mxu0 0.0
      %1429 = vmatpush1.msra.mxu0 %v732
      %1430 = vmatprep.subr.mxu0 0.0
      %1431 = vmatpush1.msra.mxu0 %v733
      %1432 = vmatprep.subr.mxu0 0.0
      %1433 = vmatpush1.msra.mxu0 %v734
      %1434 = vmatprep.subr.mxu0 0.0
      %1435 = vmatpush1.msra.mxu0 %v735
      %1436 = vmatprep.subr.mxu0 0.0
      %1437 = vmatpush1.msra.mxu0 %v736
      %1438 = vmatprep.subr.mxu0 0.0
      %1439 = vmatpush1.msra.mxu0 %v737
      %1440 = vmatprep.subr.mxu0 0.0
      %1441 = vmatpush1.msra.mxu0 %v738
      %1442 = vmatprep.subr.mxu0 0.0
      %1443 = vmatpush1.msra.mxu0 %v739
      %1444 = vmatprep.subr.mxu0 0.0
      %1445 = vmatpush1.msra.mxu0 %v740
      %1446 = vmatprep.subr.mxu0 0.0
      %1447 = vmatpush1.msra.mxu0 %v741
      %1448 = vmatprep.mubr.f32.mxu0 %v1321
      %1449 = vmatmul.mubr.f32.gmra.mrb[0].mxu0 %v1320
      %v1450 = vpop.f32.mrb[0].mxu0
      %v1451 = vadd.f32 0.0, %v1450
      %v1452 = vpop.f32.mrb[0].mxu0
      %1453 = vmatprep.mubr.f32.mxu0 %v1323
      %1454 = vmatmul.mubr.f32.gmra.mrb[0].mxu0 %v1322
      %v1455 = vpop.f32.mrb[0].mxu0
      %v1456 = vadd.f32 0.0, %v1455
      %v1457 = vpop.f32.mrb[0].mxu0
      %1458 = vmatprep.mubr.f32.mxu0 %v1325
      %1459 = vmatmul.mubr.f32.gmra.mrb[0].mxu0 %v1324
      %v1460 = vpop.f32.mrb[0].mxu0
      %v1461 = vadd.f32 0.0, %v1460
      %v1462 = vpop.f32.mrb[0].mxu0
      %1463 = vmatprep.mubr.f32.mxu0 %v1327
      %1464 = vmatmul.mubr.f32.gmra.mrb[0].mxu0 %v1326
      %v1465 = vpop.f32.mrb[0].mxu0
      %v1466 = vadd.f32 0.0, %v1465
      %v1467 = vpop.f32.mrb[0].mxu0
      %1468 = vmatprep.mubr.f32.mxu0 %v1329
      %1469 = vmatmul.mubr.f32.gmra.mrb[0].mxu0 %v1328
      %v1470 = vpop.f32.mrb[0].mxu0
      %v1471 = vadd.f32 0.0, %v1470
      %v1472 = vpop.f32.mrb[0].mxu0
      %1473 = vmatprep.mubr.f32.mxu0 %v1331
      %1474 = vmatmul.mubr.f32.gmra.mrb[0].mxu0 %v1330
      %v1475 = vpop.f32.mrb[0].mxu0
      %v1476 = vadd.f32 0.0, %v1475
      %v1477 = vpop.f32.mrb[0].mxu0
      %1478 = vmatprep.mubr.f32.mxu0 %v1333
      %1479 = vmatmul.mubr.f32.gmra.mrb[0].mxu0 %v1332
      %v1480 = vpop.f32.mrb[0].mxu0
      %v1481 = vadd.f32 0.0, %v1480
      %v1482 = vpop.f32.mrb[0].mxu0
      %1483 = vmatprep.mubr.f32.mxu0 %v1335
      %1484 = vmatmul.mubr.f32.gmra.mrb[0].mxu0 %v1334
      %v1485 = vpop.f32.mrb[0].mxu0
      %v1486 = vadd.f32 0.0, %v1485
      %v1487 = vpop.f32.mrb[0].mxu0
      %1488 = vmatprep.mubr.f32.mxu0 %v1337
      %1489 = vmatmul.mubr.f32.gmra.mrb[0].mxu0 %v1336
      %v1490 = vpop.f32.mrb[0].mxu0
      %v1491 = vadd.f32 0.0, %v1490
      %v1492 = vpop.f32.mrb[0].mxu0
      %1493 = vmatprep.mubr.f32.mxu0 %v1339
      %1494 = vmatmul.mubr.f32.gmra.mrb[0].mxu0 %v1338
      %v1495 = vpop.f32.mrb[0].mxu0
      %v1496 = vadd.f32 0.0, %v1495
      %v1497 = vpop.f32.mrb[0].mxu0
      %1498 = vmatprep.mubr.f32.mxu0 %v1341
      %1499 = vmatmul.mubr.f32.gmra.mrb[0].mxu0 %v1340
      %v1500 = vpop.f32.mrb[0].mxu0
      %v1501 = vadd.f32 0.0, %v1500
      %v1502 = vpop.f32.mrb[0].mxu0
      %1503 = vmatprep.mubr.f32.mxu0 %v1343
      %1504 = vmatmul.mubr.f32.gmra.mrb[0].mxu0 %v1342
      %v1505 = vpop.f32.mrb[0].mxu0
      %v1506 = vadd.f32 0.0, %v1505
      %v1507 = vpop.f32.mrb[0].mxu0
      %1508 = vmatprep.mubr.f32.mxu0 %v1345
      %1509 = vmatmul.mubr.f32.gmra.mrb[0].mxu0 %v1344
      %v1510 = vpop.f32.mrb[0].mxu0
      %v1511 = vadd.f32 0.0, %v1510
      %v1512 = vpop.f32.mrb[0].mxu0
      %1513 = vmatprep.mubr.f32.mxu0 %v1347
      %1514 = vmatmul.mubr.f32.gmra.mrb[0].mxu0 %v1346
      %v1515 = vpop.f32.mrb[0].mxu0
      %v1516 = vadd.f32 0.0, %v1515
      %v1517 = vpop.f32.mrb[0].mxu0
      %1518 = vmatprep.mubr.f32.mxu0 %v1349
      %1519 = vmatmul.mubr.f32.gmra.mrb[0].mxu0 %v1348
      %v1520 = vpop.f32.mrb[0].mxu0
      %v1521 = vadd.f32 0.0, %v1520
      %v1522 = vpop.f32.mrb[0].mxu0
      %1523 = vmatprep.mubr.f32.mxu0 %v1351
      %1524 = vmatmul.mubr.f32.gmra.mrb[0].mxu0 %v1350
      %v1525 = vpop.f32.mrb[0].mxu0
      %v1526 = vadd.f32 0.0, %v1525
      %v1527 = vpop.f32.mrb[0].mxu0
      %1528 = vmatprep.mubr.f32.mxu0 %v1353
      %1529 = vmatmul.mubr.f32.gmra.mrb[0].mxu0 %v1352
      %v1530 = vpop.f32.mrb[0].mxu0
      %v1531 = vadd.f32 0.0, %v1530
      %v1532 = vpop.f32.mrb[0].mxu0
      %1533 = vmatprep.mubr.f32.mxu0 %v1355
      %1534 = vmatmul.mubr.f32.gmra.mrb[0].mxu0 %v1354
      %v1535 = vpop.f32.mrb[0].mxu0
      %v1536 = vadd.f32 0.0, %v1535
      %v1537 = vpop.f32.mrb[0].mxu0
      %1538 = vmatprep.mubr.f32.mxu0 %v1357
      %1539 = vmatmul.mubr.f32.gmra.mrb[0].mxu0 %v1356
      %v1540 = vpop.f32.mrb[0].mxu0
      %v1541 = vadd.f32 0.0, %v1540
      %v1542 = vpop.f32.mrb[0].mxu0
      %1543 = vmatprep.mubr.f32.mxu0 %v1359
      %1544 = vmatmul.mubr.f32.gmra.mrb[0].mxu0 %v1358
      %v1545 = vpop.f32.mrb[0].mxu0
      %v1546 = vadd.f32 0.0, %v1545
      %v1547 = vpop.f32.mrb[0].mxu0
      %1548 = vmatprep.mubr.f32.mxu0 %v1361
      %1549 = vmatmul.mubr.f32.gmra.mrb[0].mxu0 %v1360
      %v1550 = vpop.f32.mrb[0].mxu0
      %v1551 = vadd.f32 0.0, %v1550
      %v1552 = vpop.f32.mrb[0].mxu0
      %1553 = vmatprep.mubr.f32.mxu0 %v1363
      %1554 = vmatmul.mubr.f32.gmra.mrb[0].mxu0 %v1362
      %v1555 = vpop.f32.mrb[0].mxu0
      %v1556 = vadd.f32 0.0, %v1555
      %v1557 = vpop.f32.mrb[0].mxu0
      %1558 = vmatprep.mubr.f32.mxu0 %v1365
      %1559 = vmatmul.mubr.f32.gmra.mrb[0].mxu0 %v1364
      %v1560 = vpop.f32.mrb[0].mxu0
      %v1561 = vadd.f32 0.0, %v1560
      %v1562 = vpop.f32.mrb[0].mxu0
      %1563 = vmatprep.mubr.f32.mxu0 %v1367
      %1564 = vmatmul.mubr.f32.gmra.mrb[0].mxu0 %v1366
      %v1565 = vpop.f32.mrb[0].mxu0
      %v1566 = vadd.f32 0.0, %v1565
      %v1567 = vpop.f32.mrb[0].mxu0
      %1568 = vmatprep.mubr.f32.mxu0 %v1369
      %1569 = vmatmul.mubr.f32.gmra.mrb[0].mxu0 %v1368
      %v1570 = vpop.f32.mrb[0].mxu0
      %v1571 = vadd.f32 0.0, %v1570
      %v1572 = vpop.f32.mrb[0].mxu0
      %1573 = vmatprep.mubr.f32.mxu0 %v1371
      %1574 = vmatmul.mubr.f32.gmra.mrb[0].mxu0 %v1370
      %v1575 = vpop.f32.mrb[0].mxu0
      %v1576 = vadd.f32 0.0, %v1575
      %v1577 = vpop.f32.mrb[0].mxu0
      %1578 = vmatprep.mubr.f32.mxu0 %v1373
      %1579 = vmatmul.mubr.f32.gmra.mrb[0].mxu0 %v1372
      %v1580 = vpop.f32.mrb[0].mxu0
      %v1581 = vadd.f32 0.0, %v1580
      %v1582 = vpop.f32.mrb[0].mxu0
      %1583 = vmatprep.mubr.f32.mxu0 %v1375
      %1584 = vmatmul.mubr.f32.gmra.mrb[0].mxu0 %v1374
      %v1585 = vpop.f32.mrb[0].mxu0
      %v1586 = vadd.f32 0.0, %v1585
      %v1587 = vpop.f32.mrb[0].mxu0
      %1588 = vmatprep.mubr.f32.mxu0 %v1377
      %1589 = vmatmul.mubr.f32.gmra.mrb[0].mxu0 %v1376
      %v1590 = vpop.f32.mrb[0].mxu0
      %v1591 = vadd.f32 0.0, %v1590
      %v1592 = vpop.f32.mrb[0].mxu0
      %1593 = vmatprep.mubr.f32.mxu0 %v1379
      %1594 = vmatmul.mubr.f32.gmra.mrb[0].mxu0 %v1378
      %v1595 = vpop.f32.mrb[0].mxu0
      %v1596 = vadd.f32 0.0, %v1595
      %v1597 = vpop.f32.mrb[0].mxu0
      %1598 = vmatprep.mubr.f32.mxu0 %v1381
      %1599 = vmatmul.mubr.f32.gmra.mrb[0].mxu0 %v1380
      %v1600 = vpop.f32.mrb[0].mxu0
      %v1601 = vadd.f32 0.0, %v1600
      %v1602 = vpop.f32.mrb[0].mxu0
      %1603 = vmatprep.mubr.f32.mxu0 %v1383
      %1604 = vmatmul.mubr.f32.gmra.mrb[0].mxu0 %v1382
      %v1605 = vpop.f32.mrb[0].mxu0
      %v1606 = vadd.f32 0.0, %v1605
      %v1607 = vpop.f32.mrb[0].mxu0
      %1608 = vdwg.mxu0
      %v1609 = vld [vmem:[%s4] sm:$0x1]
      %1611 = vset.pattern.permute.xlu0 3
      %1612 = vperm.xlu0 %1611, %v1451
      %v1613 = vpop.permute.xlu0 %1612
      %1616 = vset.pattern.permute.xlu0 3
      %1617 = vperm.xlu0 %1616, %v1456
      %v1618 = vpop.permute.xlu0 %1617
      %1621 = vset.pattern.permute.xlu0 3
      %1622 = vperm.xlu0 %1621, %v1461
      %v1623 = vpop.permute.xlu0 %1622
      %1626 = vset.pattern.permute.xlu0 3
      %1627 = vperm.xlu0 %1626, %v1466
      %v1628 = vpop.permute.xlu0 %1627
      %1631 = vset.pattern.permute.xlu0 3
      %1632 = vperm.xlu0 %1631, %v1471
      %v1633 = vpop.permute.xlu0 %1632
      %1636 = vset.pattern.permute.xlu0 3
      %1637 = vperm.xlu0 %1636, %v1476
      %v1638 = vpop.permute.xlu0 %1637
      %1641 = vset.pattern.permute.xlu0 3
      %1642 = vperm.xlu0 %1641, %v1481
      %v1643 = vpop.permute.xlu0 %1642
      %1646 = vset.pattern.permute.xlu0 3
      %1647 = vperm.xlu0 %1646, %v1486
      %v1648 = vpop.permute.xlu0 %1647
      %1651 = vset.pattern.permute.xlu0 3
      %1652 = vperm.xlu0 %1651, %v1491
      %v1653 = vpop.permute.xlu0 %1652
      %1656 = vset.pattern.permute.xlu0 3
      %1657 = vperm.xlu0 %1656, %v1496
      %v1658 = vpop.permute.xlu0 %1657
      %1661 = vset.pattern.permute.xlu0 3
      %1662 = vperm.xlu0 %1661, %v1501
      %v1663 = vpop.permute.xlu0 %1662
      %1666 = vset.pattern.permute.xlu0 3
      %1667 = vperm.xlu0 %1666, %v1506
      %v1668 = vpop.permute.xlu0 %1667
      %1671 = vset.pattern.permute.xlu0 3
      %1672 = vperm.xlu0 %1671, %v1511
      %v1673 = vpop.permute.xlu0 %1672
      %1676 = vset.pattern.permute.xlu0 3
      %1677 = vperm.xlu0 %1676, %v1516
      %v1678 = vpop.permute.xlu0 %1677
      %1681 = vset.pattern.permute.xlu0 3
      %1682 = vperm.xlu0 %1681, %v1521
      %v1683 = vpop.permute.xlu0 %1682
      %1686 = vset.pattern.permute.xlu0 3
      %1687 = vperm.xlu0 %1686, %v1526
      %v1688 = vpop.permute.xlu0 %1687
      %1691 = vset.pattern.permute.xlu0 3
      %1692 = vperm.xlu0 %1691, %v1531
      %v1693 = vpop.permute.xlu0 %1692
      %1696 = vset.pattern.permute.xlu0 3
      %1697 = vperm.xlu0 %1696, %v1536
      %v1698 = vpop.permute.xlu0 %1697
      %1701 = vset.pattern.permute.xlu0 3
      %1702 = vperm.xlu0 %1701, %v1541
      %v1703 = vpop.permute.xlu0 %1702
      %1706 = vset.pattern.permute.xlu0 3
      %1707 = vperm.xlu0 %1706, %v1546
      %v1708 = vpop.permute.xlu0 %1707
      %1711 = vset.pattern.permute.xlu0 3
      %1712 = vperm.xlu0 %1711, %v1551
      %v1713 = vpop.permute.xlu0 %1712
      %1716 = vset.pattern.permute.xlu0 3
      %1717 = vperm.xlu0 %1716, %v1556
      %v1718 = vpop.permute.xlu0 %1717
      %1721 = vset.pattern.permute.xlu0 3
      %1722 = vperm.xlu0 %1721, %v1561
      %v1723 = vpop.permute.xlu0 %1722
      %1726 = vset.pattern.permute.xlu0 3
      %1727 = vperm.xlu0 %1726, %v1566
      %v1728 = vpop.permute.xlu0 %1727
      %1731 = vset.pattern.permute.xlu0 3
      %1732 = vperm.xlu0 %1731, %v1571
      %v1733 = vpop.permute.xlu0 %1732
      %1736 = vset.pattern.permute.xlu0 3
      %1737 = vperm.xlu0 %1736, %v1576
      %v1738 = vpop.permute.xlu0 %1737
      %1741 = vset.pattern.permute.xlu0 3
      %1742 = vperm.xlu0 %1741, %v1581
      %v1743 = vpop.permute.xlu0 %1742
      %1746 = vset.pattern.permute.xlu0 3
      %1747 = vperm.xlu0 %1746, %v1586
      %v1748 = vpop.permute.xlu0 %1747
      %1751 = vset.pattern.permute.xlu0 3
      %1752 = vperm.xlu0 %1751, %v1591
      %v1753 = vpop.permute.xlu0 %1752
      %1756 = vset.pattern.permute.xlu0 3
      %1757 = vperm.xlu0 %1756, %v1596
      %v1758 = vpop.permute.xlu0 %1757
      %1761 = vset.pattern.permute.xlu0 3
      %1762 = vperm.xlu0 %1761, %v1601
      %v1763 = vpop.permute.xlu0 %1762
      %1766 = vset.pattern.permute.xlu0 3
      %1767 = vperm.xlu0 %1766, %v1606
      %v1768 = vpop.permute.xlu0 %1767
      %v1771 = vlaneseq
      %v1772 = vshrl.u32 %v1771, 7
      %v1773 = vsub.s32 0, %v1772
      %v1774 = vrot.slane %v1609, %v1773
      %v1776 = vmul.f32 %v1613, %v1774
      %v1777 = vmul.f32 %v1618, %v1774
      %v1778 = vmul.f32 %v1623, %v1774
      %v1779 = vmul.f32 %v1628, %v1774
      %v1780 = vmul.f32 %v1633, %v1774
      %v1781 = vmul.f32 %v1638, %v1774
      %v1782 = vmul.f32 %v1643, %v1774
      %v1783 = vmul.f32 %v1648, %v1774
      %v1784 = vmul.f32 %v1653, %v1774
      %v1785 = vmul.f32 %v1658, %v1774
      %v1786 = vmul.f32 %v1663, %v1774
      %v1787 = vmul.f32 %v1668, %v1774
      %v1788 = vmul.f32 %v1673, %v1774
      %v1789 = vmul.f32 %v1678, %v1774
      %v1790 = vmul.f32 %v1683, %v1774
      %v1791 = vmul.f32 %v1688, %v1774
      %v1792 = vmul.f32 %v1693, %v1774
      %v1793 = vmul.f32 %v1698, %v1774
      %v1794 = vmul.f32 %v1703, %v1774
      %v1795 = vmul.f32 %v1708, %v1774
      %v1796 = vmul.f32 %v1713, %v1774
      %v1797 = vmul.f32 %v1718, %v1774
      %v1798 = vmul.f32 %v1723, %v1774
      %v1799 = vmul.f32 %v1728, %v1774
      %v1800 = vmul.f32 %v1733, %v1774
      %v1801 = vmul.f32 %v1738, %v1774
      %v1802 = vmul.f32 %v1743, %v1774
      %v1803 = vmul.f32 %v1748, %v1774
      %v1804 = vmul.f32 %v1753, %v1774
      %v1805 = vmul.f32 %v1758, %v1774
      %v1806 = vmul.f32 %v1763, %v1774
      %v1807 = vmul.f32 %v1768, %v1774
      %v1808 = vadd.f32 %v1776, 0.0
      %v1809 = vadd.f32 %v1777, 0.0
      %v1810 = vadd.f32 %v1778, 0.0
      %v1811 = vadd.f32 %v1779, 0.0
      %v1812 = vadd.f32 %v1780, 0.0
      %v1813 = vadd.f32 %v1781, 0.0
      %v1814 = vadd.f32 %v1782, 0.0
      %v1815 = vadd.f32 %v1783, 0.0
      %v1816 = vadd.f32 %v1784, 0.0
      %v1817 = vadd.f32 %v1785, 0.0
      %v1818 = vadd.f32 %v1786, 0.0
      %v1819 = vadd.f32 %v1787, 0.0
      %v1820 = vadd.f32 %v1788, 0.0
      %v1821 = vadd.f32 %v1789, 0.0
      %v1822 = vadd.f32 %v1790, 0.0
      %v1823 = vadd.f32 %v1791, 0.0
      %v1824 = vadd.f32 %v1792, 0.0
      %v1825 = vadd.f32 %v1793, 0.0
      %v1826 = vadd.f32 %v1794, 0.0
      %v1827 = vadd.f32 %v1795, 0.0
      %v1828 = vadd.f32 %v1796, 0.0
      %v1829 = vadd.f32 %v1797, 0.0
      %v1830 = vadd.f32 %v1798, 0.0
      %v1831 = vadd.f32 %v1799, 0.0
      %v1832 = vadd.f32 %v1800, 0.0
      %v1833 = vadd.f32 %v1801, 0.0
      %v1834 = vadd.f32 %v1802, 0.0
      %v1835 = vadd.f32 %v1803, 0.0
      %v1836 = vadd.f32 %v1804, 0.0
      %v1837 = vadd.f32 %v1805, 0.0
      %v1838 = vadd.f32 %v1806, 0.0
      %v1839 = vadd.f32 %v1807, 0.0
      %s1840 = scalar_lea.vmem %s4, 1
      %v1841 = vld [vmem:[%s1840] sm:$0x1]
      %1843 = vset.pattern.permute.xlu0 2
      %1844 = vperm.xlu0 %1843, %v1162
      %v1845 = vpop.permute.xlu0 %1844
      %1848 = vset.pattern.permute.xlu0 2
      %1849 = vperm.xlu0 %1848, %v1167
      %v1850 = vpop.permute.xlu0 %1849
      %1853 = vset.pattern.permute.xlu0 2
      %1854 = vperm.xlu0 %1853, %v1172
      %v1855 = vpop.permute.xlu0 %1854
      %1858 = vset.pattern.permute.xlu0 2
      %1859 = vperm.xlu0 %1858, %v1177
      %v1860 = vpop.permute.xlu0 %1859
      %1863 = vset.pattern.permute.xlu0 2
      %1864 = vperm.xlu0 %1863, %v1182
      %v1865 = vpop.permute.xlu0 %1864
      %1868 = vset.pattern.permute.xlu0 2
      %1869 = vperm.xlu0 %1868, %v1187
      %v1870 = vpop.permute.xlu0 %1869
      %1873 = vset.pattern.permute.xlu0 2
      %1874 = vperm.xlu0 %1873, %v1192
      %v1875 = vpop.permute.xlu0 %1874
      %1878 = vset.pattern.permute.xlu0 2
      %1879 = vperm.xlu0 %1878, %v1197
      %v1880 = vpop.permute.xlu0 %1879
      %1883 = vset.pattern.permute.xlu0 2
      %1884 = vperm.xlu0 %1883, %v1202
      %v1885 = vpop.permute.xlu0 %1884
      %1888 = vset.pattern.permute.xlu0 2
      %1889 = vperm.xlu0 %1888, %v1207
      %v1890 = vpop.permute.xlu0 %1889
      %1893 = vset.pattern.permute.xlu0 2
      %1894 = vperm.xlu0 %1893, %v1212
      %v1895 = vpop.permute.xlu0 %1894
      %1898 = vset.pattern.permute.xlu0 2
      %1899 = vperm.xlu0 %1898, %v1217
      %v1900 = vpop.permute.xlu0 %1899
      %1903 = vset.pattern.permute.xlu0 2
      %1904 = vperm.xlu0 %1903, %v1222
      %v1905 = vpop.permute.xlu0 %1904
      %1908 = vset.pattern.permute.xlu0 2
      %1909 = vperm.xlu0 %1908, %v1227
      %v1910 = vpop.permute.xlu0 %1909
      %1913 = vset.pattern.permute.xlu0 2
      %1914 = vperm.xlu0 %1913, %v1232
      %v1915 = vpop.permute.xlu0 %1914
      %1918 = vset.pattern.permute.xlu0 2
      %1919 = vperm.xlu0 %1918, %v1237
      %v1920 = vpop.permute.xlu0 %1919
      %1923 = vset.pattern.permute.xlu0 2
      %1924 = vperm.xlu0 %1923, %v1242
      %v1925 = vpop.permute.xlu0 %1924
      %1928 = vset.pattern.permute.xlu0 2
      %1929 = vperm.xlu0 %1928, %v1247
      %v1930 = vpop.permute.xlu0 %1929
      %1933 = vset.pattern.permute.xlu0 2
      %1934 = vperm.xlu0 %1933, %v1252
      %v1935 = vpop.permute.xlu0 %1934
      %1938 = vset.pattern.permute.xlu0 2
      %1939 = vperm.xlu0 %1938, %v1257
      %v1940 = vpop.permute.xlu0 %1939
      %1943 = vset.pattern.permute.xlu0 2
      %1944 = vperm.xlu0 %1943, %v1262
      %v1945 = vpop.permute.xlu0 %1944
      %1948 = vset.pattern.permute.xlu0 2
      %1949 = vperm.xlu0 %1948, %v1267
      %v1950 = vpop.permute.xlu0 %1949
      %1953 = vset.pattern.permute.xlu0 2
      %1954 = vperm.xlu0 %1953, %v1272
      %v1955 = vpop.permute.xlu0 %1954
      %1958 = vset.pattern.permute.xlu0 2
      %1959 = vperm.xlu0 %1958, %v1277
      %v1960 = vpop.permute.xlu0 %1959
      %1963 = vset.pattern.permute.xlu0 2
      %1964 = vperm.xlu0 %1963, %v1282
      %v1965 = vpop.permute.xlu0 %1964
      %1968 = vset.pattern.permute.xlu0 2
      %1969 = vperm.xlu0 %1968, %v1287
      %v1970 = vpop.permute.xlu0 %1969
      %1973 = vset.pattern.permute.xlu0 2
      %1974 = vperm.xlu0 %1973, %v1292
      %v1975 = vpop.permute.xlu0 %1974
      %1978 = vset.pattern.permute.xlu0 2
      %1979 = vperm.xlu0 %1978, %v1297
      %v1980 = vpop.permute.xlu0 %1979
      %1983 = vset.pattern.permute.xlu0 2
      %1984 = vperm.xlu0 %1983, %v1302
      %v1985 = vpop.permute.xlu0 %1984
      %1988 = vset.pattern.permute.xlu0 2
      %1989 = vperm.xlu0 %1988, %v1307
      %v1990 = vpop.permute.xlu0 %1989
      %1993 = vset.pattern.permute.xlu0 2
      %1994 = vperm.xlu0 %1993, %v1312
      %v1995 = vpop.permute.xlu0 %1994
      %1998 = vset.pattern.permute.xlu0 2
      %1999 = vperm.xlu0 %1998, %v1317
      %v2000 = vpop.permute.xlu0 %1999
      %v2003 = vlaneseq
      %v2004 = vshrl.u32 %v2003, 7
      %v2005 = vsub.s32 0, %v2004
      %v2006 = vrot.slane %v1841, %v2005
      %v2008 = vmul.f32 %v1845, %v2006
      %v2009 = vmul.f32 %v1850, %v2006
      %v2010 = vmul.f32 %v1855, %v2006
      %v2011 = vmul.f32 %v1860, %v2006
      %v2012 = vmul.f32 %v1865, %v2006
      %v2013 = vmul.f32 %v1870, %v2006
      %v2014 = vmul.f32 %v1875, %v2006
      %v2015 = vmul.f32 %v1880, %v2006
      %v2016 = vmul.f32 %v1885, %v2006
      %v2017 = vmul.f32 %v1890, %v2006
      %v2018 = vmul.f32 %v1895, %v2006
      %v2019 = vmul.f32 %v1900, %v2006
      %v2020 = vmul.f32 %v1905, %v2006
      %v2021 = vmul.f32 %v1910, %v2006
      %v2022 = vmul.f32 %v1915, %v2006
      %v2023 = vmul.f32 %v1920, %v2006
      %v2024 = vmul.f32 %v1925, %v2006
      %v2025 = vmul.f32 %v1930, %v2006
      %v2026 = vmul.f32 %v1935, %v2006
      %v2027 = vmul.f32 %v1940, %v2006
      %v2028 = vmul.f32 %v1945, %v2006
      %v2029 = vmul.f32 %v1950, %v2006
      %v2030 = vmul.f32 %v1955, %v2006
      %v2031 = vmul.f32 %v1960, %v2006
      %v2032 = vmul.f32 %v1965, %v2006
      %v2033 = vmul.f32 %v1970, %v2006
      %v2034 = vmul.f32 %v1975, %v2006
      %v2035 = vmul.f32 %v1980, %v2006
      %v2036 = vmul.f32 %v1985, %v2006
      %v2037 = vmul.f32 %v1990, %v2006
      %v2038 = vmul.f32 %v1995, %v2006
      %v2039 = vmul.f32 %v2000, %v2006
      %v2040 = vadd.f32 %v1808, %v2008
      %v2041 = vadd.f32 %v1809, %v2009
      %v2042 = vadd.f32 %v1810, %v2010
      %v2043 = vadd.f32 %v1811, %v2011
      %v2044 = vadd.f32 %v1812, %v2012
      %v2045 = vadd.f32 %v1813, %v2013
      %v2046 = vadd.f32 %v1814, %v2014
      %v2047 = vadd.f32 %v1815, %v2015
      %v2048 = vadd.f32 %v1816, %v2016
      %v2049 = vadd.f32 %v1817, %v2017
      %v2050 = vadd.f32 %v1818, %v2018
      %v2051 = vadd.f32 %v1819, %v2019
      %v2052 = vadd.f32 %v1820, %v2020
      %v2053 = vadd.f32 %v1821, %v2021
      %v2054 = vadd.f32 %v1822, %v2022
      %v2055 = vadd.f32 %v1823, %v2023
      %v2056 = vadd.f32 %v1824, %v2024
      %v2057 = vadd.f32 %v1825, %v2025
      %v2058 = vadd.f32 %v1826, %v2026
      %v2059 = vadd.f32 %v1827, %v2027
      %v2060 = vadd.f32 %v1828, %v2028
      %v2061 = vadd.f32 %v1829, %v2029
      %v2062 = vadd.f32 %v1830, %v2030
      %v2063 = vadd.f32 %v1831, %v2031
      %v2064 = vadd.f32 %v1832, %v2032
      %v2065 = vadd.f32 %v1833, %v2033
      %v2066 = vadd.f32 %v1834, %v2034
      %v2067 = vadd.f32 %v1835, %v2035
      %v2068 = vadd.f32 %v1836, %v2036
      %v2069 = vadd.f32 %v1837, %v2037
      %v2070 = vadd.f32 %v1838, %v2038
      %v2071 = vadd.f32 %v1839, %v2039
      %s2072 = scalar_lea.vmem %s4, 2
      %v2073 = vld [vmem:[%s2072] sm:$0x1]
      %2074 = vset.pattern.permute.xlu0 3
      %2075 = vperm.xlu0 %2074, %v1162
      %v2076 = vpop.permute.xlu0 %2075
      %2078 = vset.pattern.permute.xlu0 3
      %2079 = vperm.xlu0 %2078, %v1167
      %v2080 = vpop.permute.xlu0 %2079
      %2082 = vset.pattern.permute.xlu0 3
      %2083 = vperm.xlu0 %2082, %v1172
      %v2084 = vpop.permute.xlu0 %2083
      %2086 = vset.pattern.permute.xlu0 3
      %2087 = vperm.xlu0 %2086, %v1177
      %v2088 = vpop.permute.xlu0 %2087
      %2090 = vset.pattern.permute.xlu0 3
      %2091 = vperm.xlu0 %2090, %v1182
      %v2092 = vpop.permute.xlu0 %2091
      %2094 = vset.pattern.permute.xlu0 3
      %2095 = vperm.xlu0 %2094, %v1187
      %v2096 = vpop.permute.xlu0 %2095
      %2098 = vset.pattern.permute.xlu0 3
      %2099 = vperm.xlu0 %2098, %v1192
      %v2100 = vpop.permute.xlu0 %2099
      %2102 = vset.pattern.permute.xlu0 3
      %2103 = vperm.xlu0 %2102, %v1197
      %v2104 = vpop.permute.xlu0 %2103
      %2106 = vset.pattern.permute.xlu0 3
      %2107 = vperm.xlu0 %2106, %v1202
      %v2108 = vpop.permute.xlu0 %2107
      %2110 = vset.pattern.permute.xlu0 3
      %2111 = vperm.xlu0 %2110, %v1207
      %v2112 = vpop.permute.xlu0 %2111
      %2114 = vset.pattern.permute.xlu0 3
      %2115 = vperm.xlu0 %2114, %v1212
      %v2116 = vpop.permute.xlu0 %2115
      %2118 = vset.pattern.permute.xlu0 3
      %2119 = vperm.xlu0 %2118, %v1217
      %v2120 = vpop.permute.xlu0 %2119
      %2122 = vset.pattern.permute.xlu0 3
      %2123 = vperm.xlu0 %2122, %v1222
      %v2124 = vpop.permute.xlu0 %2123
      %2126 = vset.pattern.permute.xlu0 3
      %2127 = vperm.xlu0 %2126, %v1227
      %v2128 = vpop.permute.xlu0 %2127
      %2130 = vset.pattern.permute.xlu0 3
      %2131 = vperm.xlu0 %2130, %v1232
      %v2132 = vpop.permute.xlu0 %2131
      %2134 = vset.pattern.permute.xlu0 3
      %2135 = vperm.xlu0 %2134, %v1237
      %v2136 = vpop.permute.xlu0 %2135
      %2138 = vset.pattern.permute.xlu0 3
      %2139 = vperm.xlu0 %2138, %v1242
      %v2140 = vpop.permute.xlu0 %2139
      %2142 = vset.pattern.permute.xlu0 3
      %2143 = vperm.xlu0 %2142, %v1247
      %v2144 = vpop.permute.xlu0 %2143
      %2146 = vset.pattern.permute.xlu0 3
      %2147 = vperm.xlu0 %2146, %v1252
      %v2148 = vpop.permute.xlu0 %2147
      %2150 = vset.pattern.permute.xlu0 3
      %2151 = vperm.xlu0 %2150, %v1257
      %v2152 = vpop.permute.xlu0 %2151
      %2154 = vset.pattern.permute.xlu0 3
      %2155 = vperm.xlu0 %2154, %v1262
      %v2156 = vpop.permute.xlu0 %2155
      %2158 = vset.pattern.permute.xlu0 3
      %2159 = vperm.xlu0 %2158, %v1267
      %v2160 = vpop.permute.xlu0 %2159
      %2162 = vset.pattern.permute.xlu0 3
      %2163 = vperm.xlu0 %2162, %v1272
      %v2164 = vpop.permute.xlu0 %2163
      %2166 = vset.pattern.permute.xlu0 3
      %2167 = vperm.xlu0 %2166, %v1277
      %v2168 = vpop.permute.xlu0 %2167
      %2170 = vset.pattern.permute.xlu0 3
      %2171 = vperm.xlu0 %2170, %v1282
      %v2172 = vpop.permute.xlu0 %2171
      %2174 = vset.pattern.permute.xlu0 3
      %2175 = vperm.xlu0 %2174, %v1287
      %v2176 = vpop.permute.xlu0 %2175
      %2178 = vset.pattern.permute.xlu0 3
      %2179 = vperm.xlu0 %2178, %v1292
      %v2180 = vpop.permute.xlu0 %2179
      %2182 = vset.pattern.permute.xlu0 3
      %2183 = vperm.xlu0 %2182, %v1297
      %v2184 = vpop.permute.xlu0 %2183
      %2186 = vset.pattern.permute.xlu0 3
      %2187 = vperm.xlu0 %2186, %v1302
      %v2188 = vpop.permute.xlu0 %2187
      %2190 = vset.pattern.permute.xlu0 3
      %2191 = vperm.xlu0 %2190, %v1307
      %v2192 = vpop.permute.xlu0 %2191
      %2194 = vset.pattern.permute.xlu0 3
      %2195 = vperm.xlu0 %2194, %v1312
      %v2196 = vpop.permute.xlu0 %2195
      %2198 = vset.pattern.permute.xlu0 3
      %2199 = vperm.xlu0 %2198, %v1317
      %v2200 = vpop.permute.xlu0 %2199
      %v2203 = vlaneseq
      %v2204 = vshrl.u32 %v2203, 7
      %v2205 = vsub.s32 0, %v2204
      %v2206 = vrot.slane %v2073, %v2205
      %v2208 = vmul.f32 %v2076, %v2206
      %v2209 = vmul.f32 %v2080, %v2206
      %v2210 = vmul.f32 %v2084, %v2206
      %v2211 = vmul.f32 %v2088, %v2206
      %v2212 = vmul.f32 %v2092, %v2206
      %v2213 = vmul.f32 %v2096, %v2206
      %v2214 = vmul.f32 %v2100, %v2206
      %v2215 = vmul.f32 %v2104, %v2206
      %v2216 = vmul.f32 %v2108, %v2206
      %v2217 = vmul.f32 %v2112, %v2206
      %v2218 = vmul.f32 %v2116, %v2206
      %v2219 = vmul.f32 %v2120, %v2206
      %v2220 = vmul.f32 %v2124, %v2206
      %v2221 = vmul.f32 %v2128, %v2206
      %v2222 = vmul.f32 %v2132, %v2206
      %v2223 = vmul.f32 %v2136, %v2206
      %v2224 = vmul.f32 %v2140, %v2206
      %v2225 = vmul.f32 %v2144, %v2206
      %v2226 = vmul.f32 %v2148, %v2206
      %v2227 = vmul.f32 %v2152, %v2206
      %v2228 = vmul.f32 %v2156, %v2206
      %v2229 = vmul.f32 %v2160, %v2206
      %v2230 = vmul.f32 %v2164, %v2206
      %v2231 = vmul.f32 %v2168, %v2206
      %v2232 = vmul.f32 %v2172, %v2206
      %v2233 = vmul.f32 %v2176, %v2206
      %v2234 = vmul.f32 %v2180, %v2206
      %v2235 = vmul.f32 %v2184, %v2206
      %v2236 = vmul.f32 %v2188, %v2206
      %v2237 = vmul.f32 %v2192, %v2206
      %v2238 = vmul.f32 %v2196, %v2206
      %v2239 = vmul.f32 %v2200, %v2206
      %v2240 = vadd.f32 %v2040, %v2208
      %v2241 = vadd.f32 %v2041, %v2209
      %v2242 = vadd.f32 %v2042, %v2210
      %v2243 = vadd.f32 %v2043, %v2211
      %v2244 = vadd.f32 %v2044, %v2212
      %v2245 = vadd.f32 %v2045, %v2213
      %v2246 = vadd.f32 %v2046, %v2214
      %v2247 = vadd.f32 %v2047, %v2215
      %v2248 = vadd.f32 %v2048, %v2216
      %v2249 = vadd.f32 %v2049, %v2217
      %v2250 = vadd.f32 %v2050, %v2218
      %v2251 = vadd.f32 %v2051, %v2219
      %v2252 = vadd.f32 %v2052, %v2220
      %v2253 = vadd.f32 %v2053, %v2221
      %v2254 = vadd.f32 %v2054, %v2222
      %v2255 = vadd.f32 %v2055, %v2223
      %v2256 = vadd.f32 %v2056, %v2224
      %v2257 = vadd.f32 %v2057, %v2225
      %v2258 = vadd.f32 %v2058, %v2226
      %v2259 = vadd.f32 %v2059, %v2227
      %v2260 = vadd.f32 %v2060, %v2228
      %v2261 = vadd.f32 %v2061, %v2229
      %v2262 = vadd.f32 %v2062, %v2230
      %v2263 = vadd.f32 %v2063, %v2231
      %v2264 = vadd.f32 %v2064, %v2232
      %v2265 = vadd.f32 %v2065, %v2233
      %v2266 = vadd.f32 %v2066, %v2234
      %v2267 = vadd.f32 %v2067, %v2235
      %v2268 = vadd.f32 %v2068, %v2236
      %v2269 = vadd.f32 %v2069, %v2237
      %v2270 = vadd.f32 %v2070, %v2238
      %v2271 = vadd.f32 %v2071, %v2239
      %s2272 = scalar_lea.vmem %s4, 3
      %v2273 = vld [vmem:[%s2272] sm:$0x1]
      %2275 = vset.pattern.permute.xlu0 1
      %2276 = vperm.xlu0 %2275, %v873
      %v2277 = vpop.permute.xlu0 %2276
      %2280 = vset.pattern.permute.xlu0 1
      %2281 = vperm.xlu0 %2280, %v878
      %v2282 = vpop.permute.xlu0 %2281
      %2285 = vset.pattern.permute.xlu0 1
      %2286 = vperm.xlu0 %2285, %v883
      %v2287 = vpop.permute.xlu0 %2286
      %2290 = vset.pattern.permute.xlu0 1
      %2291 = vperm.xlu0 %2290, %v888
      %v2292 = vpop.permute.xlu0 %2291
      %2295 = vset.pattern.permute.xlu0 1
      %2296 = vperm.xlu0 %2295, %v893
      %v2297 = vpop.permute.xlu0 %2296
      %2300 = vset.pattern.permute.xlu0 1
      %2301 = vperm.xlu0 %2300, %v898
      %v2302 = vpop.permute.xlu0 %2301
      %2305 = vset.pattern.permute.xlu0 1
      %2306 = vperm.xlu0 %2305, %v903
      %v2307 = vpop.permute.xlu0 %2306
      %2310 = vset.pattern.permute.xlu0 1
      %2311 = vperm.xlu0 %2310, %v908
      %v2312 = vpop.permute.xlu0 %2311
      %2315 = vset.pattern.permute.xlu0 1
      %2316 = vperm.xlu0 %2315, %v913
      %v2317 = vpop.permute.xlu0 %2316
      %2320 = vset.pattern.permute.xlu0 1
      %2321 = vperm.xlu0 %2320, %v918
      %v2322 = vpop.permute.xlu0 %2321
      %2325 = vset.pattern.permute.xlu0 1
      %2326 = vperm.xlu0 %2325, %v923
      %v2327 = vpop.permute.xlu0 %2326
      %2330 = vset.pattern.permute.xlu0 1
      %2331 = vperm.xlu0 %2330, %v928
      %v2332 = vpop.permute.xlu0 %2331
      %2335 = vset.pattern.permute.xlu0 1
      %2336 = vperm.xlu0 %2335, %v933
      %v2337 = vpop.permute.xlu0 %2336
      %2340 = vset.pattern.permute.xlu0 1
      %2341 = vperm.xlu0 %2340, %v938
      %v2342 = vpop.permute.xlu0 %2341
      %2345 = vset.pattern.permute.xlu0 1
      %2346 = vperm.xlu0 %2345, %v943
      %v2347 = vpop.permute.xlu0 %2346
      %2350 = vset.pattern.permute.xlu0 1
      %2351 = vperm.xlu0 %2350, %v948
      %v2352 = vpop.permute.xlu0 %2351
      %2355 = vset.pattern.permute.xlu0 1
      %2356 = vperm.xlu0 %2355, %v953
      %v2357 = vpop.permute.xlu0 %2356
      %2360 = vset.pattern.permute.xlu0 1
      %2361 = vperm.xlu0 %2360, %v958
      %v2362 = vpop.permute.xlu0 %2361
      %2365 = vset.pattern.permute.xlu0 1
      %2366 = vperm.xlu0 %2365, %v963
      %v2367 = vpop.permute.xlu0 %2366
      %2370 = vset.pattern.permute.xlu0 1
      %2371 = vperm.xlu0 %2370, %v968
      %v2372 = vpop.permute.xlu0 %2371
      %2375 = vset.pattern.permute.xlu0 1
      %2376 = vperm.xlu0 %2375, %v973
      %v2377 = vpop.permute.xlu0 %2376
      %2380 = vset.pattern.permute.xlu0 1
      %2381 = vperm.xlu0 %2380, %v978
      %v2382 = vpop.permute.xlu0 %2381
      %2385 = vset.pattern.permute.xlu0 1
      %2386 = vperm.xlu0 %2385, %v983
      %v2387 = vpop.permute.xlu0 %2386
      %2390 = vset.pattern.permute.xlu0 1
      %2391 = vperm.xlu0 %2390, %v988
      %v2392 = vpop.permute.xlu0 %2391
      %2395 = vset.pattern.permute.xlu0 1
      %2396 = vperm.xlu0 %2395, %v993
      %v2397 = vpop.permute.xlu0 %2396
      %2400 = vset.pattern.permute.xlu0 1
      %2401 = vperm.xlu0 %2400, %v998
      %v2402 = vpop.permute.xlu0 %2401
      %2405 = vset.pattern.permute.xlu0 1
      %2406 = vperm.xlu0 %2405, %v1003
      %v2407 = vpop.permute.xlu0 %2406
      %2410 = vset.pattern.permute.xlu0 1
      %2411 = vperm.xlu0 %2410, %v1008
      %v2412 = vpop.permute.xlu0 %2411
      %2415 = vset.pattern.permute.xlu0 1
      %2416 = vperm.xlu0 %2415, %v1013
      %v2417 = vpop.permute.xlu0 %2416
      %2420 = vset.pattern.permute.xlu0 1
      %2421 = vperm.xlu0 %2420, %v1018
      %v2422 = vpop.permute.xlu0 %2421
      %2425 = vset.pattern.permute.xlu0 1
      %2426 = vperm.xlu0 %2425, %v1023
      %v2427 = vpop.permute.xlu0 %2426
      %2430 = vset.pattern.permute.xlu0 1
      %2431 = vperm.xlu0 %2430, %v1028
      %v2432 = vpop.permute.xlu0 %2431
      %v2435 = vlaneseq
      %v2436 = vshrl.u32 %v2435, 7
      %v2437 = vsub.s32 0, %v2436
      %v2438 = vrot.slane %v2273, %v2437
      %v2440 = vmul.f32 %v2277, %v2438
      %v2441 = vmul.f32 %v2282, %v2438
      %v2442 = vmul.f32 %v2287, %v2438
      %v2443 = vmul.f32 %v2292, %v2438
      %v2444 = vmul.f32 %v2297, %v2438
      %v2445 = vmul.f32 %v2302, %v2438
      %v2446 = vmul.f32 %v2307, %v2438
      %v2447 = vmul.f32 %v2312, %v2438
      %v2448 = vmul.f32 %v2317, %v2438
      %v2449 = vmul.f32 %v2322, %v2438
      %v2450 = vmul.f32 %v2327, %v2438
      %v2451 = vmul.f32 %v2332, %v2438
      %v2452 = vmul.f32 %v2337, %v2438
      %v2453 = vmul.f32 %v2342, %v2438
      %v2454 = vmul.f32 %v2347, %v2438
      %v2455 = vmul.f32 %v2352, %v2438
      %v2456 = vmul.f32 %v2357, %v2438
      %v2457 = vmul.f32 %v2362, %v2438
      %v2458 = vmul.f32 %v2367, %v2438
      %v2459 = vmul.f32 %v2372, %v2438
      %v2460 = vmul.f32 %v2377, %v2438
      %v2461 = vmul.f32 %v2382, %v2438
      %v2462 = vmul.f32 %v2387, %v2438
      %v2463 = vmul.f32 %v2392, %v2438
      %v2464 = vmul.f32 %v2397, %v2438
      %v2465 = vmul.f32 %v2402, %v2438
      %v2466 = vmul.f32 %v2407, %v2438
      %v2467 = vmul.f32 %v2412, %v2438
      %v2468 = vmul.f32 %v2417, %v2438
      %v2469 = vmul.f32 %v2422, %v2438
      %v2470 = vmul.f32 %v2427, %v2438
      %v2471 = vmul.f32 %v2432, %v2438
      %v2472 = vadd.f32 %v2240, %v2440
      %v2473 = vadd.f32 %v2241, %v2441
      %v2474 = vadd.f32 %v2242, %v2442
      %v2475 = vadd.f32 %v2243, %v2443
      %v2476 = vadd.f32 %v2244, %v2444
      %v2477 = vadd.f32 %v2245, %v2445
      %v2478 = vadd.f32 %v2246, %v2446
      %v2479 = vadd.f32 %v2247, %v2447
      %v2480 = vadd.f32 %v2248, %v2448
      %v2481 = vadd.f32 %v2249, %v2449
      %v2482 = vadd.f32 %v2250, %v2450
      %v2483 = vadd.f32 %v2251, %v2451
      %v2484 = vadd.f32 %v2252, %v2452
      %v2485 = vadd.f32 %v2253, %v2453
      %v2486 = vadd.f32 %v2254, %v2454
      %v2487 = vadd.f32 %v2255, %v2455
      %v2488 = vadd.f32 %v2256, %v2456
      %v2489 = vadd.f32 %v2257, %v2457
      %v2490 = vadd.f32 %v2258, %v2458
      %v2491 = vadd.f32 %v2259, %v2459
      %v2492 = vadd.f32 %v2260, %v2460
      %v2493 = vadd.f32 %v2261, %v2461
      %v2494 = vadd.f32 %v2262, %v2462
      %v2495 = vadd.f32 %v2263, %v2463
      %v2496 = vadd.f32 %v2264, %v2464
      %v2497 = vadd.f32 %v2265, %v2465
      %v2498 = vadd.f32 %v2266, %v2466
      %v2499 = vadd.f32 %v2267, %v2467
      %v2500 = vadd.f32 %v2268, %v2468
      %v2501 = vadd.f32 %v2269, %v2469
      %v2502 = vadd.f32 %v2270, %v2470
      %v2503 = vadd.f32 %v2271, %v2471
      %s2504 = scalar_lea.vmem %s4, 4
      %v2505 = vld [vmem:[%s2504] sm:$0x1]
      %2507 = vset.pattern.permute.xlu0 0
      %2508 = vperm.xlu0 %2507, %v710
      %v2509 = vpop.permute.xlu0 %2508
      %2512 = vset.pattern.permute.xlu0 0
      %2513 = vperm.xlu0 %2512, %v711
      %v2514 = vpop.permute.xlu0 %2513
      %2517 = vset.pattern.permute.xlu0 0
      %2518 = vperm.xlu0 %2517, %v712
      %v2519 = vpop.permute.xlu0 %2518
      %2522 = vset.pattern.permute.xlu0 0
      %2523 = vperm.xlu0 %2522, %v713
      %v2524 = vpop.permute.xlu0 %2523
      %2527 = vset.pattern.permute.xlu0 0
      %2528 = vperm.xlu0 %2527, %v714
      %v2529 = vpop.permute.xlu0 %2528
      %2532 = vset.pattern.permute.xlu0 0
      %2533 = vperm.xlu0 %2532, %v715
      %v2534 = vpop.permute.xlu0 %2533
      %2537 = vset.pattern.permute.xlu0 0
      %2538 = vperm.xlu0 %2537, %v716
      %v2539 = vpop.permute.xlu0 %2538
      %2542 = vset.pattern.permute.xlu0 0
      %2543 = vperm.xlu0 %2542, %v717
      %v2544 = vpop.permute.xlu0 %2543
      %2547 = vset.pattern.permute.xlu0 0
      %2548 = vperm.xlu0 %2547, %v718
      %v2549 = vpop.permute.xlu0 %2548
      %2552 = vset.pattern.permute.xlu0 0
      %2553 = vperm.xlu0 %2552, %v719
      %v2554 = vpop.permute.xlu0 %2553
      %2557 = vset.pattern.permute.xlu0 0
      %2558 = vperm.xlu0 %2557, %v720
      %v2559 = vpop.permute.xlu0 %2558
      %2562 = vset.pattern.permute.xlu0 0
      %2563 = vperm.xlu0 %2562, %v721
      %v2564 = vpop.permute.xlu0 %2563
      %2567 = vset.pattern.permute.xlu0 0
      %2568 = vperm.xlu0 %2567, %v722
      %v2569 = vpop.permute.xlu0 %2568
      %2572 = vset.pattern.permute.xlu0 0
      %2573 = vperm.xlu0 %2572, %v723
      %v2574 = vpop.permute.xlu0 %2573
      %2577 = vset.pattern.permute.xlu0 0
      %2578 = vperm.xlu0 %2577, %v724
      %v2579 = vpop.permute.xlu0 %2578
      %2582 = vset.pattern.permute.xlu0 0
      %2583 = vperm.xlu0 %2582, %v725
      %v2584 = vpop.permute.xlu0 %2583
      %2587 = vset.pattern.permute.xlu0 0
      %2588 = vperm.xlu0 %2587, %v726
      %v2589 = vpop.permute.xlu0 %2588
      %2592 = vset.pattern.permute.xlu0 0
      %2593 = vperm.xlu0 %2592, %v727
      %v2594 = vpop.permute.xlu0 %2593
      %2597 = vset.pattern.permute.xlu0 0
      %2598 = vperm.xlu0 %2597, %v728
      %v2599 = vpop.permute.xlu0 %2598
      %2602 = vset.pattern.permute.xlu0 0
      %2603 = vperm.xlu0 %2602, %v729
      %v2604 = vpop.permute.xlu0 %2603
      %2607 = vset.pattern.permute.xlu0 0
      %2608 = vperm.xlu0 %2607, %v730
      %v2609 = vpop.permute.xlu0 %2608
      %2612 = vset.pattern.permute.xlu0 0
      %2613 = vperm.xlu0 %2612, %v731
      %v2614 = vpop.permute.xlu0 %2613
      %2617 = vset.pattern.permute.xlu0 0
      %2618 = vperm.xlu0 %2617, %v732
      %v2619 = vpop.permute.xlu0 %2618
      %2622 = vset.pattern.permute.xlu0 0
      %2623 = vperm.xlu0 %2622, %v733
      %v2624 = vpop.permute.xlu0 %2623
      %2627 = vset.pattern.permute.xlu0 0
      %2628 = vperm.xlu0 %2627, %v734
      %v2629 = vpop.permute.xlu0 %2628
      %2632 = vset.pattern.permute.xlu0 0
      %2633 = vperm.xlu0 %2632, %v735
      %v2634 = vpop.permute.xlu0 %2633
      %2637 = vset.pattern.permute.xlu0 0
      %2638 = vperm.xlu0 %2637, %v736
      %v2639 = vpop.permute.xlu0 %2638
      %2642 = vset.pattern.permute.xlu0 0
      %2643 = vperm.xlu0 %2642, %v737
      %v2644 = vpop.permute.xlu0 %2643
      %2647 = vset.pattern.permute.xlu0 0
      %2648 = vperm.xlu0 %2647, %v738
      %v2649 = vpop.permute.xlu0 %2648
      %2652 = vset.pattern.permute.xlu0 0
      %2653 = vperm.xlu0 %2652, %v739
      %v2654 = vpop.permute.xlu0 %2653
      %2657 = vset.pattern.permute.xlu0 0
      %2658 = vperm.xlu0 %2657, %v740
      %v2659 = vpop.permute.xlu0 %2658
      %2662 = vset.pattern.permute.xlu0 0
      %2663 = vperm.xlu0 %2662, %v741
      %v2664 = vpop.permute.xlu0 %2663
      %v2667 = vlaneseq
      %v2668 = vshrl.u32 %v2667, 7
      %v2669 = vsub.s32 0, %v2668
      %v2670 = vrot.slane %v2505, %v2669
      %v2672 = vmul.f32 %v2509, %v2670
      %v2673 = vmul.f32 %v2514, %v2670
      %v2674 = vmul.f32 %v2519, %v2670
      %v2675 = vmul.f32 %v2524, %v2670
      %v2676 = vmul.f32 %v2529, %v2670
      %v2677 = vmul.f32 %v2534, %v2670
      %v2678 = vmul.f32 %v2539, %v2670
      %v2679 = vmul.f32 %v2544, %v2670
      %v2680 = vmul.f32 %v2549, %v2670
      %v2681 = vmul.f32 %v2554, %v2670
      %v2682 = vmul.f32 %v2559, %v2670
      %v2683 = vmul.f32 %v2564, %v2670
      %v2684 = vmul.f32 %v2569, %v2670
      %v2685 = vmul.f32 %v2574, %v2670
      %v2686 = vmul.f32 %v2579, %v2670
      %v2687 = vmul.f32 %v2584, %v2670
      %v2688 = vmul.f32 %v2589, %v2670
      %v2689 = vmul.f32 %v2594, %v2670
      %v2690 = vmul.f32 %v2599, %v2670
      %v2691 = vmul.f32 %v2604, %v2670
      %v2692 = vmul.f32 %v2609, %v2670
      %v2693 = vmul.f32 %v2614, %v2670
      %v2694 = vmul.f32 %v2619, %v2670
      %v2695 = vmul.f32 %v2624, %v2670
      %v2696 = vmul.f32 %v2629, %v2670
      %v2697 = vmul.f32 %v2634, %v2670
      %v2698 = vmul.f32 %v2639, %v2670
      %v2699 = vmul.f32 %v2644, %v2670
      %v2700 = vmul.f32 %v2649, %v2670
      %v2701 = vmul.f32 %v2654, %v2670
      %v2702 = vmul.f32 %v2659, %v2670
      %v2703 = vmul.f32 %v2664, %v2670
      %v2704 = vadd.f32 %v2472, %v2672
      %v2705 = vadd.f32 %v2473, %v2673
      %v2706 = vadd.f32 %v2474, %v2674
      %v2707 = vadd.f32 %v2475, %v2675
      %v2708 = vadd.f32 %v2476, %v2676
      %v2709 = vadd.f32 %v2477, %v2677
      %v2710 = vadd.f32 %v2478, %v2678
      %v2711 = vadd.f32 %v2479, %v2679
      %v2712 = vadd.f32 %v2480, %v2680
      %v2713 = vadd.f32 %v2481, %v2681
      %v2714 = vadd.f32 %v2482, %v2682
      %v2715 = vadd.f32 %v2483, %v2683
      %v2716 = vadd.f32 %v2484, %v2684
      %v2717 = vadd.f32 %v2485, %v2685
      %v2718 = vadd.f32 %v2486, %v2686
      %v2719 = vadd.f32 %v2487, %v2687
      %v2720 = vadd.f32 %v2488, %v2688
      %v2721 = vadd.f32 %v2489, %v2689
      %v2722 = vadd.f32 %v2490, %v2690
      %v2723 = vadd.f32 %v2491, %v2691
      %v2724 = vadd.f32 %v2492, %v2692
      %v2725 = vadd.f32 %v2493, %v2693
      %v2726 = vadd.f32 %v2494, %v2694
      %v2727 = vadd.f32 %v2495, %v2695
      %v2728 = vadd.f32 %v2496, %v2696
      %v2729 = vadd.f32 %v2497, %v2697
      %v2730 = vadd.f32 %v2498, %v2698
      %v2731 = vadd.f32 %v2499, %v2699
      %v2732 = vadd.f32 %v2500, %v2700
      %v2733 = vadd.f32 %v2501, %v2701
      %v2734 = vadd.f32 %v2502, %v2702
      %v2735 = vadd.f32 %v2503, %v2703
      %s2736 = scalar_lea.vmem %s4, 5
      %v2737 = vld [vmem:[%s2736] sm:$0x1]
      %2738 = vset.pattern.permute.xlu0 1
      %2739 = vperm.xlu0 %2738, %v710
      %v2740 = vpop.permute.xlu0 %2739
      %2742 = vset.pattern.permute.xlu0 1
      %2743 = vperm.xlu0 %2742, %v711
      %v2744 = vpop.permute.xlu0 %2743
      %2746 = vset.pattern.permute.xlu0 1
      %2747 = vperm.xlu0 %2746, %v712
      %v2748 = vpop.permute.xlu0 %2747
      %2750 = vset.pattern.permute.xlu0 1
      %2751 = vperm.xlu0 %2750, %v713
      %v2752 = vpop.permute.xlu0 %2751
      %2754 = vset.pattern.permute.xlu0 1
      %2755 = vperm.xlu0 %2754, %v714
      %v2756 = vpop.permute.xlu0 %2755
      %2758 = vset.pattern.permute.xlu0 1
      %2759 = vperm.xlu0 %2758, %v715
      %v2760 = vpop.permute.xlu0 %2759
      %2762 = vset.pattern.permute.xlu0 1
      %2763 = vperm.xlu0 %2762, %v716
      %v2764 = vpop.permute.xlu0 %2763
      %2766 = vset.pattern.permute.xlu0 1
      %2767 = vperm.xlu0 %2766, %v717
      %v2768 = vpop.permute.xlu0 %2767
      %2770 = vset.pattern.permute.xlu0 1
      %2771 = vperm.xlu0 %2770, %v718
      %v2772 = vpop.permute.xlu0 %2771
      %2774 = vset.pattern.permute.xlu0 1
      %2775 = vperm.xlu0 %2774, %v719
      %v2776 = vpop.permute.xlu0 %2775
      %2778 = vset.pattern.permute.xlu0 1
      %2779 = vperm.xlu0 %2778, %v720
      %v2780 = vpop.permute.xlu0 %2779
      %2782 = vset.pattern.permute.xlu0 1
      %2783 = vperm.xlu0 %2782, %v721
      %v2784 = vpop.permute.xlu0 %2783
      %2786 = vset.pattern.permute.xlu0 1
      %2787 = vperm.xlu0 %2786, %v722
      %v2788 = vpop.permute.xlu0 %2787
      %2790 = vset.pattern.permute.xlu0 1
      %2791 = vperm.xlu0 %2790, %v723
      %v2792 = vpop.permute.xlu0 %2791
      %2794 = vset.pattern.permute.xlu0 1
      %2795 = vperm.xlu0 %2794, %v724
      %v2796 = vpop.permute.xlu0 %2795
      %2798 = vset.pattern.permute.xlu0 1
      %2799 = vperm.xlu0 %2798, %v725
      %v2800 = vpop.permute.xlu0 %2799
      %2802 = vset.pattern.permute.xlu0 1
      %2803 = vperm.xlu0 %2802, %v726
      %v2804 = vpop.permute.xlu0 %2803
      %2806 = vset.pattern.permute.xlu0 1
      %2807 = vperm.xlu0 %2806, %v727
      %v2808 = vpop.permute.xlu0 %2807
      %2810 = vset.pattern.permute.xlu0 1
      %2811 = vperm.xlu0 %2810, %v728
      %v2812 = vpop.permute.xlu0 %2811
      %2814 = vset.pattern.permute.xlu0 1
      %2815 = vperm.xlu0 %2814, %v729
      %v2816 = vpop.permute.xlu0 %2815
      %2818 = vset.pattern.permute.xlu0 1
      %2819 = vperm.xlu0 %2818, %v730
      %v2820 = vpop.permute.xlu0 %2819
      %2822 = vset.pattern.permute.xlu0 1
      %2823 = vperm.xlu0 %2822, %v731
      %v2824 = vpop.permute.xlu0 %2823
      %2826 = vset.pattern.permute.xlu0 1
      %2827 = vperm.xlu0 %2826, %v732
      %v2828 = vpop.permute.xlu0 %2827
      %2830 = vset.pattern.permute.xlu0 1
      %2831 = vperm.xlu0 %2830, %v733
      %v2832 = vpop.permute.xlu0 %2831
      %2834 = vset.pattern.permute.xlu0 1
      %2835 = vperm.xlu0 %2834, %v734
      %v2836 = vpop.permute.xlu0 %2835
      %2838 = vset.pattern.permute.xlu0 1
      %2839 = vperm.xlu0 %2838, %v735
      %v2840 = vpop.permute.xlu0 %2839
      %2842 = vset.pattern.permute.xlu0 1
      %2843 = vperm.xlu0 %2842, %v736
      %v2844 = vpop.permute.xlu0 %2843
      %2846 = vset.pattern.permute.xlu0 1
      %2847 = vperm.xlu0 %2846, %v737
      %v2848 = vpop.permute.xlu0 %2847
      %2850 = vset.pattern.permute.xlu0 1
      %2851 = vperm.xlu0 %2850, %v738
      %v2852 = vpop.permute.xlu0 %2851
      %2854 = vset.pattern.permute.xlu0 1
      %2855 = vperm.xlu0 %2854, %v739
      %v2856 = vpop.permute.xlu0 %2855
      %2858 = vset.pattern.permute.xlu0 1
      %2859 = vperm.xlu0 %2858, %v740
      %v2860 = vpop.permute.xlu0 %2859
      %2862 = vset.pattern.permute.xlu0 1
      %2863 = vperm.xlu0 %2862, %v741
      %v2864 = vpop.permute.xlu0 %2863
      %v2867 = vlaneseq
      %v2868 = vshrl.u32 %v2867, 7
      %v2869 = vsub.s32 0, %v2868
      %v2870 = vrot.slane %v2737, %v2869
      %v2872 = vmul.f32 %v2740, %v2870
      %v2873 = vmul.f32 %v2744, %v2870
      %v2874 = vmul.f32 %v2748, %v2870
      %v2875 = vmul.f32 %v2752, %v2870
      %v2876 = vmul.f32 %v2756, %v2870
      %v2877 = vmul.f32 %v2760, %v2870
      %v2878 = vmul.f32 %v2764, %v2870
      %v2879 = vmul.f32 %v2768, %v2870
      %v2880 = vmul.f32 %v2772, %v2870
      %v2881 = vmul.f32 %v2776, %v2870
      %v2882 = vmul.f32 %v2780, %v2870
      %v2883 = vmul.f32 %v2784, %v2870
      %v2884 = vmul.f32 %v2788, %v2870
      %v2885 = vmul.f32 %v2792, %v2870
      %v2886 = vmul.f32 %v2796, %v2870
      %v2887 = vmul.f32 %v2800, %v2870
      %v2888 = vmul.f32 %v2804, %v2870
      %v2889 = vmul.f32 %v2808, %v2870
      %v2890 = vmul.f32 %v2812, %v2870
      %v2891 = vmul.f32 %v2816, %v2870
      %v2892 = vmul.f32 %v2820, %v2870
      %v2893 = vmul.f32 %v2824, %v2870
      %v2894 = vmul.f32 %v2828, %v2870
      %v2895 = vmul.f32 %v2832, %v2870
      %v2896 = vmul.f32 %v2836, %v2870
      %v2897 = vmul.f32 %v2840, %v2870
      %v2898 = vmul.f32 %v2844, %v2870
      %v2899 = vmul.f32 %v2848, %v2870
      %v2900 = vmul.f32 %v2852, %v2870
      %v2901 = vmul.f32 %v2856, %v2870
      %v2902 = vmul.f32 %v2860, %v2870
      %v2903 = vmul.f32 %v2864, %v2870
      %v2904 = vadd.f32 %v2704, %v2872
      %v2905 = vadd.f32 %v2705, %v2873
      %v2906 = vadd.f32 %v2706, %v2874
      %v2907 = vadd.f32 %v2707, %v2875
      %v2908 = vadd.f32 %v2708, %v2876
      %v2909 = vadd.f32 %v2709, %v2877
      %v2910 = vadd.f32 %v2710, %v2878
      %v2911 = vadd.f32 %v2711, %v2879
      %v2912 = vadd.f32 %v2712, %v2880
      %v2913 = vadd.f32 %v2713, %v2881
      %v2914 = vadd.f32 %v2714, %v2882
      %v2915 = vadd.f32 %v2715, %v2883
      %v2916 = vadd.f32 %v2716, %v2884
      %v2917 = vadd.f32 %v2717, %v2885
      %v2918 = vadd.f32 %v2718, %v2886
      %v2919 = vadd.f32 %v2719, %v2887
      %v2920 = vadd.f32 %v2720, %v2888
      %v2921 = vadd.f32 %v2721, %v2889
      %v2922 = vadd.f32 %v2722, %v2890
      %v2923 = vadd.f32 %v2723, %v2891
      %v2924 = vadd.f32 %v2724, %v2892
      %v2925 = vadd.f32 %v2725, %v2893
      %v2926 = vadd.f32 %v2726, %v2894
      %v2927 = vadd.f32 %v2727, %v2895
      %v2928 = vadd.f32 %v2728, %v2896
      %v2929 = vadd.f32 %v2729, %v2897
      %v2930 = vadd.f32 %v2730, %v2898
      %v2931 = vadd.f32 %v2731, %v2899
      %v2932 = vadd.f32 %v2732, %v2900
      %v2933 = vadd.f32 %v2733, %v2901
      %v2934 = vadd.f32 %v2734, %v2902
      %v2935 = vadd.f32 %v2735, %v2903
      %s2936 = scalar_lea.vmem %s4, 6
      %v2937 = vld [vmem:[%s2936] sm:$0x1]
      %2938 = vset.pattern.permute.xlu0 3
      %2939 = vperm.xlu0 %2938, %v873
      %v2940 = vpop.permute.xlu0 %2939
      %2942 = vset.pattern.permute.xlu0 3
      %2943 = vperm.xlu0 %2942, %v878
      %v2944 = vpop.permute.xlu0 %2943
      %2946 = vset.pattern.permute.xlu0 3
      %2947 = vperm.xlu0 %2946, %v883
      %v2948 = vpop.permute.xlu0 %2947
      %2950 = vset.pattern.permute.xlu0 3
      %2951 = vperm.xlu0 %2950, %v888
      %v2952 = vpop.permute.xlu0 %2951
      %2954 = vset.pattern.permute.xlu0 3
      %2955 = vperm.xlu0 %2954, %v893
      %v2956 = vpop.permute.xlu0 %2955
      %2958 = vset.pattern.permute.xlu0 3
      %2959 = vperm.xlu0 %2958, %v898
      %v2960 = vpop.permute.xlu0 %2959
      %2962 = vset.pattern.permute.xlu0 3
      %2963 = vperm.xlu0 %2962, %v903
      %v2964 = vpop.permute.xlu0 %2963
      %2966 = vset.pattern.permute.xlu0 3
      %2967 = vperm.xlu0 %2966, %v908
      %v2968 = vpop.permute.xlu0 %2967
      %2970 = vset.pattern.permute.xlu0 3
      %2971 = vperm.xlu0 %2970, %v913
      %v2972 = vpop.permute.xlu0 %2971
      %2974 = vset.pattern.permute.xlu0 3
      %2975 = vperm.xlu0 %2974, %v918
      %v2976 = vpop.permute.xlu0 %2975
      %2978 = vset.pattern.permute.xlu0 3
      %2979 = vperm.xlu0 %2978, %v923
      %v2980 = vpop.permute.xlu0 %2979
      %2982 = vset.pattern.permute.xlu0 3
      %2983 = vperm.xlu0 %2982, %v928
      %v2984 = vpop.permute.xlu0 %2983
      %2986 = vset.pattern.permute.xlu0 3
      %2987 = vperm.xlu0 %2986, %v933
      %v2988 = vpop.permute.xlu0 %2987
      %2990 = vset.pattern.permute.xlu0 3
      %2991 = vperm.xlu0 %2990, %v938
      %v2992 = vpop.permute.xlu0 %2991
      %2994 = vset.pattern.permute.xlu0 3
      %2995 = vperm.xlu0 %2994, %v943
      %v2996 = vpop.permute.xlu0 %2995
      %2998 = vset.pattern.permute.xlu0 3
      %2999 = vperm.xlu0 %2998, %v948
      %v3000 = vpop.permute.xlu0 %2999
      %3002 = vset.pattern.permute.xlu0 3
      %3003 = vperm.xlu0 %3002, %v953
      %v3004 = vpop.permute.xlu0 %3003
      %3006 = vset.pattern.permute.xlu0 3
      %3007 = vperm.xlu0 %3006, %v958
      %v3008 = vpop.permute.xlu0 %3007
      %3010 = vset.pattern.permute.xlu0 3
      %3011 = vperm.xlu0 %3010, %v963
      %v3012 = vpop.permute.xlu0 %3011
      %3014 = vset.pattern.permute.xlu0 3
      %3015 = vperm.xlu0 %3014, %v968
      %v3016 = vpop.permute.xlu0 %3015
      %3018 = vset.pattern.permute.xlu0 3
      %3019 = vperm.xlu0 %3018, %v973
      %v3020 = vpop.permute.xlu0 %3019
      %3022 = vset.pattern.permute.xlu0 3
      %3023 = vperm.xlu0 %3022, %v978
      %v3024 = vpop.permute.xlu0 %3023
      %3026 = vset.pattern.permute.xlu0 3
      %3027 = vperm.xlu0 %3026, %v983
      %v3028 = vpop.permute.xlu0 %3027
      %3030 = vset.pattern.permute.xlu0 3
      %3031 = vperm.xlu0 %3030, %v988
      %v3032 = vpop.permute.xlu0 %3031
      %3034 = vset.pattern.permute.xlu0 3
      %3035 = vperm.xlu0 %3034, %v993
      %v3036 = vpop.permute.xlu0 %3035
      %3038 = vset.pattern.permute.xlu0 3
      %3039 = vperm.xlu0 %3038, %v998
      %v3040 = vpop.permute.xlu0 %3039
      %3042 = vset.pattern.permute.xlu0 3
      %3043 = vperm.xlu0 %3042, %v1003
      %v3044 = vpop.permute.xlu0 %3043
      %3046 = vset.pattern.permute.xlu0 3
      %3047 = vperm.xlu0 %3046, %v1008
      %v3048 = vpop.permute.xlu0 %3047
      %3050 = vset.pattern.permute.xlu0 3
      %3051 = vperm.xlu0 %3050, %v1013
      %v3052 = vpop.permute.xlu0 %3051
      %3054 = vset.pattern.permute.xlu0 3
      %3055 = vperm.xlu0 %3054, %v1018
      %v3056 = vpop.permute.xlu0 %3055
      %3058 = vset.pattern.permute.xlu0 3
      %3059 = vperm.xlu0 %3058, %v1023
      %v3060 = vpop.permute.xlu0 %3059
      %3062 = vset.pattern.permute.xlu0 3
      %3063 = vperm.xlu0 %3062, %v1028
      %v3064 = vpop.permute.xlu0 %3063
      %v3067 = vlaneseq
      %v3068 = vshrl.u32 %v3067, 7
      %v3069 = vsub.s32 0, %v3068
      %v3070 = vrot.slane %v2937, %v3069
      %v3072 = vmul.f32 %v2940, %v3070
      %v3073 = vmul.f32 %v2944, %v3070
      %v3074 = vmul.f32 %v2948, %v3070
      %v3075 = vmul.f32 %v2952, %v3070
      %v3076 = vmul.f32 %v2956, %v3070
      %v3077 = vmul.f32 %v2960, %v3070
      %v3078 = vmul.f32 %v2964, %v3070
      %v3079 = vmul.f32 %v2968, %v3070
      %v3080 = vmul.f32 %v2972, %v3070
      %v3081 = vmul.f32 %v2976, %v3070
      %v3082 = vmul.f32 %v2980, %v3070
      %v3083 = vmul.f32 %v2984, %v3070
      %v3084 = vmul.f32 %v2988, %v3070
      %v3085 = vmul.f32 %v2992, %v3070
      %v3086 = vmul.f32 %v2996, %v3070
      %v3087 = vmul.f32 %v3000, %v3070
      %v3088 = vmul.f32 %v3004, %v3070
      %v3089 = vmul.f32 %v3008, %v3070
      %v3090 = vmul.f32 %v3012, %v3070
      %v3091 = vmul.f32 %v3016, %v3070
      %v3092 = vmul.f32 %v3020, %v3070
      %v3093 = vmul.f32 %v3024, %v3070
      %v3094 = vmul.f32 %v3028, %v3070
      %v3095 = vmul.f32 %v3032, %v3070
      %v3096 = vmul.f32 %v3036, %v3070
      %v3097 = vmul.f32 %v3040, %v3070
      %v3098 = vmul.f32 %v3044, %v3070
      %v3099 = vmul.f32 %v3048, %v3070
      %v3100 = vmul.f32 %v3052, %v3070
      %v3101 = vmul.f32 %v3056, %v3070
      %v3102 = vmul.f32 %v3060, %v3070
      %v3103 = vmul.f32 %v3064, %v3070
      %v3104 = vadd.f32 %v2904, %v3072
      %v3105 = vadd.f32 %v2905, %v3073
      %v3106 = vadd.f32 %v2906, %v3074
      %v3107 = vadd.f32 %v2907, %v3075
      %v3108 = vadd.f32 %v2908, %v3076
      %v3109 = vadd.f32 %v2909, %v3077
      %v3110 = vadd.f32 %v2910, %v3078
      %v3111 = vadd.f32 %v2911, %v3079
      %v3112 = vadd.f32 %v2912, %v3080
      %v3113 = vadd.f32 %v2913, %v3081
      %v3114 = vadd.f32 %v2914, %v3082
      %v3115 = vadd.f32 %v2915, %v3083
      %v3116 = vadd.f32 %v2916, %v3084
      %v3117 = vadd.f32 %v2917, %v3085
      %v3118 = vadd.f32 %v2918, %v3086
      %v3119 = vadd.f32 %v2919, %v3087
      %v3120 = vadd.f32 %v2920, %v3088
      %v3121 = vadd.f32 %v2921, %v3089
      %v3122 = vadd.f32 %v2922, %v3090
      %v3123 = vadd.f32 %v2923, %v3091
      %v3124 = vadd.f32 %v2924, %v3092
      %v3125 = vadd.f32 %v2925, %v3093
      %v3126 = vadd.f32 %v2926, %v3094
      %v3127 = vadd.f32 %v2927, %v3095
      %v3128 = vadd.f32 %v2928, %v3096
      %v3129 = vadd.f32 %v2929, %v3097
      %v3130 = vadd.f32 %v2930, %v3098
      %v3131 = vadd.f32 %v2931, %v3099
      %v3132 = vadd.f32 %v2932, %v3100
      %v3133 = vadd.f32 %v2933, %v3101
      %v3134 = vadd.f32 %v2934, %v3102
      %v3135 = vadd.f32 %v2935, %v3103
      %s3136 = scalar_lea.vmem %s4, 7
      %v3137 = vld [vmem:[%s3136] sm:$0x1]
      %3138 = vset.pattern.permute.xlu0 2
      %3139 = vperm.xlu0 %3138, %v710
      %v3140 = vpop.permute.xlu0 %3139
      %3142 = vset.pattern.permute.xlu0 2
      %3143 = vperm.xlu0 %3142, %v711
      %v3144 = vpop.permute.xlu0 %3143
      %3146 = vset.pattern.permute.xlu0 2
      %3147 = vperm.xlu0 %3146, %v712
      %v3148 = vpop.permute.xlu0 %3147
      %3150 = vset.pattern.permute.xlu0 2
      %3151 = vperm.xlu0 %3150, %v713
      %v3152 = vpop.permute.xlu0 %3151
      %3154 = vset.pattern.permute.xlu0 2
      %3155 = vperm.xlu0 %3154, %v714
      %v3156 = vpop.permute.xlu0 %3155
      %3158 = vset.pattern.permute.xlu0 2
      %3159 = vperm.xlu0 %3158, %v715
      %v3160 = vpop.permute.xlu0 %3159
      %3162 = vset.pattern.permute.xlu0 2
      %3163 = vperm.xlu0 %3162, %v716
      %v3164 = vpop.permute.xlu0 %3163
      %3166 = vset.pattern.permute.xlu0 2
      %3167 = vperm.xlu0 %3166, %v717
      %v3168 = vpop.permute.xlu0 %3167
      %3170 = vset.pattern.permute.xlu0 2
      %3171 = vperm.xlu0 %3170, %v718
      %v3172 = vpop.permute.xlu0 %3171
      %3174 = vset.pattern.permute.xlu0 2
      %3175 = vperm.xlu0 %3174, %v719
      %v3176 = vpop.permute.xlu0 %3175
      %3178 = vset.pattern.permute.xlu0 2
      %3179 = vperm.xlu0 %3178, %v720
      %v3180 = vpop.permute.xlu0 %3179
      %3182 = vset.pattern.permute.xlu0 2
      %3183 = vperm.xlu0 %3182, %v721
      %v3184 = vpop.permute.xlu0 %3183
      %3186 = vset.pattern.permute.xlu0 2
      %3187 = vperm.xlu0 %3186, %v722
      %v3188 = vpop.permute.xlu0 %3187
      %3190 = vset.pattern.permute.xlu0 2
      %3191 = vperm.xlu0 %3190, %v723
      %v3192 = vpop.permute.xlu0 %3191
      %3194 = vset.pattern.permute.xlu0 2
      %3195 = vperm.xlu0 %3194, %v724
      %v3196 = vpop.permute.xlu0 %3195
      %3198 = vset.pattern.permute.xlu0 2
      %3199 = vperm.xlu0 %3198, %v725
      %v3200 = vpop.permute.xlu0 %3199
      %3202 = vset.pattern.permute.xlu0 2
      %3203 = vperm.xlu0 %3202, %v726
      %v3204 = vpop.permute.xlu0 %3203
      %3206 = vset.pattern.permute.xlu0 2
      %3207 = vperm.xlu0 %3206, %v727
      %v3208 = vpop.permute.xlu0 %3207
      %3210 = vset.pattern.permute.xlu0 2
      %3211 = vperm.xlu0 %3210, %v728
      %v3212 = vpop.permute.xlu0 %3211
      %3214 = vset.pattern.permute.xlu0 2
      %3215 = vperm.xlu0 %3214, %v729
      %v3216 = vpop.permute.xlu0 %3215
      %3218 = vset.pattern.permute.xlu0 2
      %3219 = vperm.xlu0 %3218, %v730
      %v3220 = vpop.permute.xlu0 %3219
      %3222 = vset.pattern.permute.xlu0 2
      %3223 = vperm.xlu0 %3222, %v731
      %v3224 = vpop.permute.xlu0 %3223
      %3226 = vset.pattern.permute.xlu0 2
      %3227 = vperm.xlu0 %3226, %v732
      %v3228 = vpop.permute.xlu0 %3227
      %3230 = vset.pattern.permute.xlu0 2
      %3231 = vperm.xlu0 %3230, %v733
      %v3232 = vpop.permute.xlu0 %3231
      %3234 = vset.pattern.permute.xlu0 2
      %3235 = vperm.xlu0 %3234, %v734
      %v3236 = vpop.permute.xlu0 %3235
      %3238 = vset.pattern.permute.xlu0 2
      %3239 = vperm.xlu0 %3238, %v735
      %v3240 = vpop.permute.xlu0 %3239
      %3242 = vset.pattern.permute.xlu0 2
      %3243 = vperm.xlu0 %3242, %v736
      %v3244 = vpop.permute.xlu0 %3243
      %3246 = vset.pattern.permute.xlu0 2
      %3247 = vperm.xlu0 %3246, %v737
      %v3248 = vpop.permute.xlu0 %3247
      %3250 = vset.pattern.permute.xlu0 2
      %3251 = vperm.xlu0 %3250, %v738
      %v3252 = vpop.permute.xlu0 %3251
      %3254 = vset.pattern.permute.xlu0 2
      %3255 = vperm.xlu0 %3254, %v739
      %v3256 = vpop.permute.xlu0 %3255
      %3258 = vset.pattern.permute.xlu0 2
      %3259 = vperm.xlu0 %3258, %v740
      %v3260 = vpop.permute.xlu0 %3259
      %3262 = vset.pattern.permute.xlu0 2
      %3263 = vperm.xlu0 %3262, %v741
      %v3264 = vpop.permute.xlu0 %3263
      %v3267 = vlaneseq
      %v3268 = vshrl.u32 %v3267, 7
      %v3269 = vsub.s32 0, %v3268
      %v3270 = vrot.slane %v3137, %v3269
      %v3272 = vmul.f32 %v3140, %v3270
      %v3273 = vmul.f32 %v3144, %v3270
      %v3274 = vmul.f32 %v3148, %v3270
      %v3275 = vmul.f32 %v3152, %v3270
      %v3276 = vmul.f32 %v3156, %v3270
      %v3277 = vmul.f32 %v3160, %v3270
      %v3278 = vmul.f32 %v3164, %v3270
      %v3279 = vmul.f32 %v3168, %v3270
      %v3280 = vmul.f32 %v3172, %v3270
      %v3281 = vmul.f32 %v3176, %v3270
      %v3282 = vmul.f32 %v3180, %v3270
      %v3283 = vmul.f32 %v3184, %v3270
      %v3284 = vmul.f32 %v3188, %v3270
      %v3285 = vmul.f32 %v3192, %v3270
      %v3286 = vmul.f32 %v3196, %v3270
      %v3287 = vmul.f32 %v3200, %v3270
      %v3288 = vmul.f32 %v3204, %v3270
      %v3289 = vmul.f32 %v3208, %v3270
      %v3290 = vmul.f32 %v3212, %v3270
      %v3291 = vmul.f32 %v3216, %v3270
      %v3292 = vmul.f32 %v3220, %v3270
      %v3293 = vmul.f32 %v3224, %v3270
      %v3294 = vmul.f32 %v3228, %v3270
      %v3295 = vmul.f32 %v3232, %v3270
      %v3296 = vmul.f32 %v3236, %v3270
      %v3297 = vmul.f32 %v3240, %v3270
      %v3298 = vmul.f32 %v3244, %v3270
      %v3299 = vmul.f32 %v3248, %v3270
      %v3300 = vmul.f32 %v3252, %v3270
      %v3301 = vmul.f32 %v3256, %v3270
      %v3302 = vmul.f32 %v3260, %v3270
      %v3303 = vmul.f32 %v3264, %v3270
      %v3304 = vadd.f32 %v3104, %v3272
      %v3305 = vadd.f32 %v3105, %v3273
      %v3306 = vadd.f32 %v3106, %v3274
      %v3307 = vadd.f32 %v3107, %v3275
      %v3308 = vadd.f32 %v3108, %v3276
      %v3309 = vadd.f32 %v3109, %v3277
      %v3310 = vadd.f32 %v3110, %v3278
      %v3311 = vadd.f32 %v3111, %v3279
      %v3312 = vadd.f32 %v3112, %v3280
      %v3313 = vadd.f32 %v3113, %v3281
      %v3314 = vadd.f32 %v3114, %v3282
      %v3315 = vadd.f32 %v3115, %v3283
      %v3316 = vadd.f32 %v3116, %v3284
      %v3317 = vadd.f32 %v3117, %v3285
      %v3318 = vadd.f32 %v3118, %v3286
      %v3319 = vadd.f32 %v3119, %v3287
      %v3320 = vadd.f32 %v3120, %v3288
      %v3321 = vadd.f32 %v3121, %v3289
      %v3322 = vadd.f32 %v3122, %v3290
      %v3323 = vadd.f32 %v3123, %v3291
      %v3324 = vadd.f32 %v3124, %v3292
      %v3325 = vadd.f32 %v3125, %v3293
      %v3326 = vadd.f32 %v3126, %v3294
      %v3327 = vadd.f32 %v3127, %v3295
      %v3328 = vadd.f32 %v3128, %v3296
      %v3329 = vadd.f32 %v3129, %v3297
      %v3330 = vadd.f32 %v3130, %v3298
      %v3331 = vadd.f32 %v3131, %v3299
      %v3332 = vadd.f32 %v3132, %v3300
      %v3333 = vadd.f32 %v3133, %v3301
      %v3334 = vadd.f32 %v3134, %v3302
      %v3335 = vadd.f32 %v3135, %v3303
      %s3336 = scalar_lea.vmem %s4, 8
      %v3337 = vld [vmem:[%s3336] sm:$0x1]
      %3338 = vset.pattern.permute.xlu0 3
      %3339 = vperm.xlu0 %3338, %v710
      %v3340 = vpop.permute.xlu0 %3339
      %3342 = vset.pattern.permute.xlu0 3
      %3343 = vperm.xlu0 %3342, %v711
      %v3344 = vpop.permute.xlu0 %3343
      %3346 = vset.pattern.permute.xlu0 3
      %3347 = vperm.xlu0 %3346, %v712
      %v3348 = vpop.permute.xlu0 %3347
      %3350 = vset.pattern.permute.xlu0 3
      %3351 = vperm.xlu0 %3350, %v713
      %v3352 = vpop.permute.xlu0 %3351
      %3354 = vset.pattern.permute.xlu0 3
      %3355 = vperm.xlu0 %3354, %v714
      %v3356 = vpop.permute.xlu0 %3355
      %3358 = vset.pattern.permute.xlu0 3
      %3359 = vperm.xlu0 %3358, %v715
      %v3360 = vpop.permute.xlu0 %3359
      %3362 = vset.pattern.permute.xlu0 3
      %3363 = vperm.xlu0 %3362, %v716
      %v3364 = vpop.permute.xlu0 %3363
      %3366 = vset.pattern.permute.xlu0 3
      %3367 = vperm.xlu0 %3366, %v717
      %v3368 = vpop.permute.xlu0 %3367
      %3370 = vset.pattern.permute.xlu0 3
      %3371 = vperm.xlu0 %3370, %v718
      %v3372 = vpop.permute.xlu0 %3371
      %3374 = vset.pattern.permute.xlu0 3
      %3375 = vperm.xlu0 %3374, %v719
      %v3376 = vpop.permute.xlu0 %3375
      %3378 = vset.pattern.permute.xlu0 3
      %3379 = vperm.xlu0 %3378, %v720
      %v3380 = vpop.permute.xlu0 %3379
      %3382 = vset.pattern.permute.xlu0 3
      %3383 = vperm.xlu0 %3382, %v721
      %v3384 = vpop.permute.xlu0 %3383
      %3386 = vset.pattern.permute.xlu0 3
      %3387 = vperm.xlu0 %3386, %v722
      %v3388 = vpop.permute.xlu0 %3387
      %3390 = vset.pattern.permute.xlu0 3
      %3391 = vperm.xlu0 %3390, %v723
      %v3392 = vpop.permute.xlu0 %3391
      %3394 = vset.pattern.permute.xlu0 3
      %3395 = vperm.xlu0 %3394, %v724
      %v3396 = vpop.permute.xlu0 %3395
      %3398 = vset.pattern.permute.xlu0 3
      %3399 = vperm.xlu0 %3398, %v725
      %v3400 = vpop.permute.xlu0 %3399
      %3402 = vset.pattern.permute.xlu0 3
      %3403 = vperm.xlu0 %3402, %v726
      %v3404 = vpop.permute.xlu0 %3403
      %3406 = vset.pattern.permute.xlu0 3
      %3407 = vperm.xlu0 %3406, %v727
      %v3408 = vpop.permute.xlu0 %3407
      %3410 = vset.pattern.permute.xlu0 3
      %3411 = vperm.xlu0 %3410, %v728
      %v3412 = vpop.permute.xlu0 %3411
      %3414 = vset.pattern.permute.xlu0 3
      %3415 = vperm.xlu0 %3414, %v729
      %v3416 = vpop.permute.xlu0 %3415
      %3418 = vset.pattern.permute.xlu0 3
      %3419 = vperm.xlu0 %3418, %v730
      %v3420 = vpop.permute.xlu0 %3419
      %3422 = vset.pattern.permute.xlu0 3
      %3423 = vperm.xlu0 %3422, %v731
      %v3424 = vpop.permute.xlu0 %3423
      %3426 = vset.pattern.permute.xlu0 3
      %3427 = vperm.xlu0 %3426, %v732
      %v3428 = vpop.permute.xlu0 %3427
      %3430 = vset.pattern.permute.xlu0 3
      %3431 = vperm.xlu0 %3430, %v733
      %v3432 = vpop.permute.xlu0 %3431
      %3434 = vset.pattern.permute.xlu0 3
      %3435 = vperm.xlu0 %3434, %v734
      %v3436 = vpop.permute.xlu0 %3435
      %3438 = vset.pattern.permute.xlu0 3
      %3439 = vperm.xlu0 %3438, %v735
      %v3440 = vpop.permute.xlu0 %3439
      %3442 = vset.pattern.permute.xlu0 3
      %3443 = vperm.xlu0 %3442, %v736
      %v3444 = vpop.permute.xlu0 %3443
      %3446 = vset.pattern.permute.xlu0 3
      %3447 = vperm.xlu0 %3446, %v737
      %v3448 = vpop.permute.xlu0 %3447
      %3450 = vset.pattern.permute.xlu0 3
      %3451 = vperm.xlu0 %3450, %v738
      %v3452 = vpop.permute.xlu0 %3451
      %3454 = vset.pattern.permute.xlu0 3
      %3455 = vperm.xlu0 %3454, %v739
      %v3456 = vpop.permute.xlu0 %3455
      %3458 = vset.pattern.permute.xlu0 3
      %3459 = vperm.xlu0 %3458, %v740
      %v3460 = vpop.permute.xlu0 %3459
      %3462 = vset.pattern.permute.xlu0 3
      %3463 = vperm.xlu0 %3462, %v741
      %v3464 = vpop.permute.xlu0 %3463
      %v3467 = vlaneseq
      %v3468 = vshrl.u32 %v3467, 7
      %v3469 = vsub.s32 0, %v3468
      %v3470 = vrot.slane %v3337, %v3469
      %v3472 = vmul.f32 %v3340, %v3470
      %v3473 = vmul.f32 %v3344, %v3470
      %v3474 = vmul.f32 %v3348, %v3470
      %v3475 = vmul.f32 %v3352, %v3470
      %v3476 = vmul.f32 %v3356, %v3470
      %v3477 = vmul.f32 %v3360, %v3470
      %v3478 = vmul.f32 %v3364, %v3470
      %v3479 = vmul.f32 %v3368, %v3470
      %v3480 = vmul.f32 %v3372, %v3470
      %v3481 = vmul.f32 %v3376, %v3470
      %v3482 = vmul.f32 %v3380, %v3470
      %v3483 = vmul.f32 %v3384, %v3470
      %v3484 = vmul.f32 %v3388, %v3470
      %v3485 = vmul.f32 %v3392, %v3470
      %v3486 = vmul.f32 %v3396, %v3470
      %v3487 = vmul.f32 %v3400, %v3470
      %v3488 = vmul.f32 %v3404, %v3470
      %v3489 = vmul.f32 %v3408, %v3470
      %v3490 = vmul.f32 %v3412, %v3470
      %v3491 = vmul.f32 %v3416, %v3470
      %v3492 = vmul.f32 %v3420, %v3470
      %v3493 = vmul.f32 %v3424, %v3470
      %v3494 = vmul.f32 %v3428, %v3470
      %v3495 = vmul.f32 %v3432, %v3470
      %v3496 = vmul.f32 %v3436, %v3470
      %v3497 = vmul.f32 %v3440, %v3470
      %v3498 = vmul.f32 %v3444, %v3470
      %v3499 = vmul.f32 %v3448, %v3470
      %v3500 = vmul.f32 %v3452, %v3470
      %v3501 = vmul.f32 %v3456, %v3470
      %v3502 = vmul.f32 %v3460, %v3470
      %v3503 = vmul.f32 %v3464, %v3470
      %v3504 = vadd.f32 %v3304, %v3472
      %v3505 = vadd.f32 %v3305, %v3473
      %v3506 = vadd.f32 %v3306, %v3474
      %v3507 = vadd.f32 %v3307, %v3475
      %v3508 = vadd.f32 %v3308, %v3476
      %v3509 = vadd.f32 %v3309, %v3477
      %v3510 = vadd.f32 %v3310, %v3478
      %v3511 = vadd.f32 %v3311, %v3479
      %v3512 = vadd.f32 %v3312, %v3480
      %v3513 = vadd.f32 %v3313, %v3481
      %v3514 = vadd.f32 %v3314, %v3482
      %v3515 = vadd.f32 %v3315, %v3483
      %v3516 = vadd.f32 %v3316, %v3484
      %v3517 = vadd.f32 %v3317, %v3485
      %v3518 = vadd.f32 %v3318, %v3486
      %v3519 = vadd.f32 %v3319, %v3487
      %v3520 = vadd.f32 %v3320, %v3488
      %v3521 = vadd.f32 %v3321, %v3489
      %v3522 = vadd.f32 %v3322, %v3490
      %v3523 = vadd.f32 %v3323, %v3491
      %v3524 = vadd.f32 %v3324, %v3492
      %v3525 = vadd.f32 %v3325, %v3493
      %v3526 = vadd.f32 %v3326, %v3494
      %v3527 = vadd.f32 %v3327, %v3495
      %v3528 = vadd.f32 %v3328, %v3496
      %v3529 = vadd.f32 %v3329, %v3497
      %v3530 = vadd.f32 %v3330, %v3498
      %v3531 = vadd.f32 %v3331, %v3499
      %v3532 = vadd.f32 %v3332, %v3500
      %v3533 = vadd.f32 %v3333, %v3501
      %v3534 = vadd.f32 %v3334, %v3502
      %v3535 = vadd.f32 %v3335, %v3503
      %v3536 = vld [vmem:[%s5] sm:$0x1]
      %v3538 = vlaneseq
      %v3539 = vshrl.u32 %v3538, 7
      %v3540 = vsub.s32 0, %v3539
      %v3541 = vrot.slane %v3536, %v3540
      %v3543 = vadd.f32 %v3504, %v3541
      %v3544 = vadd.f32 %v3505, %v3541
      %v3545 = vadd.f32 %v3506, %v3541
      %v3546 = vadd.f32 %v3507, %v3541
      %v3547 = vadd.f32 %v3508, %v3541
      %v3548 = vadd.f32 %v3509, %v3541
      %v3549 = vadd.f32 %v3510, %v3541
      %v3550 = vadd.f32 %v3511, %v3541
      %v3551 = vadd.f32 %v3512, %v3541
      %v3552 = vadd.f32 %v3513, %v3541
      %v3553 = vadd.f32 %v3514, %v3541
      %v3554 = vadd.f32 %v3515, %v3541
      %v3555 = vadd.f32 %v3516, %v3541
      %v3556 = vadd.f32 %v3517, %v3541
      %v3557 = vadd.f32 %v3518, %v3541
      %v3558 = vadd.f32 %v3519, %v3541
      %v3559 = vadd.f32 %v3520, %v3541
      %v3560 = vadd.f32 %v3521, %v3541
      %v3561 = vadd.f32 %v3522, %v3541
      %v3562 = vadd.f32 %v3523, %v3541
      %v3563 = vadd.f32 %v3524, %v3541
      %v3564 = vadd.f32 %v3525, %v3541
      %v3565 = vadd.f32 %v3526, %v3541
      %v3566 = vadd.f32 %v3527, %v3541
      %v3567 = vadd.f32 %v3528, %v3541
      %v3568 = vadd.f32 %v3529, %v3541
      %v3569 = vadd.f32 %v3530, %v3541
      %v3570 = vadd.f32 %v3531, %v3541
      %v3571 = vadd.f32 %v3532, %v3541
      %v3572 = vadd.f32 %v3533, %v3541
      %v3573 = vadd.f32 %v3534, %v3541
      %v3574 = vadd.f32 %v3535, %v3541
      %vm3575 = vcmp.gt.f32.partialorder %v3543, 0.0
      %vm3576 = vcmp.gt.f32.partialorder %v3544, 0.0
      %vm3577 = vcmp.gt.f32.partialorder %v3545, 0.0
      %vm3578 = vcmp.gt.f32.partialorder %v3546, 0.0
      %vm3579 = vcmp.gt.f32.partialorder %v3547, 0.0
      %vm3580 = vcmp.gt.f32.partialorder %v3548, 0.0
      %vm3581 = vcmp.gt.f32.partialorder %v3549, 0.0
      %vm3582 = vcmp.gt.f32.partialorder %v3550, 0.0
      %vm3583 = vcmp.gt.f32.partialorder %v3551, 0.0
      %vm3584 = vcmp.gt.f32.partialorder %v3552, 0.0
      %vm3585 = vcmp.gt.f32.partialorder %v3553, 0.0
      %vm3586 = vcmp.gt.f32.partialorder %v3554, 0.0
      %vm3587 = vcmp.gt.f32.partialorder %v3555, 0.0
      %vm3588 = vcmp.gt.f32.partialorder %v3556, 0.0
      %vm3589 = vcmp.gt.f32.partialorder %v3557, 0.0
      %vm3590 = vcmp.gt.f32.partialorder %v3558, 0.0
      %vm3591 = vcmp.gt.f32.partialorder %v3559, 0.0
      %vm3592 = vcmp.gt.f32.partialorder %v3560, 0.0
      %vm3593 = vcmp.gt.f32.partialorder %v3561, 0.0
      %vm3594 = vcmp.gt.f32.partialorder %v3562, 0.0
      %vm3595 = vcmp.gt.f32.partialorder %v3563, 0.0
      %vm3596 = vcmp.gt.f32.partialorder %v3564, 0.0
      %vm3597 = vcmp.gt.f32.partialorder %v3565, 0.0
      %vm3598 = vcmp.gt.f32.partialorder %v3566, 0.0
      %vm3599 = vcmp.gt.f32.partialorder %v3567, 0.0
      %vm3600 = vcmp.gt.f32.partialorder %v3568, 0.0
      %vm3601 = vcmp.gt.f32.partialorder %v3569, 0.0
      %vm3602 = vcmp.gt.f32.partialorder %v3570, 0.0
      %vm3603 = vcmp.gt.f32.partialorder %v3571, 0.0
      %vm3604 = vcmp.gt.f32.partialorder %v3572, 0.0
      %vm3605 = vcmp.gt.f32.partialorder %v3573, 0.0
      %vm3606 = vcmp.gt.f32.partialorder %v3574, 0.0
      %v3607 = vmul.f32 %v3543, 0.2
      %v3608 = vmul.f32 %v3544, 0.2
      %v3609 = vmul.f32 %v3545, 0.2
      %v3610 = vmul.f32 %v3546, 0.2
      %v3611 = vmul.f32 %v3547, 0.2
      %v3612 = vmul.f32 %v3548, 0.2
      %v3613 = vmul.f32 %v3549, 0.2
      %v3614 = vmul.f32 %v3550, 0.2
      %v3615 = vmul.f32 %v3551, 0.2
      %v3616 = vmul.f32 %v3552, 0.2
      %v3617 = vmul.f32 %v3553, 0.2
      %v3618 = vmul.f32 %v3554, 0.2
      %v3619 = vmul.f32 %v3555, 0.2
      %v3620 = vmul.f32 %v3556, 0.2
      %v3621 = vmul.f32 %v3557, 0.2
      %v3622 = vmul.f32 %v3558, 0.2
      %v3623 = vmul.f32 %v3559, 0.2
      %v3624 = vmul.f32 %v3560, 0.2
      %v3625 = vmul.f32 %v3561, 0.2
      %v3626 = vmul.f32 %v3562, 0.2
      %v3627 = vmul.f32 %v3563, 0.2
      %v3628 = vmul.f32 %v3564, 0.2
      %v3629 = vmul.f32 %v3565, 0.2
      %v3630 = vmul.f32 %v3566, 0.2
      %v3631 = vmul.f32 %v3567, 0.2
      %v3632 = vmul.f32 %v3568, 0.2
      %v3633 = vmul.f32 %v3569, 0.2
      %v3634 = vmul.f32 %v3570, 0.2
      %v3635 = vmul.f32 %v3571, 0.2
      %v3636 = vmul.f32 %v3572, 0.2
      %v3637 = vmul.f32 %v3573, 0.2
      %v3638 = vmul.f32 %v3574, 0.2
      %v3639 = vsel %vm3575, %v3543, %v3607
      %v3640 = vsel %vm3576, %v3544, %v3608
      %v3641 = vsel %vm3577, %v3545, %v3609
      %v3642 = vsel %vm3578, %v3546, %v3610
      %v3643 = vsel %vm3579, %v3547, %v3611
      %v3644 = vsel %vm3580, %v3548, %v3612
      %v3645 = vsel %vm3581, %v3549, %v3613
      %v3646 = vsel %vm3582, %v3550, %v3614
      %v3647 = vsel %vm3583, %v3551, %v3615
      %v3648 = vsel %vm3584, %v3552, %v3616
      %v3649 = vsel %vm3585, %v3553, %v3617
      %v3650 = vsel %vm3586, %v3554, %v3618
      %v3651 = vsel %vm3587, %v3555, %v3619
      %v3652 = vsel %vm3588, %v3556, %v3620
      %v3653 = vsel %vm3589, %v3557, %v3621
      %v3654 = vsel %vm3590, %v3558, %v3622
      %v3655 = vsel %vm3591, %v3559, %v3623
      %v3656 = vsel %vm3592, %v3560, %v3624
      %v3657 = vsel %vm3593, %v3561, %v3625
      %v3658 = vsel %vm3594, %v3562, %v3626
      %v3659 = vsel %vm3595, %v3563, %v3627
      %v3660 = vsel %vm3596, %v3564, %v3628
      %v3661 = vsel %vm3597, %v3565, %v3629
      %v3662 = vsel %vm3598, %v3566, %v3630
      %v3663 = vsel %vm3599, %v3567, %v3631
      %v3664 = vsel %vm3600, %v3568, %v3632
      %v3665 = vsel %vm3601, %v3569, %v3633
      %v3666 = vsel %vm3602, %v3570, %v3634
      %v3667 = vsel %vm3603, %v3571, %v3635
      %v3668 = vsel %vm3604, %v3572, %v3636
      %v3669 = vsel %vm3605, %v3573, %v3637
      %v3670 = vsel %vm3606, %v3574, %v3638
      %v3671 = vpack.c.bf16 %v3640, %v3639
      %v3672 = vpack.c.bf16 %v3642, %v3641
      %v3673 = vpack.c.bf16 %v3644, %v3643
      %v3674 = vpack.c.bf16 %v3646, %v3645
      %v3675 = vpack.c.bf16 %v3648, %v3647
      %v3676 = vpack.c.bf16 %v3650, %v3649
      %v3677 = vpack.c.bf16 %v3652, %v3651
      %v3678 = vpack.c.bf16 %v3654, %v3653
      %v3679 = vpack.c.bf16 %v3656, %v3655
      %v3680 = vpack.c.bf16 %v3658, %v3657
      %v3681 = vpack.c.bf16 %v3660, %v3659
      %v3682 = vpack.c.bf16 %v3662, %v3661
      %v3683 = vpack.c.bf16 %v3664, %v3663
      %v3684 = vpack.c.bf16 %v3666, %v3665
      %v3685 = vpack.c.bf16 %v3668, %v3667
      %v3686 = vpack.c.bf16 %v3670, %v3669
      %v3687 = vld [vmem:[%s6] sm:$0xff]
      %v3688 = vld [vmem:[%s6 + $0x8] sm:$0xff]
      %v3689 = vld [vmem:[%s6 + $0x10] sm:$0xff]
      %v3690 = vld [vmem:[%s6 + $0x18] sm:$0xff]
      %v3691 = vld [vmem:[%s6 + $0x20] sm:$0xff]
      %v3692 = vld [vmem:[%s6 + $0x28] sm:$0xff]
      %v3693 = vld [vmem:[%s6 + $0x30] sm:$0xff]
      %v3694 = vld [vmem:[%s6 + $0x38] sm:$0xff]
      %v3703 = vunpack.c.l.b16 %v3687
      %v3704 = vunpack.c.h.b16 %v3687
      %v3705 = vunpack.c.l.b16 %v3688
      %v3706 = vunpack.c.h.b16 %v3688
      %v3707 = vunpack.c.l.b16 %v3689
      %v3708 = vunpack.c.h.b16 %v3689
      %v3709 = vunpack.c.l.b16 %v3690
      %v3710 = vunpack.c.h.b16 %v3690
      %v3711 = vunpack.c.l.b16 %v3691
      %v3712 = vunpack.c.h.b16 %v3691
      %v3713 = vunpack.c.l.b16 %v3692
      %v3714 = vunpack.c.h.b16 %v3692
      %v3715 = vunpack.c.l.b16 %v3693
      %v3716 = vunpack.c.h.b16 %v3693
      %v3717 = vunpack.c.l.b16 %v3694
      %v3718 = vunpack.c.h.b16 %v3694
      %v3719 = vpack.c.b16 %v3705, %v3703
      %v3720 = vpack.c.b16 %v3706, %v3704
      %v3721 = vpack.c.b16 %v3709, %v3707
      %v3722 = vpack.c.b16 %v3710, %v3708
      %v3723 = vpack.c.b16 %v3713, %v3711
      %v3724 = vpack.c.b16 %v3714, %v3712
      %v3725 = vpack.c.b16 %v3717, %v3715
      %v3726 = vpack.c.b16 %v3718, %v3716
      %3735 = vmatprep.subr.bf16.mxu0 0
      %3736 = vmatpush1.bf16.msra.mxu0 %v3671
      %3737 = vmatprep.subr.bf16.mxu0 0
      %3738 = vmatpush1.bf16.msra.mxu0 %v3672
      %3739 = vmatprep.subr.bf16.mxu0 0
      %3740 = vmatpush1.bf16.msra.mxu0 %v3673
      %3741 = vmatprep.subr.bf16.mxu0 0
      %3742 = vmatpush1.bf16.msra.mxu0 %v3674
      %3743 = vmatprep.subr.bf16.mxu0 0
      %3744 = vmatpush1.bf16.msra.mxu0 %v3675
      %3745 = vmatprep.subr.bf16.mxu0 0
      %3746 = vmatpush1.bf16.msra.mxu0 %v3676
      %3747 = vmatprep.subr.bf16.mxu0 0
      %3748 = vmatpush1.bf16.msra.mxu0 %v3677
      %3749 = vmatprep.subr.bf16.mxu0 0
      %3750 = vmatpush1.bf16.msra.mxu0 %v3678
      %3751 = vmatprep.subr.bf16.mxu0 0
      %3752 = vmatpush1.bf16.msra.mxu0 %v3679
      %3753 = vmatprep.subr.bf16.mxu0 0
      %3754 = vmatpush1.bf16.msra.mxu0 %v3680
      %3755 = vmatprep.subr.bf16.mxu0 0
      %3756 = vmatpush1.bf16.msra.mxu0 %v3681
      %3757 = vmatprep.subr.bf16.mxu0 0
      %3758 = vmatpush1.bf16.msra.mxu0 %v3682
      %3759 = vmatprep.subr.bf16.mxu0 0
      %3760 = vmatpush1.bf16.msra.mxu0 %v3683
      %3761 = vmatprep.subr.bf16.mxu0 0
      %3762 = vmatpush1.bf16.msra.mxu0 %v3684
      %3763 = vmatprep.subr.bf16.mxu0 0
      %3764 = vmatpush1.bf16.msra.mxu0 %v3685
      %3765 = vmatprep.subr.bf16.mxu0 0
      %3766 = vmatpush1.bf16.msra.mxu0 %v3686
      %3767 = vmatprep.mubr.bf16.mxu0 %v3720
      %3768 = vmatmul.mubr.bf16.gmra.mrb[0].mxu0 %v3719
      %v3769 = vpop.f32.mrb[0].mxu0
      %v3770 = vadd.f32 0.0, %v3769
      %v3771 = vpop.f32.mrb[0].mxu0
      %v3772 = vpop.f32.mrb[0].mxu0
      %v3773 = vadd.f32 0.0, %v3772
      %v3774 = vpop.f32.mrb[0].mxu0
      %3775 = vmatprep.mubr.bf16.mxu0 %v3722
      %3776 = vmatmul.mubr.bf16.gmra.mrb[0].mxu0 %v3721
      %v3777 = vpop.f32.mrb[0].mxu0
      %v3778 = vadd.f32 0.0, %v3777
      %v3779 = vpop.f32.mrb[0].mxu0
      %v3780 = vpop.f32.mrb[0].mxu0
      %v3781 = vadd.f32 0.0, %v3780
      %v3782 = vpop.f32.mrb[0].mxu0
      %3783 = vmatprep.mubr.bf16.mxu0 %v3724
      %3784 = vmatmul.mubr.bf16.gmra.mrb[0].mxu0 %v3723
      %v3785 = vpop.f32.mrb[0].mxu0
      %v3786 = vadd.f32 0.0, %v3785
      %v3787 = vpop.f32.mrb[0].mxu0
      %v3788 = vpop.f32.mrb[0].mxu0
      %v3789 = vadd.f32 0.0, %v3788
      %v3790 = vpop.f32.mrb[0].mxu0
      %3791 = vmatprep.mubr.bf16.mxu0 %v3726
      %3792 = vmatmul.mubr.bf16.gmra.mrb[0].mxu0 %v3725
      %v3793 = vpop.f32.mrb[0].mxu0
      %v3794 = vadd.f32 0.0, %v3793
      %v3795 = vpop.f32.mrb[0].mxu0
      %v3796 = vpop.f32.mrb[0].mxu0
      %v3797 = vadd.f32 0.0, %v3796
      %v3798 = vpop.f32.mrb[0].mxu0
      %3799 = vdwg.mxu0
      %v3800 = vpack.c.bf16 %v3773, %v3770
      %v3801 = vpack.c.bf16 %v3781, %v3778
      %v3802 = vpack.c.bf16 %v3789, %v3786
      %v3803 = vpack.c.bf16 %v3797, %v3794
      %v3804 = vld [vmem:[%s7] sm:$0xf]
      %v3805 = vld [vmem:[%s7 + $0x4] sm:$0xf]
      %s3806 = scalar_lea.vmem %s6, 64
      %v3807 = vld [vmem:[%s3806] sm:$0xff]
      %v3808 = vld [vmem:[%s3806 + $0x8] sm:$0xff]
      %v3809 = vld [vmem:[%s3806 + $0x10] sm:$0xff]
      %v3810 = vld [vmem:[%s3806 + $0x18] sm:$0xff]
      %v3811 = vld [vmem:[%s3806 + $0x20] sm:$0xff]
      %v3812 = vld [vmem:[%s3806 + $0x28] sm:$0xff]
      %v3813 = vld [vmem:[%s3806 + $0x30] sm:$0xff]
      %v3814 = vld [vmem:[%s3806 + $0x38] sm:$0xff]
      %v3823 = vunpack.c.l.b16 %v3807
      %v3824 = vunpack.c.h.b16 %v3807
      %v3825 = vunpack.c.l.b16 %v3808
      %v3826 = vunpack.c.h.b16 %v3808
      %v3827 = vunpack.c.l.b16 %v3809
      %v3828 = vunpack.c.h.b16 %v3809
      %v3829 = vunpack.c.l.b16 %v3810
      %v3830 = vunpack.c.h.b16 %v3810
      %v3831 = vunpack.c.l.b16 %v3811
      %v3832 = vunpack.c.h.b16 %v3811
      %v3833 = vunpack.c.l.b16 %v3812
      %v3834 = vunpack.c.h.b16 %v3812
      %v3835 = vunpack.c.l.b16 %v3813
      %v3836 = vunpack.c.h.b16 %v3813
      %v3837 = vunpack.c.l.b16 %v3814
      %v3838 = vunpack.c.h.b16 %v3814
      %v3839 = vpack.c.b16 %v3825, %v3823
      %v3840 = vpack.c.b16 %v3826, %v3824
      %v3841 = vpack.c.b16 %v3829, %v3827
      %v3842 = vpack.c.b16 %v3830, %v3828
      %v3843 = vpack.c.b16 %v3833, %v3831
      %v3844 = vpack.c.b16 %v3834, %v3832
      %v3845 = vpack.c.b16 %v3837, %v3835
      %v3846 = vpack.c.b16 %v3838, %v3836
      %3855 = vmatprep.subr.bf16.mxu0 0
      %3856 = vmatpush1.bf16.msra.mxu0 %v3671
      %3857 = vmatprep.subr.bf16.mxu0 0
      %3858 = vmatpush1.bf16.msra.mxu0 %v3672
      %3859 = vmatprep.subr.bf16.mxu0 0
      %3860 = vmatpush1.bf16.msra.mxu0 %v3673
      %3861 = vmatprep.subr.bf16.mxu0 0
      %3862 = vmatpush1.bf16.msra.mxu0 %v3674
      %3863 = vmatprep.subr.bf16.mxu0 0
      %3864 = vmatpush1.bf16.msra.mxu0 %v3675
      %3865 = vmatprep.subr.bf16.mxu0 0
      %3866 = vmatpush1.bf16.msra.mxu0 %v3676
      %3867 = vmatprep.subr.bf16.mxu0 0
      %3868 = vmatpush1.bf16.msra.mxu0 %v3677
      %3869 = vmatprep.subr.bf16.mxu0 0
      %3870 = vmatpush1.bf16.msra.mxu0 %v3678
      %3871 = vmatprep.subr.bf16.mxu0 0
      %3872 = vmatpush1.bf16.msra.mxu0 %v3679
      %3873 = vmatprep.subr.bf16.mxu0 0
      %3874 = vmatpush1.bf16.msra.mxu0 %v3680
      %3875 = vmatprep.subr.bf16.mxu0 0
      %3876 = vmatpush1.bf16.msra.mxu0 %v3681
      %3877 = vmatprep.subr.bf16.mxu0 0
      %3878 = vmatpush1.bf16.msra.mxu0 %v3682
      %3879 = vmatprep.subr.bf16.mxu0 0
      %3880 = vmatpush1.bf16.msra.mxu0 %v3683
      %3881 = vmatprep.subr.bf16.mxu0 0
      %3882 = vmatpush1.bf16.msra.mxu0 %v3684
      %3883 = vmatprep.subr.bf16.mxu0 0
      %3884 = vmatpush1.bf16.msra.mxu0 %v3685
      %3885 = vmatprep.subr.bf16.mxu0 0
      %3886 = vmatpush1.bf16.msra.mxu0 %v3686
      %3887 = vmatprep.mubr.bf16.mxu0 %v3840
      %3888 = vmatmul.mubr.bf16.gmra.mrb[0].mxu0 %v3839
      %v3889 = vpop.f32.mrb[0].mxu0
      %v3890 = vadd.f32 0.0, %v3889
      %v3891 = vpop.f32.mrb[0].mxu0
      %v3892 = vpop.f32.mrb[0].mxu0
      %v3893 = vadd.f32 0.0, %v3892
      %v3894 = vpop.f32.mrb[0].mxu0
      %3895 = vmatprep.mubr.bf16.mxu0 %v3842
      %3896 = vmatmul.mubr.bf16.gmra.mrb[0].mxu0 %v3841
      %v3897 = vpop.f32.mrb[0].mxu0
      %v3898 = vadd.f32 0.0, %v3897
      %v3899 = vpop.f32.mrb[0].mxu0
      %v3900 = vpop.f32.mrb[0].mxu0
      %v3901 = vadd.f32 0.0, %v3900
      %v3902 = vpop.f32.mrb[0].mxu0
      %3903 = vmatprep.mubr.bf16.mxu0 %v3844
      %3904 = vmatmul.mubr.bf16.gmra.mrb[0].mxu0 %v3843
      %v3905 = vpop.f32.mrb[0].mxu0
      %v3906 = vadd.f32 0.0, %v3905
      %v3907 = vpop.f32.mrb[0].mxu0
      %v3908 = vpop.f32.mrb[0].mxu0
      %v3909 = vadd.f32 0.0, %v3908
      %v3910 = vpop.f32.mrb[0].mxu0
      %3911 = vmatprep.mubr.bf16.mxu0 %v3846
      %3912 = vmatmul.mubr.bf16.gmra.mrb[0].mxu0 %v3845
      %v3913 = vpop.f32.mrb[0].mxu0
      %v3914 = vadd.f32 0.0, %v3913
      %v3915 = vpop.f32.mrb[0].mxu0
      %v3916 = vpop.f32.mrb[0].mxu0
      %v3917 = vadd.f32 0.0, %v3916
      %v3918 = vpop.f32.mrb[0].mxu0
      %3919 = vdwg.mxu0
      %v3920 = vpack.c.bf16 %v3893, %v3890
      %v3921 = vpack.c.bf16 %v3901, %v3898
      %v3922 = vpack.c.bf16 %v3909, %v3906
      %v3923 = vpack.c.bf16 %v3917, %v3914
      %s3924 = scalar_lea.vmem %s7, 8
      %v3925 = vld [vmem:[%s3924] sm:$0xf]
      %v3926 = vld [vmem:[%s3924 + $0x4] sm:$0xf]
      %v3929 = vunpack.c.l.b16 %v3925
      %v3930 = vunpack.c.l.b16 %v3926
      %v3931 = vpack.c.b16 %v3930, %v3929
      %vm3933 = vcmask 130048
      %v3935 = vsel %vm3933, %v3920, 0
      %v3938 = vsel %vm3933, %v3921, 0
      %v3941 = vsel %vm3933, %v3922, 0
      %v3944 = vsel %vm3933, %v3923, 0
      %3946 = vmatprep.subr.bf16.mxu0 0
      %3947 = vmatpush1.bf16.msra.mxu0 %v3931
      %3948 = vmatprep.subr.bf16.mxu0 0
      %3949 = vmatpush1.bf16.msra.mxu0 0
      %3950 = vmatprep.subr.bf16.mxu0 0
      %3951 = vmatpush1.bf16.msra.mxu0 0
      %3952 = vmatprep.subr.bf16.mxu0 0
      %3953 = vmatpush1.bf16.msra.mxu0 0
      %3954 = vmatprep.subr.bf16.mxu0 0
      %3955 = vmatpush1.bf16.msra.mxu0 0
      %3956 = vmatprep.subr.bf16.mxu0 0
      %3957 = vmatpush1.bf16.msra.mxu0 0
      %3958 = vmatprep.subr.bf16.mxu0 0
      %3959 = vmatpush1.bf16.msra.mxu0 0
      %3960 = vmatprep.subr.bf16.mxu0 0
      %3961 = vmatpush1.bf16.msra.mxu0 0
      %3962 = vmatprep.subr.bf16.mxu0 0
      %3963 = vmatpush1.bf16.msra.mxu0 0
      %3964 = vmatprep.subr.bf16.mxu0 0
      %3965 = vmatpush1.bf16.msra.mxu0 0
      %3966 = vmatprep.subr.bf16.mxu0 0
      %3967 = vmatpush1.bf16.msra.mxu0 0
      %3968 = vmatprep.subr.bf16.mxu0 0
      %3969 = vmatpush1.bf16.msra.mxu0 0
      %3970 = vmatprep.subr.bf16.mxu0 0
      %3971 = vmatpush1.bf16.msra.mxu0 0
      %3972 = vmatprep.subr.bf16.mxu0 0
      %3973 = vmatpush1.bf16.msra.mxu0 0
      %3974 = vmatprep.subr.bf16.mxu0 0
      %3975 = vmatpush1.bf16.msra.mxu0 0
      %3976 = vmatprep.subr.bf16.mxu0 0
      %3977 = vmatpush1.bf16.msra.mxu0 0
      %3978 = vmatprep.mubr.bf16.mxu0 0
      %3979 = vmatmul.mubr.bf16.gmra.mrb[0].mxu0 %v3935
      %v3980 = vpop.f32.mrb[0].mxu0
      %v3981 = vadd.f32 0.0, %v3980
      %v3982 = vpop.f32.mrb[0].mxu0
      %v3983 = vpop.f32.mrb[0].mxu0
      %v3984 = vadd.f32 0.0, %v3983
      %v3985 = vpop.f32.mrb[0].mxu0
      %3986 = vmatprep.mubr.bf16.mxu0 0
      %3987 = vmatmul.mubr.bf16.gmra.mrb[0].mxu0 %v3938
      %v3988 = vpop.f32.mrb[0].mxu0
      %v3989 = vadd.f32 0.0, %v3988
      %v3990 = vpop.f32.mrb[0].mxu0
      %v3991 = vpop.f32.mrb[0].mxu0
      %v3992 = vadd.f32 0.0, %v3991
      %v3993 = vpop.f32.mrb[0].mxu0
      %3994 = vmatprep.mubr.bf16.mxu0 0
      %3995 = vmatmul.mubr.bf16.gmra.mrb[0].mxu0 %v3941
      %v3996 = vpop.f32.mrb[0].mxu0
      %v3997 = vadd.f32 0.0, %v3996
      %v3998 = vpop.f32.mrb[0].mxu0
      %v3999 = vpop.f32.mrb[0].mxu0
      %v4000 = vadd.f32 0.0, %v3999
      %v4001 = vpop.f32.mrb[0].mxu0
      %4002 = vmatprep.mubr.bf16.mxu0 0
      %4003 = vmatmul.mubr.bf16.gmra.mrb[0].mxu0 %v3944
      %v4004 = vpop.f32.mrb[0].mxu0
      %v4005 = vadd.f32 0.0, %v4004
      %v4006 = vpop.f32.mrb[0].mxu0
      %v4007 = vpop.f32.mrb[0].mxu0
      %v4008 = vadd.f32 0.0, %v4007
      %v4009 = vpop.f32.mrb[0].mxu0
      %4010 = vdwg.mxu0
      %v4013 = vunpack.c.l.b16 %v3804
      %v4014 = vunpack.c.l.b16 %v3805
      %v4015 = vpack.c.b16 %v4014, %v4013
      %v4018 = vsel %vm3933, %v3800, 0
      %v4021 = vsel %vm3933, %v3801, 0
      %v4024 = vsel %vm3933, %v3802, 0
      %v4027 = vsel %vm3933, %v3803, 0
      %4029 = vmatprep.subr.bf16.mxu0 0
      %4030 = vmatpush1.bf16.msra.mxu0 %v4015
      %4031 = vmatprep.subr.bf16.mxu0 0
      %4032 = vmatpush1.bf16.msra.mxu0 0
      %4033 = vmatprep.subr.bf16.mxu0 0
      %4034 = vmatpush1.bf16.msra.mxu0 0
      %4035 = vmatprep.subr.bf16.mxu0 0
      %4036 = vmatpush1.bf16.msra.mxu0 0
      %4037 = vmatprep.subr.bf16.mxu0 0
      %4038 = vmatpush1.bf16.msra.mxu0 0
      %4039 = vmatprep.subr.bf16.mxu0 0
      %4040 = vmatpush1.bf16.msra.mxu0 0
      %4041 = vmatprep.subr.bf16.mxu0 0
      %4042 = vmatpush1.bf16.msra.mxu0 0
      %4043 = vmatprep.subr.bf16.mxu0 0
      %4044 = vmatpush1.bf16.msra.mxu0 0
      %4045 = vmatprep.subr.bf16.mxu0 0
      %4046 = vmatpush1.bf16.msra.mxu0 0
      %4047 = vmatprep.subr.bf16.mxu0 0
      %4048 = vmatpush1.bf16.msra.mxu0 0
      %4049 = vmatprep.subr.bf16.mxu0 0
      %4050 = vmatpush1.bf16.msra.mxu0 0
      %4051 = vmatprep.subr.bf16.mxu0 0
      %4052 = vmatpush1.bf16.msra.mxu0 0
      %4053 = vmatprep.subr.bf16.mxu0 0
      %4054 = vmatpush1.bf16.msra.mxu0 0
      %4055 = vmatprep.subr.bf16.mxu0 0
      %4056 = vmatpush1.bf16.msra.mxu0 0
      %4057 = vmatprep.subr.bf16.mxu0 0
      %4058 = vmatpush1.bf16.msra.mxu0 0
      %4059 = vmatprep.subr.bf16.mxu0 0
      %4060 = vmatpush1.bf16.msra.mxu0 0
      %4061 = vmatprep.mubr.bf16.mxu0 0
      %4062 = vmatmul.mubr.bf16.gmra.mrb[0].mxu0 %v4018
      %v4063 = vpop.f32.mrb[0].mxu0
      %v4064 = vadd.f32 %v3981, %v4063
      %v4065 = vpop.f32.mrb[0].mxu0
      %v4066 = vpop.f32.mrb[0].mxu0
      %v4067 = vadd.f32 %v3984, %v4066
      %v4068 = vpop.f32.mrb[0].mxu0
      %4069 = vmatprep.mubr.bf16.mxu0 0
      %4070 = vmatmul.mubr.bf16.gmra.mrb[0].mxu0 %v4021
      %v4071 = vpop.f32.mrb[0].mxu0
      %v4072 = vadd.f32 %v3989, %v4071
      %v4073 = vpop.f32.mrb[0].mxu0
      %v4074 = vpop.f32.mrb[0].mxu0
      %v4075 = vadd.f32 %v3992, %v4074
      %v4076 = vpop.f32.mrb[0].mxu0
      %4077 = vmatprep.mubr.bf16.mxu0 0
      %4078 = vmatmul.mubr.bf16.gmra.mrb[0].mxu0 %v4024
      %v4079 = vpop.f32.mrb[0].mxu0
      %v4080 = vadd.f32 %v3997, %v4079
      %v4081 = vpop.f32.mrb[0].mxu0
      %v4082 = vpop.f32.mrb[0].mxu0
      %v4083 = vadd.f32 %v4000, %v4082
      %v4084 = vpop.f32.mrb[0].mxu0
      %4085 = vmatprep.mubr.bf16.mxu0 0
      %4086 = vmatmul.mubr.bf16.gmra.mrb[0].mxu0 %v4027
      %v4087 = vpop.f32.mrb[0].mxu0
      %v4088 = vadd.f32 %v4005, %v4087
      %v4089 = vpop.f32.mrb[0].mxu0
      %v4090 = vpop.f32.mrb[0].mxu0
      %v4091 = vadd.f32 %v4008, %v4090
      %v4092 = vpop.f32.mrb[0].mxu0
      %4093 = vdwg.mxu0
      %s4094 = scalar_lea.vmem %s6, 128
      %v4095 = vld [vmem:[%s4094] sm:$0xff]
      %v4096 = vld [vmem:[%s4094 + $0x8] sm:$0xff]
      %v4097 = vld [vmem:[%s4094 + $0x10] sm:$0xff]
      %v4098 = vld [vmem:[%s4094 + $0x18] sm:$0xff]
      %v4099 = vld [vmem:[%s4094 + $0x20] sm:$0xff]
      %v4100 = vld [vmem:[%s4094 + $0x28] sm:$0xff]
      %v4101 = vld [vmem:[%s4094 + $0x30] sm:$0xff]
      %v4102 = vld [vmem:[%s4094 + $0x38] sm:$0xff]
      %v4111 = vunpack.c.l.b16 %v4095
      %v4112 = vunpack.c.h.b16 %v4095
      %v4113 = vunpack.c.l.b16 %v4096
      %v4114 = vunpack.c.h.b16 %v4096
      %v4115 = vunpack.c.l.b16 %v4097
      %v4116 = vunpack.c.h.b16 %v4097
      %v4117 = vunpack.c.l.b16 %v4098
      %v4118 = vunpack.c.h.b16 %v4098
      %v4119 = vunpack.c.l.b16 %v4099
      %v4120 = vunpack.c.h.b16 %v4099
      %v4121 = vunpack.c.l.b16 %v4100
      %v4122 = vunpack.c.h.b16 %v4100
      %v4123 = vunpack.c.l.b16 %v4101
      %v4124 = vunpack.c.h.b16 %v4101
      %v4125 = vunpack.c.l.b16 %v4102
      %v4126 = vunpack.c.h.b16 %v4102
      %v4127 = vpack.c.b16 %v4113, %v4111
      %v4128 = vpack.c.b16 %v4114, %v4112
      %v4129 = vpack.c.b16 %v4117, %v4115
      %v4130 = vpack.c.b16 %v4118, %v4116
      %v4131 = vpack.c.b16 %v4121, %v4119
      %v4132 = vpack.c.b16 %v4122, %v4120
      %v4133 = vpack.c.b16 %v4125, %v4123
      %v4134 = vpack.c.b16 %v4126, %v4124
      %4143 = vmatprep.subr.bf16.mxu0 0
      %4144 = vmatpush1.bf16.msra.mxu0 %v3671
      %4145 = vmatprep.subr.bf16.mxu0 0
      %4146 = vmatpush1.bf16.msra.mxu0 %v3672
      %4147 = vmatprep.subr.bf16.mxu0 0
      %4148 = vmatpush1.bf16.msra.mxu0 %v3673
      %4149 = vmatprep.subr.bf16.mxu0 0
      %4150 = vmatpush1.bf16.msra.mxu0 %v3674
      %4151 = vmatprep.subr.bf16.mxu0 0
      %4152 = vmatpush1.bf16.msra.mxu0 %v3675
      %4153 = vmatprep.subr.bf16.mxu0 0
      %4154 = vmatpush1.bf16.msra.mxu0 %v3676
      %4155 = vmatprep.subr.bf16.mxu0 0
      %4156 = vmatpush1.bf16.msra.mxu0 %v3677
      %4157 = vmatprep.subr.bf16.mxu0 0
      %4158 = vmatpush1.bf16.msra.mxu0 %v3678
      %4159 = vmatprep.subr.bf16.mxu0 0
      %4160 = vmatpush1.bf16.msra.mxu0 %v3679
      %4161 = vmatprep.subr.bf16.mxu0 0
      %4162 = vmatpush1.bf16.msra.mxu0 %v3680
      %4163 = vmatprep.subr.bf16.mxu0 0
      %4164 = vmatpush1.bf16.msra.mxu0 %v3681
      %4165 = vmatprep.subr.bf16.mxu0 0
      %4166 = vmatpush1.bf16.msra.mxu0 %v3682
      %4167 = vmatprep.subr.bf16.mxu0 0
      %4168 = vmatpush1.bf16.msra.mxu0 %v3683
      %4169 = vmatprep.subr.bf16.mxu0 0
      %4170 = vmatpush1.bf16.msra.mxu0 %v3684
      %4171 = vmatprep.subr.bf16.mxu0 0
      %4172 = vmatpush1.bf16.msra.mxu0 %v3685
      %4173 = vmatprep.subr.bf16.mxu0 0
      %4174 = vmatpush1.bf16.msra.mxu0 %v3686
      %4175 = vmatprep.mubr.bf16.mxu0 %v4128
      %4176 = vmatmul.mubr.bf16.gmra.mrb[0].mxu0 %v4127
      %v4177 = vpop.f32.mrb[0].mxu0
      %v4178 = vadd.f32 0.0, %v4177
      %v4179 = vpop.f32.mrb[0].mxu0
      %v4180 = vpop.f32.mrb[0].mxu0
      %v4181 = vadd.f32 0.0, %v4180
      %v4182 = vpop.f32.mrb[0].mxu0
      %4183 = vmatprep.mubr.bf16.mxu0 %v4130
      %4184 = vmatmul.mubr.bf16.gmra.mrb[0].mxu0 %v4129
      %v4185 = vpop.f32.mrb[0].mxu0
      %v4186 = vadd.f32 0.0, %v4185
      %v4187 = vpop.f32.mrb[0].mxu0
      %v4188 = vpop.f32.mrb[0].mxu0
      %v4189 = vadd.f32 0.0, %v4188
      %v4190 = vpop.f32.mrb[0].mxu0
      %4191 = vmatprep.mubr.bf16.mxu0 %v4132
      %4192 = vmatmul.mubr.bf16.gmra.mrb[0].mxu0 %v4131
      %v4193 = vpop.f32.mrb[0].mxu0
      %v4194 = vadd.f32 0.0, %v4193
      %v4195 = vpop.f32.mrb[0].mxu0
      %v4196 = vpop.f32.mrb[0].mxu0
      %v4197 = vadd.f32 0.0, %v4196
      %v4198 = vpop.f32.mrb[0].mxu0
      %4199 = vmatprep.mubr.bf16.mxu0 %v4134
      %4200 = vmatmul.mubr.bf16.gmra.mrb[0].mxu0 %v4133
      %v4201 = vpop.f32.mrb[0].mxu0
      %v4202 = vadd.f32 0.0, %v4201
      %v4203 = vpop.f32.mrb[0].mxu0
      %v4204 = vpop.f32.mrb[0].mxu0
      %v4205 = vadd.f32 0.0, %v4204
      %v4206 = vpop.f32.mrb[0].mxu0
      %4207 = vdwg.mxu0
      %v4208 = vpack.c.bf16 %v4181, %v4178
      %v4209 = vpack.c.bf16 %v4189, %v4186
      %v4210 = vpack.c.bf16 %v4197, %v4194
      %v4211 = vpack.c.bf16 %v4205, %v4202
      %s4212 = scalar_lea.vmem %s7, 16
      %v4213 = vld [vmem:[%s4212] sm:$0xf]
      %v4214 = vld [vmem:[%s4212 + $0x4] sm:$0xf]
      %v4217 = vunpack.c.l.b16 %v4213
      %v4218 = vunpack.c.l.b16 %v4214
      %v4219 = vpack.c.b16 %v4218, %v4217
      %v4222 = vsel %vm3933, %v4208, 0
      %v4225 = vsel %vm3933, %v4209, 0
      %v4228 = vsel %vm3933, %v4210, 0
      %v4231 = vsel %vm3933, %v4211, 0
      %4233 = vmatprep.subr.bf16.mxu0 0
      %4234 = vmatpush1.bf16.msra.mxu0 %v4219
      %4235 = vmatprep.subr.bf16.mxu0 0
      %4236 = vmatpush1.bf16.msra.mxu0 0
      %4237 = vmatprep.subr.bf16.mxu0 0
      %4238 = vmatpush1.bf16.msra.mxu0 0
      %4239 = vmatprep.subr.bf16.mxu0 0
      %4240 = vmatpush1.bf16.msra.mxu0 0
      %4241 = vmatprep.subr.bf16.mxu0 0
      %4242 = vmatpush1.bf16.msra.mxu0 0
      %4243 = vmatprep.subr.bf16.mxu0 0
      %4244 = vmatpush1.bf16.msra.mxu0 0
      %4245 = vmatprep.subr.bf16.mxu0 0
      %4246 = vmatpush1.bf16.msra.mxu0 0
      %4247 = vmatprep.subr.bf16.mxu0 0
      %4248 = vmatpush1.bf16.msra.mxu0 0
      %4249 = vmatprep.subr.bf16.mxu0 0
      %4250 = vmatpush1.bf16.msra.mxu0 0
      %4251 = vmatprep.subr.bf16.mxu0 0
      %4252 = vmatpush1.bf16.msra.mxu0 0
      %4253 = vmatprep.subr.bf16.mxu0 0
      %4254 = vmatpush1.bf16.msra.mxu0 0
      %4255 = vmatprep.subr.bf16.mxu0 0
      %4256 = vmatpush1.bf16.msra.mxu0 0
      %4257 = vmatprep.subr.bf16.mxu0 0
      %4258 = vmatpush1.bf16.msra.mxu0 0
      %4259 = vmatprep.subr.bf16.mxu0 0
      %4260 = vmatpush1.bf16.msra.mxu0 0
      %4261 = vmatprep.subr.bf16.mxu0 0
      %4262 = vmatpush1.bf16.msra.mxu0 0
      %4263 = vmatprep.subr.bf16.mxu0 0
      %4264 = vmatpush1.bf16.msra.mxu0 0
      %4265 = vmatprep.mubr.bf16.mxu0 0
      %4266 = vmatmul.mubr.bf16.gmra.mrb[0].mxu0 %v4222
      %v4267 = vpop.f32.mrb[0].mxu0
      %v4268 = vadd.f32 0.0, %v4267
      %v4269 = vpop.f32.mrb[0].mxu0
      %v4270 = vpop.f32.mrb[0].mxu0
      %v4271 = vadd.f32 0.0, %v4270
      %v4272 = vpop.f32.mrb[0].mxu0
      %4273 = vmatprep.mubr.bf16.mxu0 0
      %4274 = vmatmul.mubr.bf16.gmra.mrb[0].mxu0 %v4225
      %v4275 = vpop.f32.mrb[0].mxu0
      %v4276 = vadd.f32 0.0, %v4275
      %v4277 = vpop.f32.mrb[0].mxu0
      %v4278 = vpop.f32.mrb[0].mxu0
      %v4279 = vadd.f32 0.0, %v4278
      %v4280 = vpop.f32.mrb[0].mxu0
      %4281 = vmatprep.mubr.bf16.mxu0 0
      %4282 = vmatmul.mubr.bf16.gmra.mrb[0].mxu0 %v4228
      %v4283 = vpop.f32.mrb[0].mxu0
      %v4284 = vadd.f32 0.0, %v4283
      %v4285 = vpop.f32.mrb[0].mxu0
      %v4286 = vpop.f32.mrb[0].mxu0
      %v4287 = vadd.f32 0.0, %v4286
      %v4288 = vpop.f32.mrb[0].mxu0
      %4289 = vmatprep.mubr.bf16.mxu0 0
      %4290 = vmatmul.mubr.bf16.gmra.mrb[0].mxu0 %v4231
      %v4291 = vpop.f32.mrb[0].mxu0
      %v4292 = vadd.f32 0.0, %v4291
      %v4293 = vpop.f32.mrb[0].mxu0
      %v4294 = vpop.f32.mrb[0].mxu0
      %v4295 = vadd.f32 0.0, %v4294
      %v4296 = vpop.f32.mrb[0].mxu0
      %4297 = vdwg.mxu0
      %v4298 = vadd.f32 %v4064, %v4268
      %v4299 = vadd.f32 %v4067, %v4271
      %v4300 = vadd.f32 %v4072, %v4276
      %v4301 = vadd.f32 %v4075, %v4279
      %v4302 = vadd.f32 %v4080, %v4284
      %v4303 = vadd.f32 %v4083, %v4287
      %v4304 = vadd.f32 %v4088, %v4292
      %v4305 = vadd.f32 %v4091, %v4295
      %s4306 = scalar_lea.vmem %s6, 192
      %v4307 = vld [vmem:[%s4306] sm:$0xff]
      %v4308 = vld [vmem:[%s4306 + $0x8] sm:$0xff]
      %v4309 = vld [vmem:[%s4306 + $0x10] sm:$0xff]
      %v4310 = vld [vmem:[%s4306 + $0x18] sm:$0xff]
      %v4311 = vld [vmem:[%s4306 + $0x20] sm:$0xff]
      %v4312 = vld [vmem:[%s4306 + $0x28] sm:$0xff]
      %v4313 = vld [vmem:[%s4306 + $0x30] sm:$0xff]
      %v4314 = vld [vmem:[%s4306 + $0x38] sm:$0xff]
      %v4323 = vunpack.c.l.b16 %v4307
      %v4324 = vunpack.c.h.b16 %v4307
      %v4325 = vunpack.c.l.b16 %v4308
      %v4326 = vunpack.c.h.b16 %v4308
      %v4327 = vunpack.c.l.b16 %v4309
      %v4328 = vunpack.c.h.b16 %v4309
      %v4329 = vunpack.c.l.b16 %v4310
      %v4330 = vunpack.c.h.b16 %v4310
      %v4331 = vunpack.c.l.b16 %v4311
      %v4332 = vunpack.c.h.b16 %v4311
      %v4333 = vunpack.c.l.b16 %v4312
      %v4334 = vunpack.c.h.b16 %v4312
      %v4335 = vunpack.c.l.b16 %v4313
      %v4336 = vunpack.c.h.b16 %v4313
      %v4337 = vunpack.c.l.b16 %v4314
      %v4338 = vunpack.c.h.b16 %v4314
      %v4339 = vpack.c.b16 %v4325, %v4323
      %v4340 = vpack.c.b16 %v4326, %v4324
      %v4341 = vpack.c.b16 %v4329, %v4327
      %v4342 = vpack.c.b16 %v4330, %v4328
      %v4343 = vpack.c.b16 %v4333, %v4331
      %v4344 = vpack.c.b16 %v4334, %v4332
      %v4345 = vpack.c.b16 %v4337, %v4335
      %v4346 = vpack.c.b16 %v4338, %v4336
      %4355 = vmatprep.subr.bf16.mxu0 0
      %4356 = vmatpush1.bf16.msra.mxu0 %v3671
      %4357 = vmatprep.subr.bf16.mxu0 0
      %4358 = vmatpush1.bf16.msra.mxu0 %v3672
      %4359 = vmatprep.subr.bf16.mxu0 0
      %4360 = vmatpush1.bf16.msra.mxu0 %v3673
      %4361 = vmatprep.subr.bf16.mxu0 0
      %4362 = vmatpush1.bf16.msra.mxu0 %v3674
      %4363 = vmatprep.subr.bf16.mxu0 0
      %4364 = vmatpush1.bf16.msra.mxu0 %v3675
      %4365 = vmatprep.subr.bf16.mxu0 0
      %4366 = vmatpush1.bf16.msra.mxu0 %v3676
      %4367 = vmatprep.subr.bf16.mxu0 0
      %4368 = vmatpush1.bf16.msra.mxu0 %v3677
      %4369 = vmatprep.subr.bf16.mxu0 0
      %4370 = vmatpush1.bf16.msra.mxu0 %v3678
      %4371 = vmatprep.subr.bf16.mxu0 0
      %4372 = vmatpush1.bf16.msra.mxu0 %v3679
      %4373 = vmatprep.subr.bf16.mxu0 0
      %4374 = vmatpush1.bf16.msra.mxu0 %v3680
      %4375 = vmatprep.subr.bf16.mxu0 0
      %4376 = vmatpush1.bf16.msra.mxu0 %v3681
      %4377 = vmatprep.subr.bf16.mxu0 0
      %4378 = vmatpush1.bf16.msra.mxu0 %v3682
      %4379 = vmatprep.subr.bf16.mxu0 0
      %4380 = vmatpush1.bf16.msra.mxu0 %v3683
      %4381 = vmatprep.subr.bf16.mxu0 0
      %4382 = vmatpush1.bf16.msra.mxu0 %v3684
      %4383 = vmatprep.subr.bf16.mxu0 0
      %4384 = vmatpush1.bf16.msra.mxu0 %v3685
      %4385 = vmatprep.subr.bf16.mxu0 0
      %4386 = vmatpush1.bf16.msra.mxu0 %v3686
      %4387 = vmatprep.mubr.bf16.mxu0 %v4340
      %4388 = vmatmul.mubr.bf16.gmra.mrb[0].mxu0 %v4339
      %v4389 = vpop.f32.mrb[0].mxu0
      %v4390 = vadd.f32 0.0, %v4389
      %v4391 = vpop.f32.mrb[0].mxu0
      %v4392 = vpop.f32.mrb[0].mxu0
      %v4393 = vadd.f32 0.0, %v4392
      %v4394 = vpop.f32.mrb[0].mxu0
      %4395 = vmatprep.mubr.bf16.mxu0 %v4342
      %4396 = vmatmul.mubr.bf16.gmra.mrb[0].mxu0 %v4341
      %v4397 = vpop.f32.mrb[0].mxu0
      %v4398 = vadd.f32 0.0, %v4397
      %v4399 = vpop.f32.mrb[0].mxu0
      %v4400 = vpop.f32.mrb[0].mxu0
      %v4401 = vadd.f32 0.0, %v4400
      %v4402 = vpop.f32.mrb[0].mxu0
      %4403 = vmatprep.mubr.bf16.mxu0 %v4344
      %4404 = vmatmul.mubr.bf16.gmra.mrb[0].mxu0 %v4343
      %v4405 = vpop.f32.mrb[0].mxu0
      %v4406 = vadd.f32 0.0, %v4405
      %v4407 = vpop.f32.mrb[0].mxu0
      %v4408 = vpop.f32.mrb[0].mxu0
      %v4409 = vadd.f32 0.0, %v4408
      %v4410 = vpop.f32.mrb[0].mxu0
      %4411 = vmatprep.mubr.bf16.mxu0 %v4346
      %4412 = vmatmul.mubr.bf16.gmra.mrb[0].mxu0 %v4345
      %v4413 = vpop.f32.mrb[0].mxu0
      %v4414 = vadd.f32 0.0, %v4413
      %v4415 = vpop.f32.mrb[0].mxu0
      %v4416 = vpop.f32.mrb[0].mxu0
      %v4417 = vadd.f32 0.0, %v4416
      %v4418 = vpop.f32.mrb[0].mxu0
      %4419 = vdwg.mxu0
      %v4420 = vpack.c.bf16 %v4393, %v4390
      %v4421 = vpack.c.bf16 %v4401, %v4398
      %v4422 = vpack.c.bf16 %v4409, %v4406
      %v4423 = vpack.c.bf16 %v4417, %v4414
      %s4424 = scalar_lea.vmem %s7, 24
      %v4425 = vld [vmem:[%s4424] sm:$0xf]
      %v4426 = vld [vmem:[%s4424 + $0x4] sm:$0xf]
      %v4429 = vunpack.c.l.b16 %v4425
      %v4430 = vunpack.c.l.b16 %v4426
      %v4431 = vpack.c.b16 %v4430, %v4429
      %v4434 = vsel %vm3933, %v4420, 0
      %v4437 = vsel %vm3933, %v4421, 0
      %v4440 = vsel %vm3933, %v4422, 0
      %v4443 = vsel %vm3933, %v4423, 0
      %4445 = vmatprep.subr.bf16.mxu0 0
      %4446 = vmatpush1.bf16.msra.mxu0 %v4431
      %4447 = vmatprep.subr.bf16.mxu0 0
      %4448 = vmatpush1.bf16.msra.mxu0 0
      %4449 = vmatprep.subr.bf16.mxu0 0
      %4450 = vmatpush1.bf16.msra.mxu0 0
      %4451 = vmatprep.subr.bf16.mxu0 0
      %4452 = vmatpush1.bf16.msra.mxu0 0
      %4453 = vmatprep.subr.bf16.mxu0 0
      %4454 = vmatpush1.bf16.msra.mxu0 0
      %4455 = vmatprep.subr.bf16.mxu0 0
      %4456 = vmatpush1.bf16.msra.mxu0 0
      %4457 = vmatprep.subr.bf16.mxu0 0
      %4458 = vmatpush1.bf16.msra.mxu0 0
      %4459 = vmatprep.subr.bf16.mxu0 0
      %4460 = vmatpush1.bf16.msra.mxu0 0
      %4461 = vmatprep.subr.bf16.mxu0 0
      %4462 = vmatpush1.bf16.msra.mxu0 0
      %4463 = vmatprep.subr.bf16.mxu0 0
      %4464 = vmatpush1.bf16.msra.mxu0 0
      %4465 = vmatprep.subr.bf16.mxu0 0
      %4466 = vmatpush1.bf16.msra.mxu0 0
      %4467 = vmatprep.subr.bf16.mxu0 0
      %4468 = vmatpush1.bf16.msra.mxu0 0
      %4469 = vmatprep.subr.bf16.mxu0 0
      %4470 = vmatpush1.bf16.msra.mxu0 0
      %4471 = vmatprep.subr.bf16.mxu0 0
      %4472 = vmatpush1.bf16.msra.mxu0 0
      %4473 = vmatprep.subr.bf16.mxu0 0
      %4474 = vmatpush1.bf16.msra.mxu0 0
      %4475 = vmatprep.subr.bf16.mxu0 0
      %4476 = vmatpush1.bf16.msra.mxu0 0
      %4477 = vmatprep.mubr.bf16.mxu0 0
      %4478 = vmatmul.mubr.bf16.gmra.mrb[0].mxu0 %v4434
      %v4479 = vpop.f32.mrb[0].mxu0
      %v4480 = vadd.f32 0.0, %v4479
      %v4481 = vpop.f32.mrb[0].mxu0
      %v4482 = vpop.f32.mrb[0].mxu0
      %v4483 = vadd.f32 0.0, %v4482
      %v4484 = vpop.f32.mrb[0].mxu0
      %4485 = vmatprep.mubr.bf16.mxu0 0
      %4486 = vmatmul.mubr.bf16.gmra.mrb[0].mxu0 %v4437
      %v4487 = vpop.f32.mrb[0].mxu0
      %v4488 = vadd.f32 0.0, %v4487
      %v4489 = vpop.f32.mrb[0].mxu0
      %v4490 = vpop.f32.mrb[0].mxu0
      %v4491 = vadd.f32 0.0, %v4490
      %v4492 = vpop.f32.mrb[0].mxu0
      %4493 = vmatprep.mubr.bf16.mxu0 0
      %4494 = vmatmul.mubr.bf16.gmra.mrb[0].mxu0 %v4440
      %v4495 = vpop.f32.mrb[0].mxu0
      %v4496 = vadd.f32 0.0, %v4495
      %v4497 = vpop.f32.mrb[0].mxu0
      %v4498 = vpop.f32.mrb[0].mxu0
      %v4499 = vadd.f32 0.0, %v4498
      %v4500 = vpop.f32.mrb[0].mxu0
      %4501 = vmatprep.mubr.bf16.mxu0 0
      %4502 = vmatmul.mubr.bf16.gmra.mrb[0].mxu0 %v4443
      %v4503 = vpop.f32.mrb[0].mxu0
      %v4504 = vadd.f32 0.0, %v4503
      %v4505 = vpop.f32.mrb[0].mxu0
      %v4506 = vpop.f32.mrb[0].mxu0
      %v4507 = vadd.f32 0.0, %v4506
      %v4508 = vpop.f32.mrb[0].mxu0
      %4509 = vdwg.mxu0
      %v4510 = vadd.f32 %v4298, %v4480
      %v4511 = vadd.f32 %v4299, %v4483
      %v4512 = vadd.f32 %v4300, %v4488
      %v4513 = vadd.f32 %v4301, %v4491
      %v4514 = vadd.f32 %v4302, %v4496
      %v4515 = vadd.f32 %v4303, %v4499
      %v4516 = vadd.f32 %v4304, %v4504
      %v4517 = vadd.f32 %v4305, %v4507
      %s4518 = scalar_lea.vmem %s6, 256
      %v4519 = vld [vmem:[%s4518] sm:$0xff]
      %v4520 = vld [vmem:[%s4518 + $0x8] sm:$0xff]
      %v4521 = vld [vmem:[%s4518 + $0x10] sm:$0xff]
      %v4522 = vld [vmem:[%s4518 + $0x18] sm:$0xff]
      %v4523 = vld [vmem:[%s4518 + $0x20] sm:$0xff]
      %v4524 = vld [vmem:[%s4518 + $0x28] sm:$0xff]
      %v4525 = vld [vmem:[%s4518 + $0x30] sm:$0xff]
      %v4526 = vld [vmem:[%s4518 + $0x38] sm:$0xff]
      %v4535 = vunpack.c.l.b16 %v4519
      %v4536 = vunpack.c.h.b16 %v4519
      %v4537 = vunpack.c.l.b16 %v4520
      %v4538 = vunpack.c.h.b16 %v4520
      %v4539 = vunpack.c.l.b16 %v4521
      %v4540 = vunpack.c.h.b16 %v4521
      %v4541 = vunpack.c.l.b16 %v4522
      %v4542 = vunpack.c.h.b16 %v4522
      %v4543 = vunpack.c.l.b16 %v4523
      %v4544 = vunpack.c.h.b16 %v4523
      %v4545 = vunpack.c.l.b16 %v4524
      %v4546 = vunpack.c.h.b16 %v4524
      %v4547 = vunpack.c.l.b16 %v4525
      %v4548 = vunpack.c.h.b16 %v4525
      %v4549 = vunpack.c.l.b16 %v4526
      %v4550 = vunpack.c.h.b16 %v4526
      %v4551 = vpack.c.b16 %v4537, %v4535
      %v4552 = vpack.c.b16 %v4538, %v4536
      %v4553 = vpack.c.b16 %v4541, %v4539
      %v4554 = vpack.c.b16 %v4542, %v4540
      %v4555 = vpack.c.b16 %v4545, %v4543
      %v4556 = vpack.c.b16 %v4546, %v4544
      %v4557 = vpack.c.b16 %v4549, %v4547
      %v4558 = vpack.c.b16 %v4550, %v4548
      %4567 = vmatprep.subr.bf16.mxu0 0
      %4568 = vmatpush1.bf16.msra.mxu0 %v3671
      %4569 = vmatprep.subr.bf16.mxu0 0
      %4570 = vmatpush1.bf16.msra.mxu0 %v3672
      %4571 = vmatprep.subr.bf16.mxu0 0
      %4572 = vmatpush1.bf16.msra.mxu0 %v3673
      %4573 = vmatprep.subr.bf16.mxu0 0
      %4574 = vmatpush1.bf16.msra.mxu0 %v3674
      %4575 = vmatprep.subr.bf16.mxu0 0
      %4576 = vmatpush1.bf16.msra.mxu0 %v3675
      %4577 = vmatprep.subr.bf16.mxu0 0
      %4578 = vmatpush1.bf16.msra.mxu0 %v3676
      %4579 = vmatprep.subr.bf16.mxu0 0
      %4580 = vmatpush1.bf16.msra.mxu0 %v3677
      %4581 = vmatprep.subr.bf16.mxu0 0
      %4582 = vmatpush1.bf16.msra.mxu0 %v3678
      %4583 = vmatprep.subr.bf16.mxu0 0
      %4584 = vmatpush1.bf16.msra.mxu0 %v3679
      %4585 = vmatprep.subr.bf16.mxu0 0
      %4586 = vmatpush1.bf16.msra.mxu0 %v3680
      %4587 = vmatprep.subr.bf16.mxu0 0
      %4588 = vmatpush1.bf16.msra.mxu0 %v3681
      %4589 = vmatprep.subr.bf16.mxu0 0
      %4590 = vmatpush1.bf16.msra.mxu0 %v3682
      %4591 = vmatprep.subr.bf16.mxu0 0
      %4592 = vmatpush1.bf16.msra.mxu0 %v3683
      %4593 = vmatprep.subr.bf16.mxu0 0
      %4594 = vmatpush1.bf16.msra.mxu0 %v3684
      %4595 = vmatprep.subr.bf16.mxu0 0
      %4596 = vmatpush1.bf16.msra.mxu0 %v3685
      %4597 = vmatprep.subr.bf16.mxu0 0
      %4598 = vmatpush1.bf16.msra.mxu0 %v3686
      %4599 = vmatprep.mubr.bf16.mxu0 %v4552
      %4600 = vmatmul.mubr.bf16.gmra.mrb[0].mxu0 %v4551
      %v4601 = vpop.f32.mrb[0].mxu0
      %v4602 = vadd.f32 0.0, %v4601
      %v4603 = vpop.f32.mrb[0].mxu0
      %v4604 = vpop.f32.mrb[0].mxu0
      %v4605 = vadd.f32 0.0, %v4604
      %v4606 = vpop.f32.mrb[0].mxu0
      %4607 = vmatprep.mubr.bf16.mxu0 %v4554
      %4608 = vmatmul.mubr.bf16.gmra.mrb[0].mxu0 %v4553
      %v4609 = vpop.f32.mrb[0].mxu0
      %v4610 = vadd.f32 0.0, %v4609
      %v4611 = vpop.f32.mrb[0].mxu0
      %v4612 = vpop.f32.mrb[0].mxu0
      %v4613 = vadd.f32 0.0, %v4612
      %v4614 = vpop.f32.mrb[0].mxu0
      %4615 = vmatprep.mubr.bf16.mxu0 %v4556
      %4616 = vmatmul.mubr.bf16.gmra.mrb[0].mxu0 %v4555
      %v4617 = vpop.f32.mrb[0].mxu0
      %v4618 = vadd.f32 0.0, %v4617
      %v4619 = vpop.f32.mrb[0].mxu0
      %v4620 = vpop.f32.mrb[0].mxu0
      %v4621 = vadd.f32 0.0, %v4620
      %v4622 = vpop.f32.mrb[0].mxu0
      %4623 = vmatprep.mubr.bf16.mxu0 %v4558
      %4624 = vmatmul.mubr.bf16.gmra.mrb[0].mxu0 %v4557
      %v4625 = vpop.f32.mrb[0].mxu0
      %v4626 = vadd.f32 0.0, %v4625
      %v4627 = vpop.f32.mrb[0].mxu0
      %v4628 = vpop.f32.mrb[0].mxu0
      %v4629 = vadd.f32 0.0, %v4628
      %v4630 = vpop.f32.mrb[0].mxu0
      %4631 = vdwg.mxu0
      %v4632 = vpack.c.bf16 %v4605, %v4602
      %v4633 = vpack.c.bf16 %v4613, %v4610
      %v4634 = vpack.c.bf16 %v4621, %v4618
      %v4635 = vpack.c.bf16 %v4629, %v4626
      %s4636 = scalar_lea.vmem %s7, 32
      %v4637 = vld [vmem:[%s4636] sm:$0xf]
      %v4638 = vld [vmem:[%s4636 + $0x4] sm:$0xf]
      %v4641 = vunpack.c.l.b16 %v4637
      %v4642 = vunpack.c.l.b16 %v4638
      %v4643 = vpack.c.b16 %v4642, %v4641
      %v4646 = vsel %vm3933, %v4632, 0
      %v4649 = vsel %vm3933, %v4633, 0
      %v4652 = vsel %vm3933, %v4634, 0
      %v4655 = vsel %vm3933, %v4635, 0
      %4657 = vmatprep.subr.bf16.mxu0 0
      %4658 = vmatpush1.bf16.msra.mxu0 %v4643
      %4659 = vmatprep.subr.bf16.mxu0 0
      %4660 = vmatpush1.bf16.msra.mxu0 0
      %4661 = vmatprep.subr.bf16.mxu0 0
      %4662 = vmatpush1.bf16.msra.mxu0 0
      %4663 = vmatprep.subr.bf16.mxu0 0
      %4664 = vmatpush1.bf16.msra.mxu0 0
      %4665 = vmatprep.subr.bf16.mxu0 0
      %4666 = vmatpush1.bf16.msra.mxu0 0
      %4667 = vmatprep.subr.bf16.mxu0 0
      %4668 = vmatpush1.bf16.msra.mxu0 0
      %4669 = vmatprep.subr.bf16.mxu0 0
      %4670 = vmatpush1.bf16.msra.mxu0 0
      %4671 = vmatprep.subr.bf16.mxu0 0
      %4672 = vmatpush1.bf16.msra.mxu0 0
      %4673 = vmatprep.subr.bf16.mxu0 0
      %4674 = vmatpush1.bf16.msra.mxu0 0
      %4675 = vmatprep.subr.bf16.mxu0 0
      %4676 = vmatpush1.bf16.msra.mxu0 0
      %4677 = vmatprep.subr.bf16.mxu0 0
      %4678 = vmatpush1.bf16.msra.mxu0 0
      %4679 = vmatprep.subr.bf16.mxu0 0
      %4680 = vmatpush1.bf16.msra.mxu0 0
      %4681 = vmatprep.subr.bf16.mxu0 0
      %4682 = vmatpush1.bf16.msra.mxu0 0
      %4683 = vmatprep.subr.bf16.mxu0 0
      %4684 = vmatpush1.bf16.msra.mxu0 0
      %4685 = vmatprep.subr.bf16.mxu0 0
      %4686 = vmatpush1.bf16.msra.mxu0 0
      %4687 = vmatprep.subr.bf16.mxu0 0
      %4688 = vmatpush1.bf16.msra.mxu0 0
      %4689 = vmatprep.mubr.bf16.mxu0 0
      %4690 = vmatmul.mubr.bf16.gmra.mrb[0].mxu0 %v4646
      %v4691 = vpop.f32.mrb[0].mxu0
      %v4692 = vadd.f32 0.0, %v4691
      %v4693 = vpop.f32.mrb[0].mxu0
      %v4694 = vpop.f32.mrb[0].mxu0
      %v4695 = vadd.f32 0.0, %v4694
      %v4696 = vpop.f32.mrb[0].mxu0
      %4697 = vmatprep.mubr.bf16.mxu0 0
      %4698 = vmatmul.mubr.bf16.gmra.mrb[0].mxu0 %v4649
      %v4699 = vpop.f32.mrb[0].mxu0
      %v4700 = vadd.f32 0.0, %v4699
      %v4701 = vpop.f32.mrb[0].mxu0
      %v4702 = vpop.f32.mrb[0].mxu0
      %v4703 = vadd.f32 0.0, %v4702
      %v4704 = vpop.f32.mrb[0].mxu0
      %4705 = vmatprep.mubr.bf16.mxu0 0
      %4706 = vmatmul.mubr.bf16.gmra.mrb[0].mxu0 %v4652
      %v4707 = vpop.f32.mrb[0].mxu0
      %v4708 = vadd.f32 0.0, %v4707
      %v4709 = vpop.f32.mrb[0].mxu0
      %v4710 = vpop.f32.mrb[0].mxu0
      %v4711 = vadd.f32 0.0, %v4710
      %v4712 = vpop.f32.mrb[0].mxu0
      %4713 = vmatprep.mubr.bf16.mxu0 0
      %4714 = vmatmul.mubr.bf16.gmra.mrb[0].mxu0 %v4655
      %v4715 = vpop.f32.mrb[0].mxu0
      %v4716 = vadd.f32 0.0, %v4715
      %v4717 = vpop.f32.mrb[0].mxu0
      %v4718 = vpop.f32.mrb[0].mxu0
      %v4719 = vadd.f32 0.0, %v4718
      %v4720 = vpop.f32.mrb[0].mxu0
      %4721 = vdwg.mxu0
      %v4722 = vadd.f32 %v4510, %v4692
      %v4723 = vadd.f32 %v4511, %v4695
      %v4724 = vadd.f32 %v4512, %v4700
      %v4725 = vadd.f32 %v4513, %v4703
      %v4726 = vadd.f32 %v4514, %v4708
      %v4727 = vadd.f32 %v4515, %v4711
      %v4728 = vadd.f32 %v4516, %v4716
      %v4729 = vadd.f32 %v4517, %v4719
      %s4730 = scalar_lea.vmem %s6, 320
      %v4731 = vld [vmem:[%s4730] sm:$0xff]
      %v4732 = vld [vmem:[%s4730 + $0x8] sm:$0xff]
      %v4733 = vld [vmem:[%s4730 + $0x10] sm:$0xff]
      %v4734 = vld [vmem:[%s4730 + $0x18] sm:$0xff]
      %v4735 = vld [vmem:[%s4730 + $0x20] sm:$0xff]
      %v4736 = vld [vmem:[%s4730 + $0x28] sm:$0xff]
      %v4737 = vld [vmem:[%s4730 + $0x30] sm:$0xff]
      %v4738 = vld [vmem:[%s4730 + $0x38] sm:$0xff]
      %v4747 = vunpack.c.l.b16 %v4731
      %v4748 = vunpack.c.h.b16 %v4731
      %v4749 = vunpack.c.l.b16 %v4732
      %v4750 = vunpack.c.h.b16 %v4732
      %v4751 = vunpack.c.l.b16 %v4733
      %v4752 = vunpack.c.h.b16 %v4733
      %v4753 = vunpack.c.l.b16 %v4734
      %v4754 = vunpack.c.h.b16 %v4734
      %v4755 = vunpack.c.l.b16 %v4735
      %v4756 = vunpack.c.h.b16 %v4735
      %v4757 = vunpack.c.l.b16 %v4736
      %v4758 = vunpack.c.h.b16 %v4736
      %v4759 = vunpack.c.l.b16 %v4737
      %v4760 = vunpack.c.h.b16 %v4737
      %v4761 = vunpack.c.l.b16 %v4738
      %v4762 = vunpack.c.h.b16 %v4738
      %v4763 = vpack.c.b16 %v4749, %v4747
      %v4764 = vpack.c.b16 %v4750, %v4748
      %v4765 = vpack.c.b16 %v4753, %v4751
      %v4766 = vpack.c.b16 %v4754, %v4752
      %v4767 = vpack.c.b16 %v4757, %v4755
      %v4768 = vpack.c.b16 %v4758, %v4756
      %v4769 = vpack.c.b16 %v4761, %v4759
      %v4770 = vpack.c.b16 %v4762, %v4760
      %4779 = vmatprep.subr.bf16.mxu0 0
      %4780 = vmatpush1.bf16.msra.mxu0 %v3671
      %4781 = vmatprep.subr.bf16.mxu0 0
      %4782 = vmatpush1.bf16.msra.mxu0 %v3672
      %4783 = vmatprep.subr.bf16.mxu0 0
      %4784 = vmatpush1.bf16.msra.mxu0 %v3673
      %4785 = vmatprep.subr.bf16.mxu0 0
      %4786 = vmatpush1.bf16.msra.mxu0 %v3674
      %4787 = vmatprep.subr.bf16.mxu0 0
      %4788 = vmatpush1.bf16.msra.mxu0 %v3675
      %4789 = vmatprep.subr.bf16.mxu0 0
      %4790 = vmatpush1.bf16.msra.mxu0 %v3676
      %4791 = vmatprep.subr.bf16.mxu0 0
      %4792 = vmatpush1.bf16.msra.mxu0 %v3677
      %4793 = vmatprep.subr.bf16.mxu0 0
      %4794 = vmatpush1.bf16.msra.mxu0 %v3678
      %4795 = vmatprep.subr.bf16.mxu0 0
      %4796 = vmatpush1.bf16.msra.mxu0 %v3679
      %4797 = vmatprep.subr.bf16.mxu0 0
      %4798 = vmatpush1.bf16.msra.mxu0 %v3680
      %4799 = vmatprep.subr.bf16.mxu0 0
      %4800 = vmatpush1.bf16.msra.mxu0 %v3681
      %4801 = vmatprep.subr.bf16.mxu0 0
      %4802 = vmatpush1.bf16.msra.mxu0 %v3682
      %4803 = vmatprep.subr.bf16.mxu0 0
      %4804 = vmatpush1.bf16.msra.mxu0 %v3683
      %4805 = vmatprep.subr.bf16.mxu0 0
      %4806 = vmatpush1.bf16.msra.mxu0 %v3684
      %4807 = vmatprep.subr.bf16.mxu0 0
      %4808 = vmatpush1.bf16.msra.mxu0 %v3685
      %4809 = vmatprep.subr.bf16.mxu0 0
      %4810 = vmatpush1.bf16.msra.mxu0 %v3686
      %4811 = vmatprep.mubr.bf16.mxu0 %v4764
      %4812 = vmatmul.mubr.bf16.gmra.mrb[0].mxu0 %v4763
      %v4813 = vpop.f32.mrb[0].mxu0
      %v4814 = vadd.f32 0.0, %v4813
      %v4815 = vpop.f32.mrb[0].mxu0
      %v4816 = vpop.f32.mrb[0].mxu0
      %v4817 = vadd.f32 0.0, %v4816
      %v4818 = vpop.f32.mrb[0].mxu0
      %4819 = vmatprep.mubr.bf16.mxu0 %v4766
      %4820 = vmatmul.mubr.bf16.gmra.mrb[0].mxu0 %v4765
      %v4821 = vpop.f32.mrb[0].mxu0
      %v4822 = vadd.f32 0.0, %v4821
      %v4823 = vpop.f32.mrb[0].mxu0
      %v4824 = vpop.f32.mrb[0].mxu0
      %v4825 = vadd.f32 0.0, %v4824
      %v4826 = vpop.f32.mrb[0].mxu0
      %4827 = vmatprep.mubr.bf16.mxu0 %v4768
      %4828 = vmatmul.mubr.bf16.gmra.mrb[0].mxu0 %v4767
      %v4829 = vpop.f32.mrb[0].mxu0
      %v4830 = vadd.f32 0.0, %v4829
      %v4831 = vpop.f32.mrb[0].mxu0
      %v4832 = vpop.f32.mrb[0].mxu0
      %v4833 = vadd.f32 0.0, %v4832
      %v4834 = vpop.f32.mrb[0].mxu0
      %4835 = vmatprep.mubr.bf16.mxu0 %v4770
      %4836 = vmatmul.mubr.bf16.gmra.mrb[0].mxu0 %v4769
      %v4837 = vpop.f32.mrb[0].mxu0
      %v4838 = vadd.f32 0.0, %v4837
      %v4839 = vpop.f32.mrb[0].mxu0
      %v4840 = vpop.f32.mrb[0].mxu0
      %v4841 = vadd.f32 0.0, %v4840
      %v4842 = vpop.f32.mrb[0].mxu0
      %4843 = vdwg.mxu0
      %v4844 = vpack.c.bf16 %v4817, %v4814
      %v4845 = vpack.c.bf16 %v4825, %v4822
      %v4846 = vpack.c.bf16 %v4833, %v4830
      %v4847 = vpack.c.bf16 %v4841, %v4838
      %s4848 = scalar_lea.vmem %s7, 40
      %v4849 = vld [vmem:[%s4848] sm:$0xf]
      %v4850 = vld [vmem:[%s4848 + $0x4] sm:$0xf]
      %v4853 = vunpack.c.l.b16 %v4849
      %v4854 = vunpack.c.l.b16 %v4850
      %v4855 = vpack.c.b16 %v4854, %v4853
      %v4858 = vsel %vm3933, %v4844, 0
      %v4861 = vsel %vm3933, %v4845, 0
      %v4864 = vsel %vm3933, %v4846, 0
      %v4867 = vsel %vm3933, %v4847, 0
      %4869 = vmatprep.subr.bf16.mxu0 0
      %4870 = vmatpush1.bf16.msra.mxu0 %v4855
      %4871 = vmatprep.subr.bf16.mxu0 0
      %4872 = vmatpush1.bf16.msra.mxu0 0
      %4873 = vmatprep.subr.bf16.mxu0 0
      %4874 = vmatpush1.bf16.msra.mxu0 0
      %4875 = vmatprep.subr.bf16.mxu0 0
      %4876 = vmatpush1.bf16.msra.mxu0 0
      %4877 = vmatprep.subr.bf16.mxu0 0
      %4878 = vmatpush1.bf16.msra.mxu0 0
      %4879 = vmatprep.subr.bf16.mxu0 0
      %4880 = vmatpush1.bf16.msra.mxu0 0
      %4881 = vmatprep.subr.bf16.mxu0 0
      %4882 = vmatpush1.bf16.msra.mxu0 0
      %4883 = vmatprep.subr.bf16.mxu0 0
      %4884 = vmatpush1.bf16.msra.mxu0 0
      %4885 = vmatprep.subr.bf16.mxu0 0
      %4886 = vmatpush1.bf16.msra.mxu0 0
      %4887 = vmatprep.subr.bf16.mxu0 0
      %4888 = vmatpush1.bf16.msra.mxu0 0
      %4889 = vmatprep.subr.bf16.mxu0 0
      %4890 = vmatpush1.bf16.msra.mxu0 0
      %4891 = vmatprep.subr.bf16.mxu0 0
      %4892 = vmatpush1.bf16.msra.mxu0 0
      %4893 = vmatprep.subr.bf16.mxu0 0
      %4894 = vmatpush1.bf16.msra.mxu0 0
      %4895 = vmatprep.subr.bf16.mxu0 0
      %4896 = vmatpush1.bf16.msra.mxu0 0
      %4897 = vmatprep.subr.bf16.mxu0 0
      %4898 = vmatpush1.bf16.msra.mxu0 0
      %4899 = vmatprep.subr.bf16.mxu0 0
      %4900 = vmatpush1.bf16.msra.mxu0 0
      %4901 = vmatprep.mubr.bf16.mxu0 0
      %4902 = vmatmul.mubr.bf16.gmra.mrb[0].mxu0 %v4858
      %v4903 = vpop.f32.mrb[0].mxu0
      %v4904 = vadd.f32 0.0, %v4903
      %v4905 = vpop.f32.mrb[0].mxu0
      %v4906 = vpop.f32.mrb[0].mxu0
      %v4907 = vadd.f32 0.0, %v4906
      %v4908 = vpop.f32.mrb[0].mxu0
      %4909 = vmatprep.mubr.bf16.mxu0 0
      %4910 = vmatmul.mubr.bf16.gmra.mrb[0].mxu0 %v4861
      %v4911 = vpop.f32.mrb[0].mxu0
      %v4912 = vadd.f32 0.0, %v4911
      %v4913 = vpop.f32.mrb[0].mxu0
      %v4914 = vpop.f32.mrb[0].mxu0
      %v4915 = vadd.f32 0.0, %v4914
      %v4916 = vpop.f32.mrb[0].mxu0
      %4917 = vmatprep.mubr.bf16.mxu0 0
      %4918 = vmatmul.mubr.bf16.gmra.mrb[0].mxu0 %v4864
      %v4919 = vpop.f32.mrb[0].mxu0
      %v4920 = vadd.f32 0.0, %v4919
      %v4921 = vpop.f32.mrb[0].mxu0
      %v4922 = vpop.f32.mrb[0].mxu0
      %v4923 = vadd.f32 0.0, %v4922
      %v4924 = vpop.f32.mrb[0].mxu0
      %4925 = vmatprep.mubr.bf16.mxu0 0
      %4926 = vmatmul.mubr.bf16.gmra.mrb[0].mxu0 %v4867
      %v4927 = vpop.f32.mrb[0].mxu0
      %v4928 = vadd.f32 0.0, %v4927
      %v4929 = vpop.f32.mrb[0].mxu0
      %v4930 = vpop.f32.mrb[0].mxu0
      %v4931 = vadd.f32 0.0, %v4930
      %v4932 = vpop.f32.mrb[0].mxu0
      %4933 = vdwg.mxu0
      %v4934 = vadd.f32 %v4722, %v4904
      %v4935 = vadd.f32 %v4723, %v4907
      %v4936 = vadd.f32 %v4724, %v4912
      %v4937 = vadd.f32 %v4725, %v4915
      %v4938 = vadd.f32 %v4726, %v4920
      %v4939 = vadd.f32 %v4727, %v4923
      %v4940 = vadd.f32 %v4728, %v4928
      %v4941 = vadd.f32 %v4729, %v4931
      %s4942 = scalar_lea.vmem %s6, 384
      %v4943 = vld [vmem:[%s4942] sm:$0xff]
      %v4944 = vld [vmem:[%s4942 + $0x8] sm:$0xff]
      %v4945 = vld [vmem:[%s4942 + $0x10] sm:$0xff]
      %v4946 = vld [vmem:[%s4942 + $0x18] sm:$0xff]
      %v4947 = vld [vmem:[%s4942 + $0x20] sm:$0xff]
      %v4948 = vld [vmem:[%s4942 + $0x28] sm:$0xff]
      %v4949 = vld [vmem:[%s4942 + $0x30] sm:$0xff]
      %v4950 = vld [vmem:[%s4942 + $0x38] sm:$0xff]
      %v4959 = vunpack.c.l.b16 %v4943
      %v4960 = vunpack.c.h.b16 %v4943
      %v4961 = vunpack.c.l.b16 %v4944
      %v4962 = vunpack.c.h.b16 %v4944
      %v4963 = vunpack.c.l.b16 %v4945
      %v4964 = vunpack.c.h.b16 %v4945
      %v4965 = vunpack.c.l.b16 %v4946
      %v4966 = vunpack.c.h.b16 %v4946
      %v4967 = vunpack.c.l.b16 %v4947
      %v4968 = vunpack.c.h.b16 %v4947
      %v4969 = vunpack.c.l.b16 %v4948
      %v4970 = vunpack.c.h.b16 %v4948
      %v4971 = vunpack.c.l.b16 %v4949
      %v4972 = vunpack.c.h.b16 %v4949
      %v4973 = vunpack.c.l.b16 %v4950
      %v4974 = vunpack.c.h.b16 %v4950
      %v4975 = vpack.c.b16 %v4961, %v4959
      %v4976 = vpack.c.b16 %v4962, %v4960
      %v4977 = vpack.c.b16 %v4965, %v4963
      %v4978 = vpack.c.b16 %v4966, %v4964
      %v4979 = vpack.c.b16 %v4969, %v4967
      %v4980 = vpack.c.b16 %v4970, %v4968
      %v4981 = vpack.c.b16 %v4973, %v4971
      %v4982 = vpack.c.b16 %v4974, %v4972
      %4991 = vmatprep.subr.bf16.mxu0 0
      %4992 = vmatpush1.bf16.msra.mxu0 %v3671
      %4993 = vmatprep.subr.bf16.mxu0 0
      %4994 = vmatpush1.bf16.msra.mxu0 %v3672
      %4995 = vmatprep.subr.bf16.mxu0 0
      %4996 = vmatpush1.bf16.msra.mxu0 %v3673
      %4997 = vmatprep.subr.bf16.mxu0 0
      %4998 = vmatpush1.bf16.msra.mxu0 %v3674
      %4999 = vmatprep.subr.bf16.mxu0 0
      %5000 = vmatpush1.bf16.msra.mxu0 %v3675
      %5001 = vmatprep.subr.bf16.mxu0 0
      %5002 = vmatpush1.bf16.msra.mxu0 %v3676
      %5003 = vmatprep.subr.bf16.mxu0 0
      %5004 = vmatpush1.bf16.msra.mxu0 %v3677
      %5005 = vmatprep.subr.bf16.mxu0 0
      %5006 = vmatpush1.bf16.msra.mxu0 %v3678
      %5007 = vmatprep.subr.bf16.mxu0 0
      %5008 = vmatpush1.bf16.msra.mxu0 %v3679
      %5009 = vmatprep.subr.bf16.mxu0 0
      %5010 = vmatpush1.bf16.msra.mxu0 %v3680
      %5011 = vmatprep.subr.bf16.mxu0 0
      %5012 = vmatpush1.bf16.msra.mxu0 %v3681
      %5013 = vmatprep.subr.bf16.mxu0 0
      %5014 = vmatpush1.bf16.msra.mxu0 %v3682
      %5015 = vmatprep.subr.bf16.mxu0 0
      %5016 = vmatpush1.bf16.msra.mxu0 %v3683
      %5017 = vmatprep.subr.bf16.mxu0 0
      %5018 = vmatpush1.bf16.msra.mxu0 %v3684
      %5019 = vmatprep.subr.bf16.mxu0 0
      %5020 = vmatpush1.bf16.msra.mxu0 %v3685
      %5021 = vmatprep.subr.bf16.mxu0 0
      %5022 = vmatpush1.bf16.msra.mxu0 %v3686
      %5023 = vmatprep.mubr.bf16.mxu0 %v4976
      %5024 = vmatmul.mubr.bf16.gmra.mrb[0].mxu0 %v4975
      %v5025 = vpop.f32.mrb[0].mxu0
      %v5026 = vadd.f32 0.0, %v5025
      %v5027 = vpop.f32.mrb[0].mxu0
      %v5028 = vpop.f32.mrb[0].mxu0
      %v5029 = vadd.f32 0.0, %v5028
      %v5030 = vpop.f32.mrb[0].mxu0
      %5031 = vmatprep.mubr.bf16.mxu0 %v4978
      %5032 = vmatmul.mubr.bf16.gmra.mrb[0].mxu0 %v4977
      %v5033 = vpop.f32.mrb[0].mxu0
      %v5034 = vadd.f32 0.0, %v5033
      %v5035 = vpop.f32.mrb[0].mxu0
      %v5036 = vpop.f32.mrb[0].mxu0
      %v5037 = vadd.f32 0.0, %v5036
      %v5038 = vpop.f32.mrb[0].mxu0
      %5039 = vmatprep.mubr.bf16.mxu0 %v4980
      %5040 = vmatmul.mubr.bf16.gmra.mrb[0].mxu0 %v4979
      %v5041 = vpop.f32.mrb[0].mxu0
      %v5042 = vadd.f32 0.0, %v5041
      %v5043 = vpop.f32.mrb[0].mxu0
      %v5044 = vpop.f32.mrb[0].mxu0
      %v5045 = vadd.f32 0.0, %v5044
      %v5046 = vpop.f32.mrb[0].mxu0
      %5047 = vmatprep.mubr.bf16.mxu0 %v4982
      %5048 = vmatmul.mubr.bf16.gmra.mrb[0].mxu0 %v4981
      %v5049 = vpop.f32.mrb[0].mxu0
      %v5050 = vadd.f32 0.0, %v5049
      %v5051 = vpop.f32.mrb[0].mxu0
      %v5052 = vpop.f32.mrb[0].mxu0
      %v5053 = vadd.f32 0.0, %v5052
      %v5054 = vpop.f32.mrb[0].mxu0
      %5055 = vdwg.mxu0
      %v5056 = vpack.c.bf16 %v5029, %v5026
      %v5057 = vpack.c.bf16 %v5037, %v5034
      %v5058 = vpack.c.bf16 %v5045, %v5042
      %v5059 = vpack.c.bf16 %v5053, %v5050
      %s5060 = scalar_lea.vmem %s7, 48
      %v5061 = vld [vmem:[%s5060] sm:$0xf]
      %v5062 = vld [vmem:[%s5060 + $0x4] sm:$0xf]
      %v5065 = vunpack.c.l.b16 %v5061
      %v5066 = vunpack.c.l.b16 %v5062
      %v5067 = vpack.c.b16 %v5066, %v5065
      %v5070 = vsel %vm3933, %v5056, 0
      %v5073 = vsel %vm3933, %v5057, 0
      %v5076 = vsel %vm3933, %v5058, 0
      %v5079 = vsel %vm3933, %v5059, 0
      %5081 = vmatprep.subr.bf16.mxu0 0
      %5082 = vmatpush1.bf16.msra.mxu0 %v5067
      %5083 = vmatprep.subr.bf16.mxu0 0
      %5084 = vmatpush1.bf16.msra.mxu0 0
      %5085 = vmatprep.subr.bf16.mxu0 0
      %5086 = vmatpush1.bf16.msra.mxu0 0
      %5087 = vmatprep.subr.bf16.mxu0 0
      %5088 = vmatpush1.bf16.msra.mxu0 0
      %5089 = vmatprep.subr.bf16.mxu0 0
      %5090 = vmatpush1.bf16.msra.mxu0 0
      %5091 = vmatprep.subr.bf16.mxu0 0
      %5092 = vmatpush1.bf16.msra.mxu0 0
      %5093 = vmatprep.subr.bf16.mxu0 0
      %5094 = vmatpush1.bf16.msra.mxu0 0
      %5095 = vmatprep.subr.bf16.mxu0 0
      %5096 = vmatpush1.bf16.msra.mxu0 0
      %5097 = vmatprep.subr.bf16.mxu0 0
      %5098 = vmatpush1.bf16.msra.mxu0 0
      %5099 = vmatprep.subr.bf16.mxu0 0
      %5100 = vmatpush1.bf16.msra.mxu0 0
      %5101 = vmatprep.subr.bf16.mxu0 0
      %5102 = vmatpush1.bf16.msra.mxu0 0
      %5103 = vmatprep.subr.bf16.mxu0 0
      %5104 = vmatpush1.bf16.msra.mxu0 0
      %5105 = vmatprep.subr.bf16.mxu0 0
      %5106 = vmatpush1.bf16.msra.mxu0 0
      %5107 = vmatprep.subr.bf16.mxu0 0
      %5108 = vmatpush1.bf16.msra.mxu0 0
      %5109 = vmatprep.subr.bf16.mxu0 0
      %5110 = vmatpush1.bf16.msra.mxu0 0
      %5111 = vmatprep.subr.bf16.mxu0 0
      %5112 = vmatpush1.bf16.msra.mxu0 0
      %5113 = vmatprep.mubr.bf16.mxu0 0
      %5114 = vmatmul.mubr.bf16.gmra.mrb[0].mxu0 %v5070
      %v5115 = vpop.f32.mrb[0].mxu0
      %v5116 = vadd.f32 0.0, %v5115
      %v5117 = vpop.f32.mrb[0].mxu0
      %v5118 = vpop.f32.mrb[0].mxu0
      %v5119 = vadd.f32 0.0, %v5118
      %v5120 = vpop.f32.mrb[0].mxu0
      %5121 = vmatprep.mubr.bf16.mxu0 0
      %5122 = vmatmul.mubr.bf16.gmra.mrb[0].mxu0 %v5073
      %v5123 = vpop.f32.mrb[0].mxu0
      %v5124 = vadd.f32 0.0, %v5123
      %v5125 = vpop.f32.mrb[0].mxu0
      %v5126 = vpop.f32.mrb[0].mxu0
      %v5127 = vadd.f32 0.0, %v5126
      %v5128 = vpop.f32.mrb[0].mxu0
      %5129 = vmatprep.mubr.bf16.mxu0 0
      %5130 = vmatmul.mubr.bf16.gmra.mrb[0].mxu0 %v5076
      %v5131 = vpop.f32.mrb[0].mxu0
      %v5132 = vadd.f32 0.0, %v5131
      %v5133 = vpop.f32.mrb[0].mxu0
      %v5134 = vpop.f32.mrb[0].mxu0
      %v5135 = vadd.f32 0.0, %v5134
      %v5136 = vpop.f32.mrb[0].mxu0
      %5137 = vmatprep.mubr.bf16.mxu0 0
      %5138 = vmatmul.mubr.bf16.gmra.mrb[0].mxu0 %v5079
      %v5139 = vpop.f32.mrb[0].mxu0
      %v5140 = vadd.f32 0.0, %v5139
      %v5141 = vpop.f32.mrb[0].mxu0
      %v5142 = vpop.f32.mrb[0].mxu0
      %v5143 = vadd.f32 0.0, %v5142
      %v5144 = vpop.f32.mrb[0].mxu0
      %5145 = vdwg.mxu0
      %v5146 = vadd.f32 %v4934, %v5116
      %v5147 = vadd.f32 %v4935, %v5119
      %v5148 = vadd.f32 %v4936, %v5124
      %v5149 = vadd.f32 %v4937, %v5127
      %v5150 = vadd.f32 %v4938, %v5132
      %v5151 = vadd.f32 %v4939, %v5135
      %v5152 = vadd.f32 %v4940, %v5140
      %v5153 = vadd.f32 %v4941, %v5143
      %s5154 = scalar_lea.vmem %s6, 448
      %v5155 = vld [vmem:[%s5154] sm:$0xff]
      %v5156 = vld [vmem:[%s5154 + $0x8] sm:$0xff]
      %v5157 = vld [vmem:[%s5154 + $0x10] sm:$0xff]
      %v5158 = vld [vmem:[%s5154 + $0x18] sm:$0xff]
      %v5159 = vld [vmem:[%s5154 + $0x20] sm:$0xff]
      %v5160 = vld [vmem:[%s5154 + $0x28] sm:$0xff]
      %v5161 = vld [vmem:[%s5154 + $0x30] sm:$0xff]
      %v5162 = vld [vmem:[%s5154 + $0x38] sm:$0xff]
      %v5171 = vunpack.c.l.b16 %v5155
      %v5172 = vunpack.c.h.b16 %v5155
      %v5173 = vunpack.c.l.b16 %v5156
      %v5174 = vunpack.c.h.b16 %v5156
      %v5175 = vunpack.c.l.b16 %v5157
      %v5176 = vunpack.c.h.b16 %v5157
      %v5177 = vunpack.c.l.b16 %v5158
      %v5178 = vunpack.c.h.b16 %v5158
      %v5179 = vunpack.c.l.b16 %v5159
      %v5180 = vunpack.c.h.b16 %v5159
      %v5181 = vunpack.c.l.b16 %v5160
      %v5182 = vunpack.c.h.b16 %v5160
      %v5183 = vunpack.c.l.b16 %v5161
      %v5184 = vunpack.c.h.b16 %v5161
      %v5185 = vunpack.c.l.b16 %v5162
      %v5186 = vunpack.c.h.b16 %v5162
      %v5187 = vpack.c.b16 %v5173, %v5171
      %v5188 = vpack.c.b16 %v5174, %v5172
      %v5189 = vpack.c.b16 %v5177, %v5175
      %v5190 = vpack.c.b16 %v5178, %v5176
      %v5191 = vpack.c.b16 %v5181, %v5179
      %v5192 = vpack.c.b16 %v5182, %v5180
      %v5193 = vpack.c.b16 %v5185, %v5183
      %v5194 = vpack.c.b16 %v5186, %v5184
      %5203 = vmatprep.subr.bf16.mxu0 0
      %5204 = vmatpush1.bf16.msra.mxu0 %v3671
      %5205 = vmatprep.subr.bf16.mxu0 0
      %5206 = vmatpush1.bf16.msra.mxu0 %v3672
      %5207 = vmatprep.subr.bf16.mxu0 0
      %5208 = vmatpush1.bf16.msra.mxu0 %v3673
      %5209 = vmatprep.subr.bf16.mxu0 0
      %5210 = vmatpush1.bf16.msra.mxu0 %v3674
      %5211 = vmatprep.subr.bf16.mxu0 0
      %5212 = vmatpush1.bf16.msra.mxu0 %v3675
      %5213 = vmatprep.subr.bf16.mxu0 0
      %5214 = vmatpush1.bf16.msra.mxu0 %v3676
      %5215 = vmatprep.subr.bf16.mxu0 0
      %5216 = vmatpush1.bf16.msra.mxu0 %v3677
      %5217 = vmatprep.subr.bf16.mxu0 0
      %5218 = vmatpush1.bf16.msra.mxu0 %v3678
      %5219 = vmatprep.subr.bf16.mxu0 0
      %5220 = vmatpush1.bf16.msra.mxu0 %v3679
      %5221 = vmatprep.subr.bf16.mxu0 0
      %5222 = vmatpush1.bf16.msra.mxu0 %v3680
      %5223 = vmatprep.subr.bf16.mxu0 0
      %5224 = vmatpush1.bf16.msra.mxu0 %v3681
      %5225 = vmatprep.subr.bf16.mxu0 0
      %5226 = vmatpush1.bf16.msra.mxu0 %v3682
      %5227 = vmatprep.subr.bf16.mxu0 0
      %5228 = vmatpush1.bf16.msra.mxu0 %v3683
      %5229 = vmatprep.subr.bf16.mxu0 0
      %5230 = vmatpush1.bf16.msra.mxu0 %v3684
      %5231 = vmatprep.subr.bf16.mxu0 0
      %5232 = vmatpush1.bf16.msra.mxu0 %v3685
      %5233 = vmatprep.subr.bf16.mxu0 0
      %5234 = vmatpush1.bf16.msra.mxu0 %v3686
      %5235 = vmatprep.mubr.bf16.mxu0 %v5188
      %5236 = vmatmul.mubr.bf16.gmra.mrb[0].mxu0 %v5187
      %v5237 = vpop.f32.mrb[0].mxu0
      %v5238 = vadd.f32 0.0, %v5237
      %v5239 = vpop.f32.mrb[0].mxu0
      %v5240 = vpop.f32.mrb[0].mxu0
      %v5241 = vadd.f32 0.0, %v5240
      %v5242 = vpop.f32.mrb[0].mxu0
      %5243 = vmatprep.mubr.bf16.mxu0 %v5190
      %5244 = vmatmul.mubr.bf16.gmra.mrb[0].mxu0 %v5189
      %v5245 = vpop.f32.mrb[0].mxu0
      %v5246 = vadd.f32 0.0, %v5245
      %v5247 = vpop.f32.mrb[0].mxu0
      %v5248 = vpop.f32.mrb[0].mxu0
      %v5249 = vadd.f32 0.0, %v5248
      %v5250 = vpop.f32.mrb[0].mxu0
      %5251 = vmatprep.mubr.bf16.mxu0 %v5192
      %5252 = vmatmul.mubr.bf16.gmra.mrb[0].mxu0 %v5191
      %v5253 = vpop.f32.mrb[0].mxu0
      %v5254 = vadd.f32 0.0, %v5253
      %v5255 = vpop.f32.mrb[0].mxu0
      %v5256 = vpop.f32.mrb[0].mxu0
      %v5257 = vadd.f32 0.0, %v5256
      %v5258 = vpop.f32.mrb[0].mxu0
      %5259 = vmatprep.mubr.bf16.mxu0 %v5194
      %5260 = vmatmul.mubr.bf16.gmra.mrb[0].mxu0 %v5193
      %v5261 = vpop.f32.mrb[0].mxu0
      %v5262 = vadd.f32 0.0, %v5261
      %v5263 = vpop.f32.mrb[0].mxu0
      %v5264 = vpop.f32.mrb[0].mxu0
      %v5265 = vadd.f32 0.0, %v5264
      %v5266 = vpop.f32.mrb[0].mxu0
      %5267 = vdwg.mxu0
      %v5268 = vpack.c.bf16 %v5241, %v5238
      %v5269 = vpack.c.bf16 %v5249, %v5246
      %v5270 = vpack.c.bf16 %v5257, %v5254
      %v5271 = vpack.c.bf16 %v5265, %v5262
      %s5272 = scalar_lea.vmem %s7, 56
      %v5273 = vld [vmem:[%s5272] sm:$0xf]
      %v5274 = vld [vmem:[%s5272 + $0x4] sm:$0xf]
      %v5277 = vunpack.c.l.b16 %v5273
      %v5278 = vunpack.c.l.b16 %v5274
      %v5279 = vpack.c.b16 %v5278, %v5277
      %v5282 = vsel %vm3933, %v5268, 0
      %v5285 = vsel %vm3933, %v5269, 0
      %v5288 = vsel %vm3933, %v5270, 0
      %v5291 = vsel %vm3933, %v5271, 0
      %5293 = vmatprep.subr.bf16.mxu0 0
      %5294 = vmatpush1.bf16.msra.mxu0 %v5279
      %5295 = vmatprep.subr.bf16.mxu0 0
      %5296 = vmatpush1.bf16.msra.mxu0 0
      %5297 = vmatprep.subr.bf16.mxu0 0
      %5298 = vmatpush1.bf16.msra.mxu0 0
      %5299 = vmatprep.subr.bf16.mxu0 0
      %5300 = vmatpush1.bf16.msra.mxu0 0
      %5301 = vmatprep.subr.bf16.mxu0 0
      %5302 = vmatpush1.bf16.msra.mxu0 0
      %5303 = vmatprep.subr.bf16.mxu0 0
      %5304 = vmatpush1.bf16.msra.mxu0 0
      %5305 = vmatprep.subr.bf16.mxu0 0
      %5306 = vmatpush1.bf16.msra.mxu0 0
      %5307 = vmatprep.subr.bf16.mxu0 0
      %5308 = vmatpush1.bf16.msra.mxu0 0
      %5309 = vmatprep.subr.bf16.mxu0 0
      %5310 = vmatpush1.bf16.msra.mxu0 0
      %5311 = vmatprep.subr.bf16.mxu0 0
      %5312 = vmatpush1.bf16.msra.mxu0 0
      %5313 = vmatprep.subr.bf16.mxu0 0
      %5314 = vmatpush1.bf16.msra.mxu0 0
      %5315 = vmatprep.subr.bf16.mxu0 0
      %5316 = vmatpush1.bf16.msra.mxu0 0
      %5317 = vmatprep.subr.bf16.mxu0 0
      %5318 = vmatpush1.bf16.msra.mxu0 0
      %5319 = vmatprep.subr.bf16.mxu0 0
      %5320 = vmatpush1.bf16.msra.mxu0 0
      %5321 = vmatprep.subr.bf16.mxu0 0
      %5322 = vmatpush1.bf16.msra.mxu0 0
      %5323 = vmatprep.subr.bf16.mxu0 0
      %5324 = vmatpush1.bf16.msra.mxu0 0
      %5325 = vmatprep.mubr.bf16.mxu0 0
      %5326 = vmatmul.mubr.bf16.gmra.mrb[0].mxu0 %v5282
      %v5327 = vpop.f32.mrb[0].mxu0
      %v5328 = vadd.f32 0.0, %v5327
      %v5329 = vpop.f32.mrb[0].mxu0
      %v5330 = vpop.f32.mrb[0].mxu0
      %v5331 = vadd.f32 0.0, %v5330
      %v5332 = vpop.f32.mrb[0].mxu0
      %5333 = vmatprep.mubr.bf16.mxu0 0
      %5334 = vmatmul.mubr.bf16.gmra.mrb[0].mxu0 %v5285
      %v5335 = vpop.f32.mrb[0].mxu0
      %v5336 = vadd.f32 0.0, %v5335
      %v5337 = vpop.f32.mrb[0].mxu0
      %v5338 = vpop.f32.mrb[0].mxu0
      %v5339 = vadd.f32 0.0, %v5338
      %v5340 = vpop.f32.mrb[0].mxu0
      %5341 = vmatprep.mubr.bf16.mxu0 0
      %5342 = vmatmul.mubr.bf16.gmra.mrb[0].mxu0 %v5288
      %v5343 = vpop.f32.mrb[0].mxu0
      %v5344 = vadd.f32 0.0, %v5343
      %v5345 = vpop.f32.mrb[0].mxu0
      %v5346 = vpop.f32.mrb[0].mxu0
      %v5347 = vadd.f32 0.0, %v5346
      %v5348 = vpop.f32.mrb[0].mxu0
      %5349 = vmatprep.mubr.bf16.mxu0 0
      %5350 = vmatmul.mubr.bf16.gmra.mrb[0].mxu0 %v5291
      %v5351 = vpop.f32.mrb[0].mxu0
      %v5352 = vadd.f32 0.0, %v5351
      %v5353 = vpop.f32.mrb[0].mxu0
      %v5354 = vpop.f32.mrb[0].mxu0
      %v5355 = vadd.f32 0.0, %v5354
      %v5356 = vpop.f32.mrb[0].mxu0
      %5357 = vdwg.mxu0
      %v5358 = vadd.f32 %v5146, %v5328
      %v5359 = vadd.f32 %v5147, %v5331
      %v5360 = vadd.f32 %v5148, %v5336
      %v5361 = vadd.f32 %v5149, %v5339
      %v5362 = vadd.f32 %v5150, %v5344
      %v5363 = vadd.f32 %v5151, %v5347
      %v5364 = vadd.f32 %v5152, %v5352
      %v5365 = vadd.f32 %v5153, %v5355
      %s5366 = scalar_lea.vmem %s6, 512
      %v5367 = vld [vmem:[%s5366] sm:$0xff]
      %v5368 = vld [vmem:[%s5366 + $0x8] sm:$0xff]
      %v5369 = vld [vmem:[%s5366 + $0x10] sm:$0xff]
      %v5370 = vld [vmem:[%s5366 + $0x18] sm:$0xff]
      %v5371 = vld [vmem:[%s5366 + $0x20] sm:$0xff]
      %v5372 = vld [vmem:[%s5366 + $0x28] sm:$0xff]
      %v5373 = vld [vmem:[%s5366 + $0x30] sm:$0xff]
      %v5374 = vld [vmem:[%s5366 + $0x38] sm:$0xff]
      %v5383 = vunpack.c.l.b16 %v5367
      %v5384 = vunpack.c.h.b16 %v5367
      %v5385 = vunpack.c.l.b16 %v5368
      %v5386 = vunpack.c.h.b16 %v5368
      %v5387 = vunpack.c.l.b16 %v5369
      %v5388 = vunpack.c.h.b16 %v5369
      %v5389 = vunpack.c.l.b16 %v5370
      %v5390 = vunpack.c.h.b16 %v5370
      %v5391 = vunpack.c.l.b16 %v5371
      %v5392 = vunpack.c.h.b16 %v5371
      %v5393 = vunpack.c.l.b16 %v5372
      %v5394 = vunpack.c.h.b16 %v5372
      %v5395 = vunpack.c.l.b16 %v5373
      %v5396 = vunpack.c.h.b16 %v5373
      %v5397 = vunpack.c.l.b16 %v5374
      %v5398 = vunpack.c.h.b16 %v5374
      %v5399 = vpack.c.b16 %v5385, %v5383
      %v5400 = vpack.c.b16 %v5386, %v5384
      %v5401 = vpack.c.b16 %v5389, %v5387
      %v5402 = vpack.c.b16 %v5390, %v5388
      %v5403 = vpack.c.b16 %v5393, %v5391
      %v5404 = vpack.c.b16 %v5394, %v5392
      %v5405 = vpack.c.b16 %v5397, %v5395
      %v5406 = vpack.c.b16 %v5398, %v5396
      %5415 = vmatprep.subr.bf16.mxu0 0
      %5416 = vmatpush1.bf16.msra.mxu0 %v3671
      %5417 = vmatprep.subr.bf16.mxu0 0
      %5418 = vmatpush1.bf16.msra.mxu0 %v3672
      %5419 = vmatprep.subr.bf16.mxu0 0
      %5420 = vmatpush1.bf16.msra.mxu0 %v3673
      %5421 = vmatprep.subr.bf16.mxu0 0
      %5422 = vmatpush1.bf16.msra.mxu0 %v3674
      %5423 = vmatprep.subr.bf16.mxu0 0
      %5424 = vmatpush1.bf16.msra.mxu0 %v3675
      %5425 = vmatprep.subr.bf16.mxu0 0
      %5426 = vmatpush1.bf16.msra.mxu0 %v3676
      %5427 = vmatprep.subr.bf16.mxu0 0
      %5428 = vmatpush1.bf16.msra.mxu0 %v3677
      %5429 = vmatprep.subr.bf16.mxu0 0
      %5430 = vmatpush1.bf16.msra.mxu0 %v3678
      %5431 = vmatprep.subr.bf16.mxu0 0
      %5432 = vmatpush1.bf16.msra.mxu0 %v3679
      %5433 = vmatprep.subr.bf16.mxu0 0
      %5434 = vmatpush1.bf16.msra.mxu0 %v3680
      %5435 = vmatprep.subr.bf16.mxu0 0
      %5436 = vmatpush1.bf16.msra.mxu0 %v3681
      %5437 = vmatprep.subr.bf16.mxu0 0
      %5438 = vmatpush1.bf16.msra.mxu0 %v3682
      %5439 = vmatprep.subr.bf16.mxu0 0
      %5440 = vmatpush1.bf16.msra.mxu0 %v3683
      %5441 = vmatprep.subr.bf16.mxu0 0
      %5442 = vmatpush1.bf16.msra.mxu0 %v3684
      %5443 = vmatprep.subr.bf16.mxu0 0
      %5444 = vmatpush1.bf16.msra.mxu0 %v3685
      %5445 = vmatprep.subr.bf16.mxu0 0
      %5446 = vmatpush1.bf16.msra.mxu0 %v3686
      %5447 = vmatprep.mubr.bf16.mxu0 %v5400
      %5448 = vmatmul.mubr.bf16.gmra.mrb[0].mxu0 %v5399
      %v5449 = vpop.f32.mrb[0].mxu0
      %v5450 = vadd.f32 0.0, %v5449
      %v5451 = vpop.f32.mrb[0].mxu0
      %v5452 = vpop.f32.mrb[0].mxu0
      %v5453 = vadd.f32 0.0, %v5452
      %v5454 = vpop.f32.mrb[0].mxu0
      %5455 = vmatprep.mubr.bf16.mxu0 %v5402
      %5456 = vmatmul.mubr.bf16.gmra.mrb[0].mxu0 %v5401
      %v5457 = vpop.f32.mrb[0].mxu0
      %v5458 = vadd.f32 0.0, %v5457
      %v5459 = vpop.f32.mrb[0].mxu0
      %v5460 = vpop.f32.mrb[0].mxu0
      %v5461 = vadd.f32 0.0, %v5460
      %v5462 = vpop.f32.mrb[0].mxu0
      %5463 = vmatprep.mubr.bf16.mxu0 %v5404
      %5464 = vmatmul.mubr.bf16.gmra.mrb[0].mxu0 %v5403
      %v5465 = vpop.f32.mrb[0].mxu0
      %v5466 = vadd.f32 0.0, %v5465
      %v5467 = vpop.f32.mrb[0].mxu0
      %v5468 = vpop.f32.mrb[0].mxu0
      %v5469 = vadd.f32 0.0, %v5468
      %v5470 = vpop.f32.mrb[0].mxu0
      %5471 = vmatprep.mubr.bf16.mxu0 %v5406
      %5472 = vmatmul.mubr.bf16.gmra.mrb[0].mxu0 %v5405
      %v5473 = vpop.f32.mrb[0].mxu0
      %v5474 = vadd.f32 0.0, %v5473
      %v5475 = vpop.f32.mrb[0].mxu0
      %v5476 = vpop.f32.mrb[0].mxu0
      %v5477 = vadd.f32 0.0, %v5476
      %v5478 = vpop.f32.mrb[0].mxu0
      %5479 = vdwg.mxu0
      %v5480 = vpack.c.bf16 %v5453, %v5450
      %v5481 = vpack.c.bf16 %v5461, %v5458
      %v5482 = vpack.c.bf16 %v5469, %v5466
      %v5483 = vpack.c.bf16 %v5477, %v5474
      %s5484 = scalar_lea.vmem %s7, 64
      %v5485 = vld [vmem:[%s5484] sm:$0xf]
      %v5486 = vld [vmem:[%s5484 + $0x4] sm:$0xf]
      %v5489 = vunpack.c.l.b16 %v5485
      %v5490 = vunpack.c.l.b16 %v5486
      %v5491 = vpack.c.b16 %v5490, %v5489
      %v5494 = vsel %vm3933, %v5480, 0
      %v5497 = vsel %vm3933, %v5481, 0
      %v5500 = vsel %vm3933, %v5482, 0
      %v5503 = vsel %vm3933, %v5483, 0
      %5505 = vmatprep.subr.bf16.mxu0 0
      %5506 = vmatpush1.bf16.msra.mxu0 %v5491
      %5507 = vmatprep.subr.bf16.mxu0 0
      %5508 = vmatpush1.bf16.msra.mxu0 0
      %5509 = vmatprep.subr.bf16.mxu0 0
      %5510 = vmatpush1.bf16.msra.mxu0 0
      %5511 = vmatprep.subr.bf16.mxu0 0
      %5512 = vmatpush1.bf16.msra.mxu0 0
      %5513 = vmatprep.subr.bf16.mxu0 0
      %5514 = vmatpush1.bf16.msra.mxu0 0
      %5515 = vmatprep.subr.bf16.mxu0 0
      %5516 = vmatpush1.bf16.msra.mxu0 0
      %5517 = vmatprep.subr.bf16.mxu0 0
      %5518 = vmatpush1.bf16.msra.mxu0 0
      %5519 = vmatprep.subr.bf16.mxu0 0
      %5520 = vmatpush1.bf16.msra.mxu0 0
      %5521 = vmatprep.subr.bf16.mxu0 0
      %5522 = vmatpush1.bf16.msra.mxu0 0
      %5523 = vmatprep.subr.bf16.mxu0 0
      %5524 = vmatpush1.bf16.msra.mxu0 0
      %5525 = vmatprep.subr.bf16.mxu0 0
      %5526 = vmatpush1.bf16.msra.mxu0 0
      %5527 = vmatprep.subr.bf16.mxu0 0
      %5528 = vmatpush1.bf16.msra.mxu0 0
      %5529 = vmatprep.subr.bf16.mxu0 0
      %5530 = vmatpush1.bf16.msra.mxu0 0
      %5531 = vmatprep.subr.bf16.mxu0 0
      %5532 = vmatpush1.bf16.msra.mxu0 0
      %5533 = vmatprep.subr.bf16.mxu0 0
      %5534 = vmatpush1.bf16.msra.mxu0 0
      %5535 = vmatprep.subr.bf16.mxu0 0
      %5536 = vmatpush1.bf16.msra.mxu0 0
      %5537 = vmatprep.mubr.bf16.mxu0 0
      %5538 = vmatmul.mubr.bf16.gmra.mrb[0].mxu0 %v5494
      %v5539 = vpop.f32.mrb[0].mxu0
      %v5540 = vadd.f32 0.0, %v5539
      %v5541 = vpop.f32.mrb[0].mxu0
      %v5542 = vpop.f32.mrb[0].mxu0
      %v5543 = vadd.f32 0.0, %v5542
      %v5544 = vpop.f32.mrb[0].mxu0
      %5545 = vmatprep.mubr.bf16.mxu0 0
      %5546 = vmatmul.mubr.bf16.gmra.mrb[0].mxu0 %v5497
      %v5547 = vpop.f32.mrb[0].mxu0
      %v5548 = vadd.f32 0.0, %v5547
      %v5549 = vpop.f32.mrb[0].mxu0
      %v5550 = vpop.f32.mrb[0].mxu0
      %v5551 = vadd.f32 0.0, %v5550
      %v5552 = vpop.f32.mrb[0].mxu0
      %5553 = vmatprep.mubr.bf16.mxu0 0
      %5554 = vmatmul.mubr.bf16.gmra.mrb[0].mxu0 %v5500
      %v5555 = vpop.f32.mrb[0].mxu0
      %v5556 = vadd.f32 0.0, %v5555
      %v5557 = vpop.f32.mrb[0].mxu0
      %v5558 = vpop.f32.mrb[0].mxu0
      %v5559 = vadd.f32 0.0, %v5558
      %v5560 = vpop.f32.mrb[0].mxu0
      %5561 = vmatprep.mubr.bf16.mxu0 0
      %5562 = vmatmul.mubr.bf16.gmra.mrb[0].mxu0 %v5503
      %v5563 = vpop.f32.mrb[0].mxu0
      %v5564 = vadd.f32 0.0, %v5563
      %v5565 = vpop.f32.mrb[0].mxu0
      %v5566 = vpop.f32.mrb[0].mxu0
      %v5567 = vadd.f32 0.0, %v5566
      %v5568 = vpop.f32.mrb[0].mxu0
      %5569 = vdwg.mxu0
      %v5570 = vadd.f32 %v5358, %v5540
      %v5571 = vadd.f32 %v5359, %v5543
      %v5572 = vadd.f32 %v5360, %v5548
      %v5573 = vadd.f32 %v5361, %v5551
      %v5574 = vadd.f32 %v5362, %v5556
      %v5575 = vadd.f32 %v5363, %v5559
      %v5576 = vadd.f32 %v5364, %v5564
      %v5577 = vadd.f32 %v5365, %v5567
      %v5578 = vld [vmem:[%s8] sm:$0x1]
      %v5580 = vlaneseq
      %v5581 = vshrl.u32 %v5580, 7
      %v5582 = vsub.s32 0, %v5581
      %v5583 = vrot.slane %v5578, %v5582
      %v5585 = vadd.f32 %v5570, %v5583
      %v5586 = vadd.f32 %v5571, %v5583
      %v5587 = vadd.f32 %v5572, %v5583
      %v5588 = vadd.f32 %v5573, %v5583
      %v5589 = vadd.f32 %v5574, %v5583
      %v5590 = vadd.f32 %v5575, %v5583
      %v5591 = vadd.f32 %v5576, %v5583
      %v5592 = vadd.f32 %v5577, %v5583
      %vm5593 = vcmp.gt.f32.partialorder %v5585, 0.0
      %vm5594 = vcmp.gt.f32.partialorder %v5586, 0.0
      %vm5595 = vcmp.gt.f32.partialorder %v5587, 0.0
      %vm5596 = vcmp.gt.f32.partialorder %v5588, 0.0
      %vm5597 = vcmp.gt.f32.partialorder %v5589, 0.0
      %vm5598 = vcmp.gt.f32.partialorder %v5590, 0.0
      %vm5599 = vcmp.gt.f32.partialorder %v5591, 0.0
      %vm5600 = vcmp.gt.f32.partialorder %v5592, 0.0
      %v5601 = vmul.f32 %v5585, 0.2
      %v5602 = vmul.f32 %v5586, 0.2
      %v5603 = vmul.f32 %v5587, 0.2
      %v5604 = vmul.f32 %v5588, 0.2
      %v5605 = vmul.f32 %v5589, 0.2
      %v5606 = vmul.f32 %v5590, 0.2
      %v5607 = vmul.f32 %v5591, 0.2
      %v5608 = vmul.f32 %v5592, 0.2
      %v5609 = vsel %vm5593, %v5585, %v5601
      %v5610 = vsel %vm5594, %v5586, %v5602
      %v5611 = vsel %vm5595, %v5587, %v5603
      %v5612 = vsel %vm5596, %v5588, %v5604
      %v5613 = vsel %vm5597, %v5589, %v5605
      %v5614 = vsel %vm5598, %v5590, %v5606
      %v5615 = vsel %vm5599, %v5591, %v5607
      %v5616 = vsel %vm5600, %v5592, %v5608
      %v5617 = vld [vmem:[%s9] sm:$0x1]
      %v5619 = vlaneseq
      %v5620 = vshrl.u32 %v5619, 7
      %v5621 = vsub.s32 0, %v5620
      %v5622 = vrot.slane %v5617, %v5621
      %v5624 = vmul.f32 %v5609, %v5622
      %v5625 = vmul.f32 %v5610, %v5622
      %v5626 = vmul.f32 %v5611, %v5622
      %v5627 = vmul.f32 %v5612, %v5622
      %v5628 = vmul.f32 %v5613, %v5622
      %v5629 = vmul.f32 %v5614, %v5622
      %v5630 = vmul.f32 %v5615, %v5622
      %v5631 = vmul.f32 %v5616, %v5622
      %v5632 = vld [vmem:[%s10] sm:$0x1]
      %v5634 = vlaneseq
      %v5635 = vshrl.u32 %v5634, 7
      %v5636 = vsub.s32 0, %v5635
      %v5637 = vrot.slane %v5632, %v5636
      %v5639 = vadd.f32 %v5624, %v5637
      %v5640 = vadd.f32 %v5625, %v5637
      %v5641 = vadd.f32 %v5626, %v5637
      %v5642 = vadd.f32 %v5627, %v5637
      %v5643 = vadd.f32 %v5628, %v5637
      %v5644 = vadd.f32 %v5629, %v5637
      %v5645 = vadd.f32 %v5630, %v5637
      %v5646 = vadd.f32 %v5631, %v5637
      %v5647 = vpack.c.bf16 %v5640, %v5639
      %v5648 = vpack.c.bf16 %v5642, %v5641
      %v5649 = vpack.c.bf16 %v5644, %v5643
      %v5650 = vpack.c.bf16 %v5646, %v5645
      %v5651 = vld [vmem:[%s11] sm:$0xf]
      %v5652 = vld [vmem:[%s11 + $0x4] sm:$0xf]
      %v5655 = vunpack.c.l.b16 %v5651
      %v5656 = vunpack.c.l.b16 %v5652
      %v5657 = vpack.c.b16 %v5656, %v5655
      %vm5658 = vcmask 523264
      %v5660 = vsel %vm5658, %v5657, 0
      %5662 = vmatprep.subr.bf16.mxu0 0
      %5663 = vmatpush1.bf16.msra.mxu0 %v5647
      %5664 = vmatprep.subr.bf16.mxu0 0
      %5665 = vmatpush1.bf16.msra.mxu0 %v5648
      %5666 = vmatprep.subr.bf16.mxu0 0
      %5667 = vmatpush1.bf16.msra.mxu0 %v5649
      %5668 = vmatprep.subr.bf16.mxu0 0
      %5669 = vmatpush1.bf16.msra.mxu0 %v5650
      %5670 = vmatprep.subr.bf16.mxu0 0
      %5671 = vmatpush1.bf16.msra.mxu0 0
      %5672 = vmatprep.subr.bf16.mxu0 0
      %5673 = vmatpush1.bf16.msra.mxu0 0
      %5674 = vmatprep.subr.bf16.mxu0 0
      %5675 = vmatpush1.bf16.msra.mxu0 0
      %5676 = vmatprep.subr.bf16.mxu0 0
      %5677 = vmatpush1.bf16.msra.mxu0 0
      %5678 = vmatprep.subr.bf16.mxu0 0
      %5679 = vmatpush1.bf16.msra.mxu0 0
      %5680 = vmatprep.subr.bf16.mxu0 0
      %5681 = vmatpush1.bf16.msra.mxu0 0
      %5682 = vmatprep.subr.bf16.mxu0 0
      %5683 = vmatpush1.bf16.msra.mxu0 0
      %5684 = vmatprep.subr.bf16.mxu0 0
      %5685 = vmatpush1.bf16.msra.mxu0 0
      %5686 = vmatprep.subr.bf16.mxu0 0
      %5687 = vmatpush1.bf16.msra.mxu0 0
      %5688 = vmatprep.subr.bf16.mxu0 0
      %5689 = vmatpush1.bf16.msra.mxu0 0
      %5690 = vmatprep.subr.bf16.mxu0 0
      %5691 = vmatpush1.bf16.msra.mxu0 0
      %5692 = vmatprep.subr.bf16.mxu0 0
      %5693 = vmatpush1.bf16.msra.mxu0 0
      %5694 = vmatprep.mubr.bf16.mxu0 0
      %5695 = vmatmul.mubr.bf16.gmra.mrb[0].mxu0 %v5660
      %v5696 = vpop.f32.mrb[0].mxu0
      %v5697 = vadd.f32 0.0, %v5696
      %v5698 = vpop.f32.mrb[0].mxu0
      %v5699 = vpop.f32.mrb[0].mxu0
      %v5700 = vadd.f32 0.0, %v5699
      %v5701 = vpop.f32.mrb[0].mxu0
      %5702 = vdwg.mxu0
      %v5703 = vpack.c.bf16 %v5700, %v5697
      %v5704 = vld [vmem:[%s12] sm:$0xf]
      %v5705 = vld [vmem:[%s12 + $0x4] sm:$0xf]
      %v5706 = vld [vmem:[%s12 + $0x8] sm:$0xf]
      %v5707 = vld [vmem:[%s12 + $0xc] sm:$0xf]
      %s5708 = scalar_lea.vmem %s11, 8
      %v5709 = vld [vmem:[%s5708] sm:$0xf]
      %v5710 = vld [vmem:[%s5708 + $0x4] sm:$0xf]
      %v5713 = vunpack.c.l.b16 %v5709
      %v5714 = vunpack.c.l.b16 %v5710
      %v5715 = vpack.c.b16 %v5714, %v5713
      %v5717 = vsel %vm5658, %v5715, 0
      %5719 = vmatprep.subr.bf16.mxu0 0
      %5720 = vmatpush1.bf16.msra.mxu0 %v5647
      %5721 = vmatprep.subr.bf16.mxu0 0
      %5722 = vmatpush1.bf16.msra.mxu0 %v5648
      %5723 = vmatprep.subr.bf16.mxu0 0
      %5724 = vmatpush1.bf16.msra.mxu0 %v5649
      %5725 = vmatprep.subr.bf16.mxu0 0
      %5726 = vmatpush1.bf16.msra.mxu0 %v5650
      %5727 = vmatprep.subr.bf16.mxu0 0
      %5728 = vmatpush1.bf16.msra.mxu0 0
      %5729 = vmatprep.subr.bf16.mxu0 0
      %5730 = vmatpush1.bf16.msra.mxu0 0
      %5731 = vmatprep.subr.bf16.mxu0 0
      %5732 = vmatpush1.bf16.msra.mxu0 0
      %5733 = vmatprep.subr.bf16.mxu0 0
      %5734 = vmatpush1.bf16.msra.mxu0 0
      %5735 = vmatprep.subr.bf16.mxu0 0
      %5736 = vmatpush1.bf16.msra.mxu0 0
      %5737 = vmatprep.subr.bf16.mxu0 0
      %5738 = vmatpush1.bf16.msra.mxu0 0
      %5739 = vmatprep.subr.bf16.mxu0 0
      %5740 = vmatpush1.bf16.msra.mxu0 0
      %5741 = vmatprep.subr.bf16.mxu0 0
      %5742 = vmatpush1.bf16.msra.mxu0 0
      %5743 = vmatprep.subr.bf16.mxu0 0
      %5744 = vmatpush1.bf16.msra.mxu0 0
      %5745 = vmatprep.subr.bf16.mxu0 0
      %5746 = vmatpush1.bf16.msra.mxu0 0
      %5747 = vmatprep.subr.bf16.mxu0 0
      %5748 = vmatpush1.bf16.msra.mxu0 0
      %5749 = vmatprep.subr.bf16.mxu0 0
      %5750 = vmatpush1.bf16.msra.mxu0 0
      %5751 = vmatprep.mubr.bf16.mxu0 0
      %5752 = vmatmul.mubr.bf16.gmra.mrb[0].mxu0 %v5717
      %v5753 = vpop.f32.mrb[0].mxu0
      %v5754 = vadd.f32 0.0, %v5753
      %v5755 = vpop.f32.mrb[0].mxu0
      %v5756 = vpop.f32.mrb[0].mxu0
      %v5757 = vadd.f32 0.0, %v5756
      %v5758 = vpop.f32.mrb[0].mxu0
      %5759 = vdwg.mxu0
      %v5760 = vpack.c.bf16 %v5757, %v5754
      %s5761 = scalar_lea.vmem %s12, 16
      %v5762 = vld [vmem:[%s5761] sm:$0xf]
      %v5763 = vld [vmem:[%s5761 + $0x4] sm:$0xf]
      %v5764 = vld [vmem:[%s5761 + $0x8] sm:$0xf]
      %v5765 = vld [vmem:[%s5761 + $0xc] sm:$0xf]
      %v5770 = vunpack.c.l.b16 %v5762
      %v5771 = vunpack.c.l.b16 %v5763
      %v5772 = vunpack.c.l.b16 %v5764
      %v5773 = vunpack.c.l.b16 %v5765
      %v5774 = vpack.c.b16 %v5771, %v5770
      %v5775 = vpack.c.b16 %v5773, %v5772
      %vm5778 = vcmask 261120
      %v5780 = vsel %vm5778, %v5760, 0
      %5782 = vmatprep.subr.bf16.mxu0 0
      %5783 = vmatpush1.bf16.msra.mxu0 %v5774
      %5784 = vmatprep.subr.bf16.mxu0 0
      %5785 = vmatpush1.bf16.msra.mxu0 %v5775
      %5786 = vmatprep.subr.bf16.mxu0 0
      %5787 = vmatpush1.bf16.msra.mxu0 0
      %5788 = vmatprep.subr.bf16.mxu0 0
      %5789 = vmatpush1.bf16.msra.mxu0 0
      %5790 = vmatprep.subr.bf16.mxu0 0
      %5791 = vmatpush1.bf16.msra.mxu0 0
      %5792 = vmatprep.subr.bf16.mxu0 0
      %5793 = vmatpush1.bf16.msra.mxu0 0
      %5794 = vmatprep.subr.bf16.mxu0 0
      %5795 = vmatpush1.bf16.msra.mxu0 0
      %5796 = vmatprep.subr.bf16.mxu0 0
      %5797 = vmatpush1.bf16.msra.mxu0 0
      %5798 = vmatprep.subr.bf16.mxu0 0
      %5799 = vmatpush1.bf16.msra.mxu0 0
      %5800 = vmatprep.subr.bf16.mxu0 0
      %5801 = vmatpush1.bf16.msra.mxu0 0
      %5802 = vmatprep.subr.bf16.mxu0 0
      %5803 = vmatpush1.bf16.msra.mxu0 0
      %5804 = vmatprep.subr.bf16.mxu0 0
      %5805 = vmatpush1.bf16.msra.mxu0 0
      %5806 = vmatprep.subr.bf16.mxu0 0
      %5807 = vmatpush1.bf16.msra.mxu0 0
      %5808 = vmatprep.subr.bf16.mxu0 0
      %5809 = vmatpush1.bf16.msra.mxu0 0
      %5810 = vmatprep.subr.bf16.mxu0 0
      %5811 = vmatpush1.bf16.msra.mxu0 0
      %5812 = vmatprep.subr.bf16.mxu0 0
      %5813 = vmatpush1.bf16.msra.mxu0 0
      %5814 = vmatprep.mubr.bf16.mxu0 0
      %5815 = vmatmul.mubr.bf16.gmra.mrb[0].mxu0 %v5780
      %v5816 = vpop.f32.mrb[0].mxu0
      %v5817 = vadd.f32 0.0, %v5816
      %v5818 = vpop.f32.mrb[0].mxu0
      %v5819 = vpop.f32.mrb[0].mxu0
      %v5820 = vadd.f32 0.0, %v5819
      %v5821 = vpop.f32.mrb[0].mxu0
      %5822 = vdwg.mxu0
      %v5827 = vunpack.c.l.b16 %v5704
      %v5828 = vunpack.c.l.b16 %v5705
      %v5829 = vunpack.c.l.b16 %v5706
      %v5830 = vunpack.c.l.b16 %v5707
      %v5831 = vpack.c.b16 %v5828, %v5827
      %v5832 = vpack.c.b16 %v5830, %v5829
      %v5836 = vsel %vm5778, %v5703, 0
      %5838 = vmatprep.subr.bf16.mxu0 0
      %5839 = vmatpush1.bf16.msra.mxu0 %v5831
      %5840 = vmatprep.subr.bf16.mxu0 0
      %5841 = vmatpush1.bf16.msra.mxu0 %v5832
      %5842 = vmatprep.subr.bf16.mxu0 0
      %5843 = vmatpush1.bf16.msra.mxu0 0
      %5844 = vmatprep.subr.bf16.mxu0 0
      %5845 = vmatpush1.bf16.msra.mxu0 0
      %5846 = vmatprep.subr.bf16.mxu0 0
      %5847 = vmatpush1.bf16.msra.mxu0 0
      %5848 = vmatprep.subr.bf16.mxu0 0
      %5849 = vmatpush1.bf16.msra.mxu0 0
      %5850 = vmatprep.subr.bf16.mxu0 0
      %5851 = vmatpush1.bf16.msra.mxu0 0
      %5852 = vmatprep.subr.bf16.mxu0 0
      %5853 = vmatpush1.bf16.msra.mxu0 0
      %5854 = vmatprep.subr.bf16.mxu0 0
      %5855 = vmatpush1.bf16.msra.mxu0 0
      %5856 = vmatprep.subr.bf16.mxu0 0
      %5857 = vmatpush1.bf16.msra.mxu0 0
      %5858 = vmatprep.subr.bf16.mxu0 0
      %5859 = vmatpush1.bf16.msra.mxu0 0
      %5860 = vmatprep.subr.bf16.mxu0 0
      %5861 = vmatpush1.bf16.msra.mxu0 0
      %5862 = vmatprep.subr.bf16.mxu0 0
      %5863 = vmatpush1.bf16.msra.mxu0 0
      %5864 = vmatprep.subr.bf16.mxu0 0
      %5865 = vmatpush1.bf16.msra.mxu0 0
      %5866 = vmatprep.subr.bf16.mxu0 0
      %5867 = vmatpush1.bf16.msra.mxu0 0
      %5868 = vmatprep.subr.bf16.mxu0 0
      %5869 = vmatpush1.bf16.msra.mxu0 0
      %5870 = vmatprep.mubr.bf16.mxu0 0
      %5871 = vmatmul.mubr.bf16.gmra.mrb[0].mxu0 %v5836
      %v5872 = vpop.f32.mrb[0].mxu0
      %v5873 = vadd.f32 %v5817, %v5872
      %v5874 = vpop.f32.mrb[0].mxu0
      %v5875 = vpop.f32.mrb[0].mxu0
      %v5876 = vadd.f32 %v5820, %v5875
      %v5877 = vpop.f32.mrb[0].mxu0
      %5878 = vdwg.mxu0
      %s5879 = scalar_lea.vmem %s11, 16
      %v5880 = vld [vmem:[%s5879] sm:$0xf]
      %v5881 = vld [vmem:[%s5879 + $0x4] sm:$0xf]
      %v5884 = vunpack.c.l.b16 %v5880
      %v5885 = vunpack.c.l.b16 %v5881
      %v5886 = vpack.c.b16 %v5885, %v5884
      %v5888 = vsel %vm5658, %v5886, 0
      %5890 = vmatprep.subr.bf16.mxu0 0
      %5891 = vmatpush1.bf16.msra.mxu0 %v5647
      %5892 = vmatprep.subr.bf16.mxu0 0
      %5893 = vmatpush1.bf16.msra.mxu0 %v5648
      %5894 = vmatprep.subr.bf16.mxu0 0
      %5895 = vmatpush1.bf16.msra.mxu0 %v5649
      %5896 = vmatprep.subr.bf16.mxu0 0
      %5897 = vmatpush1.bf16.msra.mxu0 %v5650
      %5898 = vmatprep.subr.bf16.mxu0 0
      %5899 = vmatpush1.bf16.msra.mxu0 0
      %5900 = vmatprep.subr.bf16.mxu0 0
      %5901 = vmatpush1.bf16.msra.mxu0 0
      %5902 = vmatprep.subr.bf16.mxu0 0
      %5903 = vmatpush1.bf16.msra.mxu0 0
      %5904 = vmatprep.subr.bf16.mxu0 0
      %5905 = vmatpush1.bf16.msra.mxu0 0
      %5906 = vmatprep.subr.bf16.mxu0 0
      %5907 = vmatpush1.bf16.msra.mxu0 0
      %5908 = vmatprep.subr.bf16.mxu0 0
      %5909 = vmatpush1.bf16.msra.mxu0 0
      %5910 = vmatprep.subr.bf16.mxu0 0
      %5911 = vmatpush1.bf16.msra.mxu0 0
      %5912 = vmatprep.subr.bf16.mxu0 0
      %5913 = vmatpush1.bf16.msra.mxu0 0
      %5914 = vmatprep.subr.bf16.mxu0 0
      %5915 = vmatpush1.bf16.msra.mxu0 0
      %5916 = vmatprep.subr.bf16.mxu0 0
      %5917 = vmatpush1.bf16.msra.mxu0 0
      %5918 = vmatprep.subr.bf16.mxu0 0
      %5919 = vmatpush1.bf16.msra.mxu0 0
      %5920 = vmatprep.subr.bf16.mxu0 0
      %5921 = vmatpush1.bf16.msra.mxu0 0
      %5922 = vmatprep.mubr.bf16.mxu0 0
      %5923 = vmatmul.mubr.bf16.gmra.mrb[0].mxu0 %v5888
      %v5924 = vpop.f32.mrb[0].mxu0
      %v5925 = vadd.f32 0.0, %v5924
      %v5926 = vpop.f32.mrb[0].mxu0
      %v5927 = vpop.f32.mrb[0].mxu0
      %v5928 = vadd.f32 0.0, %v5927
      %v5929 = vpop.f32.mrb[0].mxu0
      %5930 = vdwg.mxu0
      %v5931 = vpack.c.bf16 %v5928, %v5925
      %s5932 = scalar_lea.vmem %s12, 32
      %v5933 = vld [vmem:[%s5932] sm:$0xf]
      %v5934 = vld [vmem:[%s5932 + $0x4] sm:$0xf]
      %v5935 = vld [vmem:[%s5932 + $0x8] sm:$0xf]
      %v5936 = vld [vmem:[%s5932 + $0xc] sm:$0xf]
      %v5941 = vunpack.c.l.b16 %v5933
      %v5942 = vunpack.c.l.b16 %v5934
      %v5943 = vunpack.c.l.b16 %v5935
      %v5944 = vunpack.c.l.b16 %v5936
      %v5945 = vpack.c.b16 %v5942, %v5941
      %v5946 = vpack.c.b16 %v5944, %v5943
      %v5950 = vsel %vm5778, %v5931, 0
      %5952 = vmatprep.subr.bf16.mxu0 0
      %5953 = vmatpush1.bf16.msra.mxu0 %v5945
      %5954 = vmatprep.subr.bf16.mxu0 0
      %5955 = vmatpush1.bf16.msra.mxu0 %v5946
      %5956 = vmatprep.subr.bf16.mxu0 0
      %5957 = vmatpush1.bf16.msra.mxu0 0
      %5958 = vmatprep.subr.bf16.mxu0 0
      %5959 = vmatpush1.bf16.msra.mxu0 0
      %5960 = vmatprep.subr.bf16.mxu0 0
      %5961 = vmatpush1.bf16.msra.mxu0 0
      %5962 = vmatprep.subr.bf16.mxu0 0
      %5963 = vmatpush1.bf16.msra.mxu0 0
      %5964 = vmatprep.subr.bf16.mxu0 0
      %5965 = vmatpush1.bf16.msra.mxu0 0
      %5966 = vmatprep.subr.bf16.mxu0 0
      %5967 = vmatpush1.bf16.msra.mxu0 0
      %5968 = vmatprep.subr.bf16.mxu0 0
      %5969 = vmatpush1.bf16.msra.mxu0 0
      %5970 = vmatprep.subr.bf16.mxu0 0
      %5971 = vmatpush1.bf16.msra.mxu0 0
      %5972 = vmatprep.subr.bf16.mxu0 0
      %5973 = vmatpush1.bf16.msra.mxu0 0
      %5974 = vmatprep.subr.bf16.mxu0 0
      %5975 = vmatpush1.bf16.msra.mxu0 0
      %5976 = vmatprep.subr.bf16.mxu0 0
      %5977 = vmatpush1.bf16.msra.mxu0 0
      %5978 = vmatprep.subr.bf16.mxu0 0
      %5979 = vmatpush1.bf16.msra.mxu0 0
      %5980 = vmatprep.subr.bf16.mxu0 0
      %5981 = vmatpush1.bf16.msra.mxu0 0
      %5982 = vmatprep.subr.bf16.mxu0 0
      %5983 = vmatpush1.bf16.msra.mxu0 0
      %5984 = vmatprep.mubr.bf16.mxu0 0
      %5985 = vmatmul.mubr.bf16.gmra.mrb[0].mxu0 %v5950
      %v5986 = vpop.f32.mrb[0].mxu0
      %v5987 = vadd.f32 0.0, %v5986
      %v5988 = vpop.f32.mrb[0].mxu0
      %v5989 = vpop.f32.mrb[0].mxu0
      %v5990 = vadd.f32 0.0, %v5989
      %v5991 = vpop.f32.mrb[0].mxu0
      %5992 = vdwg.mxu0
      %v5993 = vadd.f32 %v5873, %v5987
      %v5994 = vadd.f32 %v5876, %v5990
      %s5995 = scalar_lea.vmem %s11, 24
      %v5996 = vld [vmem:[%s5995] sm:$0xf]
      %v5997 = vld [vmem:[%s5995 + $0x4] sm:$0xf]
      %v6000 = vunpack.c.l.b16 %v5996
      %v6001 = vunpack.c.l.b16 %v5997
      %v6002 = vpack.c.b16 %v6001, %v6000
      %v6004 = vsel %vm5658, %v6002, 0
      %6006 = vmatprep.subr.bf16.mxu0 0
      %6007 = vmatpush1.bf16.msra.mxu0 %v5647
      %6008 = vmatprep.subr.bf16.mxu0 0
      %6009 = vmatpush1.bf16.msra.mxu0 %v5648
      %6010 = vmatprep.subr.bf16.mxu0 0
      %6011 = vmatpush1.bf16.msra.mxu0 %v5649
      %6012 = vmatprep.subr.bf16.mxu0 0
      %6013 = vmatpush1.bf16.msra.mxu0 %v5650
      %6014 = vmatprep.subr.bf16.mxu0 0
      %6015 = vmatpush1.bf16.msra.mxu0 0
      %6016 = vmatprep.subr.bf16.mxu0 0
      %6017 = vmatpush1.bf16.msra.mxu0 0
      %6018 = vmatprep.subr.bf16.mxu0 0
      %6019 = vmatpush1.bf16.msra.mxu0 0
      %6020 = vmatprep.subr.bf16.mxu0 0
      %6021 = vmatpush1.bf16.msra.mxu0 0
      %6022 = vmatprep.subr.bf16.mxu0 0
      %6023 = vmatpush1.bf16.msra.mxu0 0
      %6024 = vmatprep.subr.bf16.mxu0 0
      %6025 = vmatpush1.bf16.msra.mxu0 0
      %6026 = vmatprep.subr.bf16.mxu0 0
      %6027 = vmatpush1.bf16.msra.mxu0 0
      %6028 = vmatprep.subr.bf16.mxu0 0
      %6029 = vmatpush1.bf16.msra.mxu0 0
      %6030 = vmatprep.subr.bf16.mxu0 0
      %6031 = vmatpush1.bf16.msra.mxu0 0
      %6032 = vmatprep.subr.bf16.mxu0 0
      %6033 = vmatpush1.bf16.msra.mxu0 0
      %6034 = vmatprep.subr.bf16.mxu0 0
      %6035 = vmatpush1.bf16.msra.mxu0 0
      %6036 = vmatprep.subr.bf16.mxu0 0
      %6037 = vmatpush1.bf16.msra.mxu0 0
      %6038 = vmatprep.mubr.bf16.mxu0 0
      %6039 = vmatmul.mubr.bf16.gmra.mrb[0].mxu0 %v6004
      %v6040 = vpop.f32.mrb[0].mxu0
      %v6041 = vadd.f32 0.0, %v6040
      %v6042 = vpop.f32.mrb[0].mxu0
      %v6043 = vpop.f32.mrb[0].mxu0
      %v6044 = vadd.f32 0.0, %v6043
      %v6045 = vpop.f32.mrb[0].mxu0
      %6046 = vdwg.mxu0
      %v6047 = vpack.c.bf16 %v6044, %v6041
      %s6048 = scalar_lea.vmem %s12, 48
      %v6049 = vld [vmem:[%s6048] sm:$0xf]
      %v6050 = vld [vmem:[%s6048 + $0x4] sm:$0xf]
      %v6051 = vld [vmem:[%s6048 + $0x8] sm:$0xf]
      %v6052 = vld [vmem:[%s6048 + $0xc] sm:$0xf]
      %v6057 = vunpack.c.l.b16 %v6049
      %v6058 = vunpack.c.l.b16 %v6050
      %v6059 = vunpack.c.l.b16 %v6051
      %v6060 = vunpack.c.l.b16 %v6052
      %v6061 = vpack.c.b16 %v6058, %v6057
      %v6062 = vpack.c.b16 %v6060, %v6059
      %v6066 = vsel %vm5778, %v6047, 0
      %6068 = vmatprep.subr.bf16.mxu0 0
      %6069 = vmatpush1.bf16.msra.mxu0 %v6061
      %6070 = vmatprep.subr.bf16.mxu0 0
      %6071 = vmatpush1.bf16.msra.mxu0 %v6062
      %6072 = vmatprep.subr.bf16.mxu0 0
      %6073 = vmatpush1.bf16.msra.mxu0 0
      %6074 = vmatprep.subr.bf16.mxu0 0
      %6075 = vmatpush1.bf16.msra.mxu0 0
      %6076 = vmatprep.subr.bf16.mxu0 0
      %6077 = vmatpush1.bf16.msra.mxu0 0
      %6078 = vmatprep.subr.bf16.mxu0 0
      %6079 = vmatpush1.bf16.msra.mxu0 0
      %6080 = vmatprep.subr.bf16.mxu0 0
      %6081 = vmatpush1.bf16.msra.mxu0 0
      %6082 = vmatprep.subr.bf16.mxu0 0
      %6083 = vmatpush1.bf16.msra.mxu0 0
      %6084 = vmatprep.subr.bf16.mxu0 0
      %6085 = vmatpush1.bf16.msra.mxu0 0
      %6086 = vmatprep.subr.bf16.mxu0 0
      %6087 = vmatpush1.bf16.msra.mxu0 0
      %6088 = vmatprep.subr.bf16.mxu0 0
      %6089 = vmatpush1.bf16.msra.mxu0 0
      %6090 = vmatprep.subr.bf16.mxu0 0
      %6091 = vmatpush1.bf16.msra.mxu0 0
      %6092 = vmatprep.subr.bf16.mxu0 0
      %6093 = vmatpush1.bf16.msra.mxu0 0
      %6094 = vmatprep.subr.bf16.mxu0 0
      %6095 = vmatpush1.bf16.msra.mxu0 0
      %6096 = vmatprep.subr.bf16.mxu0 0
      %6097 = vmatpush1.bf16.msra.mxu0 0
      %6098 = vmatprep.subr.bf16.mxu0 0
      %6099 = vmatpush1.bf16.msra.mxu0 0
      %6100 = vmatprep.mubr.bf16.mxu0 0
      %6101 = vmatmul.mubr.bf16.gmra.mrb[0].mxu0 %v6066
      %v6102 = vpop.f32.mrb[0].mxu0
      %v6103 = vadd.f32 0.0, %v6102
      %v6104 = vpop.f32.mrb[0].mxu0
      %v6105 = vpop.f32.mrb[0].mxu0
      %v6106 = vadd.f32 0.0, %v6105
      %v6107 = vpop.f32.mrb[0].mxu0
      %6108 = vdwg.mxu0
      %v6109 = vadd.f32 %v5993, %v6103
      %v6110 = vadd.f32 %v5994, %v6106
      %s6111 = scalar_lea.vmem %s11, 32
      %v6112 = vld [vmem:[%s6111] sm:$0xf]
      %v6113 = vld [vmem:[%s6111 + $0x4] sm:$0xf]
      %v6116 = vunpack.c.l.b16 %v6112
      %v6117 = vunpack.c.l.b16 %v6113
      %v6118 = vpack.c.b16 %v6117, %v6116
      %v6120 = vsel %vm5658, %v6118, 0
      %6122 = vmatprep.subr.bf16.mxu0 0
      %6123 = vmatpush1.bf16.msra.mxu0 %v5647
      %6124 = vmatprep.subr.bf16.mxu0 0
      %6125 = vmatpush1.bf16.msra.mxu0 %v5648
      %6126 = vmatprep.subr.bf16.mxu0 0
      %6127 = vmatpush1.bf16.msra.mxu0 %v5649
      %6128 = vmatprep.subr.bf16.mxu0 0
      %6129 = vmatpush1.bf16.msra.mxu0 %v5650
      %6130 = vmatprep.subr.bf16.mxu0 0
      %6131 = vmatpush1.bf16.msra.mxu0 0
      %6132 = vmatprep.subr.bf16.mxu0 0
      %6133 = vmatpush1.bf16.msra.mxu0 0
      %6134 = vmatprep.subr.bf16.mxu0 0
      %6135 = vmatpush1.bf16.msra.mxu0 0
      %6136 = vmatprep.subr.bf16.mxu0 0
      %6137 = vmatpush1.bf16.msra.mxu0 0
      %6138 = vmatprep.subr.bf16.mxu0 0
      %6139 = vmatpush1.bf16.msra.mxu0 0
      %6140 = vmatprep.subr.bf16.mxu0 0
      %6141 = vmatpush1.bf16.msra.mxu0 0
      %6142 = vmatprep.subr.bf16.mxu0 0
      %6143 = vmatpush1.bf16.msra.mxu0 0
      %6144 = vmatprep.subr.bf16.mxu0 0
      %6145 = vmatpush1.bf16.msra.mxu0 0
      %6146 = vmatprep.subr.bf16.mxu0 0
      %6147 = vmatpush1.bf16.msra.mxu0 0
      %6148 = vmatprep.subr.bf16.mxu0 0
      %6149 = vmatpush1.bf16.msra.mxu0 0
      %6150 = vmatprep.subr.bf16.mxu0 0
      %6151 = vmatpush1.bf16.msra.mxu0 0
      %6152 = vmatprep.subr.bf16.mxu0 0
      %6153 = vmatpush1.bf16.msra.mxu0 0
      %6154 = vmatprep.mubr.bf16.mxu0 0
      %6155 = vmatmul.mubr.bf16.gmra.mrb[0].mxu0 %v6120
      %v6156 = vpop.f32.mrb[0].mxu0
      %v6157 = vadd.f32 0.0, %v6156
      %v6158 = vpop.f32.mrb[0].mxu0
      %v6159 = vpop.f32.mrb[0].mxu0
      %v6160 = vadd.f32 0.0, %v6159
      %v6161 = vpop.f32.mrb[0].mxu0
      %6162 = vdwg.mxu0
      %v6163 = vpack.c.bf16 %v6160, %v6157
      %s6164 = scalar_lea.vmem %s12, 64
      %v6165 = vld [vmem:[%s6164] sm:$0xf]
      %v6166 = vld [vmem:[%s6164 + $0x4] sm:$0xf]
      %v6167 = vld [vmem:[%s6164 + $0x8] sm:$0xf]
      %v6168 = vld [vmem:[%s6164 + $0xc] sm:$0xf]
      %v6173 = vunpack.c.l.b16 %v6165
      %v6174 = vunpack.c.l.b16 %v6166
      %v6175 = vunpack.c.l.b16 %v6167
      %v6176 = vunpack.c.l.b16 %v6168
      %v6177 = vpack.c.b16 %v6174, %v6173
      %v6178 = vpack.c.b16 %v6176, %v6175
      %v6182 = vsel %vm5778, %v6163, 0
      %6184 = vmatprep.subr.bf16.mxu0 0
      %6185 = vmatpush1.bf16.msra.mxu0 %v6177
      %6186 = vmatprep.subr.bf16.mxu0 0
      %6187 = vmatpush1.bf16.msra.mxu0 %v6178
      %6188 = vmatprep.subr.bf16.mxu0 0
      %6189 = vmatpush1.bf16.msra.mxu0 0
      %6190 = vmatprep.subr.bf16.mxu0 0
      %6191 = vmatpush1.bf16.msra.mxu0 0
      %6192 = vmatprep.subr.bf16.mxu0 0
      %6193 = vmatpush1.bf16.msra.mxu0 0
      %6194 = vmatprep.subr.bf16.mxu0 0
      %6195 = vmatpush1.bf16.msra.mxu0 0
      %6196 = vmatprep.subr.bf16.mxu0 0
      %6197 = vmatpush1.bf16.msra.mxu0 0
      %6198 = vmatprep.subr.bf16.mxu0 0
      %6199 = vmatpush1.bf16.msra.mxu0 0
      %6200 = vmatprep.subr.bf16.mxu0 0
      %6201 = vmatpush1.bf16.msra.mxu0 0
      %6202 = vmatprep.subr.bf16.mxu0 0
      %6203 = vmatpush1.bf16.msra.mxu0 0
      %6204 = vmatprep.subr.bf16.mxu0 0
      %6205 = vmatpush1.bf16.msra.mxu0 0
      %6206 = vmatprep.subr.bf16.mxu0 0
      %6207 = vmatpush1.bf16.msra.mxu0 0
      %6208 = vmatprep.subr.bf16.mxu0 0
      %6209 = vmatpush1.bf16.msra.mxu0 0
      %6210 = vmatprep.subr.bf16.mxu0 0
      %6211 = vmatpush1.bf16.msra.mxu0 0
      %6212 = vmatprep.subr.bf16.mxu0 0
      %6213 = vmatpush1.bf16.msra.mxu0 0
      %6214 = vmatprep.subr.bf16.mxu0 0
      %6215 = vmatpush1.bf16.msra.mxu0 0
      %6216 = vmatprep.mubr.bf16.mxu0 0
      %6217 = vmatmul.mubr.bf16.gmra.mrb[0].mxu0 %v6182
      %v6218 = vpop.f32.mrb[0].mxu0
      %v6219 = vadd.f32 0.0, %v6218
      %v6220 = vpop.f32.mrb[0].mxu0
      %v6221 = vpop.f32.mrb[0].mxu0
      %v6222 = vadd.f32 0.0, %v6221
      %v6223 = vpop.f32.mrb[0].mxu0
      %6224 = vdwg.mxu0
      %v6225 = vadd.f32 %v6109, %v6219
      %v6226 = vadd.f32 %v6110, %v6222
      %s6227 = scalar_lea.vmem %s11, 40
      %v6228 = vld [vmem:[%s6227] sm:$0xf]
      %v6229 = vld [vmem:[%s6227 + $0x4] sm:$0xf]
      %v6232 = vunpack.c.l.b16 %v6228
      %v6233 = vunpack.c.l.b16 %v6229
      %v6234 = vpack.c.b16 %v6233, %v6232
      %v6236 = vsel %vm5658, %v6234, 0
      %6238 = vmatprep.subr.bf16.mxu0 0
      %6239 = vmatpush1.bf16.msra.mxu0 %v5647
      %6240 = vmatprep.subr.bf16.mxu0 0
      %6241 = vmatpush1.bf16.msra.mxu0 %v5648
      %6242 = vmatprep.subr.bf16.mxu0 0
      %6243 = vmatpush1.bf16.msra.mxu0 %v5649
      %6244 = vmatprep.subr.bf16.mxu0 0
      %6245 = vmatpush1.bf16.msra.mxu0 %v5650
      %6246 = vmatprep.subr.bf16.mxu0 0
      %6247 = vmatpush1.bf16.msra.mxu0 0
      %6248 = vmatprep.subr.bf16.mxu0 0
      %6249 = vmatpush1.bf16.msra.mxu0 0
      %6250 = vmatprep.subr.bf16.mxu0 0
      %6251 = vmatpush1.bf16.msra.mxu0 0
      %6252 = vmatprep.subr.bf16.mxu0 0
      %6253 = vmatpush1.bf16.msra.mxu0 0
      %6254 = vmatprep.subr.bf16.mxu0 0
      %6255 = vmatpush1.bf16.msra.mxu0 0
      %6256 = vmatprep.subr.bf16.mxu0 0
      %6257 = vmatpush1.bf16.msra.mxu0 0
      %6258 = vmatprep.subr.bf16.mxu0 0
      %6259 = vmatpush1.bf16.msra.mxu0 0
      %6260 = vmatprep.subr.bf16.mxu0 0
      %6261 = vmatpush1.bf16.msra.mxu0 0
      %6262 = vmatprep.subr.bf16.mxu0 0
      %6263 = vmatpush1.bf16.msra.mxu0 0
      %6264 = vmatprep.subr.bf16.mxu0 0
      %6265 = vmatpush1.bf16.msra.mxu0 0
      %6266 = vmatprep.subr.bf16.mxu0 0
      %6267 = vmatpush1.bf16.msra.mxu0 0
      %6268 = vmatprep.subr.bf16.mxu0 0
      %6269 = vmatpush1.bf16.msra.mxu0 0
      %6270 = vmatprep.mubr.bf16.mxu0 0
      %6271 = vmatmul.mubr.bf16.gmra.mrb[0].mxu0 %v6236
      %v6272 = vpop.f32.mrb[0].mxu0
      %v6273 = vadd.f32 0.0, %v6272
      %v6274 = vpop.f32.mrb[0].mxu0
      %v6275 = vpop.f32.mrb[0].mxu0
      %v6276 = vadd.f32 0.0, %v6275
      %v6277 = vpop.f32.mrb[0].mxu0
      %6278 = vdwg.mxu0
      %v6279 = vpack.c.bf16 %v6276, %v6273
      %s6280 = scalar_lea.vmem %s12, 80
      %v6281 = vld [vmem:[%s6280] sm:$0xf]
      %v6282 = vld [vmem:[%s6280 + $0x4] sm:$0xf]
      %v6283 = vld [vmem:[%s6280 + $0x8] sm:$0xf]
      %v6284 = vld [vmem:[%s6280 + $0xc] sm:$0xf]
      %v6289 = vunpack.c.l.b16 %v6281
      %v6290 = vunpack.c.l.b16 %v6282
      %v6291 = vunpack.c.l.b16 %v6283
      %v6292 = vunpack.c.l.b16 %v6284
      %v6293 = vpack.c.b16 %v6290, %v6289
      %v6294 = vpack.c.b16 %v6292, %v6291
      %v6298 = vsel %vm5778, %v6279, 0
      %6300 = vmatprep.subr.bf16.mxu0 0
      %6301 = vmatpush1.bf16.msra.mxu0 %v6293
      %6302 = vmatprep.subr.bf16.mxu0 0
      %6303 = vmatpush1.bf16.msra.mxu0 %v6294
      %6304 = vmatprep.subr.bf16.mxu0 0
      %6305 = vmatpush1.bf16.msra.mxu0 0
      %6306 = vmatprep.subr.bf16.mxu0 0
      %6307 = vmatpush1.bf16.msra.mxu0 0
      %6308 = vmatprep.subr.bf16.mxu0 0
      %6309 = vmatpush1.bf16.msra.mxu0 0
      %6310 = vmatprep.subr.bf16.mxu0 0
      %6311 = vmatpush1.bf16.msra.mxu0 0
      %6312 = vmatprep.subr.bf16.mxu0 0
      %6313 = vmatpush1.bf16.msra.mxu0 0
      %6314 = vmatprep.subr.bf16.mxu0 0
      %6315 = vmatpush1.bf16.msra.mxu0 0
      %6316 = vmatprep.subr.bf16.mxu0 0
      %6317 = vmatpush1.bf16.msra.mxu0 0
      %6318 = vmatprep.subr.bf16.mxu0 0
      %6319 = vmatpush1.bf16.msra.mxu0 0
      %6320 = vmatprep.subr.bf16.mxu0 0
      %6321 = vmatpush1.bf16.msra.mxu0 0
      %6322 = vmatprep.subr.bf16.mxu0 0
      %6323 = vmatpush1.bf16.msra.mxu0 0
      %6324 = vmatprep.subr.bf16.mxu0 0
      %6325 = vmatpush1.bf16.msra.mxu0 0
      %6326 = vmatprep.subr.bf16.mxu0 0
      %6327 = vmatpush1.bf16.msra.mxu0 0
      %6328 = vmatprep.subr.bf16.mxu0 0
      %6329 = vmatpush1.bf16.msra.mxu0 0
      %6330 = vmatprep.subr.bf16.mxu0 0
      %6331 = vmatpush1.bf16.msra.mxu0 0
      %6332 = vmatprep.mubr.bf16.mxu0 0
      %6333 = vmatmul.mubr.bf16.gmra.mrb[0].mxu0 %v6298
      %v6334 = vpop.f32.mrb[0].mxu0
      %v6335 = vadd.f32 0.0, %v6334
      %v6336 = vpop.f32.mrb[0].mxu0
      %v6337 = vpop.f32.mrb[0].mxu0
      %v6338 = vadd.f32 0.0, %v6337
      %v6339 = vpop.f32.mrb[0].mxu0
      %6340 = vdwg.mxu0
      %v6341 = vadd.f32 %v6225, %v6335
      %v6342 = vadd.f32 %v6226, %v6338
      %s6343 = scalar_lea.vmem %s11, 48
      %v6344 = vld [vmem:[%s6343] sm:$0xf]
      %v6345 = vld [vmem:[%s6343 + $0x4] sm:$0xf]
      %v6348 = vunpack.c.l.b16 %v6344
      %v6349 = vunpack.c.l.b16 %v6345
      %v6350 = vpack.c.b16 %v6349, %v6348
      %v6352 = vsel %vm5658, %v6350, 0
      %6354 = vmatprep.subr.bf16.mxu0 0
      %6355 = vmatpush1.bf16.msra.mxu0 %v5647
      %6356 = vmatprep.subr.bf16.mxu0 0
      %6357 = vmatpush1.bf16.msra.mxu0 %v5648
      %6358 = vmatprep.subr.bf16.mxu0 0
      %6359 = vmatpush1.bf16.msra.mxu0 %v5649
      %6360 = vmatprep.subr.bf16.mxu0 0
      %6361 = vmatpush1.bf16.msra.mxu0 %v5650
      %6362 = vmatprep.subr.bf16.mxu0 0
      %6363 = vmatpush1.bf16.msra.mxu0 0
      %6364 = vmatprep.subr.bf16.mxu0 0
      %6365 = vmatpush1.bf16.msra.mxu0 0
      %6366 = vmatprep.subr.bf16.mxu0 0
      %6367 = vmatpush1.bf16.msra.mxu0 0
      %6368 = vmatprep.subr.bf16.mxu0 0
      %6369 = vmatpush1.bf16.msra.mxu0 0
      %6370 = vmatprep.subr.bf16.mxu0 0
      %6371 = vmatpush1.bf16.msra.mxu0 0
      %6372 = vmatprep.subr.bf16.mxu0 0
      %6373 = vmatpush1.bf16.msra.mxu0 0
      %6374 = vmatprep.subr.bf16.mxu0 0
      %6375 = vmatpush1.bf16.msra.mxu0 0
      %6376 = vmatprep.subr.bf16.mxu0 0
      %6377 = vmatpush1.bf16.msra.mxu0 0
      %6378 = vmatprep.subr.bf16.mxu0 0
      %6379 = vmatpush1.bf16.msra.mxu0 0
      %6380 = vmatprep.subr.bf16.mxu0 0
      %6381 = vmatpush1.bf16.msra.mxu0 0
      %6382 = vmatprep.subr.bf16.mxu0 0
      %6383 = vmatpush1.bf16.msra.mxu0 0
      %6384 = vmatprep.subr.bf16.mxu0 0
      %6385 = vmatpush1.bf16.msra.mxu0 0
      %6386 = vmatprep.mubr.bf16.mxu0 0
      %6387 = vmatmul.mubr.bf16.gmra.mrb[0].mxu0 %v6352
      %v6388 = vpop.f32.mrb[0].mxu0
      %v6389 = vadd.f32 0.0, %v6388
      %v6390 = vpop.f32.mrb[0].mxu0
      %v6391 = vpop.f32.mrb[0].mxu0
      %v6392 = vadd.f32 0.0, %v6391
      %v6393 = vpop.f32.mrb[0].mxu0
      %6394 = vdwg.mxu0
      %v6395 = vpack.c.bf16 %v6392, %v6389
      %s6396 = scalar_lea.vmem %s12, 96
      %v6397 = vld [vmem:[%s6396] sm:$0xf]
      %v6398 = vld [vmem:[%s6396 + $0x4] sm:$0xf]
      %v6399 = vld [vmem:[%s6396 + $0x8] sm:$0xf]
      %v6400 = vld [vmem:[%s6396 + $0xc] sm:$0xf]
      %v6405 = vunpack.c.l.b16 %v6397
      %v6406 = vunpack.c.l.b16 %v6398
      %v6407 = vunpack.c.l.b16 %v6399
      %v6408 = vunpack.c.l.b16 %v6400
      %v6409 = vpack.c.b16 %v6406, %v6405
      %v6410 = vpack.c.b16 %v6408, %v6407
      %v6414 = vsel %vm5778, %v6395, 0
      %6416 = vmatprep.subr.bf16.mxu0 0
      %6417 = vmatpush1.bf16.msra.mxu0 %v6409
      %6418 = vmatprep.subr.bf16.mxu0 0
      %6419 = vmatpush1.bf16.msra.mxu0 %v6410
      %6420 = vmatprep.subr.bf16.mxu0 0
      %6421 = vmatpush1.bf16.msra.mxu0 0
      %6422 = vmatprep.subr.bf16.mxu0 0
      %6423 = vmatpush1.bf16.msra.mxu0 0
      %6424 = vmatprep.subr.bf16.mxu0 0
      %6425 = vmatpush1.bf16.msra.mxu0 0
      %6426 = vmatprep.subr.bf16.mxu0 0
      %6427 = vmatpush1.bf16.msra.mxu0 0
      %6428 = vmatprep.subr.bf16.mxu0 0
      %6429 = vmatpush1.bf16.msra.mxu0 0
      %6430 = vmatprep.subr.bf16.mxu0 0
      %6431 = vmatpush1.bf16.msra.mxu0 0
      %6432 = vmatprep.subr.bf16.mxu0 0
      %6433 = vmatpush1.bf16.msra.mxu0 0
      %6434 = vmatprep.subr.bf16.mxu0 0
      %6435 = vmatpush1.bf16.msra.mxu0 0
      %6436 = vmatprep.subr.bf16.mxu0 0
      %6437 = vmatpush1.bf16.msra.mxu0 0
      %6438 = vmatprep.subr.bf16.mxu0 0
      %6439 = vmatpush1.bf16.msra.mxu0 0
      %6440 = vmatprep.subr.bf16.mxu0 0
      %6441 = vmatpush1.bf16.msra.mxu0 0
      %6442 = vmatprep.subr.bf16.mxu0 0
      %6443 = vmatpush1.bf16.msra.mxu0 0
      %6444 = vmatprep.subr.bf16.mxu0 0
      %6445 = vmatpush1.bf16.msra.mxu0 0
      %6446 = vmatprep.subr.bf16.mxu0 0
      %6447 = vmatpush1.bf16.msra.mxu0 0
      %6448 = vmatprep.mubr.bf16.mxu0 0
      %6449 = vmatmul.mubr.bf16.gmra.mrb[0].mxu0 %v6414
      %v6450 = vpop.f32.mrb[0].mxu0
      %v6451 = vadd.f32 0.0, %v6450
      %v6452 = vpop.f32.mrb[0].mxu0
      %v6453 = vpop.f32.mrb[0].mxu0
      %v6454 = vadd.f32 0.0, %v6453
      %v6455 = vpop.f32.mrb[0].mxu0
      %6456 = vdwg.mxu0
      %v6457 = vadd.f32 %v6341, %v6451
      %v6458 = vadd.f32 %v6342, %v6454
      %s6459 = scalar_lea.vmem %s11, 56
      %v6460 = vld [vmem:[%s6459] sm:$0xf]
      %v6461 = vld [vmem:[%s6459 + $0x4] sm:$0xf]
      %v6464 = vunpack.c.l.b16 %v6460
      %v6465 = vunpack.c.l.b16 %v6461
      %v6466 = vpack.c.b16 %v6465, %v6464
      %v6468 = vsel %vm5658, %v6466, 0
      %6470 = vmatprep.subr.bf16.mxu0 0
      %6471 = vmatpush1.bf16.msra.mxu0 %v5647
      %6472 = vmatprep.subr.bf16.mxu0 0
      %6473 = vmatpush1.bf16.msra.mxu0 %v5648
      %6474 = vmatprep.subr.bf16.mxu0 0
      %6475 = vmatpush1.bf16.msra.mxu0 %v5649
      %6476 = vmatprep.subr.bf16.mxu0 0
      %6477 = vmatpush1.bf16.msra.mxu0 %v5650
      %6478 = vmatprep.subr.bf16.mxu0 0
      %6479 = vmatpush1.bf16.msra.mxu0 0
      %6480 = vmatprep.subr.bf16.mxu0 0
      %6481 = vmatpush1.bf16.msra.mxu0 0
      %6482 = vmatprep.subr.bf16.mxu0 0
      %6483 = vmatpush1.bf16.msra.mxu0 0
      %6484 = vmatprep.subr.bf16.mxu0 0
      %6485 = vmatpush1.bf16.msra.mxu0 0
      %6486 = vmatprep.subr.bf16.mxu0 0
      %6487 = vmatpush1.bf16.msra.mxu0 0
      %6488 = vmatprep.subr.bf16.mxu0 0
      %6489 = vmatpush1.bf16.msra.mxu0 0
      %6490 = vmatprep.subr.bf16.mxu0 0
      %6491 = vmatpush1.bf16.msra.mxu0 0
      %6492 = vmatprep.subr.bf16.mxu0 0
      %6493 = vmatpush1.bf16.msra.mxu0 0
      %6494 = vmatprep.subr.bf16.mxu0 0
      %6495 = vmatpush1.bf16.msra.mxu0 0
      %6496 = vmatprep.subr.bf16.mxu0 0
      %6497 = vmatpush1.bf16.msra.mxu0 0
      %6498 = vmatprep.subr.bf16.mxu0 0
      %6499 = vmatpush1.bf16.msra.mxu0 0
      %6500 = vmatprep.subr.bf16.mxu0 0
      %6501 = vmatpush1.bf16.msra.mxu0 0
      %6502 = vmatprep.mubr.bf16.mxu0 0
      %6503 = vmatmul.mubr.bf16.gmra.mrb[0].mxu0 %v6468
      %v6504 = vpop.f32.mrb[0].mxu0
      %v6505 = vadd.f32 0.0, %v6504
      %v6506 = vpop.f32.mrb[0].mxu0
      %v6507 = vpop.f32.mrb[0].mxu0
      %v6508 = vadd.f32 0.0, %v6507
      %v6509 = vpop.f32.mrb[0].mxu0
      %6510 = vdwg.mxu0
      %v6511 = vpack.c.bf16 %v6508, %v6505
      %s6512 = scalar_lea.vmem %s12, 112
      %v6513 = vld [vmem:[%s6512] sm:$0xf]
      %v6514 = vld [vmem:[%s6512 + $0x4] sm:$0xf]
      %v6515 = vld [vmem:[%s6512 + $0x8] sm:$0xf]
      %v6516 = vld [vmem:[%s6512 + $0xc] sm:$0xf]
      %v6521 = vunpack.c.l.b16 %v6513
      %v6522 = vunpack.c.l.b16 %v6514
      %v6523 = vunpack.c.l.b16 %v6515
      %v6524 = vunpack.c.l.b16 %v6516
      %v6525 = vpack.c.b16 %v6522, %v6521
      %v6526 = vpack.c.b16 %v6524, %v6523
      %v6530 = vsel %vm5778, %v6511, 0
      %6532 = vmatprep.subr.bf16.mxu0 0
      %6533 = vmatpush1.bf16.msra.mxu0 %v6525
      %6534 = vmatprep.subr.bf16.mxu0 0
      %6535 = vmatpush1.bf16.msra.mxu0 %v6526
      %6536 = vmatprep.subr.bf16.mxu0 0
      %6537 = vmatpush1.bf16.msra.mxu0 0
      %6538 = vmatprep.subr.bf16.mxu0 0
      %6539 = vmatpush1.bf16.msra.mxu0 0
      %6540 = vmatprep.subr.bf16.mxu0 0
      %6541 = vmatpush1.bf16.msra.mxu0 0
      %6542 = vmatprep.subr.bf16.mxu0 0
      %6543 = vmatpush1.bf16.msra.mxu0 0
      %6544 = vmatprep.subr.bf16.mxu0 0
      %6545 = vmatpush1.bf16.msra.mxu0 0
      %6546 = vmatprep.subr.bf16.mxu0 0
      %6547 = vmatpush1.bf16.msra.mxu0 0
      %6548 = vmatprep.subr.bf16.mxu0 0
      %6549 = vmatpush1.bf16.msra.mxu0 0
      %6550 = vmatprep.subr.bf16.mxu0 0
      %6551 = vmatpush1.bf16.msra.mxu0 0
      %6552 = vmatprep.subr.bf16.mxu0 0
      %6553 = vmatpush1.bf16.msra.mxu0 0
      %6554 = vmatprep.subr.bf16.mxu0 0
      %6555 = vmatpush1.bf16.msra.mxu0 0
      %6556 = vmatprep.subr.bf16.mxu0 0
      %6557 = vmatpush1.bf16.msra.mxu0 0
      %6558 = vmatprep.subr.bf16.mxu0 0
      %6559 = vmatpush1.bf16.msra.mxu0 0
      %6560 = vmatprep.subr.bf16.mxu0 0
      %6561 = vmatpush1.bf16.msra.mxu0 0
      %6562 = vmatprep.subr.bf16.mxu0 0
      %6563 = vmatpush1.bf16.msra.mxu0 0
      %6564 = vmatprep.mubr.bf16.mxu0 0
      %6565 = vmatmul.mubr.bf16.gmra.mrb[0].mxu0 %v6530
      %v6566 = vpop.f32.mrb[0].mxu0
      %v6567 = vadd.f32 0.0, %v6566
      %v6568 = vpop.f32.mrb[0].mxu0
      %v6569 = vpop.f32.mrb[0].mxu0
      %v6570 = vadd.f32 0.0, %v6569
      %v6571 = vpop.f32.mrb[0].mxu0
      %6572 = vdwg.mxu0
      %v6573 = vadd.f32 %v6457, %v6567
      %v6574 = vadd.f32 %v6458, %v6570
      %s6575 = scalar_lea.vmem %s11, 64
      %v6576 = vld [vmem:[%s6575] sm:$0xf]
      %v6577 = vld [vmem:[%s6575 + $0x4] sm:$0xf]
      %v6580 = vunpack.c.l.b16 %v6576
      %v6581 = vunpack.c.l.b16 %v6577
      %v6582 = vpack.c.b16 %v6581, %v6580
      %v6584 = vsel %vm5658, %v6582, 0
      %6586 = vmatprep.subr.bf16.mxu0 0
      %6587 = vmatpush1.bf16.msra.mxu0 %v5647
      %6588 = vmatprep.subr.bf16.mxu0 0
      %6589 = vmatpush1.bf16.msra.mxu0 %v5648
      %6590 = vmatprep.subr.bf16.mxu0 0
      %6591 = vmatpush1.bf16.msra.mxu0 %v5649
      %6592 = vmatprep.subr.bf16.mxu0 0
      %6593 = vmatpush1.bf16.msra.mxu0 %v5650
      %6594 = vmatprep.subr.bf16.mxu0 0
      %6595 = vmatpush1.bf16.msra.mxu0 0
      %6596 = vmatprep.subr.bf16.mxu0 0
      %6597 = vmatpush1.bf16.msra.mxu0 0
      %6598 = vmatprep.subr.bf16.mxu0 0
      %6599 = vmatpush1.bf16.msra.mxu0 0
      %6600 = vmatprep.subr.bf16.mxu0 0
      %6601 = vmatpush1.bf16.msra.mxu0 0
      %6602 = vmatprep.subr.bf16.mxu0 0
      %6603 = vmatpush1.bf16.msra.mxu0 0
      %6604 = vmatprep.subr.bf16.mxu0 0
      %6605 = vmatpush1.bf16.msra.mxu0 0
      %6606 = vmatprep.subr.bf16.mxu0 0
      %6607 = vmatpush1.bf16.msra.mxu0 0
      %6608 = vmatprep.subr.bf16.mxu0 0
      %6609 = vmatpush1.bf16.msra.mxu0 0
      %6610 = vmatprep.subr.bf16.mxu0 0
      %6611 = vmatpush1.bf16.msra.mxu0 0
      %6612 = vmatprep.subr.bf16.mxu0 0
      %6613 = vmatpush1.bf16.msra.mxu0 0
      %6614 = vmatprep.subr.bf16.mxu0 0
      %6615 = vmatpush1.bf16.msra.mxu0 0
      %6616 = vmatprep.subr.bf16.mxu0 0
      %6617 = vmatpush1.bf16.msra.mxu0 0
      %6618 = vmatprep.mubr.bf16.mxu0 0
      %6619 = vmatmul.mubr.bf16.gmra.mrb[0].mxu0 %v6584
      %v6620 = vpop.f32.mrb[0].mxu0
      %v6621 = vadd.f32 0.0, %v6620
      %v6622 = vpop.f32.mrb[0].mxu0
      %v6623 = vpop.f32.mrb[0].mxu0
      %v6624 = vadd.f32 0.0, %v6623
      %v6625 = vpop.f32.mrb[0].mxu0
      %6626 = vdwg.mxu0
      %v6627 = vpack.c.bf16 %v6624, %v6621
      %s6628 = scalar_lea.vmem %s12, 128
      %v6629 = vld [vmem:[%s6628] sm:$0xf]
      %v6630 = vld [vmem:[%s6628 + $0x4] sm:$0xf]
      %v6631 = vld [vmem:[%s6628 + $0x8] sm:$0xf]
      %v6632 = vld [vmem:[%s6628 + $0xc] sm:$0xf]
      %v6637 = vunpack.c.l.b16 %v6629
      %v6638 = vunpack.c.l.b16 %v6630
      %v6639 = vunpack.c.l.b16 %v6631
      %v6640 = vunpack.c.l.b16 %v6632
      %v6641 = vpack.c.b16 %v6638, %v6637
      %v6642 = vpack.c.b16 %v6640, %v6639
      %v6646 = vsel %vm5778, %v6627, 0
      %6648 = vmatprep.subr.bf16.mxu0 0
      %6649 = vmatpush1.bf16.msra.mxu0 %v6641
      %6650 = vmatprep.subr.bf16.mxu0 0
      %6651 = vmatpush1.bf16.msra.mxu0 %v6642
      %6652 = vmatprep.subr.bf16.mxu0 0
      %6653 = vmatpush1.bf16.msra.mxu0 0
      %6654 = vmatprep.subr.bf16.mxu0 0
      %6655 = vmatpush1.bf16.msra.mxu0 0
      %6656 = vmatprep.subr.bf16.mxu0 0
      %6657 = vmatpush1.bf16.msra.mxu0 0
      %6658 = vmatprep.subr.bf16.mxu0 0
      %6659 = vmatpush1.bf16.msra.mxu0 0
      %6660 = vmatprep.subr.bf16.mxu0 0
      %6661 = vmatpush1.bf16.msra.mxu0 0
      %6662 = vmatprep.subr.bf16.mxu0 0
      %6663 = vmatpush1.bf16.msra.mxu0 0
      %6664 = vmatprep.subr.bf16.mxu0 0
      %6665 = vmatpush1.bf16.msra.mxu0 0
      %6666 = vmatprep.subr.bf16.mxu0 0
      %6667 = vmatpush1.bf16.msra.mxu0 0
      %6668 = vmatprep.subr.bf16.mxu0 0
      %6669 = vmatpush1.bf16.msra.mxu0 0
      %6670 = vmatprep.subr.bf16.mxu0 0
      %6671 = vmatpush1.bf16.msra.mxu0 0
      %6672 = vmatprep.subr.bf16.mxu0 0
      %6673 = vmatpush1.bf16.msra.mxu0 0
      %6674 = vmatprep.subr.bf16.mxu0 0
      %6675 = vmatpush1.bf16.msra.mxu0 0
      %6676 = vmatprep.subr.bf16.mxu0 0
      %6677 = vmatpush1.bf16.msra.mxu0 0
      %6678 = vmatprep.subr.bf16.mxu0 0
      %6679 = vmatpush1.bf16.msra.mxu0 0
      %6680 = vmatprep.mubr.bf16.mxu0 0
      %6681 = vmatmul.mubr.bf16.gmra.mrb[0].mxu0 %v6646
      %v6682 = vpop.f32.mrb[0].mxu0
      %v6683 = vadd.f32 0.0, %v6682
      %v6684 = vpop.f32.mrb[0].mxu0
      %v6685 = vpop.f32.mrb[0].mxu0
      %v6686 = vadd.f32 0.0, %v6685
      %v6687 = vpop.f32.mrb[0].mxu0
      %6688 = vdwg.mxu0
      %v6689 = vadd.f32 %v6573, %v6683
      %v6690 = vadd.f32 %v6574, %v6686
      %v6691 = vld [vmem:[%s13] sm:$0x1]
      %v6693 = vlaneseq
      %v6694 = vshrl.u32 %v6693, 7
      %v6695 = vsub.s32 0, %v6694
      %v6696 = vrot.slane %v6691, %v6695
      %v6698 = vadd.f32 %v6689, %v6696
      %v6699 = vadd.f32 %v6690, %v6696
      %vm6700 = vcmp.gt.f32.partialorder %v6698, 0.0
      %vm6701 = vcmp.gt.f32.partialorder %v6699, 0.0
      %v6702 = vmul.f32 %v6698, 0.2
      %v6703 = vmul.f32 %v6699, 0.2
      %v6704 = vsel %vm6700, %v6698, %v6702
      %v6705 = vsel %vm6701, %v6699, %v6703
      %v6706 = vld [vmem:[%s14] sm:$0x1]
      %v6708 = vlaneseq
      %v6709 = vshrl.u32 %v6708, 7
      %v6710 = vsub.s32 0, %v6709
      %v6711 = vrot.slane %v6706, %v6710
      %v6713 = vmul.f32 %v6704, %v6711
      %v6714 = vmul.f32 %v6705, %v6711
      %v6715 = vld [vmem:[%s15] sm:$0x1]
      %v6717 = vlaneseq
      %v6718 = vshrl.u32 %v6717, 7
      %v6719 = vsub.s32 0, %v6718
      %v6720 = vrot.slane %v6715, %v6719
      %v6722 = vadd.f32 %v6713, %v6720
      %v6723 = vadd.f32 %v6714, %v6720
      %v6724 = vpack.c.bf16 %v6723, %v6722
      %v6725 = vld [vmem:[%s16] sm:$0x3]
      %v6727 = vsel %vm3933, %v6725, 0
      %6729 = vmatprep.subr.bf16.mxu0 0
      %6730 = vmatpush1.bf16.msra.mxu0 %v6724
      %6731 = vmatprep.subr.bf16.mxu0 0
      %6732 = vmatpush1.bf16.msra.mxu0 0
      %6733 = vmatprep.subr.bf16.mxu0 0
      %6734 = vmatpush1.bf16.msra.mxu0 0
      %6735 = vmatprep.subr.bf16.mxu0 0
      %6736 = vmatpush1.bf16.msra.mxu0 0
      %6737 = vmatprep.subr.bf16.mxu0 0
      %6738 = vmatpush1.bf16.msra.mxu0 0
      %6739 = vmatprep.subr.bf16.mxu0 0
      %6740 = vmatpush1.bf16.msra.mxu0 0
      %6741 = vmatprep.subr.bf16.mxu0 0
      %6742 = vmatpush1.bf16.msra.mxu0 0
      %6743 = vmatprep.subr.bf16.mxu0 0
      %6744 = vmatpush1.bf16.msra.mxu0 0
      %6745 = vmatprep.subr.bf16.mxu0 0
      %6746 = vmatpush1.bf16.msra.mxu0 0
      %6747 = vmatprep.subr.bf16.mxu0 0
      %6748 = vmatpush1.bf16.msra.mxu0 0
      %6749 = vmatprep.subr.bf16.mxu0 0
      %6750 = vmatpush1.bf16.msra.mxu0 0
      %6751 = vmatprep.subr.bf16.mxu0 0
      %6752 = vmatpush1.bf16.msra.mxu0 0
      %6753 = vmatprep.subr.bf16.mxu0 0
      %6754 = vmatpush1.bf16.msra.mxu0 0
      %6755 = vmatprep.subr.bf16.mxu0 0
      %6756 = vmatpush1.bf16.msra.mxu0 0
      %6757 = vmatprep.subr.bf16.mxu0 0
      %6758 = vmatpush1.bf16.msra.mxu0 0
      %6759 = vmatprep.subr.bf16.mxu0 0
      %6760 = vmatpush1.bf16.msra.mxu0 0
      %6761 = vmatprep.mubr.bf16.mxu0 0
      %6762 = vmatmul.mubr.bf16.gmra.mrb[0].mxu0 %v6727
      %v6763 = vpop.f32.mrb[0].mxu0
      %v6764 = vadd.f32 0.0, %v6763
      %v6765 = vpop.f32.mrb[0].mxu0
      %v6766 = vpop.f32.mrb[0].mxu0
      %v6767 = vpop.f32.mrb[0].mxu0
      %6768 = vdwg.mxu0
      %v6769 = vpack.c.bf16 %v6764, %v6764
      %v6770 = vld [vmem:[%s17] sm:$0xf]
      %v6771 = vld [vmem:[%s17 + $0x4] sm:$0xf]
      %v6772 = vld [vmem:[%s17 + $0x8] sm:$0xf]
      %v6773 = vld [vmem:[%s17 + $0xc] sm:$0xf]
      %v6774 = vld [vmem:[%s17 + $0x10] sm:$0xf]
      %v6775 = vld [vmem:[%s17 + $0x14] sm:$0xf]
      %v6776 = vld [vmem:[%s17 + $0x18] sm:$0xf]
      %v6777 = vld [vmem:[%s17 + $0x1c] sm:$0xf]
      %s6778 = scalar_lea.vmem %s16, 2
      %v6779 = vld [vmem:[%s6778] sm:$0x3]
      %v6781 = vsel %vm3933, %v6779, 0
      %6783 = vmatprep.subr.bf16.mxu0 0
      %6784 = vmatpush1.bf16.msra.mxu0 %v6724
      %6785 = vmatprep.subr.bf16.mxu0 0
      %6786 = vmatpush1.bf16.msra.mxu0 0
      %6787 = vmatprep.subr.bf16.mxu0 0
      %6788 = vmatpush1.bf16.msra.mxu0 0
      %6789 = vmatprep.subr.bf16.mxu0 0
      %6790 = vmatpush1.bf16.msra.mxu0 0
      %6791 = vmatprep.subr.bf16.mxu0 0
      %6792 = vmatpush1.bf16.msra.mxu0 0
      %6793 = vmatprep.subr.bf16.mxu0 0
      %6794 = vmatpush1.bf16.msra.mxu0 0
      %6795 = vmatprep.subr.bf16.mxu0 0
      %6796 = vmatpush1.bf16.msra.mxu0 0
      %6797 = vmatprep.subr.bf16.mxu0 0
      %6798 = vmatpush1.bf16.msra.mxu0 0
      %6799 = vmatprep.subr.bf16.mxu0 0
      %6800 = vmatpush1.bf16.msra.mxu0 0
      %6801 = vmatprep.subr.bf16.mxu0 0
      %6802 = vmatpush1.bf16.msra.mxu0 0
      %6803 = vmatprep.subr.bf16.mxu0 0
      %6804 = vmatpush1.bf16.msra.mxu0 0
      %6805 = vmatprep.subr.bf16.mxu0 0
      %6806 = vmatpush1.bf16.msra.mxu0 0
      %6807 = vmatprep.subr.bf16.mxu0 0
      %6808 = vmatpush1.bf16.msra.mxu0 0
      %6809 = vmatprep.subr.bf16.mxu0 0
      %6810 = vmatpush1.bf16.msra.mxu0 0
      %6811 = vmatprep.subr.bf16.mxu0 0
      %6812 = vmatpush1.bf16.msra.mxu0 0
      %6813 = vmatprep.subr.bf16.mxu0 0
      %6814 = vmatpush1.bf16.msra.mxu0 0
      %6815 = vmatprep.mubr.bf16.mxu0 0
      %6816 = vmatmul.mubr.bf16.gmra.mrb[0].mxu0 %v6781
      %v6817 = vpop.f32.mrb[0].mxu0
      %v6818 = vadd.f32 0.0, %v6817
      %v6819 = vpop.f32.mrb[0].mxu0
      %v6820 = vpop.f32.mrb[0].mxu0
      %v6821 = vpop.f32.mrb[0].mxu0
      %6822 = vdwg.mxu0
      %v6823 = vpack.c.bf16 %v6818, %v6818
      %s6824 = scalar_lea.vmem %s17, 32
      %v6825 = vld [vmem:[%s6824] sm:$0xf]
      %v6826 = vld [vmem:[%s6824 + $0x4] sm:$0xf]
      %v6827 = vld [vmem:[%s6824 + $0x8] sm:$0xf]
      %v6828 = vld [vmem:[%s6824 + $0xc] sm:$0xf]
      %v6829 = vld [vmem:[%s6824 + $0x10] sm:$0xf]
      %v6830 = vld [vmem:[%s6824 + $0x14] sm:$0xf]
      %v6831 = vld [vmem:[%s6824 + $0x18] sm:$0xf]
      %v6832 = vld [vmem:[%s6824 + $0x1c] sm:$0xf]
      %v6841 = vunpack.c.l.b16 %v6825
      %v6842 = vunpack.c.l.b16 %v6826
      %v6843 = vunpack.c.l.b16 %v6827
      %v6844 = vunpack.c.l.b16 %v6828
      %v6845 = vunpack.c.l.b16 %v6829
      %v6846 = vunpack.c.l.b16 %v6830
      %v6847 = vunpack.c.l.b16 %v6831
      %v6848 = vunpack.c.l.b16 %v6832
      %v6849 = vpack.c.b16 %v6842, %v6841
      %v6850 = vpack.c.b16 %v6844, %v6843
      %v6851 = vpack.c.b16 %v6846, %v6845
      %v6852 = vpack.c.b16 %v6848, %v6847
      %v6858 = vsel %vm5658, %v6823, 0
      %6860 = vmatprep.subr.bf16.mxu0 0
      %6861 = vmatpush1.bf16.msra.mxu0 %v6849
      %6862 = vmatprep.subr.bf16.mxu0 0
      %6863 = vmatpush1.bf16.msra.mxu0 %v6850
      %6864 = vmatprep.subr.bf16.mxu0 0
      %6865 = vmatpush1.bf16.msra.mxu0 %v6851
      %6866 = vmatprep.subr.bf16.mxu0 0
      %6867 = vmatpush1.bf16.msra.mxu0 %v6852
      %6868 = vmatprep.subr.bf16.mxu0 0
      %6869 = vmatpush1.bf16.msra.mxu0 0
      %6870 = vmatprep.subr.bf16.mxu0 0
      %6871 = vmatpush1.bf16.msra.mxu0 0
      %6872 = vmatprep.subr.bf16.mxu0 0
      %6873 = vmatpush1.bf16.msra.mxu0 0
      %6874 = vmatprep.subr.bf16.mxu0 0
      %6875 = vmatpush1.bf16.msra.mxu0 0
      %6876 = vmatprep.subr.bf16.mxu0 0
      %6877 = vmatpush1.bf16.msra.mxu0 0
      %6878 = vmatprep.subr.bf16.mxu0 0
      %6879 = vmatpush1.bf16.msra.mxu0 0
      %6880 = vmatprep.subr.bf16.mxu0 0
      %6881 = vmatpush1.bf16.msra.mxu0 0
      %6882 = vmatprep.subr.bf16.mxu0 0
      %6883 = vmatpush1.bf16.msra.mxu0 0
      %6884 = vmatprep.subr.bf16.mxu0 0
      %6885 = vmatpush1.bf16.msra.mxu0 0
      %6886 = vmatprep.subr.bf16.mxu0 0
      %6887 = vmatpush1.bf16.msra.mxu0 0
      %6888 = vmatprep.subr.bf16.mxu0 0
      %6889 = vmatpush1.bf16.msra.mxu0 0
      %6890 = vmatprep.subr.bf16.mxu0 0
      %6891 = vmatpush1.bf16.msra.mxu0 0
      %6892 = vmatprep.mubr.bf16.mxu0 0
      %6893 = vmatmul.mubr.bf16.gmra.mrb[0].mxu0 %v6858
      %v6894 = vpop.f32.mrb[0].mxu0
      %v6895 = vadd.f32 0.0, %v6894
      %v6896 = vpop.f32.mrb[0].mxu0
      %v6897 = vpop.f32.mrb[0].mxu0
      %v6898 = vpop.f32.mrb[0].mxu0
      %6899 = vdwg.mxu0
      %v6908 = vunpack.c.l.b16 %v6770
      %v6909 = vunpack.c.l.b16 %v6771
      %v6910 = vunpack.c.l.b16 %v6772
      %v6911 = vunpack.c.l.b16 %v6773
      %v6912 = vunpack.c.l.b16 %v6774
      %v6913 = vunpack.c.l.b16 %v6775
      %v6914 = vunpack.c.l.b16 %v6776
      %v6915 = vunpack.c.l.b16 %v6777
      %v6916 = vpack.c.b16 %v6909, %v6908
      %v6917 = vpack.c.b16 %v6911, %v6910
      %v6918 = vpack.c.b16 %v6913, %v6912
      %v6919 = vpack.c.b16 %v6915, %v6914
      %v6925 = vsel %vm5658, %v6769, 0
      %6927 = vmatprep.subr.bf16.mxu0 0
      %6928 = vmatpush1.bf16.msra.mxu0 %v6916
      %6929 = vmatprep.subr.bf16.mxu0 0
      %6930 = vmatpush1.bf16.msra.mxu0 %v6917
      %6931 = vmatprep.subr.bf16.mxu0 0
      %6932 = vmatpush1.bf16.msra.mxu0 %v6918
      %6933 = vmatprep.subr.bf16.mxu0 0
      %6934 = vmatpush1.bf16.msra.mxu0 %v6919
      %6935 = vmatprep.subr.bf16.mxu0 0
      %6936 = vmatpush1.bf16.msra.mxu0 0
      %6937 = vmatprep.subr.bf16.mxu0 0
      %6938 = vmatpush1.bf16.msra.mxu0 0
      %6939 = vmatprep.subr.bf16.mxu0 0
      %6940 = vmatpush1.bf16.msra.mxu0 0
      %6941 = vmatprep.subr.bf16.mxu0 0
      %6942 = vmatpush1.bf16.msra.mxu0 0
      %6943 = vmatprep.subr.bf16.mxu0 0
      %6944 = vmatpush1.bf16.msra.mxu0 0
      %6945 = vmatprep.subr.bf16.mxu0 0
      %6946 = vmatpush1.bf16.msra.mxu0 0
      %6947 = vmatprep.subr.bf16.mxu0 0
      %6948 = vmatpush1.bf16.msra.mxu0 0
      %6949 = vmatprep.subr.bf16.mxu0 0
      %6950 = vmatpush1.bf16.msra.mxu0 0
      %6951 = vmatprep.subr.bf16.mxu0 0
      %6952 = vmatpush1.bf16.msra.mxu0 0
      %6953 = vmatprep.subr.bf16.mxu0 0
      %6954 = vmatpush1.bf16.msra.mxu0 0
      %6955 = vmatprep.subr.bf16.mxu0 0
      %6956 = vmatpush1.bf16.msra.mxu0 0
      %6957 = vmatprep.subr.bf16.mxu0 0
      %6958 = vmatpush1.bf16.msra.mxu0 0
      %6959 = vmatprep.mubr.bf16.mxu0 0
      %6960 = vmatmul.mubr.bf16.gmra.mrb[0].mxu0 %v6925
      %v6961 = vpop.f32.mrb[0].mxu0
      %v6962 = vadd.f32 %v6895, %v6961
      %v6963 = vpop.f32.mrb[0].mxu0
      %v6964 = vpop.f32.mrb[0].mxu0
      %v6965 = vpop.f32.mrb[0].mxu0
      %6966 = vdwg.mxu0
      %s6967 = scalar_lea.vmem %s16, 4
      %v6968 = vld [vmem:[%s6967] sm:$0x3]
      %v6970 = vsel %vm3933, %v6968, 0
      %6972 = vmatprep.subr.bf16.mxu0 0
      %6973 = vmatpush1.bf16.msra.mxu0 %v6724
      %6974 = vmatprep.subr.bf16.mxu0 0
      %6975 = vmatpush1.bf16.msra.mxu0 0
      %6976 = vmatprep.subr.bf16.mxu0 0
      %6977 = vmatpush1.bf16.msra.mxu0 0
      %6978 = vmatprep.subr.bf16.mxu0 0
      %6979 = vmatpush1.bf16.msra.mxu0 0
      %6980 = vmatprep.subr.bf16.mxu0 0
      %6981 = vmatpush1.bf16.msra.mxu0 0
      %6982 = vmatprep.subr.bf16.mxu0 0
      %6983 = vmatpush1.bf16.msra.mxu0 0
      %6984 = vmatprep.subr.bf16.mxu0 0
      %6985 = vmatpush1.bf16.msra.mxu0 0
      %6986 = vmatprep.subr.bf16.mxu0 0
      %6987 = vmatpush1.bf16.msra.mxu0 0
      %6988 = vmatprep.subr.bf16.mxu0 0
      %6989 = vmatpush1.bf16.msra.mxu0 0
      %6990 = vmatprep.subr.bf16.mxu0 0
      %6991 = vmatpush1.bf16.msra.mxu0 0
      %6992 = vmatprep.subr.bf16.mxu0 0
      %6993 = vmatpush1.bf16.msra.mxu0 0
      %6994 = vmatprep.subr.bf16.mxu0 0
      %6995 = vmatpush1.bf16.msra.mxu0 0
      %6996 = vmatprep.subr.bf16.mxu0 0
      %6997 = vmatpush1.bf16.msra.mxu0 0
      %6998 = vmatprep.subr.bf16.mxu0 0
      %6999 = vmatpush1.bf16.msra.mxu0 0
      %7000 = vmatprep.subr.bf16.mxu0 0
      %7001 = vmatpush1.bf16.msra.mxu0 0
      %7002 = vmatprep.subr.bf16.mxu0 0
      %7003 = vmatpush1.bf16.msra.mxu0 0
      %7004 = vmatprep.mubr.bf16.mxu0 0
      %7005 = vmatmul.mubr.bf16.gmra.mrb[0].mxu0 %v6970
      %v7006 = vpop.f32.mrb[0].mxu0
      %v7007 = vadd.f32 0.0, %v7006
      %v7008 = vpop.f32.mrb[0].mxu0
      %v7009 = vpop.f32.mrb[0].mxu0
      %v7010 = vpop.f32.mrb[0].mxu0
      %7011 = vdwg.mxu0
      %v7012 = vpack.c.bf16 %v7007, %v7007
      %s7013 = scalar_lea.vmem %s17, 64
      %v7014 = vld [vmem:[%s7013] sm:$0xf]
      %v7015 = vld [vmem:[%s7013 + $0x4] sm:$0xf]
      %v7016 = vld [vmem:[%s7013 + $0x8] sm:$0xf]
      %v7017 = vld [vmem:[%s7013 + $0xc] sm:$0xf]
      %v7018 = vld [vmem:[%s7013 + $0x10] sm:$0xf]
      %v7019 = vld [vmem:[%s7013 + $0x14] sm:$0xf]
      %v7020 = vld [vmem:[%s7013 + $0x18] sm:$0xf]
      %v7021 = vld [vmem:[%s7013 + $0x1c] sm:$0xf]
      %v7030 = vunpack.c.l.b16 %v7014
      %v7031 = vunpack.c.l.b16 %v7015
      %v7032 = vunpack.c.l.b16 %v7016
      %v7033 = vunpack.c.l.b16 %v7017
      %v7034 = vunpack.c.l.b16 %v7018
      %v7035 = vunpack.c.l.b16 %v7019
      %v7036 = vunpack.c.l.b16 %v7020
      %v7037 = vunpack.c.l.b16 %v7021
      %v7038 = vpack.c.b16 %v7031, %v7030
      %v7039 = vpack.c.b16 %v7033, %v7032
      %v7040 = vpack.c.b16 %v7035, %v7034
      %v7041 = vpack.c.b16 %v7037, %v7036
      %v7047 = vsel %vm5658, %v7012, 0
      %7049 = vmatprep.subr.bf16.mxu0 0
      %7050 = vmatpush1.bf16.msra.mxu0 %v7038
      %7051 = vmatprep.subr.bf16.mxu0 0
      %7052 = vmatpush1.bf16.msra.mxu0 %v7039
      %7053 = vmatprep.subr.bf16.mxu0 0
      %7054 = vmatpush1.bf16.msra.mxu0 %v7040
      %7055 = vmatprep.subr.bf16.mxu0 0
      %7056 = vmatpush1.bf16.msra.mxu0 %v7041
      %7057 = vmatprep.subr.bf16.mxu0 0
      %7058 = vmatpush1.bf16.msra.mxu0 0
      %7059 = vmatprep.subr.bf16.mxu0 0
      %7060 = vmatpush1.bf16.msra.mxu0 0
      %7061 = vmatprep.subr.bf16.mxu0 0
      %7062 = vmatpush1.bf16.msra.mxu0 0
      %7063 = vmatprep.subr.bf16.mxu0 0
      %7064 = vmatpush1.bf16.msra.mxu0 0
      %7065 = vmatprep.subr.bf16.mxu0 0
      %7066 = vmatpush1.bf16.msra.mxu0 0
      %7067 = vmatprep.subr.bf16.mxu0 0
      %7068 = vmatpush1.bf16.msra.mxu0 0
      %7069 = vmatprep.subr.bf16.mxu0 0
      %7070 = vmatpush1.bf16.msra.mxu0 0
      %7071 = vmatprep.subr.bf16.mxu0 0
      %7072 = vmatpush1.bf16.msra.mxu0 0
      %7073 = vmatprep.subr.bf16.mxu0 0
      %7074 = vmatpush1.bf16.msra.mxu0 0
      %7075 = vmatprep.subr.bf16.mxu0 0
      %7076 = vmatpush1.bf16.msra.mxu0 0
      %7077 = vmatprep.subr.bf16.mxu0 0
      %7078 = vmatpush1.bf16.msra.mxu0 0
      %7079 = vmatprep.subr.bf16.mxu0 0
      %7080 = vmatpush1.bf16.msra.mxu0 0
      %7081 = vmatprep.mubr.bf16.mxu0 0
      %7082 = vmatmul.mubr.bf16.gmra.mrb[0].mxu0 %v7047
      %v7083 = vpop.f32.mrb[0].mxu0
      %v7084 = vadd.f32 0.0, %v7083
      %v7085 = vpop.f32.mrb[0].mxu0
      %v7086 = vpop.f32.mrb[0].mxu0
      %v7087 = vpop.f32.mrb[0].mxu0
      %7088 = vdwg.mxu0
      %v7089 = vadd.f32 %v6962, %v7084
      %s7090 = scalar_lea.vmem %s16, 6
      %v7091 = vld [vmem:[%s7090] sm:$0x3]
      %v7093 = vsel %vm3933, %v7091, 0
      %7095 = vmatprep.subr.bf16.mxu0 0
      %7096 = vmatpush1.bf16.msra.mxu0 %v6724
      %7097 = vmatprep.subr.bf16.mxu0 0
      %7098 = vmatpush1.bf16.msra.mxu0 0
      %7099 = vmatprep.subr.bf16.mxu0 0
      %7100 = vmatpush1.bf16.msra.mxu0 0
      %7101 = vmatprep.subr.bf16.mxu0 0
      %7102 = vmatpush1.bf16.msra.mxu0 0
      %7103 = vmatprep.subr.bf16.mxu0 0
      %7104 = vmatpush1.bf16.msra.mxu0 0
      %7105 = vmatprep.subr.bf16.mxu0 0
      %7106 = vmatpush1.bf16.msra.mxu0 0
      %7107 = vmatprep.subr.bf16.mxu0 0
      %7108 = vmatpush1.bf16.msra.mxu0 0
      %7109 = vmatprep.subr.bf16.mxu0 0
      %7110 = vmatpush1.bf16.msra.mxu0 0
      %7111 = vmatprep.subr.bf16.mxu0 0
      %7112 = vmatpush1.bf16.msra.mxu0 0
      %7113 = vmatprep.subr.bf16.mxu0 0
      %7114 = vmatpush1.bf16.msra.mxu0 0
      %7115 = vmatprep.subr.bf16.mxu0 0
      %7116 = vmatpush1.bf16.msra.mxu0 0
      %7117 = vmatprep.subr.bf16.mxu0 0
      %7118 = vmatpush1.bf16.msra.mxu0 0
      %7119 = vmatprep.subr.bf16.mxu0 0
      %7120 = vmatpush1.bf16.msra.mxu0 0
      %7121 = vmatprep.subr.bf16.mxu0 0
      %7122 = vmatpush1.bf16.msra.mxu0 0
      %7123 = vmatprep.subr.bf16.mxu0 0
      %7124 = vmatpush1.bf16.msra.mxu0 0
      %7125 = vmatprep.subr.bf16.mxu0 0
      %7126 = vmatpush1.bf16.msra.mxu0 0
      %7127 = vmatprep.mubr.bf16.mxu0 0
      %7128 = vmatmul.mubr.bf16.gmra.mrb[0].mxu0 %v7093
      %v7129 = vpop.f32.mrb[0].mxu0
      %v7130 = vadd.f32 0.0, %v7129
      %v7131 = vpop.f32.mrb[0].mxu0
      %v7132 = vpop.f32.mrb[0].mxu0
      %v7133 = vpop.f32.mrb[0].mxu0
      %7134 = vdwg.mxu0
      %v7135 = vpack.c.bf16 %v7130, %v7130
      %s7136 = scalar_lea.vmem %s17, 96
      %v7137 = vld [vmem:[%s7136] sm:$0xf]
      %v7138 = vld [vmem:[%s7136 + $0x4] sm:$0xf]
      %v7139 = vld [vmem:[%s7136 + $0x8] sm:$0xf]
      %v7140 = vld [vmem:[%s7136 + $0xc] sm:$0xf]
      %v7141 = vld [vmem:[%s7136 + $0x10] sm:$0xf]
      %v7142 = vld [vmem:[%s7136 + $0x14] sm:$0xf]
      %v7143 = vld [vmem:[%s7136 + $0x18] sm:$0xf]
      %v7144 = vld [vmem:[%s7136 + $0x1c] sm:$0xf]
      %v7153 = vunpack.c.l.b16 %v7137
      %v7154 = vunpack.c.l.b16 %v7138
      %v7155 = vunpack.c.l.b16 %v7139
      %v7156 = vunpack.c.l.b16 %v7140
      %v7157 = vunpack.c.l.b16 %v7141
      %v7158 = vunpack.c.l.b16 %v7142
      %v7159 = vunpack.c.l.b16 %v7143
      %v7160 = vunpack.c.l.b16 %v7144
      %v7161 = vpack.c.b16 %v7154, %v7153
      %v7162 = vpack.c.b16 %v7156, %v7155
      %v7163 = vpack.c.b16 %v7158, %v7157
      %v7164 = vpack.c.b16 %v7160, %v7159
      %v7170 = vsel %vm5658, %v7135, 0
      %7172 = vmatprep.subr.bf16.mxu0 0
      %7173 = vmatpush1.bf16.msra.mxu0 %v7161
      %7174 = vmatprep.subr.bf16.mxu0 0
      %7175 = vmatpush1.bf16.msra.mxu0 %v7162
      %7176 = vmatprep.subr.bf16.mxu0 0
      %7177 = vmatpush1.bf16.msra.mxu0 %v7163
      %7178 = vmatprep.subr.bf16.mxu0 0
      %7179 = vmatpush1.bf16.msra.mxu0 %v7164
      %7180 = vmatprep.subr.bf16.mxu0 0
      %7181 = vmatpush1.bf16.msra.mxu0 0
      %7182 = vmatprep.subr.bf16.mxu0 0
      %7183 = vmatpush1.bf16.msra.mxu0 0
      %7184 = vmatprep.subr.bf16.mxu0 0
      %7185 = vmatpush1.bf16.msra.mxu0 0
      %7186 = vmatprep.subr.bf16.mxu0 0
      %7187 = vmatpush1.bf16.msra.mxu0 0
      %7188 = vmatprep.subr.bf16.mxu0 0
      %7189 = vmatpush1.bf16.msra.mxu0 0
      %7190 = vmatprep.subr.bf16.mxu0 0
      %7191 = vmatpush1.bf16.msra.mxu0 0
      %7192 = vmatprep.subr.bf16.mxu0 0
      %7193 = vmatpush1.bf16.msra.mxu0 0
      %7194 = vmatprep.subr.bf16.mxu0 0
      %7195 = vmatpush1.bf16.msra.mxu0 0
      %7196 = vmatprep.subr.bf16.mxu0 0
      %7197 = vmatpush1.bf16.msra.mxu0 0
      %7198 = vmatprep.subr.bf16.mxu0 0
      %7199 = vmatpush1.bf16.msra.mxu0 0
      %7200 = vmatprep.subr.bf16.mxu0 0
      %7201 = vmatpush1.bf16.msra.mxu0 0
      %7202 = vmatprep.subr.bf16.mxu0 0
      %7203 = vmatpush1.bf16.msra.mxu0 0
      %7204 = vmatprep.mubr.bf16.mxu0 0
      %7205 = vmatmul.mubr.bf16.gmra.mrb[0].mxu0 %v7170
      %v7206 = vpop.f32.mrb[0].mxu0
      %v7207 = vadd.f32 0.0, %v7206
      %v7208 = vpop.f32.mrb[0].mxu0
      %v7209 = vpop.f32.mrb[0].mxu0
      %v7210 = vpop.f32.mrb[0].mxu0
      %7211 = vdwg.mxu0
      %v7212 = vadd.f32 %v7089, %v7207
      %s7213 = scalar_lea.vmem %s16, 8
      %v7214 = vld [vmem:[%s7213] sm:$0x3]
      %v7216 = vsel %vm3933, %v7214, 0
      %7218 = vmatprep.subr.bf16.mxu0 0
      %7219 = vmatpush1.bf16.msra.mxu0 %v6724
      %7220 = vmatprep.subr.bf16.mxu0 0
      %7221 = vmatpush1.bf16.msra.mxu0 0
      %7222 = vmatprep.subr.bf16.mxu0 0
      %7223 = vmatpush1.bf16.msra.mxu0 0
      %7224 = vmatprep.subr.bf16.mxu0 0
      %7225 = vmatpush1.bf16.msra.mxu0 0
      %7226 = vmatprep.subr.bf16.mxu0 0
      %7227 = vmatpush1.bf16.msra.mxu0 0
      %7228 = vmatprep.subr.bf16.mxu0 0
      %7229 = vmatpush1.bf16.msra.mxu0 0
      %7230 = vmatprep.subr.bf16.mxu0 0
      %7231 = vmatpush1.bf16.msra.mxu0 0
      %7232 = vmatprep.subr.bf16.mxu0 0
      %7233 = vmatpush1.bf16.msra.mxu0 0
      %7234 = vmatprep.subr.bf16.mxu0 0
      %7235 = vmatpush1.bf16.msra.mxu0 0
      %7236 = vmatprep.subr.bf16.mxu0 0
      %7237 = vmatpush1.bf16.msra.mxu0 0
      %7238 = vmatprep.subr.bf16.mxu0 0
      %7239 = vmatpush1.bf16.msra.mxu0 0
      %7240 = vmatprep.subr.bf16.mxu0 0
      %7241 = vmatpush1.bf16.msra.mxu0 0
      %7242 = vmatprep.subr.bf16.mxu0 0
      %7243 = vmatpush1.bf16.msra.mxu0 0
      %7244 = vmatprep.subr.bf16.mxu0 0
      %7245 = vmatpush1.bf16.msra.mxu0 0
      %7246 = vmatprep.subr.bf16.mxu0 0
      %7247 = vmatpush1.bf16.msra.mxu0 0
      %7248 = vmatprep.subr.bf16.mxu0 0
      %7249 = vmatpush1.bf16.msra.mxu0 0
      %7250 = vmatprep.mubr.bf16.mxu0 0
      %7251 = vmatmul.mubr.bf16.gmra.mrb[0].mxu0 %v7216
      %v7252 = vpop.f32.mrb[0].mxu0
      %v7253 = vadd.f32 0.0, %v7252
      %v7254 = vpop.f32.mrb[0].mxu0
      %v7255 = vpop.f32.mrb[0].mxu0
      %v7256 = vpop.f32.mrb[0].mxu0
      %7257 = vdwg.mxu0
      %v7258 = vpack.c.bf16 %v7253, %v7253
      %s7259 = scalar_lea.vmem %s17, 128
      %v7260 = vld [vmem:[%s7259] sm:$0xf]
      %v7261 = vld [vmem:[%s7259 + $0x4] sm:$0xf]
      %v7262 = vld [vmem:[%s7259 + $0x8] sm:$0xf]
      %v7263 = vld [vmem:[%s7259 + $0xc] sm:$0xf]
      %v7264 = vld [vmem:[%s7259 + $0x10] sm:$0xf]
      %v7265 = vld [vmem:[%s7259 + $0x14] sm:$0xf]
      %v7266 = vld [vmem:[%s7259 + $0x18] sm:$0xf]
      %v7267 = vld [vmem:[%s7259 + $0x1c] sm:$0xf]
      %v7276 = vunpack.c.l.b16 %v7260
      %v7277 = vunpack.c.l.b16 %v7261
      %v7278 = vunpack.c.l.b16 %v7262
      %v7279 = vunpack.c.l.b16 %v7263
      %v7280 = vunpack.c.l.b16 %v7264
      %v7281 = vunpack.c.l.b16 %v7265
      %v7282 = vunpack.c.l.b16 %v7266
      %v7283 = vunpack.c.l.b16 %v7267
      %v7284 = vpack.c.b16 %v7277, %v7276
      %v7285 = vpack.c.b16 %v7279, %v7278
      %v7286 = vpack.c.b16 %v7281, %v7280
      %v7287 = vpack.c.b16 %v7283, %v7282
      %v7293 = vsel %vm5658, %v7258, 0
      %7295 = vmatprep.subr.bf16.mxu0 0
      %7296 = vmatpush1.bf16.msra.mxu0 %v7284
      %7297 = vmatprep.subr.bf16.mxu0 0
      %7298 = vmatpush1.bf16.msra.mxu0 %v7285
      %7299 = vmatprep.subr.bf16.mxu0 0
      %7300 = vmatpush1.bf16.msra.mxu0 %v7286
      %7301 = vmatprep.subr.bf16.mxu0 0
      %7302 = vmatpush1.bf16.msra.mxu0 %v7287
      %7303 = vmatprep.subr.bf16.mxu0 0
      %7304 = vmatpush1.bf16.msra.mxu0 0
      %7305 = vmatprep.subr.bf16.mxu0 0
      %7306 = vmatpush1.bf16.msra.mxu0 0
      %7307 = vmatprep.subr.bf16.mxu0 0
      %7308 = vmatpush1.bf16.msra.mxu0 0
      %7309 = vmatprep.subr.bf16.mxu0 0
      %7310 = vmatpush1.bf16.msra.mxu0 0
      %7311 = vmatprep.subr.bf16.mxu0 0
      %7312 = vmatpush1.bf16.msra.mxu0 0
      %7313 = vmatprep.subr.bf16.mxu0 0
      %7314 = vmatpush1.bf16.msra.mxu0 0
      %7315 = vmatprep.subr.bf16.mxu0 0
      %7316 = vmatpush1.bf16.msra.mxu0 0
      %7317 = vmatprep.subr.bf16.mxu0 0
      %7318 = vmatpush1.bf16.msra.mxu0 0
      %7319 = vmatprep.subr.bf16.mxu0 0
      %7320 = vmatpush1.bf16.msra.mxu0 0
      %7321 = vmatprep.subr.bf16.mxu0 0
      %7322 = vmatpush1.bf16.msra.mxu0 0
      %7323 = vmatprep.subr.bf16.mxu0 0
      %7324 = vmatpush1.bf16.msra.mxu0 0
      %7325 = vmatprep.subr.bf16.mxu0 0
      %7326 = vmatpush1.bf16.msra.mxu0 0
      %7327 = vmatprep.mubr.bf16.mxu0 0
      %7328 = vmatmul.mubr.bf16.gmra.mrb[0].mxu0 %v7293
      %v7329 = vpop.f32.mrb[0].mxu0
      %v7330 = vadd.f32 0.0, %v7329
      %v7331 = vpop.f32.mrb[0].mxu0
      %v7332 = vpop.f32.mrb[0].mxu0
      %v7333 = vpop.f32.mrb[0].mxu0
      %7334 = vdwg.mxu0
      %v7335 = vadd.f32 %v7212, %v7330
      %s7336 = scalar_lea.vmem %s16, 10
      %v7337 = vld [vmem:[%s7336] sm:$0x3]
      %v7339 = vsel %vm3933, %v7337, 0
      %7341 = vmatprep.subr.bf16.mxu0 0
      %7342 = vmatpush1.bf16.msra.mxu0 %v6724
      %7343 = vmatprep.subr.bf16.mxu0 0
      %7344 = vmatpush1.bf16.msra.mxu0 0
      %7345 = vmatprep.subr.bf16.mxu0 0
      %7346 = vmatpush1.bf16.msra.mxu0 0
      %7347 = vmatprep.subr.bf16.mxu0 0
      %7348 = vmatpush1.bf16.msra.mxu0 0
      %7349 = vmatprep.subr.bf16.mxu0 0
      %7350 = vmatpush1.bf16.msra.mxu0 0
      %7351 = vmatprep.subr.bf16.mxu0 0
      %7352 = vmatpush1.bf16.msra.mxu0 0
      %7353 = vmatprep.subr.bf16.mxu0 0
      %7354 = vmatpush1.bf16.msra.mxu0 0
      %7355 = vmatprep.subr.bf16.mxu0 0
      %7356 = vmatpush1.bf16.msra.mxu0 0
      %7357 = vmatprep.subr.bf16.mxu0 0
      %7358 = vmatpush1.bf16.msra.mxu0 0
      %7359 = vmatprep.subr.bf16.mxu0 0
      %7360 = vmatpush1.bf16.msra.mxu0 0
      %7361 = vmatprep.subr.bf16.mxu0 0
      %7362 = vmatpush1.bf16.msra.mxu0 0
      %7363 = vmatprep.subr.bf16.mxu0 0
      %7364 = vmatpush1.bf16.msra.mxu0 0
      %7365 = vmatprep.subr.bf16.mxu0 0
      %7366 = vmatpush1.bf16.msra.mxu0 0
      %7367 = vmatprep.subr.bf16.mxu0 0
      %7368 = vmatpush1.bf16.msra.mxu0 0
      %7369 = vmatprep.subr.bf16.mxu0 0
      %7370 = vmatpush1.bf16.msra.mxu0 0
      %7371 = vmatprep.subr.bf16.mxu0 0
      %7372 = vmatpush1.bf16.msra.mxu0 0
      %7373 = vmatprep.mubr.bf16.mxu0 0
      %7374 = vmatmul.mubr.bf16.gmra.mrb[0].mxu0 %v7339
      %v7375 = vpop.f32.mrb[0].mxu0
      %v7376 = vadd.f32 0.0, %v7375
      %v7377 = vpop.f32.mrb[0].mxu0
      %v7378 = vpop.f32.mrb[0].mxu0
      %v7379 = vpop.f32.mrb[0].mxu0
      %7380 = vdwg.mxu0
      %v7381 = vpack.c.bf16 %v7376, %v7376
      %s7382 = scalar_lea.vmem %s17, 160
      %v7383 = vld [vmem:[%s7382] sm:$0xf]
      %v7384 = vld [vmem:[%s7382 + $0x4] sm:$0xf]
      %v7385 = vld [vmem:[%s7382 + $0x8] sm:$0xf]
      %v7386 = vld [vmem:[%s7382 + $0xc] sm:$0xf]
      %v7387 = vld [vmem:[%s7382 + $0x10] sm:$0xf]
      %v7388 = vld [vmem:[%s7382 + $0x14] sm:$0xf]
      %v7389 = vld [vmem:[%s7382 + $0x18] sm:$0xf]
      %v7390 = vld [vmem:[%s7382 + $0x1c] sm:$0xf]
      %v7399 = vunpack.c.l.b16 %v7383
      %v7400 = vunpack.c.l.b16 %v7384
      %v7401 = vunpack.c.l.b16 %v7385
      %v7402 = vunpack.c.l.b16 %v7386
      %v7403 = vunpack.c.l.b16 %v7387
      %v7404 = vunpack.c.l.b16 %v7388
      %v7405 = vunpack.c.l.b16 %v7389
      %v7406 = vunpack.c.l.b16 %v7390
      %v7407 = vpack.c.b16 %v7400, %v7399
      %v7408 = vpack.c.b16 %v7402, %v7401
      %v7409 = vpack.c.b16 %v7404, %v7403
      %v7410 = vpack.c.b16 %v7406, %v7405
      %v7416 = vsel %vm5658, %v7381, 0
      %7418 = vmatprep.subr.bf16.mxu0 0
      %7419 = vmatpush1.bf16.msra.mxu0 %v7407
      %7420 = vmatprep.subr.bf16.mxu0 0
      %7421 = vmatpush1.bf16.msra.mxu0 %v7408
      %7422 = vmatprep.subr.bf16.mxu0 0
      %7423 = vmatpush1.bf16.msra.mxu0 %v7409
      %7424 = vmatprep.subr.bf16.mxu0 0
      %7425 = vmatpush1.bf16.msra.mxu0 %v7410
      %7426 = vmatprep.subr.bf16.mxu0 0
      %7427 = vmatpush1.bf16.msra.mxu0 0
      %7428 = vmatprep.subr.bf16.mxu0 0
      %7429 = vmatpush1.bf16.msra.mxu0 0
      %7430 = vmatprep.subr.bf16.mxu0 0
      %7431 = vmatpush1.bf16.msra.mxu0 0
      %7432 = vmatprep.subr.bf16.mxu0 0
      %7433 = vmatpush1.bf16.msra.mxu0 0
      %7434 = vmatprep.subr.bf16.mxu0 0
      %7435 = vmatpush1.bf16.msra.mxu0 0
      %7436 = vmatprep.subr.bf16.mxu0 0
      %7437 = vmatpush1.bf16.msra.mxu0 0
      %7438 = vmatprep.subr.bf16.mxu0 0
      %7439 = vmatpush1.bf16.msra.mxu0 0
      %7440 = vmatprep.subr.bf16.mxu0 0
      %7441 = vmatpush1.bf16.msra.mxu0 0
      %7442 = vmatprep.subr.bf16.mxu0 0
      %7443 = vmatpush1.bf16.msra.mxu0 0
      %7444 = vmatprep.subr.bf16.mxu0 0
      %7445 = vmatpush1.bf16.msra.mxu0 0
      %7446 = vmatprep.subr.bf16.mxu0 0
      %7447 = vmatpush1.bf16.msra.mxu0 0
      %7448 = vmatprep.subr.bf16.mxu0 0
      %7449 = vmatpush1.bf16.msra.mxu0 0
      %7450 = vmatprep.mubr.bf16.mxu0 0
      %7451 = vmatmul.mubr.bf16.gmra.mrb[0].mxu0 %v7416
      %v7452 = vpop.f32.mrb[0].mxu0
      %v7453 = vadd.f32 0.0, %v7452
      %v7454 = vpop.f32.mrb[0].mxu0
      %v7455 = vpop.f32.mrb[0].mxu0
      %v7456 = vpop.f32.mrb[0].mxu0
      %7457 = vdwg.mxu0
      %v7458 = vadd.f32 %v7335, %v7453
      %s7459 = scalar_lea.vmem %s16, 12
      %v7460 = vld [vmem:[%s7459] sm:$0x3]
      %v7462 = vsel %vm3933, %v7460, 0
      %7464 = vmatprep.subr.bf16.mxu0 0
      %7465 = vmatpush1.bf16.msra.mxu0 %v6724
      %7466 = vmatprep.subr.bf16.mxu0 0
      %7467 = vmatpush1.bf16.msra.mxu0 0
      %7468 = vmatprep.subr.bf16.mxu0 0
      %7469 = vmatpush1.bf16.msra.mxu0 0
      %7470 = vmatprep.subr.bf16.mxu0 0
      %7471 = vmatpush1.bf16.msra.mxu0 0
      %7472 = vmatprep.subr.bf16.mxu0 0
      %7473 = vmatpush1.bf16.msra.mxu0 0
      %7474 = vmatprep.subr.bf16.mxu0 0
      %7475 = vmatpush1.bf16.msra.mxu0 0
      %7476 = vmatprep.subr.bf16.mxu0 0
      %7477 = vmatpush1.bf16.msra.mxu0 0
      %7478 = vmatprep.subr.bf16.mxu0 0
      %7479 = vmatpush1.bf16.msra.mxu0 0
      %7480 = vmatprep.subr.bf16.mxu0 0
      %7481 = vmatpush1.bf16.msra.mxu0 0
      %7482 = vmatprep.subr.bf16.mxu0 0
      %7483 = vmatpush1.bf16.msra.mxu0 0
      %7484 = vmatprep.subr.bf16.mxu0 0
      %7485 = vmatpush1.bf16.msra.mxu0 0
      %7486 = vmatprep.subr.bf16.mxu0 0
      %7487 = vmatpush1.bf16.msra.mxu0 0
      %7488 = vmatprep.subr.bf16.mxu0 0
      %7489 = vmatpush1.bf16.msra.mxu0 0
      %7490 = vmatprep.subr.bf16.mxu0 0
      %7491 = vmatpush1.bf16.msra.mxu0 0
      %7492 = vmatprep.subr.bf16.mxu0 0
      %7493 = vmatpush1.bf16.msra.mxu0 0
      %7494 = vmatprep.subr.bf16.mxu0 0
      %7495 = vmatpush1.bf16.msra.mxu0 0
      %7496 = vmatprep.mubr.bf16.mxu0 0
      %7497 = vmatmul.mubr.bf16.gmra.mrb[0].mxu0 %v7462
      %v7498 = vpop.f32.mrb[0].mxu0
      %v7499 = vadd.f32 0.0, %v7498
      %v7500 = vpop.f32.mrb[0].mxu0
      %v7501 = vpop.f32.mrb[0].mxu0
      %v7502 = vpop.f32.mrb[0].mxu0
      %7503 = vdwg.mxu0
      %v7504 = vpack.c.bf16 %v7499, %v7499
      %s7505 = scalar_lea.vmem %s17, 192
      %v7506 = vld [vmem:[%s7505] sm:$0xf]
      %v7507 = vld [vmem:[%s7505 + $0x4] sm:$0xf]
      %v7508 = vld [vmem:[%s7505 + $0x8] sm:$0xf]
      %v7509 = vld [vmem:[%s7505 + $0xc] sm:$0xf]
      %v7510 = vld [vmem:[%s7505 + $0x10] sm:$0xf]
      %v7511 = vld [vmem:[%s7505 + $0x14] sm:$0xf]
      %v7512 = vld [vmem:[%s7505 + $0x18] sm:$0xf]
      %v7513 = vld [vmem:[%s7505 + $0x1c] sm:$0xf]
      %v7522 = vunpack.c.l.b16 %v7506
      %v7523 = vunpack.c.l.b16 %v7507
      %v7524 = vunpack.c.l.b16 %v7508
      %v7525 = vunpack.c.l.b16 %v7509
      %v7526 = vunpack.c.l.b16 %v7510
      %v7527 = vunpack.c.l.b16 %v7511
      %v7528 = vunpack.c.l.b16 %v7512
      %v7529 = vunpack.c.l.b16 %v7513
      %v7530 = vpack.c.b16 %v7523, %v7522
      %v7531 = vpack.c.b16 %v7525, %v7524
      %v7532 = vpack.c.b16 %v7527, %v7526
      %v7533 = vpack.c.b16 %v7529, %v7528
      %v7539 = vsel %vm5658, %v7504, 0
      %7541 = vmatprep.subr.bf16.mxu0 0
      %7542 = vmatpush1.bf16.msra.mxu0 %v7530
      %7543 = vmatprep.subr.bf16.mxu0 0
      %7544 = vmatpush1.bf16.msra.mxu0 %v7531
      %7545 = vmatprep.subr.bf16.mxu0 0
      %7546 = vmatpush1.bf16.msra.mxu0 %v7532
      %7547 = vmatprep.subr.bf16.mxu0 0
      %7548 = vmatpush1.bf16.msra.mxu0 %v7533
      %7549 = vmatprep.subr.bf16.mxu0 0
      %7550 = vmatpush1.bf16.msra.mxu0 0
      %7551 = vmatprep.subr.bf16.mxu0 0
      %7552 = vmatpush1.bf16.msra.mxu0 0
      %7553 = vmatprep.subr.bf16.mxu0 0
      %7554 = vmatpush1.bf16.msra.mxu0 0
      %7555 = vmatprep.subr.bf16.mxu0 0
      %7556 = vmatpush1.bf16.msra.mxu0 0
      %7557 = vmatprep.subr.bf16.mxu0 0
      %7558 = vmatpush1.bf16.msra.mxu0 0
      %7559 = vmatprep.subr.bf16.mxu0 0
      %7560 = vmatpush1.bf16.msra.mxu0 0
      %7561 = vmatprep.subr.bf16.mxu0 0
      %7562 = vmatpush1.bf16.msra.mxu0 0
      %7563 = vmatprep.subr.bf16.mxu0 0
      %7564 = vmatpush1.bf16.msra.mxu0 0
      %7565 = vmatprep.subr.bf16.mxu0 0
      %7566 = vmatpush1.bf16.msra.mxu0 0
      %7567 = vmatprep.subr.bf16.mxu0 0
      %7568 = vmatpush1.bf16.msra.mxu0 0
      %7569 = vmatprep.subr.bf16.mxu0 0
      %7570 = vmatpush1.bf16.msra.mxu0 0
      %7571 = vmatprep.subr.bf16.mxu0 0
      %7572 = vmatpush1.bf16.msra.mxu0 0
      %7573 = vmatprep.mubr.bf16.mxu0 0
      %7574 = vmatmul.mubr.bf16.gmra.mrb[0].mxu0 %v7539
      %v7575 = vpop.f32.mrb[0].mxu0
      %v7576 = vadd.f32 0.0, %v7575
      %v7577 = vpop.f32.mrb[0].mxu0
      %v7578 = vpop.f32.mrb[0].mxu0
      %v7579 = vpop.f32.mrb[0].mxu0
      %7580 = vdwg.mxu0
      %v7581 = vadd.f32 %v7458, %v7576
      %s7582 = scalar_lea.vmem %s16, 14
      %v7583 = vld [vmem:[%s7582] sm:$0x3]
      %v7585 = vsel %vm3933, %v7583, 0
      %7587 = vmatprep.subr.bf16.mxu0 0
      %7588 = vmatpush1.bf16.msra.mxu0 %v6724
      %7589 = vmatprep.subr.bf16.mxu0 0
      %7590 = vmatpush1.bf16.msra.mxu0 0
      %7591 = vmatprep.subr.bf16.mxu0 0
      %7592 = vmatpush1.bf16.msra.mxu0 0
      %7593 = vmatprep.subr.bf16.mxu0 0
      %7594 = vmatpush1.bf16.msra.mxu0 0
      %7595 = vmatprep.subr.bf16.mxu0 0
      %7596 = vmatpush1.bf16.msra.mxu0 0
      %7597 = vmatprep.subr.bf16.mxu0 0
      %7598 = vmatpush1.bf16.msra.mxu0 0
      %7599 = vmatprep.subr.bf16.mxu0 0
      %7600 = vmatpush1.bf16.msra.mxu0 0
      %7601 = vmatprep.subr.bf16.mxu0 0
      %7602 = vmatpush1.bf16.msra.mxu0 0
      %7603 = vmatprep.subr.bf16.mxu0 0
      %7604 = vmatpush1.bf16.msra.mxu0 0
      %7605 = vmatprep.subr.bf16.mxu0 0
      %7606 = vmatpush1.bf16.msra.mxu0 0
      %7607 = vmatprep.subr.bf16.mxu0 0
      %7608 = vmatpush1.bf16.msra.mxu0 0
      %7609 = vmatprep.subr.bf16.mxu0 0
      %7610 = vmatpush1.bf16.msra.mxu0 0
      %7611 = vmatprep.subr.bf16.mxu0 0
      %7612 = vmatpush1.bf16.msra.mxu0 0
      %7613 = vmatprep.subr.bf16.mxu0 0
      %7614 = vmatpush1.bf16.msra.mxu0 0
      %7615 = vmatprep.subr.bf16.mxu0 0
      %7616 = vmatpush1.bf16.msra.mxu0 0
      %7617 = vmatprep.subr.bf16.mxu0 0
      %7618 = vmatpush1.bf16.msra.mxu0 0
      %7619 = vmatprep.mubr.bf16.mxu0 0
      %7620 = vmatmul.mubr.bf16.gmra.mrb[0].mxu0 %v7585
      %v7621 = vpop.f32.mrb[0].mxu0
      %v7622 = vadd.f32 0.0, %v7621
      %v7623 = vpop.f32.mrb[0].mxu0
      %v7624 = vpop.f32.mrb[0].mxu0
      %v7625 = vpop.f32.mrb[0].mxu0
      %7626 = vdwg.mxu0
      %v7627 = vpack.c.bf16 %v7622, %v7622
      %s7628 = scalar_lea.vmem %s17, 224
      %v7629 = vld [vmem:[%s7628] sm:$0xf]
      %v7630 = vld [vmem:[%s7628 + $0x4] sm:$0xf]
      %v7631 = vld [vmem:[%s7628 + $0x8] sm:$0xf]
      %v7632 = vld [vmem:[%s7628 + $0xc] sm:$0xf]
      %v7633 = vld [vmem:[%s7628 + $0x10] sm:$0xf]
      %v7634 = vld [vmem:[%s7628 + $0x14] sm:$0xf]
      %v7635 = vld [vmem:[%s7628 + $0x18] sm:$0xf]
      %v7636 = vld [vmem:[%s7628 + $0x1c] sm:$0xf]
      %v7645 = vunpack.c.l.b16 %v7629
      %v7646 = vunpack.c.l.b16 %v7630
      %v7647 = vunpack.c.l.b16 %v7631
      %v7648 = vunpack.c.l.b16 %v7632
      %v7649 = vunpack.c.l.b16 %v7633
      %v7650 = vunpack.c.l.b16 %v7634
      %v7651 = vunpack.c.l.b16 %v7635
      %v7652 = vunpack.c.l.b16 %v7636
      %v7653 = vpack.c.b16 %v7646, %v7645
      %v7654 = vpack.c.b16 %v7648, %v7647
      %v7655 = vpack.c.b16 %v7650, %v7649
      %v7656 = vpack.c.b16 %v7652, %v7651
      %v7662 = vsel %vm5658, %v7627, 0
      %7664 = vmatprep.subr.bf16.mxu0 0
      %7665 = vmatpush1.bf16.msra.mxu0 %v7653
      %7666 = vmatprep.subr.bf16.mxu0 0
      %7667 = vmatpush1.bf16.msra.mxu0 %v7654
      %7668 = vmatprep.subr.bf16.mxu0 0
      %7669 = vmatpush1.bf16.msra.mxu0 %v7655
      %7670 = vmatprep.subr.bf16.mxu0 0
      %7671 = vmatpush1.bf16.msra.mxu0 %v7656
      %7672 = vmatprep.subr.bf16.mxu0 0
      %7673 = vmatpush1.bf16.msra.mxu0 0
      %7674 = vmatprep.subr.bf16.mxu0 0
      %7675 = vmatpush1.bf16.msra.mxu0 0
      %7676 = vmatprep.subr.bf16.mxu0 0
      %7677 = vmatpush1.bf16.msra.mxu0 0
      %7678 = vmatprep.subr.bf16.mxu0 0
      %7679 = vmatpush1.bf16.msra.mxu0 0
      %7680 = vmatprep.subr.bf16.mxu0 0
      %7681 = vmatpush1.bf16.msra.mxu0 0
      %7682 = vmatprep.subr.bf16.mxu0 0
      %7683 = vmatpush1.bf16.msra.mxu0 0
      %7684 = vmatprep.subr.bf16.mxu0 0
      %7685 = vmatpush1.bf16.msra.mxu0 0
      %7686 = vmatprep.subr.bf16.mxu0 0
      %7687 = vmatpush1.bf16.msra.mxu0 0
      %7688 = vmatprep.subr.bf16.mxu0 0
      %7689 = vmatpush1.bf16.msra.mxu0 0
      %7690 = vmatprep.subr.bf16.mxu0 0
      %7691 = vmatpush1.bf16.msra.mxu0 0
      %7692 = vmatprep.subr.bf16.mxu0 0
      %7693 = vmatpush1.bf16.msra.mxu0 0
      %7694 = vmatprep.subr.bf16.mxu0 0
      %7695 = vmatpush1.bf16.msra.mxu0 0
      %7696 = vmatprep.mubr.bf16.mxu0 0
      %7697 = vmatmul.mubr.bf16.gmra.mrb[0].mxu0 %v7662
      %v7698 = vpop.f32.mrb[0].mxu0
      %v7699 = vadd.f32 0.0, %v7698
      %v7700 = vpop.f32.mrb[0].mxu0
      %v7701 = vpop.f32.mrb[0].mxu0
      %v7702 = vpop.f32.mrb[0].mxu0
      %7703 = vdwg.mxu0
      %v7704 = vadd.f32 %v7581, %v7699
      %s7705 = scalar_lea.vmem %s16, 16
      %v7706 = vld [vmem:[%s7705] sm:$0x3]
      %v7708 = vsel %vm3933, %v7706, 0
      %7710 = vmatprep.subr.bf16.mxu0 0
      %7711 = vmatpush1.bf16.msra.mxu0 %v6724
      %7712 = vmatprep.subr.bf16.mxu0 0
      %7713 = vmatpush1.bf16.msra.mxu0 0
      %7714 = vmatprep.subr.bf16.mxu0 0
      %7715 = vmatpush1.bf16.msra.mxu0 0
      %7716 = vmatprep.subr.bf16.mxu0 0
      %7717 = vmatpush1.bf16.msra.mxu0 0
      %7718 = vmatprep.subr.bf16.mxu0 0
      %7719 = vmatpush1.bf16.msra.mxu0 0
      %7720 = vmatprep.subr.bf16.mxu0 0
      %7721 = vmatpush1.bf16.msra.mxu0 0
      %7722 = vmatprep.subr.bf16.mxu0 0
      %7723 = vmatpush1.bf16.msra.mxu0 0
      %7724 = vmatprep.subr.bf16.mxu0 0
      %7725 = vmatpush1.bf16.msra.mxu0 0
      %7726 = vmatprep.subr.bf16.mxu0 0
      %7727 = vmatpush1.bf16.msra.mxu0 0
      %7728 = vmatprep.subr.bf16.mxu0 0
      %7729 = vmatpush1.bf16.msra.mxu0 0
      %7730 = vmatprep.subr.bf16.mxu0 0
      %7731 = vmatpush1.bf16.msra.mxu0 0
      %7732 = vmatprep.subr.bf16.mxu0 0
      %7733 = vmatpush1.bf16.msra.mxu0 0
      %7734 = vmatprep.subr.bf16.mxu0 0
      %7735 = vmatpush1.bf16.msra.mxu0 0
      %7736 = vmatprep.subr.bf16.mxu0 0
      %7737 = vmatpush1.bf16.msra.mxu0 0
      %7738 = vmatprep.subr.bf16.mxu0 0
      %7739 = vmatpush1.bf16.msra.mxu0 0
      %7740 = vmatprep.subr.bf16.mxu0 0
      %7741 = vmatpush1.bf16.msra.mxu0 0
      %7742 = vmatprep.mubr.bf16.mxu0 0
      %7743 = vmatmul.mubr.bf16.gmra.mrb[0].mxu0 %v7708
      %v7744 = vpop.f32.mrb[0].mxu0
      %v7745 = vadd.f32 0.0, %v7744
      %v7746 = vpop.f32.mrb[0].mxu0
      %v7747 = vpop.f32.mrb[0].mxu0
      %v7748 = vpop.f32.mrb[0].mxu0
      %7749 = vdwg.mxu0
      %v7750 = vpack.c.bf16 %v7745, %v7745
      %s7751 = scalar_lea.vmem %s17, 256
      %v7752 = vld [vmem:[%s7751] sm:$0xf]
      %v7753 = vld [vmem:[%s7751 + $0x4] sm:$0xf]
      %v7754 = vld [vmem:[%s7751 + $0x8] sm:$0xf]
      %v7755 = vld [vmem:[%s7751 + $0xc] sm:$0xf]
      %v7756 = vld [vmem:[%s7751 + $0x10] sm:$0xf]
      %v7757 = vld [vmem:[%s7751 + $0x14] sm:$0xf]
      %v7758 = vld [vmem:[%s7751 + $0x18] sm:$0xf]
      %v7759 = vld [vmem:[%s7751 + $0x1c] sm:$0xf]
      %v7768 = vunpack.c.l.b16 %v7752
      %v7769 = vunpack.c.l.b16 %v7753
      %v7770 = vunpack.c.l.b16 %v7754
      %v7771 = vunpack.c.l.b16 %v7755
      %v7772 = vunpack.c.l.b16 %v7756
      %v7773 = vunpack.c.l.b16 %v7757
      %v7774 = vunpack.c.l.b16 %v7758
      %v7775 = vunpack.c.l.b16 %v7759
      %v7776 = vpack.c.b16 %v7769, %v7768
      %v7777 = vpack.c.b16 %v7771, %v7770
      %v7778 = vpack.c.b16 %v7773, %v7772
      %v7779 = vpack.c.b16 %v7775, %v7774
      %v7785 = vsel %vm5658, %v7750, 0
      %7787 = vmatprep.subr.bf16.mxu0 0
      %7788 = vmatpush1.bf16.msra.mxu0 %v7776
      %7789 = vmatprep.subr.bf16.mxu0 0
      %7790 = vmatpush1.bf16.msra.mxu0 %v7777
      %7791 = vmatprep.subr.bf16.mxu0 0
      %7792 = vmatpush1.bf16.msra.mxu0 %v7778
      %7793 = vmatprep.subr.bf16.mxu0 0
      %7794 = vmatpush1.bf16.msra.mxu0 %v7779
      %7795 = vmatprep.subr.bf16.mxu0 0
      %7796 = vmatpush1.bf16.msra.mxu0 0
      %7797 = vmatprep.subr.bf16.mxu0 0
      %7798 = vmatpush1.bf16.msra.mxu0 0
      %7799 = vmatprep.subr.bf16.mxu0 0
      %7800 = vmatpush1.bf16.msra.mxu0 0
      %7801 = vmatprep.subr.bf16.mxu0 0
      %7802 = vmatpush1.bf16.msra.mxu0 0
      %7803 = vmatprep.subr.bf16.mxu0 0
      %7804 = vmatpush1.bf16.msra.mxu0 0
      %7805 = vmatprep.subr.bf16.mxu0 0
      %7806 = vmatpush1.bf16.msra.mxu0 0
      %7807 = vmatprep.subr.bf16.mxu0 0
      %7808 = vmatpush1.bf16.msra.mxu0 0
      %7809 = vmatprep.subr.bf16.mxu0 0
      %7810 = vmatpush1.bf16.msra.mxu0 0
      %7811 = vmatprep.subr.bf16.mxu0 0
      %7812 = vmatpush1.bf16.msra.mxu0 0
      %7813 = vmatprep.subr.bf16.mxu0 0
      %7814 = vmatpush1.bf16.msra.mxu0 0
      %7815 = vmatprep.subr.bf16.mxu0 0
      %7816 = vmatpush1.bf16.msra.mxu0 0
      %7817 = vmatprep.subr.bf16.mxu0 0
      %7818 = vmatpush1.bf16.msra.mxu0 0
      %7819 = vmatprep.mubr.bf16.mxu0 0
      %7820 = vmatmul.mubr.bf16.gmra.mrb[0].mxu0 %v7785
      %v7821 = vpop.f32.mrb[0].mxu0
      %v7822 = vadd.f32 0.0, %v7821
      %v7823 = vpop.f32.mrb[0].mxu0
      %v7824 = vpop.f32.mrb[0].mxu0
      %v7825 = vpop.f32.mrb[0].mxu0
      %7826 = vdwg.mxu0
      %v7827 = vadd.f32 %v7704, %v7822
      %v7828 = vld [vmem:[%s18] sm:$0x1]
      %v7830 = vlaneseq
      %v7831 = vshrl.u32 %v7830, 7
      %v7832 = vsub.s32 0, %v7831
      %v7833 = vrot.slane %v7828, %v7832
      %v7835 = vadd.f32 %v7827, %v7833
      %vm7836 = vcmp.gt.f32.partialorder %v7835, 0.0
      %v7837 = vmul.f32 %v7835, 0.2
      %v7838 = vsel %vm7836, %v7835, %v7837
      %v7839 = vld [vmem:[%s19] sm:$0x1]
      %v7841 = vlaneseq
      %v7842 = vshrl.u32 %v7841, 7
      %v7843 = vsub.s32 0, %v7842
      %v7844 = vrot.slane %v7839, %v7843
      %v7846 = vmul.f32 %v7838, %v7844
      %v7847 = vld [vmem:[%s20] sm:$0x1]
      %v7849 = vlaneseq
      %v7850 = vshrl.u32 %v7849, 7
      %v7851 = vsub.s32 0, %v7850
      %v7852 = vrot.slane %v7847, %v7851
      %v7854 = vadd.f32 %v7846, %v7852
      %v7855 = vld [vmem:[%s21] sm:$0xf]
      %v7856 = vmul.f32 %v7854, %v7855
      %vm7857 = vcmask 1043456
      %v7858 = vsel %vm7857, %v7856, 0.0
      %7859 = vadd.xlane.f32.xlu0 %v7858
      %v7860 = vpop.xlane.xlu0 %7859
      %v7861 = vsel %vm7857, %v7860, 0.0
      %v7862 = vrot.slane %v7861, 4
      %v7863 = vadd.f32 %v7861, %v7862
      %v7864 = vrot.slane %v7863, 2
      %v7865 = vadd.f32 %v7863, %v7864
      %v7866 = vrot.slane %v7865, 1
      %v7867 = vadd.f32 %v7865, %v7866
      %v7868 = vld [vmem:[#allocation2] sm:$0x1]
      %v7869 = vadd.f32 %v7867, %v7868
      %v7870 = vsub.f32 0.0, %v7869
      %v7871 = vmul.f32 %v7870, 1.442695
      %v7872 = vpow.pop %v7871
      %v7873 = vadd.f32 %v7872, 1.0
      %v7874 = vrcp.pop %v7873
      %vm7875 = vcmask 0
      %7876 = vst.msk [vmem:[%s708] sm:$0x1] %vm7875, %v7874
      %p7877 = scmp.lt.s32.totalorder %s36, 3
      %s7878 = scalar_select %p7877, %s36, 3
      %s7879 = scalar_lea.vmem %s23, %s7878
      // Predicated region
      $region113: #{dnet_forward.1} parent=111 // pred_check
        %p7880 = pneg %p542
      $region114: #{dnet_forward.1} parent=111 // pred_check_branch
        %7882 = sbr.rel (%p7880) target = $region116
      $region115: #{dnet_forward.1} parent=111 // pred_region
        _
      $region116: #{dnet_forward.1} parent=111 // pred_fallthru
        _
    $region112: #{dnet_forward.1} parent=5 // pred_fallthru
      _
    %p7883 = scmp.le.s32.totalorder 2, %s31
    // Predicated region
    $region117: #{dnet_forward.1} parent=5 // pred_check
      %p7884 = pneg %p7883
    $region118: #{dnet_forward.1} parent=5 // pred_check_branch
      %7886 = sbr.rel (%p7884) target = $region120
    $region119: #{dnet_forward.1} parent=5 // pred_region
      %s7887 = ssub.s32 %s31, 2
      // Predicated region
      $region121: #{dnet_forward.1} parent=119 // pred_check
        %p7888 = pneg %p548
      $region122: #{dnet_forward.1} parent=119 // pred_check_branch
        %7890 = sbr.rel (%p7888) target = $region124
      $region123: #{dnet_forward.1} parent=119 // pred_region
        %p7891 = scmp.lt.s32.totalorder %s37, 3
        %s7892 = scalar_select %p7891, %s37, 3
        %s7893 = scalar_lea.vmem %s23, %s7892
      $region124: #{dnet_forward.1} parent=119 // pred_fallthru
        _
    $region120: #{dnet_forward.1} parent=5 // pred_fallthru
      _
  $region6: #{dnet_forward.1} parent=0 // loop_footer
    %s35 = sadd.s32 1, %s31
  $region7: #{dnet_forward.1} parent=0 // loop_footer_branch
    %30 = sbr.rel target = $region3
  $region8: #{dnet_forward.1} parent=0 // loop_exit
    _

</llo_original>
